<compile_context>
chip_gen: v5e
topology: v5e:2x2
jax: 0.10.0
libtpu: 0.0.40
codegen_flags: <defaults>
</compile_context>

<pallas_src>
import functools

import jax
import jax.numpy as jnp
from jax.experimental import pallas as pl
from jax.experimental.pallas import tpu as pltpu


HEAD_PAD = 128  # lane-dense head output; sliced back to num_classes in the wrapper


# ---------------------------------------------------------------------------
# helpers
# ---------------------------------------------------------------------------
def _layernorm(x, g, b, eps):
    mu = jnp.mean(x, axis=-1, keepdims=True)
    var = jnp.mean((x - mu) ** 2, axis=-1, keepdims=True)
    return (x - mu) * jax.lax.rsqrt(var + eps) * g + b


def _full_spec(shape):
    # whole-array block, identical block index for every grid step
    # -> weights stay VMEM-resident, no re-DMA between grid iterations
    return pl.BlockSpec(shape, lambda g, _r=len(shape): (0,) * _r)


# ---------------------------------------------------------------------------
# the single fused kernel (one grid step = Bt images)
# ---------------------------------------------------------------------------
def fused_vit_kernel(
    p_ref, pos_ref, pool_ref,             # (1, Bt*S, P) patches, (Bt*S, D) pos, (Bt, Bt*S) mean-pool matrix
    wpe_ref, bpe_ref,                     # patch embedding (P, D) bf16, (1, D) f32
    ln1g_ref, ln1b_ref,                   # (depth, 1, D)
    wqkv_ref, bqkv_ref,                   # (depth, D, 3D) bf16, (depth, 1, 3D)
    wpr_ref, bpr_ref,                     # (depth, D, D) bf16, (depth, 1, D)
    ln2g_ref, ln2b_ref,                   # (depth, 1, D)
    wfc1_ref, bfc1_ref,                   # (depth, D, H) bf16, (depth, 1, H)
    wfc2_ref, bfc2_ref,                   # (depth, H, D) bf16, (depth, 1, D)
    vng_ref, vnb_ref,                     # final ViT LayerNorm
    hng_ref, hnb_ref,                     # head LayerNorm
    hw_ref, hb_ref,                       # (D, HEAD_PAD) bf16, (1, HEAD_PAD)
    o_ref,                                # (1, Bt, HEAD_PAD)
    ctx_ref,                              # VMEM scratch (Bt*S, D) f32 - attention context slab
    *, depth, num_heads, batch_tile, seq_len, eps,
):
    f32, bf16 = jnp.float32, jnp.bfloat16
    D = wpe_ref.shape[1]
    nh = num_heads
    hd = D // nh
    S = seq_len
    Bt = batch_tile

    # Patch embedding + positional embedding for the whole Bt-image slab in one
    # matmul. The cls token rides as the LAST token of each image: its "patch" row
    # is all-zeros and its pos row already holds cls_token + pos_emb[0] - patch_bias
    # (so the bias add cancels there). Token order does not change the output:
    # self-attention and mean pooling are permutation-invariant over tokens.
    x = jnp.dot(p_ref[0], wpe_ref[...], preferred_element_type=f32)   # (Bt*S, D)
    x = x + bpe_ref[...] + pos_ref[...]

    # Static unroll over depth (depth=2 here).
    # TODO(synk): at kornia's default depth=12, switch to lax.fori_loop over d
    # (dynamic ref indexing works) to bound program size / vreg live ranges.
    for d in range(depth):
        # ---- pre-norm multi-head self-attention + residual ----
        h1 = _layernorm(x, ln1g_ref[d], ln1b_ref[d], eps)
        qkv = (jnp.dot(h1.astype(bf16), wqkv_ref[d], preferred_element_type=f32)
               + bqkv_ref[d])                                          # (Bt*S, 3D)

        for b in range(Bt):                 # per image; heads batched inside
            r0, r1 = b * S, (b + 1) * S
            qkv_b = qkv[r0:r1, :]                                      # (S, 3D)
            # head-major stacks (nh, S, hd); 1/sqrt(hd) already folded into W_q
            q = jnp.concatenate(
                [qkv_b[:, h * hd:(h + 1) * hd][None] for h in range(nh)], axis=0)
            k = jnp.concatenate(
                [qkv_b[:, D + h * hd:D + (h + 1) * hd][None] for h in range(nh)], axis=0)
            v = jnp.concatenate(
                [qkv_b[:, 2 * D + h * hd:2 * D + (h + 1) * hd][None] for h in range(nh)],
                axis=0)
            s = jnp.einsum('hqd,hkd->hqk', q.astype(bf16), k.astype(bf16),
                           preferred_element_type=f32)                 # (nh, S, S)
            s = s - jnp.max(s, axis=-1, keepdims=True)
            p = jnp.exp(s)
            p = p / jnp.sum(p, axis=-1, keepdims=True)                 # exact softmax
            ctx = jnp.einsum('hqk,hkd->hqd', p.astype(bf16), v.astype(bf16),
                             preferred_element_type=f32)               # (nh, S, hd)
            for h in range(nh):             # assemble concat-heads context slab
                ctx_ref[r0:r1, h * hd:(h + 1) * hd] = ctx[h]

        # single merged output projection for all images & heads
        attn = (jnp.dot(ctx_ref[...].astype(bf16), wpr_ref[d],
                        preferred_element_type=f32) + bpr_ref[d])
        x = x + attn

        # ---- pre-norm MLP + residual ----
        h2 = _layernorm(x, ln2g_ref[d], ln2b_ref[d], eps)
        h2 = (jnp.dot(h2.astype(bf16), wfc1_ref[d], preferred_element_type=f32)
              + bfc1_ref[d])
        # TODO(synk): kornia uses exact-erf nn.GELU(); tanh approximation kept for
        # robust Mosaic lowering (max abs deviation ~3e-4).
        h2 = jax.nn.gelu(h2, approximate=True)
        h2 = (jnp.dot(h2.astype(bf16), wfc2_ref[d], preferred_element_type=f32)
              + bfc2_ref[d])
        x = x + h2

    # ---- final ViT norm -> per-image mean over tokens (one MXU matmul with a
    #      block-averaging matrix) -> head norm -> Linear (lane-padded to 128) ----
    x = _layernorm(x, vng_ref[...], vnb_ref[...], eps)
    m = jnp.dot(pool_ref[...], x, preferred_element_type=f32)          # (Bt, D)
    m = _layernorm(m, hng_ref[...], hnb_ref[...], eps)
    o_ref[0] = (jnp.dot(m.astype(bf16), hw_ref[...], preferred_element_type=f32)
                + hb_ref[...])


# ---------------------------------------------------------------------------
# parameters (deterministic synthetic init — no checkpoint loading)
# ---------------------------------------------------------------------------
def init_params(key, *, image_size, patch_size, in_channels, embed_dim,
                num_heads, depth, num_classes):
    ps = patch_size
    n_patch = (image_size // ps) ** 2
    p_dim = in_channels * ps * ps
    hd = embed_dim // num_heads
    mlp = embed_dim * 4

    def nrm(k, shape, scale=0.02):
        return (scale * jax.random.normal(k, shape)).astype(jnp.float32)

    keys = jax.random.split(key, 9)

    # Fused QKV weight, head-concatenated on the lane axis; the 1/sqrt(head_dim)
    # attention scale is folded into the Q third (b_qkv is zero so no bias fold needed).
    w_q = nrm(keys[3], (depth, embed_dim, embed_dim)) * (1.0 / hd ** 0.5)
    w_k = nrm(keys[4], (depth, embed_dim, embed_dim))
    w_v = nrm(keys[5], (depth, embed_dim, embed_dim))
    w_qkv = jnp.concatenate([w_q, w_k, w_v], axis=-1)                  # (depth, D, 3D)

    # lane-dense head: pad columns num_classes -> HEAD_PAD with zeros
    head_w = nrm(keys[8], (embed_dim, num_classes))
    head_w = jnp.pad(head_w, ((0, 0), (0, HEAD_PAD - num_classes)))

    bf16 = jnp.bfloat16
    return {
        # matmul weights stored in bf16 (MXU-native); everything elementwise stays f32
        "patch_w": nrm(keys[0], (p_dim, embed_dim)).astype(bf16),
        "patch_b": jnp.zeros((1, embed_dim), jnp.float32),
        "cls_token": nrm(keys[1], (1, 1, embed_dim)),
        "pos_emb": nrm(keys[2], (1, n_patch + 1, embed_dim)),
        "ln1_g": jnp.ones((depth, 1, embed_dim), jnp.float32),
        "ln1_b": jnp.zeros((depth, 1, embed_dim), jnp.float32),
        "w_qkv": w_qkv.astype(bf16),
        "b_qkv": jnp.zeros((depth, 1, 3 * embed_dim), jnp.float32),
        "w_proj": nrm(keys[6], (depth, embed_dim, embed_dim)).astype(bf16),
        "b_proj": jnp.zeros((depth, 1, embed_dim), jnp.float32),
        "ln2_g": jnp.ones((depth, 1, embed_dim), jnp.float32),
        "ln2_b": jnp.zeros((depth, 1, embed_dim), jnp.float32),
        "w_fc1": nrm(keys[7], (depth, embed_dim, mlp)).astype(bf16),
        "b_fc1": jnp.zeros((depth, 1, mlp), jnp.float32),
        "w_fc2": nrm(jax.random.fold_in(keys[7], 1), (depth, mlp, embed_dim)).astype(bf16),
        "b_fc2": jnp.zeros((depth, 1, embed_dim), jnp.float32),
        "vit_norm_g": jnp.ones((1, embed_dim), jnp.float32),
        "vit_norm_b": jnp.zeros((1, embed_dim), jnp.float32),
        "head_norm_g": jnp.ones((1, embed_dim), jnp.float32),
        "head_norm_b": jnp.zeros((1, embed_dim), jnp.float32),
        "head_w": head_w.astype(bf16),
        "head_b": jnp.zeros((1, HEAD_PAD), jnp.float32),
    }


# ---------------------------------------------------------------------------
# forward pass: one pallas_call for the entire network, Bt images per grid step
# ---------------------------------------------------------------------------
def chess_piece_predictor_forward(params, x, *, patch_size, num_heads, num_classes,
                                  batch_tile=None):
    B, C, Himg, Wimg = x.shape
    ps = patch_size
    gh, gw = Himg // ps, Wimg // ps
    N = gh * gw
    P = C * ps * ps
    D = params["patch_w"].shape[1]
    S = N + 1
    hd = D // num_heads
    depth = params["w_qkv"].shape[0]
    Hmlp = params["w_fc1"].shape[2]
    npad = params["head_w"].shape[1]

    if batch_tile is None:
        # grid of 2 keeps both v7x TensorCores busy; on v5e/v6e (single TC) two
        # steps still amortize the ~0.35us/step pipeline overhead vs grid=(B,).
        batch_tile = max(1, -(-B // 2))
    Bt = batch_tile
    G = -(-B // Bt)
    Bp = G * Bt

    # im2col for the stride==kernel patch conv (pure layout glue), plus one extra
    # all-zero row per image that becomes the cls-token slot (appended last).
    patches = (
        x.reshape(B, C, gh, ps, gw, ps)
        .transpose(0, 2, 4, 1, 3, 5)
        .reshape(B, N, P)
        .astype(jnp.float32)
    )
    patches = jnp.concatenate([patches, jnp.zeros((B, 1, P), jnp.float32)], axis=1)
    if Bp != B:  # pad batch to a multiple of the tile with zero images
        patches = jnp.concatenate(
            [patches, jnp.zeros((Bp - B, S, P), jnp.float32)], axis=0)
    # fold the batch tile into the row (sublane) axis; bf16 matmul operand
    patches = patches.reshape(G, Bt * S, P).astype(jnp.bfloat16)

    # positional table: rows 0..N-1 = pos_emb of the patch tokens, row N = cls token
    # (+ its pos_emb, - patch bias so the in-kernel bias add cancels on the zero row);
    # tiled Bt times to match the (Bt*S, D) slab.
    cls_row = params["cls_token"][0] + params["pos_emb"][0, 0:1] - params["patch_b"]
    pos_full = jnp.concatenate([params["pos_emb"][0, 1:], cls_row], axis=0)    # (S, D)
    pos_tiled = jnp.tile(pos_full, (Bt, 1))                                    # (Bt*S, D)

    # block-averaging matrix: pooled[b] = mean over image b's S token rows (one MXU op)
    pool = jnp.kron(jnp.eye(Bt, dtype=jnp.float32),
                    jnp.full((1, S), 1.0 / S, jnp.float32))                    # (Bt, Bt*S)

    kernel = functools.partial(
        fused_vit_kernel, depth=depth, num_heads=num_heads,
        batch_tile=Bt, seq_len=S, eps=1e-5)   # PyTorch nn.LayerNorm default eps

    # advisory cost estimate for the surrounding XLA schedule
    T = Bt * S
    flops_layer = (2 * T * D * 3 * D + num_heads * Bt * 4 * S * S * hd
                   + 2 * T * D * D + 4 * T * D * Hmlp)
    flops = G * (2 * T * P * D + depth * flops_layer + 2 * Bt * T * D + 2 * Bt * D * npad)
    transcendentals = G * depth * (Bt * num_heads * S * S + T * Hmlp)
    param_bytes = sum(int(v.size) * v.dtype.itemsize for v in params.values())
    bytes_accessed = (int(patches.size) * 2 + int(pos_tiled.size) * 4
                      + int(pool.size) * 4 + param_bytes + Bp * npad * 4)

    logits_pad = pl.pallas_call(
        kernel,
        out_shape=jax.ShapeDtypeStruct((G, Bt, npad), jnp.float32),
        grid=(G,),
        in_specs=[
            pl.BlockSpec((1, Bt * S, P), lambda g: (g, 0, 0)),
            _full_spec((Bt * S, D)),
            _full_spec((Bt, Bt * S)),
            _full_spec((P, D)), _full_spec((1, D)),
            _full_spec((depth, 1, D)), _full_spec((depth, 1, D)),
            _full_spec((depth, D, 3 * D)), _full_spec((depth, 1, 3 * D)),
            _full_spec((depth, D, D)), _full_spec((depth, 1, D)),
            _full_spec((depth, 1, D)), _full_spec((depth, 1, D)),
            _full_spec((depth, D, Hmlp)), _full_spec((depth, 1, Hmlp)),
            _full_spec((depth, Hmlp, D)), _full_spec((depth, 1, D)),
            _full_spec((1, D)), _full_spec((1, D)),
            _full_spec((1, D)), _full_spec((1, D)),
            _full_spec((D, npad)), _full_spec((1, npad)),
        ],
        out_specs=pl.BlockSpec((1, Bt, npad), lambda g: (g, 0, 0)),
        scratch_shapes=[pltpu.VMEM((Bt * S, D), jnp.float32)],
        compiler_params=pltpu.CompilerParams(dimension_semantics=("parallel",)),
        cost_estimate=pl.CostEstimate(flops=int(flops),
                                      transcendentals=int(transcendentals),
                                      bytes_accessed=int(bytes_accessed)),
    )(
        patches, pos_tiled, pool,
        params["patch_w"], params["patch_b"],
        params["ln1_g"], params["ln1_b"],
        params["w_qkv"], params["b_qkv"],
        params["w_proj"], params["b_proj"],
        params["ln2_g"], params["ln2_b"],
        params["w_fc1"], params["b_fc1"],
        params["w_fc2"], params["b_fc2"],
        params["vit_norm_g"], params["vit_norm_b"],
        params["head_norm_g"], params["head_norm_b"],
        params["head_w"], params["head_b"],
    )
    return logits_pad.reshape(Bp, npad)[:B, :num_classes]


# ---------------------------------------------------------------------------
# main
# ---------------------------------------------------------------------------
if __name__ == "__main__":
    IMAGE_SIZE = 16
    PATCH_SIZE = 4
    IN_CHANNELS = 3
    EMBED_DIM = 32
    NUM_HEADS = 4
    DEPTH = 2          # kornia's VisionTransformer default depth is 12; 2 kept for small demo
    NUM_CLASSES = 13   # fixed by ClassificationHead(num_classes=13)
    BATCH = 8
    BATCH_TILE = 4     # -> grid=(2,): one step per v7x TensorCore; 2 steps on v5e/v6e

    key = jax.random.PRNGKey(0)
    pkey, xkey = jax.random.split(key)

    params = init_params(
        pkey,
        image_size=IMAGE_SIZE, patch_size=PATCH_SIZE, in_channels=IN_CHANNELS,
        embed_dim=EMBED_DIM, num_heads=NUM_HEADS, depth=DEPTH,
        num_classes=NUM_CLASSES,
    )
    x = jax.random.normal(xkey, (BATCH, IN_CHANNELS, IMAGE_SIZE, IMAGE_SIZE), jnp.float32)

    fwd = jax.jit(
        functools.partial(
            chess_piece_predictor_forward,
            patch_size=PATCH_SIZE, num_heads=NUM_HEADS, num_classes=NUM_CLASSES,
            batch_tile=BATCH_TILE,
        )
    )
    out = fwd(params, x)
    jax.block_until_ready(out)
    assert out.shape == (BATCH, NUM_CLASSES) and out.dtype == jnp.float32
    assert bool(jnp.all(jnp.isfinite(out)))
    print("KERNEL_OK")
</pallas_src>

<mosaic_0001>
module attributes {stable_mosaic.version = 11 : i64} {
  func.func @fused_vit_kernel(%arg0: i32, %arg1: memref<1x68x48xbf16, #tpu.memory_space<vmem>>, %arg2: memref<68x32xf32, #tpu.memory_space<vmem>>, %arg3: memref<4x68xf32, #tpu.memory_space<vmem>>, %arg4: memref<48x32xbf16, #tpu.memory_space<vmem>>, %arg5: memref<1x32xf32, #tpu.memory_space<vmem>>, %arg6: memref<2x1x32xf32, #tpu.memory_space<vmem>>, %arg7: memref<2x1x32xf32, #tpu.memory_space<vmem>>, %arg8: memref<2x32x96xbf16, #tpu.memory_space<vmem>>, %arg9: memref<2x1x96xf32, #tpu.memory_space<vmem>>, %arg10: memref<2x32x32xbf16, #tpu.memory_space<vmem>>, %arg11: memref<2x1x32xf32, #tpu.memory_space<vmem>>, %arg12: memref<2x1x32xf32, #tpu.memory_space<vmem>>, %arg13: memref<2x1x32xf32, #tpu.memory_space<vmem>>, %arg14: memref<2x32x128xbf16, #tpu.memory_space<vmem>>, %arg15: memref<2x1x128xf32, #tpu.memory_space<vmem>>, %arg16: memref<2x128x32xbf16, #tpu.memory_space<vmem>>, %arg17: memref<2x1x32xf32, #tpu.memory_space<vmem>>, %arg18: memref<1x32xf32, #tpu.memory_space<vmem>>, %arg19: memref<1x32xf32, #tpu.memory_space<vmem>>, %arg20: memref<1x32xf32, #tpu.memory_space<vmem>>, %arg21: memref<1x32xf32, #tpu.memory_space<vmem>>, %arg22: memref<32x128xbf16, #tpu.memory_space<vmem>>, %arg23: memref<1x128xf32, #tpu.memory_space<vmem>>, %arg24: memref<1x4x128xf32, #tpu.memory_space<vmem>>, %arg25: memref<68x32xf32, #tpu.memory_space<vmem>>) attributes {dimension_semantics = [#tpu.dimension_semantics<parallel>], iteration_bounds = array<i64: 2>, scalar_prefetch = 0 : i64, scratch_operands = 1 : i64, tpu.core_type = #tpu.core_type<tc>, window_params = [{transform_indices = @transform_0, window_bounds = array<i64: 1, 68, 48>}, {pipeline_mode = #tpu.pipeline_mode<synchronous>, transform_indices = @transform_1, window_bounds = array<i64: 68, 32>}, {pipeline_mode = #tpu.pipeline_mode<synchronous>, transform_indices = @transform_2, window_bounds = array<i64: 4, 68>}, {pipeline_mode = #tpu.pipeline_mode<synchronous>, transform_indices = @transform_3, window_bounds = array<i64: 48, 32>}, {pipeline_mode = #tpu.pipeline_mode<synchronous>, transform_indices = @transform_4, window_bounds = array<i64: 1, 32>}, {pipeline_mode = #tpu.pipeline_mode<synchronous>, transform_indices = @transform_5, window_bounds = array<i64: 2, 1, 32>}, {pipeline_mode = #tpu.pipeline_mode<synchronous>, transform_indices = @transform_6, window_bounds = array<i64: 2, 1, 32>}, {pipeline_mode = #tpu.pipeline_mode<synchronous>, transform_indices = @transform_7, window_bounds = array<i64: 2, 32, 96>}, {pipeline_mode = #tpu.pipeline_mode<synchronous>, transform_indices = @transform_8, window_bounds = array<i64: 2, 1, 96>}, {pipeline_mode = #tpu.pipeline_mode<synchronous>, transform_indices = @transform_9, window_bounds = array<i64: 2, 32, 32>}, {pipeline_mode = #tpu.pipeline_mode<synchronous>, transform_indices = @transform_10, window_bounds = array<i64: 2, 1, 32>}, {pipeline_mode = #tpu.pipeline_mode<synchronous>, transform_indices = @transform_11, window_bounds = array<i64: 2, 1, 32>}, {pipeline_mode = #tpu.pipeline_mode<synchronous>, transform_indices = @transform_12, window_bounds = array<i64: 2, 1, 32>}, {pipeline_mode = #tpu.pipeline_mode<synchronous>, transform_indices = @transform_13, window_bounds = array<i64: 2, 32, 128>}, {pipeline_mode = #tpu.pipeline_mode<synchronous>, transform_indices = @transform_14, window_bounds = array<i64: 2, 1, 128>}, {pipeline_mode = #tpu.pipeline_mode<synchronous>, transform_indices = @transform_15, window_bounds = array<i64: 2, 128, 32>}, {pipeline_mode = #tpu.pipeline_mode<synchronous>, transform_indices = @transform_16, window_bounds = array<i64: 2, 1, 32>}, {pipeline_mode = #tpu.pipeline_mode<synchronous>, transform_indices = @transform_17, window_bounds = array<i64: 1, 32>}, {pipeline_mode = #tpu.pipeline_mode<synchronous>, transform_indices = @transform_18, window_bounds = array<i64: 1, 32>}, {pipeline_mode = #tpu.pipeline_mode<synchronous>, transform_indices = @transform_19, window_bounds = array<i64: 1, 32>}, {pipeline_mode = #tpu.pipeline_mode<synchronous>, transform_indices = @transform_20, window_bounds = array<i64: 1, 32>}, {pipeline_mode = #tpu.pipeline_mode<synchronous>, transform_indices = @transform_21, window_bounds = array<i64: 32, 128>}, {pipeline_mode = #tpu.pipeline_mode<synchronous>, transform_indices = @transform_22, window_bounds = array<i64: 1, 128>}, {transform_indices = @transform_23, window_bounds = array<i64: 1, 4, 128>}]} {
    %c0 = arith.constant 0 : index
    %c0_0 = arith.constant 0 : index
    %c0_1 = arith.constant 0 : index
    %0 = vector.load %arg1[%c0, %c0_0, %c0_1] : memref<1x68x48xbf16, #tpu.memory_space<vmem>>, vector<1x68x48xbf16>
    %1 = vector.shape_cast %0 : vector<1x68x48xbf16> to vector<68x48xbf16>
    %c0_2 = arith.constant 0 : index
    %c0_3 = arith.constant 0 : index
    %2 = vector.load %arg4[%c0_2, %c0_3] : memref<48x32xbf16, #tpu.memory_space<vmem>>, vector<48x32xbf16>
    %cst = arith.constant dense<0.000000e+00> : vector<68x32xf32>
    %3 = tpu.matmul %1, %2, %cst {dimension_numbers = #tpu.dot_dimension_numbers<[1], [0], [0], [1], [0, 0, 1, 1], [], []>} : vector<68x48xbf16>, vector<48x32xbf16>, vector<68x32xf32> -> vector<68x32xf32>
    %c0_4 = arith.constant 0 : index
    %c0_5 = arith.constant 0 : index
    %4 = vector.load %arg5[%c0_4, %c0_5] : memref<1x32xf32, #tpu.memory_space<vmem>>, vector<1x32xf32>
    %5 = vector.broadcast %4 : vector<1x32xf32> to vector<68x32xf32>
    %6 = arith.addf %3, %5 : vector<68x32xf32>
    %c0_6 = arith.constant 0 : index
    %c0_7 = arith.constant 0 : index
    %7 = vector.load %arg2[%c0_6, %c0_7] : memref<68x32xf32, #tpu.memory_space<vmem>>, vector<68x32xf32>
    %8 = arith.addf %6, %7 : vector<68x32xf32>
    %c0_8 = arith.constant 0 : index
    %c0_9 = arith.constant 0 : index
    %c0_10 = arith.constant 0 : index
    %9 = vector.load %arg6[%c0_8, %c0_9, %c0_10] : memref<2x1x32xf32, #tpu.memory_space<vmem>>, vector<1x1x32xf32>
    %10 = vector.shape_cast %9 : vector<1x1x32xf32> to vector<1x32xf32>
    %c0_11 = arith.constant 0 : index
    %c0_12 = arith.constant 0 : index
    %c0_13 = arith.constant 0 : index
    %11 = vector.load %arg7[%c0_11, %c0_12, %c0_13] : memref<2x1x32xf32, #tpu.memory_space<vmem>>, vector<1x1x32xf32>
    %12 = vector.shape_cast %11 : vector<1x1x32xf32> to vector<1x32xf32>
    %cst_14 = arith.constant dense<0.000000e+00> : vector<68xf32>
    %13 = vector.multi_reduction <add>, %8, %cst_14 [1] : vector<68x32xf32> to vector<68xf32>
    %14 = vector.shape_cast %13 : vector<68xf32> to vector<68x1xf32>
    %cst_15 = arith.constant 3.200000e+01 : f32
    %15 = vector.broadcast %cst_15 : f32 to vector<68x1xf32>
    %16 = arith.divf %14, %15 : vector<68x1xf32>
    %17 = vector.broadcast %16 : vector<68x1xf32> to vector<68x32xf32>
    %18 = arith.subf %8, %17 : vector<68x32xf32>
    %19 = arith.mulf %18, %18 : vector<68x32xf32>
    %cst_16 = arith.constant dense<0.000000e+00> : vector<68xf32>
    %20 = vector.multi_reduction <add>, %19, %cst_16 [1] : vector<68x32xf32> to vector<68xf32>
    %21 = vector.shape_cast %20 : vector<68xf32> to vector<68x1xf32>
    %cst_17 = arith.constant 3.200000e+01 : f32
    %22 = vector.broadcast %cst_17 : f32 to vector<68x1xf32>
    %23 = arith.divf %21, %22 : vector<68x1xf32>
    %24 = vector.broadcast %16 : vector<68x1xf32> to vector<68x32xf32>
    %25 = arith.subf %8, %24 : vector<68x32xf32>
    %cst_18 = arith.constant 9.99999974E-6 : f32
    %26 = vector.broadcast %cst_18 : f32 to vector<68x1xf32>
    %27 = arith.addf %23, %26 : vector<68x1xf32>
    %28 = math.rsqrt %27 : vector<68x1xf32>
    %29 = vector.broadcast %28 : vector<68x1xf32> to vector<68x32xf32>
    %30 = arith.mulf %25, %29 : vector<68x32xf32>
    %31 = vector.broadcast %10 : vector<1x32xf32> to vector<68x32xf32>
    %32 = arith.mulf %30, %31 : vector<68x32xf32>
    %33 = vector.broadcast %12 : vector<1x32xf32> to vector<68x32xf32>
    %34 = arith.addf %32, %33 : vector<68x32xf32>
    %35 = arith.truncf %34 : vector<68x32xf32> to vector<68x32xbf16>
    %c0_19 = arith.constant 0 : index
    %c0_20 = arith.constant 0 : index
    %c0_21 = arith.constant 0 : index
    %36 = vector.load %arg8[%c0_19, %c0_20, %c0_21] : memref<2x32x96xbf16, #tpu.memory_space<vmem>>, vector<1x32x96xbf16>
    %37 = vector.shape_cast %36 : vector<1x32x96xbf16> to vector<32x96xbf16>
    %cst_22 = arith.constant dense<0.000000e+00> : vector<68x96xf32>
    %38 = tpu.matmul %35, %37, %cst_22 {dimension_numbers = #tpu.dot_dimension_numbers<[1], [0], [0], [1], [0, 0, 1, 1], [], []>} : vector<68x32xbf16>, vector<32x96xbf16>, vector<68x96xf32> -> vector<68x96xf32>
    %c0_23 = arith.constant 0 : index
    %c0_24 = arith.constant 0 : index
    %c0_25 = arith.constant 0 : index
    %39 = vector.load %arg9[%c0_23, %c0_24, %c0_25] : memref<2x1x96xf32, #tpu.memory_space<vmem>>, vector<1x1x96xf32>
    %40 = vector.shape_cast %39 : vector<1x1x96xf32> to vector<1x96xf32>
    %41 = vector.broadcast %40 : vector<1x96xf32> to vector<68x96xf32>
    %42 = arith.addf %38, %41 : vector<68x96xf32>
    %43 = vector.extract_strided_slice %42 {offsets = [0, 0], sizes = [17, 96], strides = [1, 1]} : vector<68x96xf32> to vector<17x96xf32>
    %44 = vector.extract_strided_slice %43 {offsets = [0, 0], sizes = [17, 8], strides = [1, 1]} : vector<17x96xf32> to vector<17x8xf32>
    %45 = vector.shape_cast %44 : vector<17x8xf32> to vector<1x17x8xf32>
    %46 = vector.extract_strided_slice %43 {offsets = [0, 8], sizes = [17, 8], strides = [1, 1]} : vector<17x96xf32> to vector<17x8xf32>
    %47 = vector.shape_cast %46 : vector<17x8xf32> to vector<1x17x8xf32>
    %48 = vector.extract_strided_slice %43 {offsets = [0, 16], sizes = [17, 8], strides = [1, 1]} : vector<17x96xf32> to vector<17x8xf32>
    %49 = vector.shape_cast %48 : vector<17x8xf32> to vector<1x17x8xf32>
    %50 = vector.extract_strided_slice %43 {offsets = [0, 24], sizes = [17, 8], strides = [1, 1]} : vector<17x96xf32> to vector<17x8xf32>
    %51 = vector.shape_cast %50 : vector<17x8xf32> to vector<1x17x8xf32>
    %52 = tpu.concatenate %45, %47, %49, %51 in 0 : vector<1x17x8xf32>, vector<1x17x8xf32>, vector<1x17x8xf32>, vector<1x17x8xf32> -> vector<4x17x8xf32>
    %53 = vector.extract_strided_slice %43 {offsets = [0, 32], sizes = [17, 8], strides = [1, 1]} : vector<17x96xf32> to vector<17x8xf32>
    %54 = vector.shape_cast %53 : vector<17x8xf32> to vector<1x17x8xf32>
    %55 = vector.extract_strided_slice %43 {offsets = [0, 40], sizes = [17, 8], strides = [1, 1]} : vector<17x96xf32> to vector<17x8xf32>
    %56 = vector.shape_cast %55 : vector<17x8xf32> to vector<1x17x8xf32>
    %57 = vector.extract_strided_slice %43 {offsets = [0, 48], sizes = [17, 8], strides = [1, 1]} : vector<17x96xf32> to vector<17x8xf32>
    %58 = vector.shape_cast %57 : vector<17x8xf32> to vector<1x17x8xf32>
    %59 = vector.extract_strided_slice %43 {offsets = [0, 56], sizes = [17, 8], strides = [1, 1]} : vector<17x96xf32> to vector<17x8xf32>
    %60 = vector.shape_cast %59 : vector<17x8xf32> to vector<1x17x8xf32>
    %61 = tpu.concatenate %54, %56, %58, %60 in 0 : vector<1x17x8xf32>, vector<1x17x8xf32>, vector<1x17x8xf32>, vector<1x17x8xf32> -> vector<4x17x8xf32>
    %62 = vector.extract_strided_slice %43 {offsets = [0, 64], sizes = [17, 8], strides = [1, 1]} : vector<17x96xf32> to vector<17x8xf32>
    %63 = vector.shape_cast %62 : vector<17x8xf32> to vector<1x17x8xf32>
    %64 = vector.extract_strided_slice %43 {offsets = [0, 72], sizes = [17, 8], strides = [1, 1]} : vector<17x96xf32> to vector<17x8xf32>
    %65 = vector.shape_cast %64 : vector<17x8xf32> to vector<1x17x8xf32>
    %66 = vector.extract_strided_slice %43 {offsets = [0, 80], sizes = [17, 8], strides = [1, 1]} : vector<17x96xf32> to vector<17x8xf32>
    %67 = vector.shape_cast %66 : vector<17x8xf32> to vector<1x17x8xf32>
    %68 = vector.extract_strided_slice %43 {offsets = [0, 88], sizes = [17, 8], strides = [1, 1]} : vector<17x96xf32> to vector<17x8xf32>
    %69 = vector.shape_cast %68 : vector<17x8xf32> to vector<1x17x8xf32>
    %70 = tpu.concatenate %63, %65, %67, %69 in 0 : vector<1x17x8xf32>, vector<1x17x8xf32>, vector<1x17x8xf32>, vector<1x17x8xf32> -> vector<4x17x8xf32>
    %71 = arith.truncf %52 : vector<4x17x8xf32> to vector<4x17x8xbf16>
    %72 = arith.truncf %61 : vector<4x17x8xf32> to vector<4x17x8xbf16>
    "tpu.trace_start"() <{level = 10 : i32, message = "hqd,hkd->hqk"}> : () -> ()
    %cst_26 = arith.constant dense<0.000000e+00> : vector<4x17x17xf32>
    %73 = tpu.matmul %71, %72, %cst_26 {dimension_numbers = #tpu.dot_dimension_numbers<[2], [2], [1], [1], [0, 0, 0, 1, 1, 1], [0], [0]>} : vector<4x17x8xbf16>, vector<4x17x8xbf16>, vector<4x17x17xf32> -> vector<4x17x17xf32>
    "tpu.trace_stop"() : () -> ()
    %cst_27 = arith.constant dense<0xFF800000> : vector<4x17xf32>
    %74 = vector.multi_reduction <maximumf>, %73, %cst_27 [2] : vector<4x17x17xf32> to vector<4x17xf32>
    %75 = vector.shape_cast %74 : vector<4x17xf32> to vector<4x17x1xf32>
    %76 = vector.broadcast %75 : vector<4x17x1xf32> to vector<4x17x17xf32>
    %77 = arith.subf %73, %76 : vector<4x17x17xf32>
    %78 = math.exp %77 : vector<4x17x17xf32>
    %cst_28 = arith.constant dense<0.000000e+00> : vector<4x17xf32>
    %79 = vector.multi_reduction <add>, %78, %cst_28 [2] : vector<4x17x17xf32> to vector<4x17xf32>
    %80 = vector.shape_cast %79 : vector<4x17xf32> to vector<4x17x1xf32>
    %81 = vector.broadcast %80 : vector<4x17x1xf32> to vector<4x17x17xf32>
    %82 = arith.divf %78, %81 : vector<4x17x17xf32>
    %83 = arith.truncf %82 : vector<4x17x17xf32> to vector<4x17x17xbf16>
    %84 = arith.truncf %70 : vector<4x17x8xf32> to vector<4x17x8xbf16>
    "tpu.trace_start"() <{level = 10 : i32, message = "hqk,hkd->hqd"}> : () -> ()
    %cst_29 = arith.constant dense<0.000000e+00> : vector<4x17x8xf32>
    %85 = tpu.matmul %83, %84, %cst_29 {dimension_numbers = #tpu.dot_dimension_numbers<[2], [1], [1], [2], [0, 0, 0, 1, 1, 2], [0], [0]>} : vector<4x17x17xbf16>, vector<4x17x8xbf16>, vector<4x17x8xf32> -> vector<4x17x8xf32>
    "tpu.trace_stop"() : () -> ()
    %86 = vector.extract_strided_slice %85 {offsets = [0, 0, 0], sizes = [1, 17, 8], strides = [1, 1, 1]} : vector<4x17x8xf32> to vector<1x17x8xf32>
    %87 = vector.shape_cast %86 : vector<1x17x8xf32> to vector<17x8xf32>
    %c0_30 = arith.constant 0 : index
    %c0_31 = arith.constant 0 : index
    %88 = vector.load %arg25[%c0_30, %c0_31] : memref<68x32xf32, #tpu.memory_space<vmem>>, vector<17x8xf32>
    tpu.vector_store %arg25[%c0_30, %c0_31], %87 {strides = array<i32>} : memref<68x32xf32, #tpu.memory_space<vmem>>, vector<17x8xf32>,
    %89 = vector.extract_strided_slice %85 {offsets = [1, 0, 0], sizes = [1, 17, 8], strides = [1, 1, 1]} : vector<4x17x8xf32> to vector<1x17x8xf32>
    %90 = vector.shape_cast %89 : vector<1x17x8xf32> to vector<17x8xf32>
    %c0_32 = arith.constant 0 : index
    %c8 = arith.constant 8 : index
    %91 = vector.load %arg25[%c0_32, %c8] : memref<68x32xf32, #tpu.memory_space<vmem>>, vector<17x8xf32>
    tpu.vector_store %arg25[%c0_32, %c8], %90 {strides = array<i32>} : memref<68x32xf32, #tpu.memory_space<vmem>>, vector<17x8xf32>,
    %92 = vector.extract_strided_slice %85 {offsets = [2, 0, 0], sizes = [1, 17, 8], strides = [1, 1, 1]} : vector<4x17x8xf32> to vector<1x17x8xf32>
    %93 = vector.shape_cast %92 : vector<1x17x8xf32> to vector<17x8xf32>
    %c0_33 = arith.constant 0 : index
    %c16 = arith.constant 16 : index
    %94 = vector.load %arg25[%c0_33, %c16] : memref<68x32xf32, #tpu.memory_space<vmem>>, vector<17x8xf32>
    tpu.vector_store %arg25[%c0_33, %c16], %93 {strides = array<i32>} : memref<68x32xf32, #tpu.memory_space<vmem>>, vector<17x8xf32>,
    %95 = vector.extract_strided_slice %85 {offsets = [3, 0, 0], sizes = [1, 17, 8], strides = [1, 1, 1]} : vector<4x17x8xf32> to vector<1x17x8xf32>
    %96 = vector.shape_cast %95 : vector<1x17x8xf32> to vector<17x8xf32>
    %c0_34 = arith.constant 0 : index
    %c24 = arith.constant 24 : index
    %97 = vector.load %arg25[%c0_34, %c24] : memref<68x32xf32, #tpu.memory_space<vmem>>, vector<17x8xf32>
    tpu.vector_store %arg25[%c0_34, %c24], %96 {strides = array<i32>} : memref<68x32xf32, #tpu.memory_space<vmem>>, vector<17x8xf32>,
    %98 = vector.extract_strided_slice %42 {offsets = [17, 0], sizes = [17, 96], strides = [1, 1]} : vector<68x96xf32> to vector<17x96xf32>
    %99 = vector.extract_strided_slice %98 {offsets = [0, 0], sizes = [17, 8], strides = [1, 1]} : vector<17x96xf32> to vector<17x8xf32>
    %100 = vector.shape_cast %99 : vector<17x8xf32> to vector<1x17x8xf32>
    %101 = vector.extract_strided_slice %98 {offsets = [0, 8], sizes = [17, 8], strides = [1, 1]} : vector<17x96xf32> to vector<17x8xf32>
    %102 = vector.shape_cast %101 : vector<17x8xf32> to vector<1x17x8xf32>
    %103 = vector.extract_strided_slice %98 {offsets = [0, 16], sizes = [17, 8], strides = [1, 1]} : vector<17x96xf32> to vector<17x8xf32>
    %104 = vector.shape_cast %103 : vector<17x8xf32> to vector<1x17x8xf32>
    %105 = vector.extract_strided_slice %98 {offsets = [0, 24], sizes = [17, 8], strides = [1, 1]} : vector<17x96xf32> to vector<17x8xf32>
    %106 = vector.shape_cast %105 : vector<17x8xf32> to vector<1x17x8xf32>
    %107 = tpu.concatenate %100, %102, %104, %106 in 0 : vector<1x17x8xf32>, vector<1x17x8xf32>, vector<1x17x8xf32>, vector<1x17x8xf32> -> vector<4x17x8xf32>
    %108 = vector.extract_strided_slice %98 {offsets = [0, 32], sizes = [17, 8], strides = [1, 1]} : vector<17x96xf32> to vector<17x8xf32>
    %109 = vector.shape_cast %108 : vector<17x8xf32> to vector<1x17x8xf32>
    %110 = vector.extract_strided_slice %98 {offsets = [0, 40], sizes = [17, 8], strides = [1, 1]} : vector<17x96xf32> to vector<17x8xf32>
    %111 = vector.shape_cast %110 : vector<17x8xf32> to vector<1x17x8xf32>
    %112 = vector.extract_strided_slice %98 {offsets = [0, 48], sizes = [17, 8], strides = [1, 1]} : vector<17x96xf32> to vector<17x8xf32>
    %113 = vector.shape_cast %112 : vector<17x8xf32> to vector<1x17x8xf32>
    %114 = vector.extract_strided_slice %98 {offsets = [0, 56], sizes = [17, 8], strides = [1, 1]} : vector<17x96xf32> to vector<17x8xf32>
    %115 = vector.shape_cast %114 : vector<17x8xf32> to vector<1x17x8xf32>
    %116 = tpu.concatenate %109, %111, %113, %115 in 0 : vector<1x17x8xf32>, vector<1x17x8xf32>, vector<1x17x8xf32>, vector<1x17x8xf32> -> vector<4x17x8xf32>
    %117 = vector.extract_strided_slice %98 {offsets = [0, 64], sizes = [17, 8], strides = [1, 1]} : vector<17x96xf32> to vector<17x8xf32>
    %118 = vector.shape_cast %117 : vector<17x8xf32> to vector<1x17x8xf32>
    %119 = vector.extract_strided_slice %98 {offsets = [0, 72], sizes = [17, 8], strides = [1, 1]} : vector<17x96xf32> to vector<17x8xf32>
    %120 = vector.shape_cast %119 : vector<17x8xf32> to vector<1x17x8xf32>
    %121 = vector.extract_strided_slice %98 {offsets = [0, 80], sizes = [17, 8], strides = [1, 1]} : vector<17x96xf32> to vector<17x8xf32>
    %122 = vector.shape_cast %121 : vector<17x8xf32> to vector<1x17x8xf32>
    %123 = vector.extract_strided_slice %98 {offsets = [0, 88], sizes = [17, 8], strides = [1, 1]} : vector<17x96xf32> to vector<17x8xf32>
    %124 = vector.shape_cast %123 : vector<17x8xf32> to vector<1x17x8xf32>
    %125 = tpu.concatenate %118, %120, %122, %124 in 0 : vector<1x17x8xf32>, vector<1x17x8xf32>, vector<1x17x8xf32>, vector<1x17x8xf32> -> vector<4x17x8xf32>
    %126 = arith.truncf %107 : vector<4x17x8xf32> to vector<4x17x8xbf16>
    %127 = arith.truncf %116 : vector<4x17x8xf32> to vector<4x17x8xbf16>
    "tpu.trace_start"() <{level = 10 : i32, message = "hqd,hkd->hqk"}> : () -> ()
    %cst_35 = arith.constant dense<0.000000e+00> : vector<4x17x17xf32>
    %128 = tpu.matmul %126, %127, %cst_35 {dimension_numbers = #tpu.dot_dimension_numbers<[2], [2], [1], [1], [0, 0, 0, 1, 1, 1], [0], [0]>} : vector<4x17x8xbf16>, vector<4x17x8xbf16>, vector<4x17x17xf32> -> vector<4x17x17xf32>
    "tpu.trace_stop"() : () -> ()
    %cst_36 = arith.constant dense<0xFF800000> : vector<4x17xf32>
    %129 = vector.multi_reduction <maximumf>, %128, %cst_36 [2] : vector<4x17x17xf32> to vector<4x17xf32>
    %130 = vector.shape_cast %129 : vector<4x17xf32> to vector<4x17x1xf32>
    %131 = vector.broadcast %130 : vector<4x17x1xf32> to vector<4x17x17xf32>
    %132 = arith.subf %128, %131 : vector<4x17x17xf32>
    %133 = math.exp %132 : vector<4x17x17xf32>
    %cst_37 = arith.constant dense<0.000000e+00> : vector<4x17xf32>
    %134 = vector.multi_reduction <add>, %133, %cst_37 [2] : vector<4x17x17xf32> to vector<4x17xf32>
    %135 = vector.shape_cast %134 : vector<4x17xf32> to vector<4x17x1xf32>
    %136 = vector.broadcast %135 : vector<4x17x1xf32> to vector<4x17x17xf32>
    %137 = arith.divf %133, %136 : vector<4x17x17xf32>
    %138 = arith.truncf %137 : vector<4x17x17xf32> to vector<4x17x17xbf16>
    %139 = arith.truncf %125 : vector<4x17x8xf32> to vector<4x17x8xbf16>
    "tpu.trace_start"() <{level = 10 : i32, message = "hqk,hkd->hqd"}> : () -> ()
    %cst_38 = arith.constant dense<0.000000e+00> : vector<4x17x8xf32>
    %140 = tpu.matmul %138, %139, %cst_38 {dimension_numbers = #tpu.dot_dimension_numbers<[2], [1], [1], [2], [0, 0, 0, 1, 1, 2], [0], [0]>} : vector<4x17x17xbf16>, vector<4x17x8xbf16>, vector<4x17x8xf32> -> vector<4x17x8xf32>
    "tpu.trace_stop"() : () -> ()
    %141 = vector.extract_strided_slice %140 {offsets = [0, 0, 0], sizes = [1, 17, 8], strides = [1, 1, 1]} : vector<4x17x8xf32> to vector<1x17x8xf32>
    %142 = vector.shape_cast %141 : vector<1x17x8xf32> to vector<17x8xf32>
    %c17 = arith.constant 17 : index
    %c0_39 = arith.constant 0 : index
    %143 = vector.load %arg25[%c17, %c0_39] : memref<68x32xf32, #tpu.memory_space<vmem>>, vector<17x8xf32>
    tpu.vector_store %arg25[%c17, %c0_39], %142 {strides = array<i32>} : memref<68x32xf32, #tpu.memory_space<vmem>>, vector<17x8xf32>,
    %144 = vector.extract_strided_slice %140 {offsets = [1, 0, 0], sizes = [1, 17, 8], strides = [1, 1, 1]} : vector<4x17x8xf32> to vector<1x17x8xf32>
    %145 = vector.shape_cast %144 : vector<1x17x8xf32> to vector<17x8xf32>
    %c17_40 = arith.constant 17 : index
    %c8_41 = arith.constant 8 : index
    %146 = vector.load %arg25[%c17_40, %c8_41] : memref<68x32xf32, #tpu.memory_space<vmem>>, vector<17x8xf32>
    tpu.vector_store %arg25[%c17_40, %c8_41], %145 {strides = array<i32>} : memref<68x32xf32, #tpu.memory_space<vmem>>, vector<17x8xf32>,
    %147 = vector.extract_strided_slice %140 {offsets = [2, 0, 0], sizes = [1, 17, 8], strides = [1, 1, 1]} : vector<4x17x8xf32> to vector<1x17x8xf32>
    %148 = vector.shape_cast %147 : vector<1x17x8xf32> to vector<17x8xf32>
    %c17_42 = arith.constant 17 : index
    %c16_43 = arith.constant 16 : index
    %149 = vector.load %arg25[%c17_42, %c16_43] : memref<68x32xf32, #tpu.memory_space<vmem>>, vector<17x8xf32>
    tpu.vector_store %arg25[%c17_42, %c16_43], %148 {strides = array<i32>} : memref<68x32xf32, #tpu.memory_space<vmem>>, vector<17x8xf32>,
    %150 = vector.extract_strided_slice %140 {offsets = [3, 0, 0], sizes = [1, 17, 8], strides = [1, 1, 1]} : vector<4x17x8xf32> to vector<1x17x8xf32>
    %151 = vector.shape_cast %150 : vector<1x17x8xf32> to vector<17x8xf32>
    %c17_44 = arith.constant 17 : index
    %c24_45 = arith.constant 24 : index
    %152 = vector.load %arg25[%c17_44, %c24_45] : memref<68x32xf32, #tpu.memory_space<vmem>>, vector<17x8xf32>
    tpu.vector_store %arg25[%c17_44, %c24_45], %151 {strides = array<i32>} : memref<68x32xf32, #tpu.memory_space<vmem>>, vector<17x8xf32>,
    %153 = vector.extract_strided_slice %42 {offsets = [34, 0], sizes = [17, 96], strides = [1, 1]} : vector<68x96xf32> to vector<17x96xf32>
    %154 = vector.extract_strided_slice %153 {offsets = [0, 0], sizes = [17, 8], strides = [1, 1]} : vector<17x96xf32> to vector<17x8xf32>
    %155 = vector.shape_cast %154 : vector<17x8xf32> to vector<1x17x8xf32>
    %156 = vector.extract_strided_slice %153 {offsets = [0, 8], sizes = [17, 8], strides = [1, 1]} : vector<17x96xf32> to vector<17x8xf32>
    %157 = vector.shape_cast %156 : vector<17x8xf32> to vector<1x17x8xf32>
    %158 = vector.extract_strided_slice %153 {offsets = [0, 16], sizes = [17, 8], strides = [1, 1]} : vector<17x96xf32> to vector<17x8xf32>
    %159 = vector.shape_cast %158 : vector<17x8xf32> to vector<1x17x8xf32>
    %160 = vector.extract_strided_slice %153 {offsets = [0, 24], sizes = [17, 8], strides = [1, 1]} : vector<17x96xf32> to vector<17x8xf32>
    %161 = vector.shape_cast %160 : vector<17x8xf32> to vector<1x17x8xf32>
    %162 = tpu.concatenate %155, %157, %159, %161 in 0 : vector<1x17x8xf32>, vector<1x17x8xf32>, vector<1x17x8xf32>, vector<1x17x8xf32> -> vector<4x17x8xf32>
    %163 = vector.extract_strided_slice %153 {offsets = [0, 32], sizes = [17, 8], strides = [1, 1]} : vector<17x96xf32> to vector<17x8xf32>
    %164 = vector.shape_cast %163 : vector<17x8xf32> to vector<1x17x8xf32>
    %165 = vector.extract_strided_slice %153 {offsets = [0, 40], sizes = [17, 8], strides = [1, 1]} : vector<17x96xf32> to vector<17x8xf32>
    %166 = vector.shape_cast %165 : vector<17x8xf32> to vector<1x17x8xf32>
    %167 = vector.extract_strided_slice %153 {offsets = [0, 48], sizes = [17, 8], strides = [1, 1]} : vector<17x96xf32> to vector<17x8xf32>
    %168 = vector.shape_cast %167 : vector<17x8xf32> to vector<1x17x8xf32>
    %169 = vector.extract_strided_slice %153 {offsets = [0, 56], sizes = [17, 8], strides = [1, 1]} : vector<17x96xf32> to vector<17x8xf32>
    %170 = vector.shape_cast %169 : vector<17x8xf32> to vector<1x17x8xf32>
    %171 = tpu.concatenate %164, %166, %168, %170 in 0 : vector<1x17x8xf32>, vector<1x17x8xf32>, vector<1x17x8xf32>, vector<1x17x8xf32> -> vector<4x17x8xf32>
    %172 = vector.extract_strided_slice %153 {offsets = [0, 64], sizes = [17, 8], strides = [1, 1]} : vector<17x96xf32> to vector<17x8xf32>
    %173 = vector.shape_cast %172 : vector<17x8xf32> to vector<1x17x8xf32>
    %174 = vector.extract_strided_slice %153 {offsets = [0, 72], sizes = [17, 8], strides = [1, 1]} : vector<17x96xf32> to vector<17x8xf32>
    %175 = vector.shape_cast %174 : vector<17x8xf32> to vector<1x17x8xf32>
    %176 = vector.extract_strided_slice %153 {offsets = [0, 80], sizes = [17, 8], strides = [1, 1]} : vector<17x96xf32> to vector<17x8xf32>
    %177 = vector.shape_cast %176 : vector<17x8xf32> to vector<1x17x8xf32>
    %178 = vector.extract_strided_slice %153 {offsets = [0, 88], sizes = [17, 8], strides = [1, 1]} : vector<17x96xf32> to vector<17x8xf32>
    %179 = vector.shape_cast %178 : vector<17x8xf32> to vector<1x17x8xf32>
    %180 = tpu.concatenate %173, %175, %177, %179 in 0 : vector<1x17x8xf32>, vector<1x17x8xf32>, vector<1x17x8xf32>, vector<1x17x8xf32> -> vector<4x17x8xf32>
    %181 = arith.truncf %162 : vector<4x17x8xf32> to vector<4x17x8xbf16>
    %182 = arith.truncf %171 : vector<4x17x8xf32> to vector<4x17x8xbf16>
    "tpu.trace_start"() <{level = 10 : i32, message = "hqd,hkd->hqk"}> : () -> ()
    %cst_46 = arith.constant dense<0.000000e+00> : vector<4x17x17xf32>
    %183 = tpu.matmul %181, %182, %cst_46 {dimension_numbers = #tpu.dot_dimension_numbers<[2], [2], [1], [1], [0, 0, 0, 1, 1, 1], [0], [0]>} : vector<4x17x8xbf16>, vector<4x17x8xbf16>, vector<4x17x17xf32> -> vector<4x17x17xf32>
    "tpu.trace_stop"() : () -> ()
    %cst_47 = arith.constant dense<0xFF800000> : vector<4x17xf32>
    %184 = vector.multi_reduction <maximumf>, %183, %cst_47 [2] : vector<4x17x17xf32> to vector<4x17xf32>
    %185 = vector.shape_cast %184 : vector<4x17xf32> to vector<4x17x1xf32>
    %186 = vector.broadcast %185 : vector<4x17x1xf32> to vector<4x17x17xf32>
    %187 = arith.subf %183, %186 : vector<4x17x17xf32>
    %188 = math.exp %187 : vector<4x17x17xf32>
    %cst_48 = arith.constant dense<0.000000e+00> : vector<4x17xf32>
    %189 = vector.multi_reduction <add>, %188, %cst_48 [2] : vector<4x17x17xf32> to vector<4x17xf32>
    %190 = vector.shape_cast %189 : vector<4x17xf32> to vector<4x17x1xf32>
    %191 = vector.broadcast %190 : vector<4x17x1xf32> to vector<4x17x17xf32>
    %192 = arith.divf %188, %191 : vector<4x17x17xf32>
    %193 = arith.truncf %192 : vector<4x17x17xf32> to vector<4x17x17xbf16>
    %194 = arith.truncf %180 : vector<4x17x8xf32> to vector<4x17x8xbf16>
    "tpu.trace_start"() <{level = 10 : i32, message = "hqk,hkd->hqd"}> : () -> ()
    %cst_49 = arith.constant dense<0.000000e+00> : vector<4x17x8xf32>
    %195 = tpu.matmul %193, %194, %cst_49 {dimension_numbers = #tpu.dot_dimension_numbers<[2], [1], [1], [2], [0, 0, 0, 1, 1, 2], [0], [0]>} : vector<4x17x17xbf16>, vector<4x17x8xbf16>, vector<4x17x8xf32> -> vector<4x17x8xf32>
    "tpu.trace_stop"() : () -> ()
    %196 = vector.extract_strided_slice %195 {offsets = [0, 0, 0], sizes = [1, 17, 8], strides = [1, 1, 1]} : vector<4x17x8xf32> to vector<1x17x8xf32>
    %197 = vector.shape_cast %196 : vector<1x17x8xf32> to vector<17x8xf32>
    %c34 = arith.constant 34 : index
    %c0_50 = arith.constant 0 : index
    %198 = vector.load %arg25[%c34, %c0_50] : memref<68x32xf32, #tpu.memory_space<vmem>>, vector<17x8xf32>
    tpu.vector_store %arg25[%c34, %c0_50], %197 {strides = array<i32>} : memref<68x32xf32, #tpu.memory_space<vmem>>, vector<17x8xf32>,
    %199 = vector.extract_strided_slice %195 {offsets = [1, 0, 0], sizes = [1, 17, 8], strides = [1, 1, 1]} : vector<4x17x8xf32> to vector<1x17x8xf32>
    %200 = vector.shape_cast %199 : vector<1x17x8xf32> to vector<17x8xf32>
    %c34_51 = arith.constant 34 : index
    %c8_52 = arith.constant 8 : index
    %201 = vector.load %arg25[%c34_51, %c8_52] : memref<68x32xf32, #tpu.memory_space<vmem>>, vector<17x8xf32>
    tpu.vector_store %arg25[%c34_51, %c8_52], %200 {strides = array<i32>} : memref<68x32xf32, #tpu.memory_space<vmem>>, vector<17x8xf32>,
    %202 = vector.extract_strided_slice %195 {offsets = [2, 0, 0], sizes = [1, 17, 8], strides = [1, 1, 1]} : vector<4x17x8xf32> to vector<1x17x8xf32>
    %203 = vector.shape_cast %202 : vector<1x17x8xf32> to vector<17x8xf32>
    %c34_53 = arith.constant 34 : index
    %c16_54 = arith.constant 16 : index
    %204 = vector.load %arg25[%c34_53, %c16_54] : memref<68x32xf32, #tpu.memory_space<vmem>>, vector<17x8xf32>
    tpu.vector_store %arg25[%c34_53, %c16_54], %203 {strides = array<i32>} : memref<68x32xf32, #tpu.memory_space<vmem>>, vector<17x8xf32>,
    %205 = vector.extract_strided_slice %195 {offsets = [3, 0, 0], sizes = [1, 17, 8], strides = [1, 1, 1]} : vector<4x17x8xf32> to vector<1x17x8xf32>
    %206 = vector.shape_cast %205 : vector<1x17x8xf32> to vector<17x8xf32>
    %c34_55 = arith.constant 34 : index
    %c24_56 = arith.constant 24 : index
    %207 = vector.load %arg25[%c34_55, %c24_56] : memref<68x32xf32, #tpu.memory_space<vmem>>, vector<17x8xf32>
    tpu.vector_store %arg25[%c34_55, %c24_56], %206 {strides = array<i32>} : memref<68x32xf32, #tpu.memory_space<vmem>>, vector<17x8xf32>,
    %208 = vector.extract_strided_slice %42 {offsets = [51, 0], sizes = [17, 96], strides = [1, 1]} : vector<68x96xf32> to vector<17x96xf32>
    %209 = vector.extract_strided_slice %208 {offsets = [0, 0], sizes = [17, 8], strides = [1, 1]} : vector<17x96xf32> to vector<17x8xf32>
    %210 = vector.shape_cast %209 : vector<17x8xf32> to vector<1x17x8xf32>
    %211 = vector.extract_strided_slice %208 {offsets = [0, 8], sizes = [17, 8], strides = [1, 1]} : vector<17x96xf32> to vector<17x8xf32>
    %212 = vector.shape_cast %211 : vector<17x8xf32> to vector<1x17x8xf32>
    %213 = vector.extract_strided_slice %208 {offsets = [0, 16], sizes = [17, 8], strides = [1, 1]} : vector<17x96xf32> to vector<17x8xf32>
    %214 = vector.shape_cast %213 : vector<17x8xf32> to vector<1x17x8xf32>
    %215 = vector.extract_strided_slice %208 {offsets = [0, 24], sizes = [17, 8], strides = [1, 1]} : vector<17x96xf32> to vector<17x8xf32>
    %216 = vector.shape_cast %215 : vector<17x8xf32> to vector<1x17x8xf32>
    %217 = tpu.concatenate %210, %212, %214, %216 in 0 : vector<1x17x8xf32>, vector<1x17x8xf32>, vector<1x17x8xf32>, vector<1x17x8xf32> -> vector<4x17x8xf32>
    %218 = vector.extract_strided_slice %208 {offsets = [0, 32], sizes = [17, 8], strides = [1, 1]} : vector<17x96xf32> to vector<17x8xf32>
    %219 = vector.shape_cast %218 : vector<17x8xf32> to vector<1x17x8xf32>
    %220 = vector.extract_strided_slice %208 {offsets = [0, 40], sizes = [17, 8], strides = [1, 1]} : vector<17x96xf32> to vector<17x8xf32>
    %221 = vector.shape_cast %220 : vector<17x8xf32> to vector<1x17x8xf32>
    %222 = vector.extract_strided_slice %208 {offsets = [0, 48], sizes = [17, 8], strides = [1, 1]} : vector<17x96xf32> to vector<17x8xf32>
    %223 = vector.shape_cast %222 : vector<17x8xf32> to vector<1x17x8xf32>
    %224 = vector.extract_strided_slice %208 {offsets = [0, 56], sizes = [17, 8], strides = [1, 1]} : vector<17x96xf32> to vector<17x8xf32>
    %225 = vector.shape_cast %224 : vector<17x8xf32> to vector<1x17x8xf32>
    %226 = tpu.concatenate %219, %221, %223, %225 in 0 : vector<1x17x8xf32>, vector<1x17x8xf32>, vector<1x17x8xf32>, vector<1x17x8xf32> -> vector<4x17x8xf32>
    %227 = vector.extract_strided_slice %208 {offsets = [0, 64], sizes = [17, 8], strides = [1, 1]} : vector<17x96xf32> to vector<17x8xf32>
    %228 = vector.shape_cast %227 : vector<17x8xf32> to vector<1x17x8xf32>
    %229 = vector.extract_strided_slice %208 {offsets = [0, 72], sizes = [17, 8], strides = [1, 1]} : vector<17x96xf32> to vector<17x8xf32>
    %230 = vector.shape_cast %229 : vector<17x8xf32> to vector<1x17x8xf32>
    %231 = vector.extract_strided_slice %208 {offsets = [0, 80], sizes = [17, 8], strides = [1, 1]} : vector<17x96xf32> to vector<17x8xf32>
    %232 = vector.shape_cast %231 : vector<17x8xf32> to vector<1x17x8xf32>
    %233 = vector.extract_strided_slice %208 {offsets = [0, 88], sizes = [17, 8], strides = [1, 1]} : vector<17x96xf32> to vector<17x8xf32>
    %234 = vector.shape_cast %233 : vector<17x8xf32> to vector<1x17x8xf32>
    %235 = tpu.concatenate %228, %230, %232, %234 in 0 : vector<1x17x8xf32>, vector<1x17x8xf32>, vector<1x17x8xf32>, vector<1x17x8xf32> -> vector<4x17x8xf32>
    %236 = arith.truncf %217 : vector<4x17x8xf32> to vector<4x17x8xbf16>
    %237 = arith.truncf %226 : vector<4x17x8xf32> to vector<4x17x8xbf16>
    "tpu.trace_start"() <{level = 10 : i32, message = "hqd,hkd->hqk"}> : () -> ()
    %cst_57 = arith.constant dense<0.000000e+00> : vector<4x17x17xf32>
    %238 = tpu.matmul %236, %237, %cst_57 {dimension_numbers = #tpu.dot_dimension_numbers<[2], [2], [1], [1], [0, 0, 0, 1, 1, 1], [0], [0]>} : vector<4x17x8xbf16>, vector<4x17x8xbf16>, vector<4x17x17xf32> -> vector<4x17x17xf32>
    "tpu.trace_stop"() : () -> ()
    %cst_58 = arith.constant dense<0xFF800000> : vector<4x17xf32>
    %239 = vector.multi_reduction <maximumf>, %238, %cst_58 [2] : vector<4x17x17xf32> to vector<4x17xf32>
    %240 = vector.shape_cast %239 : vector<4x17xf32> to vector<4x17x1xf32>
    %241 = vector.broadcast %240 : vector<4x17x1xf32> to vector<4x17x17xf32>
    %242 = arith.subf %238, %241 : vector<4x17x17xf32>
    %243 = math.exp %242 : vector<4x17x17xf32>
    %cst_59 = arith.constant dense<0.000000e+00> : vector<4x17xf32>
    %244 = vector.multi_reduction <add>, %243, %cst_59 [2] : vector<4x17x17xf32> to vector<4x17xf32>
    %245 = vector.shape_cast %244 : vector<4x17xf32> to vector<4x17x1xf32>
    %246 = vector.broadcast %245 : vector<4x17x1xf32> to vector<4x17x17xf32>
    %247 = arith.divf %243, %246 : vector<4x17x17xf32>
    %248 = arith.truncf %247 : vector<4x17x17xf32> to vector<4x17x17xbf16>
    %249 = arith.truncf %235 : vector<4x17x8xf32> to vector<4x17x8xbf16>
    "tpu.trace_start"() <{level = 10 : i32, message = "hqk,hkd->hqd"}> : () -> ()
    %cst_60 = arith.constant dense<0.000000e+00> : vector<4x17x8xf32>
    %250 = tpu.matmul %248, %249, %cst_60 {dimension_numbers = #tpu.dot_dimension_numbers<[2], [1], [1], [2], [0, 0, 0, 1, 1, 2], [0], [0]>} : vector<4x17x17xbf16>, vector<4x17x8xbf16>, vector<4x17x8xf32> -> vector<4x17x8xf32>
    "tpu.trace_stop"() : () -> ()
    %251 = vector.extract_strided_slice %250 {offsets = [0, 0, 0], sizes = [1, 17, 8], strides = [1, 1, 1]} : vector<4x17x8xf32> to vector<1x17x8xf32>
    %252 = vector.shape_cast %251 : vector<1x17x8xf32> to vector<17x8xf32>
    %c51 = arith.constant 51 : index
    %c0_61 = arith.constant 0 : index
    %253 = vector.load %arg25[%c51, %c0_61] : memref<68x32xf32, #tpu.memory_space<vmem>>, vector<17x8xf32>
    tpu.vector_store %arg25[%c51, %c0_61], %252 {strides = array<i32>} : memref<68x32xf32, #tpu.memory_space<vmem>>, vector<17x8xf32>,
    %254 = vector.extract_strided_slice %250 {offsets = [1, 0, 0], sizes = [1, 17, 8], strides = [1, 1, 1]} : vector<4x17x8xf32> to vector<1x17x8xf32>
    %255 = vector.shape_cast %254 : vector<1x17x8xf32> to vector<17x8xf32>
    %c51_62 = arith.constant 51 : index
    %c8_63 = arith.constant 8 : index
    %256 = vector.load %arg25[%c51_62, %c8_63] : memref<68x32xf32, #tpu.memory_space<vmem>>, vector<17x8xf32>
    tpu.vector_store %arg25[%c51_62, %c8_63], %255 {strides = array<i32>} : memref<68x32xf32, #tpu.memory_space<vmem>>, vector<17x8xf32>,
    %257 = vector.extract_strided_slice %250 {offsets = [2, 0, 0], sizes = [1, 17, 8], strides = [1, 1, 1]} : vector<4x17x8xf32> to vector<1x17x8xf32>
    %258 = vector.shape_cast %257 : vector<1x17x8xf32> to vector<17x8xf32>
    %c51_64 = arith.constant 51 : index
    %c16_65 = arith.constant 16 : index
    %259 = vector.load %arg25[%c51_64, %c16_65] : memref<68x32xf32, #tpu.memory_space<vmem>>, vector<17x8xf32>
    tpu.vector_store %arg25[%c51_64, %c16_65], %258 {strides = array<i32>} : memref<68x32xf32, #tpu.memory_space<vmem>>, vector<17x8xf32>,
    %260 = vector.extract_strided_slice %250 {offsets = [3, 0, 0], sizes = [1, 17, 8], strides = [1, 1, 1]} : vector<4x17x8xf32> to vector<1x17x8xf32>
    %261 = vector.shape_cast %260 : vector<1x17x8xf32> to vector<17x8xf32>
    %c51_66 = arith.constant 51 : index
    %c24_67 = arith.constant 24 : index
    %262 = vector.load %arg25[%c51_66, %c24_67] : memref<68x32xf32, #tpu.memory_space<vmem>>, vector<17x8xf32>
    tpu.vector_store %arg25[%c51_66, %c24_67], %261 {strides = array<i32>} : memref<68x32xf32, #tpu.memory_space<vmem>>, vector<17x8xf32>,
    %c0_68 = arith.constant 0 : index
    %c0_69 = arith.constant 0 : index
    %263 = vector.load %arg25[%c0_68, %c0_69] : memref<68x32xf32, #tpu.memory_space<vmem>>, vector<68x32xf32>
    %264 = arith.truncf %263 : vector<68x32xf32> to vector<68x32xbf16>
    %c0_70 = arith.constant 0 : index
    %c0_71 = arith.constant 0 : index
    %c0_72 = arith.constant 0 : index
    %265 = vector.load %arg10[%c0_70, %c0_71, %c0_72] : memref<2x32x32xbf16, #tpu.memory_space<vmem>>, vector<1x32x32xbf16>
    %266 = vector.shape_cast %265 : vector<1x32x32xbf16> to vector<32x32xbf16>
    %cst_73 = arith.constant dense<0.000000e+00> : vector<68x32xf32>
    %267 = tpu.matmul %264, %266, %cst_73 {dimension_numbers = #tpu.dot_dimension_numbers<[1], [0], [0], [1], [0, 0, 1, 1], [], []>} : vector<68x32xbf16>, vector<32x32xbf16>, vector<68x32xf32> -> vector<68x32xf32>
    %c0_74 = arith.constant 0 : index
    %c0_75 = arith.constant 0 : index
    %c0_76 = arith.constant 0 : index
    %268 = vector.load %arg11[%c0_74, %c0_75, %c0_76] : memref<2x1x32xf32, #tpu.memory_space<vmem>>, vector<1x1x32xf32>
    %269 = vector.shape_cast %268 : vector<1x1x32xf32> to vector<1x32xf32>
    %270 = vector.broadcast %269 : vector<1x32xf32> to vector<68x32xf32>
    %271 = arith.addf %267, %270 : vector<68x32xf32>
    %272 = arith.addf %8, %271 : vector<68x32xf32>
    %c0_77 = arith.constant 0 : index
    %c0_78 = arith.constant 0 : index
    %c0_79 = arith.constant 0 : index
    %273 = vector.load %arg12[%c0_77, %c0_78, %c0_79] : memref<2x1x32xf32, #tpu.memory_space<vmem>>, vector<1x1x32xf32>
    %274 = vector.shape_cast %273 : vector<1x1x32xf32> to vector<1x32xf32>
    %c0_80 = arith.constant 0 : index
    %c0_81 = arith.constant 0 : index
    %c0_82 = arith.constant 0 : index
    %275 = vector.load %arg13[%c0_80, %c0_81, %c0_82] : memref<2x1x32xf32, #tpu.memory_space<vmem>>, vector<1x1x32xf32>
    %276 = vector.shape_cast %275 : vector<1x1x32xf32> to vector<1x32xf32>
    %cst_83 = arith.constant dense<0.000000e+00> : vector<68xf32>
    %277 = vector.multi_reduction <add>, %272, %cst_83 [1] : vector<68x32xf32> to vector<68xf32>
    %278 = vector.shape_cast %277 : vector<68xf32> to vector<68x1xf32>
    %cst_84 = arith.constant 3.200000e+01 : f32
    %279 = vector.broadcast %cst_84 : f32 to vector<68x1xf32>
    %280 = arith.divf %278, %279 : vector<68x1xf32>
    %281 = vector.broadcast %280 : vector<68x1xf32> to vector<68x32xf32>
    %282 = arith.subf %272, %281 : vector<68x32xf32>
    %283 = arith.mulf %282, %282 : vector<68x32xf32>
    %cst_85 = arith.constant dense<0.000000e+00> : vector<68xf32>
    %284 = vector.multi_reduction <add>, %283, %cst_85 [1] : vector<68x32xf32> to vector<68xf32>
    %285 = vector.shape_cast %284 : vector<68xf32> to vector<68x1xf32>
    %cst_86 = arith.constant 3.200000e+01 : f32
    %286 = vector.broadcast %cst_86 : f32 to vector<68x1xf32>
    %287 = arith.divf %285, %286 : vector<68x1xf32>
    %288 = vector.broadcast %280 : vector<68x1xf32> to vector<68x32xf32>
    %289 = arith.subf %272, %288 : vector<68x32xf32>
    %cst_87 = arith.constant 9.99999974E-6 : f32
    %290 = vector.broadcast %cst_87 : f32 to vector<68x1xf32>
    %291 = arith.addf %287, %290 : vector<68x1xf32>
    %292 = math.rsqrt %291 : vector<68x1xf32>
    %293 = vector.broadcast %292 : vector<68x1xf32> to vector<68x32xf32>
    %294 = arith.mulf %289, %293 : vector<68x32xf32>
    %295 = vector.broadcast %274 : vector<1x32xf32> to vector<68x32xf32>
    %296 = arith.mulf %294, %295 : vector<68x32xf32>
    %297 = vector.broadcast %276 : vector<1x32xf32> to vector<68x32xf32>
    %298 = arith.addf %296, %297 : vector<68x32xf32>
    %299 = arith.truncf %298 : vector<68x32xf32> to vector<68x32xbf16>
    %c0_88 = arith.constant 0 : index
    %c0_89 = arith.constant 0 : index
    %c0_90 = arith.constant 0 : index
    %300 = vector.load %arg14[%c0_88, %c0_89, %c0_90] : memref<2x32x128xbf16, #tpu.memory_space<vmem>>, vector<1x32x128xbf16>
    %301 = vector.shape_cast %300 : vector<1x32x128xbf16> to vector<32x128xbf16>
    %cst_91 = arith.constant dense<0.000000e+00> : vector<68x128xf32>
    %302 = tpu.matmul %299, %301, %cst_91 {dimension_numbers = #tpu.dot_dimension_numbers<[1], [0], [0], [1], [0, 0, 1, 1], [], []>} : vector<68x32xbf16>, vector<32x128xbf16>, vector<68x128xf32> -> vector<68x128xf32>
    %c0_92 = arith.constant 0 : index
    %c0_93 = arith.constant 0 : index
    %c0_94 = arith.constant 0 : index
    %303 = vector.load %arg15[%c0_92, %c0_93, %c0_94] : memref<2x1x128xf32, #tpu.memory_space<vmem>>, vector<1x1x128xf32>
    %304 = vector.shape_cast %303 : vector<1x1x128xf32> to vector<1x128xf32>
    %305 = vector.broadcast %304 : vector<1x128xf32> to vector<68x128xf32>
    %306 = arith.addf %302, %305 : vector<68x128xf32>
    %307 = arith.mulf %306, %306 : vector<68x128xf32>
    %308 = arith.mulf %306, %307 : vector<68x128xf32>
    %cst_95 = arith.constant 4.471500e-02 : f32
    %309 = vector.broadcast %cst_95 : f32 to vector<68x128xf32>
    %310 = arith.mulf %309, %308 : vector<68x128xf32>
    %311 = arith.addf %306, %310 : vector<68x128xf32>
    %cst_96 = arith.constant 0.797884583 : f32
    %312 = vector.broadcast %cst_96 : f32 to vector<68x128xf32>
    %313 = arith.mulf %312, %311 : vector<68x128xf32>
    %314 = math.tanh %313 : vector<68x128xf32>
    %cst_97 = arith.constant 1.000000e+00 : f32
    %315 = vector.broadcast %cst_97 : f32 to vector<68x128xf32>
    %316 = arith.addf %315, %314 : vector<68x128xf32>
    %cst_98 = arith.constant 5.000000e-01 : f32
    %317 = vector.broadcast %cst_98 : f32 to vector<68x128xf32>
    %318 = arith.mulf %317, %316 : vector<68x128xf32>
    %319 = arith.mulf %306, %318 : vector<68x128xf32>
    %320 = arith.truncf %319 : vector<68x128xf32> to vector<68x128xbf16>
    %c0_99 = arith.constant 0 : index
    %c0_100 = arith.constant 0 : index
    %c0_101 = arith.constant 0 : index
    %321 = vector.load %arg16[%c0_99, %c0_100, %c0_101] : memref<2x128x32xbf16, #tpu.memory_space<vmem>>, vector<1x128x32xbf16>
    %322 = vector.shape_cast %321 : vector<1x128x32xbf16> to vector<128x32xbf16>
    %cst_102 = arith.constant dense<0.000000e+00> : vector<68x32xf32>
    %323 = tpu.matmul %320, %322, %cst_102 {dimension_numbers = #tpu.dot_dimension_numbers<[1], [0], [0], [1], [0, 0, 1, 1], [], []>} : vector<68x128xbf16>, vector<128x32xbf16>, vector<68x32xf32> -> vector<68x32xf32>
    %c0_103 = arith.constant 0 : index
    %c0_104 = arith.constant 0 : index
    %c0_105 = arith.constant 0 : index
    %324 = vector.load %arg17[%c0_103, %c0_104, %c0_105] : memref<2x1x32xf32, #tpu.memory_space<vmem>>, vector<1x1x32xf32>
    %325 = vector.shape_cast %324 : vector<1x1x32xf32> to vector<1x32xf32>
    %326 = vector.broadcast %325 : vector<1x32xf32> to vector<68x32xf32>
    %327 = arith.addf %323, %326 : vector<68x32xf32>
    %328 = arith.addf %272, %327 : vector<68x32xf32>
    %c1 = arith.constant 1 : index
    %c0_106 = arith.constant 0 : index
    %c0_107 = arith.constant 0 : index
    %329 = vector.load %arg6[%c1, %c0_106, %c0_107] : memref<2x1x32xf32, #tpu.memory_space<vmem>>, vector<1x1x32xf32>
    %330 = vector.shape_cast %329 : vector<1x1x32xf32> to vector<1x32xf32>
    %c1_108 = arith.constant 1 : index
    %c0_109 = arith.constant 0 : index
    %c0_110 = arith.constant 0 : index
    %331 = vector.load %arg7[%c1_108, %c0_109, %c0_110] : memref<2x1x32xf32, #tpu.memory_space<vmem>>, vector<1x1x32xf32>
    %332 = vector.shape_cast %331 : vector<1x1x32xf32> to vector<1x32xf32>
    %cst_111 = arith.constant dense<0.000000e+00> : vector<68xf32>
    %333 = vector.multi_reduction <add>, %328, %cst_111 [1] : vector<68x32xf32> to vector<68xf32>
    %334 = vector.shape_cast %333 : vector<68xf32> to vector<68x1xf32>
    %cst_112 = arith.constant 3.200000e+01 : f32
    %335 = vector.broadcast %cst_112 : f32 to vector<68x1xf32>
    %336 = arith.divf %334, %335 : vector<68x1xf32>
    %337 = vector.broadcast %336 : vector<68x1xf32> to vector<68x32xf32>
    %338 = arith.subf %328, %337 : vector<68x32xf32>
    %339 = arith.mulf %338, %338 : vector<68x32xf32>
    %cst_113 = arith.constant dense<0.000000e+00> : vector<68xf32>
    %340 = vector.multi_reduction <add>, %339, %cst_113 [1] : vector<68x32xf32> to vector<68xf32>
    %341 = vector.shape_cast %340 : vector<68xf32> to vector<68x1xf32>
    %cst_114 = arith.constant 3.200000e+01 : f32
    %342 = vector.broadcast %cst_114 : f32 to vector<68x1xf32>
    %343 = arith.divf %341, %342 : vector<68x1xf32>
    %344 = vector.broadcast %336 : vector<68x1xf32> to vector<68x32xf32>
    %345 = arith.subf %328, %344 : vector<68x32xf32>
    %cst_115 = arith.constant 9.99999974E-6 : f32
    %346 = vector.broadcast %cst_115 : f32 to vector<68x1xf32>
    %347 = arith.addf %343, %346 : vector<68x1xf32>
    %348 = math.rsqrt %347 : vector<68x1xf32>
    %349 = vector.broadcast %348 : vector<68x1xf32> to vector<68x32xf32>
    %350 = arith.mulf %345, %349 : vector<68x32xf32>
    %351 = vector.broadcast %330 : vector<1x32xf32> to vector<68x32xf32>
    %352 = arith.mulf %350, %351 : vector<68x32xf32>
    %353 = vector.broadcast %332 : vector<1x32xf32> to vector<68x32xf32>
    %354 = arith.addf %352, %353 : vector<68x32xf32>
    %355 = arith.truncf %354 : vector<68x32xf32> to vector<68x32xbf16>
    %c1_116 = arith.constant 1 : index
    %c0_117 = arith.constant 0 : index
    %c0_118 = arith.constant 0 : index
    %356 = vector.load %arg8[%c1_116, %c0_117, %c0_118] : memref<2x32x96xbf16, #tpu.memory_space<vmem>>, vector<1x32x96xbf16>
    %357 = vector.shape_cast %356 : vector<1x32x96xbf16> to vector<32x96xbf16>
    %cst_119 = arith.constant dense<0.000000e+00> : vector<68x96xf32>
    %358 = tpu.matmul %355, %357, %cst_119 {dimension_numbers = #tpu.dot_dimension_numbers<[1], [0], [0], [1], [0, 0, 1, 1], [], []>} : vector<68x32xbf16>, vector<32x96xbf16>, vector<68x96xf32> -> vector<68x96xf32>
    %c1_120 = arith.constant 1 : index
    %c0_121 = arith.constant 0 : index
    %c0_122 = arith.constant 0 : index
    %359 = vector.load %arg9[%c1_120, %c0_121, %c0_122] : memref<2x1x96xf32, #tpu.memory_space<vmem>>, vector<1x1x96xf32>
    %360 = vector.shape_cast %359 : vector<1x1x96xf32> to vector<1x96xf32>
    %361 = vector.broadcast %360 : vector<1x96xf32> to vector<68x96xf32>
    %362 = arith.addf %358, %361 : vector<68x96xf32>
    %363 = vector.extract_strided_slice %362 {offsets = [0, 0], sizes = [17, 96], strides = [1, 1]} : vector<68x96xf32> to vector<17x96xf32>
    %364 = vector.extract_strided_slice %363 {offsets = [0, 0], sizes = [17, 8], strides = [1, 1]} : vector<17x96xf32> to vector<17x8xf32>
    %365 = vector.shape_cast %364 : vector<17x8xf32> to vector<1x17x8xf32>
    %366 = vector.extract_strided_slice %363 {offsets = [0, 8], sizes = [17, 8], strides = [1, 1]} : vector<17x96xf32> to vector<17x8xf32>
    %367 = vector.shape_cast %366 : vector<17x8xf32> to vector<1x17x8xf32>
    %368 = vector.extract_strided_slice %363 {offsets = [0, 16], sizes = [17, 8], strides = [1, 1]} : vector<17x96xf32> to vector<17x8xf32>
    %369 = vector.shape_cast %368 : vector<17x8xf32> to vector<1x17x8xf32>
    %370 = vector.extract_strided_slice %363 {offsets = [0, 24], sizes = [17, 8], strides = [1, 1]} : vector<17x96xf32> to vector<17x8xf32>
    %371 = vector.shape_cast %370 : vector<17x8xf32> to vector<1x17x8xf32>
    %372 = tpu.concatenate %365, %367, %369, %371 in 0 : vector<1x17x8xf32>, vector<1x17x8xf32>, vector<1x17x8xf32>, vector<1x17x8xf32> -> vector<4x17x8xf32>
    %373 = vector.extract_strided_slice %363 {offsets = [0, 32], sizes = [17, 8], strides = [1, 1]} : vector<17x96xf32> to vector<17x8xf32>
    %374 = vector.shape_cast %373 : vector<17x8xf32> to vector<1x17x8xf32>
    %375 = vector.extract_strided_slice %363 {offsets = [0, 40], sizes = [17, 8], strides = [1, 1]} : vector<17x96xf32> to vector<17x8xf32>
    %376 = vector.shape_cast %375 : vector<17x8xf32> to vector<1x17x8xf32>
    %377 = vector.extract_strided_slice %363 {offsets = [0, 48], sizes = [17, 8], strides = [1, 1]} : vector<17x96xf32> to vector<17x8xf32>
    %378 = vector.shape_cast %377 : vector<17x8xf32> to vector<1x17x8xf32>
    %379 = vector.extract_strided_slice %363 {offsets = [0, 56], sizes = [17, 8], strides = [1, 1]} : vector<17x96xf32> to vector<17x8xf32>
    %380 = vector.shape_cast %379 : vector<17x8xf32> to vector<1x17x8xf32>
    %381 = tpu.concatenate %374, %376, %378, %380 in 0 : vector<1x17x8xf32>, vector<1x17x8xf32>, vector<1x17x8xf32>, vector<1x17x8xf32> -> vector<4x17x8xf32>
    %382 = vector.extract_strided_slice %363 {offsets = [0, 64], sizes = [17, 8], strides = [1, 1]} : vector<17x96xf32> to vector<17x8xf32>
    %383 = vector.shape_cast %382 : vector<17x8xf32> to vector<1x17x8xf32>
    %384 = vector.extract_strided_slice %363 {offsets = [0, 72], sizes = [17, 8], strides = [1, 1]} : vector<17x96xf32> to vector<17x8xf32>
    %385 = vector.shape_cast %384 : vector<17x8xf32> to vector<1x17x8xf32>
    %386 = vector.extract_strided_slice %363 {offsets = [0, 80], sizes = [17, 8], strides = [1, 1]} : vector<17x96xf32> to vector<17x8xf32>
    %387 = vector.shape_cast %386 : vector<17x8xf32> to vector<1x17x8xf32>
    %388 = vector.extract_strided_slice %363 {offsets = [0, 88], sizes = [17, 8], strides = [1, 1]} : vector<17x96xf32> to vector<17x8xf32>
    %389 = vector.shape_cast %388 : vector<17x8xf32> to vector<1x17x8xf32>
    %390 = tpu.concatenate %383, %385, %387, %389 in 0 : vector<1x17x8xf32>, vector<1x17x8xf32>, vector<1x17x8xf32>, vector<1x17x8xf32> -> vector<4x17x8xf32>
    %391 = arith.truncf %372 : vector<4x17x8xf32> to vector<4x17x8xbf16>
    %392 = arith.truncf %381 : vector<4x17x8xf32> to vector<4x17x8xbf16>
    "tpu.trace_start"() <{level = 10 : i32, message = "hqd,hkd->hqk"}> : () -> ()
    %cst_123 = arith.constant dense<0.000000e+00> : vector<4x17x17xf32>
    %393 = tpu.matmul %391, %392, %cst_123 {dimension_numbers = #tpu.dot_dimension_numbers<[2], [2], [1], [1], [0, 0, 0, 1, 1, 1], [0], [0]>} : vector<4x17x8xbf16>, vector<4x17x8xbf16>, vector<4x17x17xf32> -> vector<4x17x17xf32>
    "tpu.trace_stop"() : () -> ()
    %cst_124 = arith.constant dense<0xFF800000> : vector<4x17xf32>
    %394 = vector.multi_reduction <maximumf>, %393, %cst_124 [2] : vector<4x17x17xf32> to vector<4x17xf32>
    %395 = vector.shape_cast %394 : vector<4x17xf32> to vector<4x17x1xf32>
    %396 = vector.broadcast %395 : vector<4x17x1xf32> to vector<4x17x17xf32>
    %397 = arith.subf %393, %396 : vector<4x17x17xf32>
    %398 = math.exp %397 : vector<4x17x17xf32>
    %cst_125 = arith.constant dense<0.000000e+00> : vector<4x17xf32>
    %399 = vector.multi_reduction <add>, %398, %cst_125 [2] : vector<4x17x17xf32> to vector<4x17xf32>
    %400 = vector.shape_cast %399 : vector<4x17xf32> to vector<4x17x1xf32>
    %401 = vector.broadcast %400 : vector<4x17x1xf32> to vector<4x17x17xf32>
    %402 = arith.divf %398, %401 : vector<4x17x17xf32>
    %403 = arith.truncf %402 : vector<4x17x17xf32> to vector<4x17x17xbf16>
    %404 = arith.truncf %390 : vector<4x17x8xf32> to vector<4x17x8xbf16>
    "tpu.trace_start"() <{level = 10 : i32, message = "hqk,hkd->hqd"}> : () -> ()
    %cst_126 = arith.constant dense<0.000000e+00> : vector<4x17x8xf32>
    %405 = tpu.matmul %403, %404, %cst_126 {dimension_numbers = #tpu.dot_dimension_numbers<[2], [1], [1], [2], [0, 0, 0, 1, 1, 2], [0], [0]>} : vector<4x17x17xbf16>, vector<4x17x8xbf16>, vector<4x17x8xf32> -> vector<4x17x8xf32>
    "tpu.trace_stop"() : () -> ()
    %406 = vector.extract_strided_slice %405 {offsets = [0, 0, 0], sizes = [1, 17, 8], strides = [1, 1, 1]} : vector<4x17x8xf32> to vector<1x17x8xf32>
    %407 = vector.shape_cast %406 : vector<1x17x8xf32> to vector<17x8xf32>
    %c0_127 = arith.constant 0 : index
    %c0_128 = arith.constant 0 : index
    %408 = vector.load %arg25[%c0_127, %c0_128] : memref<68x32xf32, #tpu.memory_space<vmem>>, vector<17x8xf32>
    tpu.vector_store %arg25[%c0_127, %c0_128], %407 {strides = array<i32>} : memref<68x32xf32, #tpu.memory_space<vmem>>, vector<17x8xf32>,
    %409 = vector.extract_strided_slice %405 {offsets = [1, 0, 0], sizes = [1, 17, 8], strides = [1, 1, 1]} : vector<4x17x8xf32> to vector<1x17x8xf32>
    %410 = vector.shape_cast %409 : vector<1x17x8xf32> to vector<17x8xf32>
    %c0_129 = arith.constant 0 : index
    %c8_130 = arith.constant 8 : index
    %411 = vector.load %arg25[%c0_129, %c8_130] : memref<68x32xf32, #tpu.memory_space<vmem>>, vector<17x8xf32>
    tpu.vector_store %arg25[%c0_129, %c8_130], %410 {strides = array<i32>} : memref<68x32xf32, #tpu.memory_space<vmem>>, vector<17x8xf32>,
    %412 = vector.extract_strided_slice %405 {offsets = [2, 0, 0], sizes = [1, 17, 8], strides = [1, 1, 1]} : vector<4x17x8xf32> to vector<1x17x8xf32>
    %413 = vector.shape_cast %412 : vector<1x17x8xf32> to vector<17x8xf32>
    %c0_131 = arith.constant 0 : index
    %c16_132 = arith.constant 16 : index
    %414 = vector.load %arg25[%c0_131, %c16_132] : memref<68x32xf32, #tpu.memory_space<vmem>>, vector<17x8xf32>
    tpu.vector_store %arg25[%c0_131, %c16_132], %413 {strides = array<i32>} : memref<68x32xf32, #tpu.memory_space<vmem>>, vector<17x8xf32>,
    %415 = vector.extract_strided_slice %405 {offsets = [3, 0, 0], sizes = [1, 17, 8], strides = [1, 1, 1]} : vector<4x17x8xf32> to vector<1x17x8xf32>
    %416 = vector.shape_cast %415 : vector<1x17x8xf32> to vector<17x8xf32>
    %c0_133 = arith.constant 0 : index
    %c24_134 = arith.constant 24 : index
    %417 = vector.load %arg25[%c0_133, %c24_134] : memref<68x32xf32, #tpu.memory_space<vmem>>, vector<17x8xf32>
    tpu.vector_store %arg25[%c0_133, %c24_134], %416 {strides = array<i32>} : memref<68x32xf32, #tpu.memory_space<vmem>>, vector<17x8xf32>,
    %418 = vector.extract_strided_slice %362 {offsets = [17, 0], sizes = [17, 96], strides = [1, 1]} : vector<68x96xf32> to vector<17x96xf32>
    %419 = vector.extract_strided_slice %418 {offsets = [0, 0], sizes = [17, 8], strides = [1, 1]} : vector<17x96xf32> to vector<17x8xf32>
    %420 = vector.shape_cast %419 : vector<17x8xf32> to vector<1x17x8xf32>
    %421 = vector.extract_strided_slice %418 {offsets = [0, 8], sizes = [17, 8], strides = [1, 1]} : vector<17x96xf32> to vector<17x8xf32>
    %422 = vector.shape_cast %421 : vector<17x8xf32> to vector<1x17x8xf32>
    %423 = vector.extract_strided_slice %418 {offsets = [0, 16], sizes = [17, 8], strides = [1, 1]} : vector<17x96xf32> to vector<17x8xf32>
    %424 = vector.shape_cast %423 : vector<17x8xf32> to vector<1x17x8xf32>
    %425 = vector.extract_strided_slice %418 {offsets = [0, 24], sizes = [17, 8], strides = [1, 1]} : vector<17x96xf32> to vector<17x8xf32>
    %426 = vector.shape_cast %425 : vector<17x8xf32> to vector<1x17x8xf32>
    %427 = tpu.concatenate %420, %422, %424, %426 in 0 : vector<1x17x8xf32>, vector<1x17x8xf32>, vector<1x17x8xf32>, vector<1x17x8xf32> -> vector<4x17x8xf32>
    %428 = vector.extract_strided_slice %418 {offsets = [0, 32], sizes = [17, 8], strides = [1, 1]} : vector<17x96xf32> to vector<17x8xf32>
    %429 = vector.shape_cast %428 : vector<17x8xf32> to vector<1x17x8xf32>
    %430 = vector.extract_strided_slice %418 {offsets = [0, 40], sizes = [17, 8], strides = [1, 1]} : vector<17x96xf32> to vector<17x8xf32>
    %431 = vector.shape_cast %430 : vector<17x8xf32> to vector<1x17x8xf32>
    %432 = vector.extract_strided_slice %418 {offsets = [0, 48], sizes = [17, 8], strides = [1, 1]} : vector<17x96xf32> to vector<17x8xf32>
    %433 = vector.shape_cast %432 : vector<17x8xf32> to vector<1x17x8xf32>
    %434 = vector.extract_strided_slice %418 {offsets = [0, 56], sizes = [17, 8], strides = [1, 1]} : vector<17x96xf32> to vector<17x8xf32>
    %435 = vector.shape_cast %434 : vector<17x8xf32> to vector<1x17x8xf32>
    %436 = tpu.concatenate %429, %431, %433, %435 in 0 : vector<1x17x8xf32>, vector<1x17x8xf32>, vector<1x17x8xf32>, vector<1x17x8xf32> -> vector<4x17x8xf32>
    %437 = vector.extract_strided_slice %418 {offsets = [0, 64], sizes = [17, 8], strides = [1, 1]} : vector<17x96xf32> to vector<17x8xf32>
    %438 = vector.shape_cast %437 : vector<17x8xf32> to vector<1x17x8xf32>
    %439 = vector.extract_strided_slice %418 {offsets = [0, 72], sizes = [17, 8], strides = [1, 1]} : vector<17x96xf32> to vector<17x8xf32>
    %440 = vector.shape_cast %439 : vector<17x8xf32> to vector<1x17x8xf32>
    %441 = vector.extract_strided_slice %418 {offsets = [0, 80], sizes = [17, 8], strides = [1, 1]} : vector<17x96xf32> to vector<17x8xf32>
    %442 = vector.shape_cast %441 : vector<17x8xf32> to vector<1x17x8xf32>
    %443 = vector.extract_strided_slice %418 {offsets = [0, 88], sizes = [17, 8], strides = [1, 1]} : vector<17x96xf32> to vector<17x8xf32>
    %444 = vector.shape_cast %443 : vector<17x8xf32> to vector<1x17x8xf32>
    %445 = tpu.concatenate %438, %440, %442, %444 in 0 : vector<1x17x8xf32>, vector<1x17x8xf32>, vector<1x17x8xf32>, vector<1x17x8xf32> -> vector<4x17x8xf32>
    %446 = arith.truncf %427 : vector<4x17x8xf32> to vector<4x17x8xbf16>
    %447 = arith.truncf %436 : vector<4x17x8xf32> to vector<4x17x8xbf16>
    "tpu.trace_start"() <{level = 10 : i32, message = "hqd,hkd->hqk"}> : () -> ()
    %cst_135 = arith.constant dense<0.000000e+00> : vector<4x17x17xf32>
    %448 = tpu.matmul %446, %447, %cst_135 {dimension_numbers = #tpu.dot_dimension_numbers<[2], [2], [1], [1], [0, 0, 0, 1, 1, 1], [0], [0]>} : vector<4x17x8xbf16>, vector<4x17x8xbf16>, vector<4x17x17xf32> -> vector<4x17x17xf32>
    "tpu.trace_stop"() : () -> ()
    %cst_136 = arith.constant dense<0xFF800000> : vector<4x17xf32>
    %449 = vector.multi_reduction <maximumf>, %448, %cst_136 [2] : vector<4x17x17xf32> to vector<4x17xf32>
    %450 = vector.shape_cast %449 : vector<4x17xf32> to vector<4x17x1xf32>
    %451 = vector.broadcast %450 : vector<4x17x1xf32> to vector<4x17x17xf32>
    %452 = arith.subf %448, %451 : vector<4x17x17xf32>
    %453 = math.exp %452 : vector<4x17x17xf32>
    %cst_137 = arith.constant dense<0.000000e+00> : vector<4x17xf32>
    %454 = vector.multi_reduction <add>, %453, %cst_137 [2] : vector<4x17x17xf32> to vector<4x17xf32>
    %455 = vector.shape_cast %454 : vector<4x17xf32> to vector<4x17x1xf32>
    %456 = vector.broadcast %455 : vector<4x17x1xf32> to vector<4x17x17xf32>
    %457 = arith.divf %453, %456 : vector<4x17x17xf32>
    %458 = arith.truncf %457 : vector<4x17x17xf32> to vector<4x17x17xbf16>
    %459 = arith.truncf %445 : vector<4x17x8xf32> to vector<4x17x8xbf16>
    "tpu.trace_start"() <{level = 10 : i32, message = "hqk,hkd->hqd"}> : () -> ()
    %cst_138 = arith.constant dense<0.000000e+00> : vector<4x17x8xf32>
    %460 = tpu.matmul %458, %459, %cst_138 {dimension_numbers = #tpu.dot_dimension_numbers<[2], [1], [1], [2], [0, 0, 0, 1, 1, 2], [0], [0]>} : vector<4x17x17xbf16>, vector<4x17x8xbf16>, vector<4x17x8xf32> -> vector<4x17x8xf32>
    "tpu.trace_stop"() : () -> ()
    %461 = vector.extract_strided_slice %460 {offsets = [0, 0, 0], sizes = [1, 17, 8], strides = [1, 1, 1]} : vector<4x17x8xf32> to vector<1x17x8xf32>
    %462 = vector.shape_cast %461 : vector<1x17x8xf32> to vector<17x8xf32>
    %c17_139 = arith.constant 17 : index
    %c0_140 = arith.constant 0 : index
    %463 = vector.load %arg25[%c17_139, %c0_140] : memref<68x32xf32, #tpu.memory_space<vmem>>, vector<17x8xf32>
    tpu.vector_store %arg25[%c17_139, %c0_140], %462 {strides = array<i32>} : memref<68x32xf32, #tpu.memory_space<vmem>>, vector<17x8xf32>,
    %464 = vector.extract_strided_slice %460 {offsets = [1, 0, 0], sizes = [1, 17, 8], strides = [1, 1, 1]} : vector<4x17x8xf32> to vector<1x17x8xf32>
    %465 = vector.shape_cast %464 : vector<1x17x8xf32> to vector<17x8xf32>
    %c17_141 = arith.constant 17 : index
    %c8_142 = arith.constant 8 : index
    %466 = vector.load %arg25[%c17_141, %c8_142] : memref<68x32xf32, #tpu.memory_space<vmem>>, vector<17x8xf32>
    tpu.vector_store %arg25[%c17_141, %c8_142], %465 {strides = array<i32>} : memref<68x32xf32, #tpu.memory_space<vmem>>, vector<17x8xf32>,
    %467 = vector.extract_strided_slice %460 {offsets = [2, 0, 0], sizes = [1, 17, 8], strides = [1, 1, 1]} : vector<4x17x8xf32> to vector<1x17x8xf32>
    %468 = vector.shape_cast %467 : vector<1x17x8xf32> to vector<17x8xf32>
    %c17_143 = arith.constant 17 : index
    %c16_144 = arith.constant 16 : index
    %469 = vector.load %arg25[%c17_143, %c16_144] : memref<68x32xf32, #tpu.memory_space<vmem>>, vector<17x8xf32>
    tpu.vector_store %arg25[%c17_143, %c16_144], %468 {strides = array<i32>} : memref<68x32xf32, #tpu.memory_space<vmem>>, vector<17x8xf32>,
    %470 = vector.extract_strided_slice %460 {offsets = [3, 0, 0], sizes = [1, 17, 8], strides = [1, 1, 1]} : vector<4x17x8xf32> to vector<1x17x8xf32>
    %471 = vector.shape_cast %470 : vector<1x17x8xf32> to vector<17x8xf32>
    %c17_145 = arith.constant 17 : index
    %c24_146 = arith.constant 24 : index
    %472 = vector.load %arg25[%c17_145, %c24_146] : memref<68x32xf32, #tpu.memory_space<vmem>>, vector<17x8xf32>
    tpu.vector_store %arg25[%c17_145, %c24_146], %471 {strides = array<i32>} : memref<68x32xf32, #tpu.memory_space<vmem>>, vector<17x8xf32>,
    %473 = vector.extract_strided_slice %362 {offsets = [34, 0], sizes = [17, 96], strides = [1, 1]} : vector<68x96xf32> to vector<17x96xf32>
    %474 = vector.extract_strided_slice %473 {offsets = [0, 0], sizes = [17, 8], strides = [1, 1]} : vector<17x96xf32> to vector<17x8xf32>
    %475 = vector.shape_cast %474 : vector<17x8xf32> to vector<1x17x8xf32>
    %476 = vector.extract_strided_slice %473 {offsets = [0, 8], sizes = [17, 8], strides = [1, 1]} : vector<17x96xf32> to vector<17x8xf32>
    %477 = vector.shape_cast %476 : vector<17x8xf32> to vector<1x17x8xf32>
    %478 = vector.extract_strided_slice %473 {offsets = [0, 16], sizes = [17, 8], strides = [1, 1]} : vector<17x96xf32> to vector<17x8xf32>
    %479 = vector.shape_cast %478 : vector<17x8xf32> to vector<1x17x8xf32>
    %480 = vector.extract_strided_slice %473 {offsets = [0, 24], sizes = [17, 8], strides = [1, 1]} : vector<17x96xf32> to vector<17x8xf32>
    %481 = vector.shape_cast %480 : vector<17x8xf32> to vector<1x17x8xf32>
    %482 = tpu.concatenate %475, %477, %479, %481 in 0 : vector<1x17x8xf32>, vector<1x17x8xf32>, vector<1x17x8xf32>, vector<1x17x8xf32> -> vector<4x17x8xf32>
    %483 = vector.extract_strided_slice %473 {offsets = [0, 32], sizes = [17, 8], strides = [1, 1]} : vector<17x96xf32> to vector<17x8xf32>
    %484 = vector.shape_cast %483 : vector<17x8xf32> to vector<1x17x8xf32>
    %485 = vector.extract_strided_slice %473 {offsets = [0, 40], sizes = [17, 8], strides = [1, 1]} : vector<17x96xf32> to vector<17x8xf32>
    %486 = vector.shape_cast %485 : vector<17x8xf32> to vector<1x17x8xf32>
    %487 = vector.extract_strided_slice %473 {offsets = [0, 48], sizes = [17, 8], strides = [1, 1]} : vector<17x96xf32> to vector<17x8xf32>
    %488 = vector.shape_cast %487 : vector<17x8xf32> to vector<1x17x8xf32>
    %489 = vector.extract_strided_slice %473 {offsets = [0, 56], sizes = [17, 8], strides = [1, 1]} : vector<17x96xf32> to vector<17x8xf32>
    %490 = vector.shape_cast %489 : vector<17x8xf32> to vector<1x17x8xf32>
    %491 = tpu.concatenate %484, %486, %488, %490 in 0 : vector<1x17x8xf32>, vector<1x17x8xf32>, vector<1x17x8xf32>, vector<1x17x8xf32> -> vector<4x17x8xf32>
    %492 = vector.extract_strided_slice %473 {offsets = [0, 64], sizes = [17, 8], strides = [1, 1]} : vector<17x96xf32> to vector<17x8xf32>
    %493 = vector.shape_cast %492 : vector<17x8xf32> to vector<1x17x8xf32>
    %494 = vector.extract_strided_slice %473 {offsets = [0, 72], sizes = [17, 8], strides = [1, 1]} : vector<17x96xf32> to vector<17x8xf32>
    %495 = vector.shape_cast %494 : vector<17x8xf32> to vector<1x17x8xf32>
    %496 = vector.extract_strided_slice %473 {offsets = [0, 80], sizes = [17, 8], strides = [1, 1]} : vector<17x96xf32> to vector<17x8xf32>
    %497 = vector.shape_cast %496 : vector<17x8xf32> to vector<1x17x8xf32>
    %498 = vector.extract_strided_slice %473 {offsets = [0, 88], sizes = [17, 8], strides = [1, 1]} : vector<17x96xf32> to vector<17x8xf32>
    %499 = vector.shape_cast %498 : vector<17x8xf32> to vector<1x17x8xf32>
    %500 = tpu.concatenate %493, %495, %497, %499 in 0 : vector<1x17x8xf32>, vector<1x17x8xf32>, vector<1x17x8xf32>, vector<1x17x8xf32> -> vector<4x17x8xf32>
    %501 = arith.truncf %482 : vector<4x17x8xf32> to vector<4x17x8xbf16>
    %502 = arith.truncf %491 : vector<4x17x8xf32> to vector<4x17x8xbf16>
    "tpu.trace_start"() <{level = 10 : i32, message = "hqd,hkd->hqk"}> : () -> ()
    %cst_147 = arith.constant dense<0.000000e+00> : vector<4x17x17xf32>
    %503 = tpu.matmul %501, %502, %cst_147 {dimension_numbers = #tpu.dot_dimension_numbers<[2], [2], [1], [1], [0, 0, 0, 1, 1, 1], [0], [0]>} : vector<4x17x8xbf16>, vector<4x17x8xbf16>, vector<4x17x17xf32> -> vector<4x17x17xf32>
    "tpu.trace_stop"() : () -> ()
    %cst_148 = arith.constant dense<0xFF800000> : vector<4x17xf32>
    %504 = vector.multi_reduction <maximumf>, %503, %cst_148 [2] : vector<4x17x17xf32> to vector<4x17xf32>
    %505 = vector.shape_cast %504 : vector<4x17xf32> to vector<4x17x1xf32>
    %506 = vector.broadcast %505 : vector<4x17x1xf32> to vector<4x17x17xf32>
    %507 = arith.subf %503, %506 : vector<4x17x17xf32>
    %508 = math.exp %507 : vector<4x17x17xf32>
    %cst_149 = arith.constant dense<0.000000e+00> : vector<4x17xf32>
    %509 = vector.multi_reduction <add>, %508, %cst_149 [2] : vector<4x17x17xf32> to vector<4x17xf32>
    %510 = vector.shape_cast %509 : vector<4x17xf32> to vector<4x17x1xf32>
    %511 = vector.broadcast %510 : vector<4x17x1xf32> to vector<4x17x17xf32>
    %512 = arith.divf %508, %511 : vector<4x17x17xf32>
    %513 = arith.truncf %512 : vector<4x17x17xf32> to vector<4x17x17xbf16>
    %514 = arith.truncf %500 : vector<4x17x8xf32> to vector<4x17x8xbf16>
    "tpu.trace_start"() <{level = 10 : i32, message = "hqk,hkd->hqd"}> : () -> ()
    %cst_150 = arith.constant dense<0.000000e+00> : vector<4x17x8xf32>
    %515 = tpu.matmul %513, %514, %cst_150 {dimension_numbers = #tpu.dot_dimension_numbers<[2], [1], [1], [2], [0, 0, 0, 1, 1, 2], [0], [0]>} : vector<4x17x17xbf16>, vector<4x17x8xbf16>, vector<4x17x8xf32> -> vector<4x17x8xf32>
    "tpu.trace_stop"() : () -> ()
    %516 = vector.extract_strided_slice %515 {offsets = [0, 0, 0], sizes = [1, 17, 8], strides = [1, 1, 1]} : vector<4x17x8xf32> to vector<1x17x8xf32>
    %517 = vector.shape_cast %516 : vector<1x17x8xf32> to vector<17x8xf32>
    %c34_151 = arith.constant 34 : index
    %c0_152 = arith.constant 0 : index
    %518 = vector.load %arg25[%c34_151, %c0_152] : memref<68x32xf32, #tpu.memory_space<vmem>>, vector<17x8xf32>
    tpu.vector_store %arg25[%c34_151, %c0_152], %517 {strides = array<i32>} : memref<68x32xf32, #tpu.memory_space<vmem>>, vector<17x8xf32>,
    %519 = vector.extract_strided_slice %515 {offsets = [1, 0, 0], sizes = [1, 17, 8], strides = [1, 1, 1]} : vector<4x17x8xf32> to vector<1x17x8xf32>
    %520 = vector.shape_cast %519 : vector<1x17x8xf32> to vector<17x8xf32>
    %c34_153 = arith.constant 34 : index
    %c8_154 = arith.constant 8 : index
    %521 = vector.load %arg25[%c34_153, %c8_154] : memref<68x32xf32, #tpu.memory_space<vmem>>, vector<17x8xf32>
    tpu.vector_store %arg25[%c34_153, %c8_154], %520 {strides = array<i32>} : memref<68x32xf32, #tpu.memory_space<vmem>>, vector<17x8xf32>,
    %522 = vector.extract_strided_slice %515 {offsets = [2, 0, 0], sizes = [1, 17, 8], strides = [1, 1, 1]} : vector<4x17x8xf32> to vector<1x17x8xf32>
    %523 = vector.shape_cast %522 : vector<1x17x8xf32> to vector<17x8xf32>
    %c34_155 = arith.constant 34 : index
    %c16_156 = arith.constant 16 : index
    %524 = vector.load %arg25[%c34_155, %c16_156] : memref<68x32xf32, #tpu.memory_space<vmem>>, vector<17x8xf32>
    tpu.vector_store %arg25[%c34_155, %c16_156], %523 {strides = array<i32>} : memref<68x32xf32, #tpu.memory_space<vmem>>, vector<17x8xf32>,
    %525 = vector.extract_strided_slice %515 {offsets = [3, 0, 0], sizes = [1, 17, 8], strides = [1, 1, 1]} : vector<4x17x8xf32> to vector<1x17x8xf32>
    %526 = vector.shape_cast %525 : vector<1x17x8xf32> to vector<17x8xf32>
    %c34_157 = arith.constant 34 : index
    %c24_158 = arith.constant 24 : index
    %527 = vector.load %arg25[%c34_157, %c24_158] : memref<68x32xf32, #tpu.memory_space<vmem>>, vector<17x8xf32>
    tpu.vector_store %arg25[%c34_157, %c24_158], %526 {strides = array<i32>} : memref<68x32xf32, #tpu.memory_space<vmem>>, vector<17x8xf32>,
    %528 = vector.extract_strided_slice %362 {offsets = [51, 0], sizes = [17, 96], strides = [1, 1]} : vector<68x96xf32> to vector<17x96xf32>
    %529 = vector.extract_strided_slice %528 {offsets = [0, 0], sizes = [17, 8], strides = [1, 1]} : vector<17x96xf32> to vector<17x8xf32>
    %530 = vector.shape_cast %529 : vector<17x8xf32> to vector<1x17x8xf32>
    %531 = vector.extract_strided_slice %528 {offsets = [0, 8], sizes = [17, 8], strides = [1, 1]} : vector<17x96xf32> to vector<17x8xf32>
    %532 = vector.shape_cast %531 : vector<17x8xf32> to vector<1x17x8xf32>
    %533 = vector.extract_strided_slice %528 {offsets = [0, 16], sizes = [17, 8], strides = [1, 1]} : vector<17x96xf32> to vector<17x8xf32>
    %534 = vector.shape_cast %533 : vector<17x8xf32> to vector<1x17x8xf32>
    %535 = vector.extract_strided_slice %528 {offsets = [0, 24], sizes = [17, 8], strides = [1, 1]} : vector<17x96xf32> to vector<17x8xf32>
    %536 = vector.shape_cast %535 : vector<17x8xf32> to vector<1x17x8xf32>
    %537 = tpu.concatenate %530, %532, %534, %536 in 0 : vector<1x17x8xf32>, vector<1x17x8xf32>, vector<1x17x8xf32>, vector<1x17x8xf32> -> vector<4x17x8xf32>
    %538 = vector.extract_strided_slice %528 {offsets = [0, 32], sizes = [17, 8], strides = [1, 1]} : vector<17x96xf32> to vector<17x8xf32>
    %539 = vector.shape_cast %538 : vector<17x8xf32> to vector<1x17x8xf32>
    %540 = vector.extract_strided_slice %528 {offsets = [0, 40], sizes = [17, 8], strides = [1, 1]} : vector<17x96xf32> to vector<17x8xf32>
    %541 = vector.shape_cast %540 : vector<17x8xf32> to vector<1x17x8xf32>
    %542 = vector.extract_strided_slice %528 {offsets = [0, 48], sizes = [17, 8], strides = [1, 1]} : vector<17x96xf32> to vector<17x8xf32>
    %543 = vector.shape_cast %542 : vector<17x8xf32> to vector<1x17x8xf32>
    %544 = vector.extract_strided_slice %528 {offsets = [0, 56], sizes = [17, 8], strides = [1, 1]} : vector<17x96xf32> to vector<17x8xf32>
    %545 = vector.shape_cast %544 : vector<17x8xf32> to vector<1x17x8xf32>
    %546 = tpu.concatenate %539, %541, %543, %545 in 0 : vector<1x17x8xf32>, vector<1x17x8xf32>, vector<1x17x8xf32>, vector<1x17x8xf32> -> vector<4x17x8xf32>
    %547 = vector.extract_strided_slice %528 {offsets = [0, 64], sizes = [17, 8], strides = [1, 1]} : vector<17x96xf32> to vector<17x8xf32>
    %548 = vector.shape_cast %547 : vector<17x8xf32> to vector<1x17x8xf32>
    %549 = vector.extract_strided_slice %528 {offsets = [0, 72], sizes = [17, 8], strides = [1, 1]} : vector<17x96xf32> to vector<17x8xf32>
    %550 = vector.shape_cast %549 : vector<17x8xf32> to vector<1x17x8xf32>
    %551 = vector.extract_strided_slice %528 {offsets = [0, 80], sizes = [17, 8], strides = [1, 1]} : vector<17x96xf32> to vector<17x8xf32>
    %552 = vector.shape_cast %551 : vector<17x8xf32> to vector<1x17x8xf32>
    %553 = vector.extract_strided_slice %528 {offsets = [0, 88], sizes = [17, 8], strides = [1, 1]} : vector<17x96xf32> to vector<17x8xf32>
    %554 = vector.shape_cast %553 : vector<17x8xf32> to vector<1x17x8xf32>
    %555 = tpu.concatenate %548, %550, %552, %554 in 0 : vector<1x17x8xf32>, vector<1x17x8xf32>, vector<1x17x8xf32>, vector<1x17x8xf32> -> vector<4x17x8xf32>
    %556 = arith.truncf %537 : vector<4x17x8xf32> to vector<4x17x8xbf16>
    %557 = arith.truncf %546 : vector<4x17x8xf32> to vector<4x17x8xbf16>
    "tpu.trace_start"() <{level = 10 : i32, message = "hqd,hkd->hqk"}> : () -> ()
    %cst_159 = arith.constant dense<0.000000e+00> : vector<4x17x17xf32>
    %558 = tpu.matmul %556, %557, %cst_159 {dimension_numbers = #tpu.dot_dimension_numbers<[2], [2], [1], [1], [0, 0, 0, 1, 1, 1], [0], [0]>} : vector<4x17x8xbf16>, vector<4x17x8xbf16>, vector<4x17x17xf32> -> vector<4x17x17xf32>
    "tpu.trace_stop"() : () -> ()
    %cst_160 = arith.constant dense<0xFF800000> : vector<4x17xf32>
    %559 = vector.multi_reduction <maximumf>, %558, %cst_160 [2] : vector<4x17x17xf32> to vector<4x17xf32>
    %560 = vector.shape_cast %559 : vector<4x17xf32> to vector<4x17x1xf32>
    %561 = vector.broadcast %560 : vector<4x17x1xf32> to vector<4x17x17xf32>
    %562 = arith.subf %558, %561 : vector<4x17x17xf32>
    %563 = math.exp %562 : vector<4x17x17xf32>
    %cst_161 = arith.constant dense<0.000000e+00> : vector<4x17xf32>
    %564 = vector.multi_reduction <add>, %563, %cst_161 [2] : vector<4x17x17xf32> to vector<4x17xf32>
    %565 = vector.shape_cast %564 : vector<4x17xf32> to vector<4x17x1xf32>
    %566 = vector.broadcast %565 : vector<4x17x1xf32> to vector<4x17x17xf32>
    %567 = arith.divf %563, %566 : vector<4x17x17xf32>
    %568 = arith.truncf %567 : vector<4x17x17xf32> to vector<4x17x17xbf16>
    %569 = arith.truncf %555 : vector<4x17x8xf32> to vector<4x17x8xbf16>
    "tpu.trace_start"() <{level = 10 : i32, message = "hqk,hkd->hqd"}> : () -> ()
    %cst_162 = arith.constant dense<0.000000e+00> : vector<4x17x8xf32>
    %570 = tpu.matmul %568, %569, %cst_162 {dimension_numbers = #tpu.dot_dimension_numbers<[2], [1], [1], [2], [0, 0, 0, 1, 1, 2], [0], [0]>} : vector<4x17x17xbf16>, vector<4x17x8xbf16>, vector<4x17x8xf32> -> vector<4x17x8xf32>
    "tpu.trace_stop"() : () -> ()
    %571 = vector.extract_strided_slice %570 {offsets = [0, 0, 0], sizes = [1, 17, 8], strides = [1, 1, 1]} : vector<4x17x8xf32> to vector<1x17x8xf32>
    %572 = vector.shape_cast %571 : vector<1x17x8xf32> to vector<17x8xf32>
    %c51_163 = arith.constant 51 : index
    %c0_164 = arith.constant 0 : index
    %573 = vector.load %arg25[%c51_163, %c0_164] : memref<68x32xf32, #tpu.memory_space<vmem>>, vector<17x8xf32>
    tpu.vector_store %arg25[%c51_163, %c0_164], %572 {strides = array<i32>} : memref<68x32xf32, #tpu.memory_space<vmem>>, vector<17x8xf32>,
    %574 = vector.extract_strided_slice %570 {offsets = [1, 0, 0], sizes = [1, 17, 8], strides = [1, 1, 1]} : vector<4x17x8xf32> to vector<1x17x8xf32>
    %575 = vector.shape_cast %574 : vector<1x17x8xf32> to vector<17x8xf32>
    %c51_165 = arith.constant 51 : index
    %c8_166 = arith.constant 8 : index
    %576 = vector.load %arg25[%c51_165, %c8_166] : memref<68x32xf32, #tpu.memory_space<vmem>>, vector<17x8xf32>
    tpu.vector_store %arg25[%c51_165, %c8_166], %575 {strides = array<i32>} : memref<68x32xf32, #tpu.memory_space<vmem>>, vector<17x8xf32>,
    %577 = vector.extract_strided_slice %570 {offsets = [2, 0, 0], sizes = [1, 17, 8], strides = [1, 1, 1]} : vector<4x17x8xf32> to vector<1x17x8xf32>
    %578 = vector.shape_cast %577 : vector<1x17x8xf32> to vector<17x8xf32>
    %c51_167 = arith.constant 51 : index
    %c16_168 = arith.constant 16 : index
    %579 = vector.load %arg25[%c51_167, %c16_168] : memref<68x32xf32, #tpu.memory_space<vmem>>, vector<17x8xf32>
    tpu.vector_store %arg25[%c51_167, %c16_168], %578 {strides = array<i32>} : memref<68x32xf32, #tpu.memory_space<vmem>>, vector<17x8xf32>,
    %580 = vector.extract_strided_slice %570 {offsets = [3, 0, 0], sizes = [1, 17, 8], strides = [1, 1, 1]} : vector<4x17x8xf32> to vector<1x17x8xf32>
    %581 = vector.shape_cast %580 : vector<1x17x8xf32> to vector<17x8xf32>
    %c51_169 = arith.constant 51 : index
    %c24_170 = arith.constant 24 : index
    %582 = vector.load %arg25[%c51_169, %c24_170] : memref<68x32xf32, #tpu.memory_space<vmem>>, vector<17x8xf32>
    tpu.vector_store %arg25[%c51_169, %c24_170], %581 {strides = array<i32>} : memref<68x32xf32, #tpu.memory_space<vmem>>, vector<17x8xf32>,
    %c0_171 = arith.constant 0 : index
    %c0_172 = arith.constant 0 : index
    %583 = vector.load %arg25[%c0_171, %c0_172] : memref<68x32xf32, #tpu.memory_space<vmem>>, vector<68x32xf32>
    %584 = arith.truncf %583 : vector<68x32xf32> to vector<68x32xbf16>
    %c1_173 = arith.constant 1 : index
    %c0_174 = arith.constant 0 : index
    %c0_175 = arith.constant 0 : index
    %585 = vector.load %arg10[%c1_173, %c0_174, %c0_175] : memref<2x32x32xbf16, #tpu.memory_space<vmem>>, vector<1x32x32xbf16>
    %586 = vector.shape_cast %585 : vector<1x32x32xbf16> to vector<32x32xbf16>
    %cst_176 = arith.constant dense<0.000000e+00> : vector<68x32xf32>
    %587 = tpu.matmul %584, %586, %cst_176 {dimension_numbers = #tpu.dot_dimension_numbers<[1], [0], [0], [1], [0, 0, 1, 1], [], []>} : vector<68x32xbf16>, vector<32x32xbf16>, vector<68x32xf32> -> vector<68x32xf32>
    %c1_177 = arith.constant 1 : index
    %c0_178 = arith.constant 0 : index
    %c0_179 = arith.constant 0 : index
    %588 = vector.load %arg11[%c1_177, %c0_178, %c0_179] : memref<2x1x32xf32, #tpu.memory_space<vmem>>, vector<1x1x32xf32>
    %589 = vector.shape_cast %588 : vector<1x1x32xf32> to vector<1x32xf32>
    %590 = vector.broadcast %589 : vector<1x32xf32> to vector<68x32xf32>
    %591 = arith.addf %587, %590 : vector<68x32xf32>
    %592 = arith.addf %328, %591 : vector<68x32xf32>
    %c1_180 = arith.constant 1 : index
    %c0_181 = arith.constant 0 : index
    %c0_182 = arith.constant 0 : index
    %593 = vector.load %arg12[%c1_180, %c0_181, %c0_182] : memref<2x1x32xf32, #tpu.memory_space<vmem>>, vector<1x1x32xf32>
    %594 = vector.shape_cast %593 : vector<1x1x32xf32> to vector<1x32xf32>
    %c1_183 = arith.constant 1 : index
    %c0_184 = arith.constant 0 : index
    %c0_185 = arith.constant 0 : index
    %595 = vector.load %arg13[%c1_183, %c0_184, %c0_185] : memref<2x1x32xf32, #tpu.memory_space<vmem>>, vector<1x1x32xf32>
    %596 = vector.shape_cast %595 : vector<1x1x32xf32> to vector<1x32xf32>
    %cst_186 = arith.constant dense<0.000000e+00> : vector<68xf32>
    %597 = vector.multi_reduction <add>, %592, %cst_186 [1] : vector<68x32xf32> to vector<68xf32>
    %598 = vector.shape_cast %597 : vector<68xf32> to vector<68x1xf32>
    %cst_187 = arith.constant 3.200000e+01 : f32
    %599 = vector.broadcast %cst_187 : f32 to vector<68x1xf32>
    %600 = arith.divf %598, %599 : vector<68x1xf32>
    %601 = vector.broadcast %600 : vector<68x1xf32> to vector<68x32xf32>
    %602 = arith.subf %592, %601 : vector<68x32xf32>
    %603 = arith.mulf %602, %602 : vector<68x32xf32>
    %cst_188 = arith.constant dense<0.000000e+00> : vector<68xf32>
    %604 = vector.multi_reduction <add>, %603, %cst_188 [1] : vector<68x32xf32> to vector<68xf32>
    %605 = vector.shape_cast %604 : vector<68xf32> to vector<68x1xf32>
    %cst_189 = arith.constant 3.200000e+01 : f32
    %606 = vector.broadcast %cst_189 : f32 to vector<68x1xf32>
    %607 = arith.divf %605, %606 : vector<68x1xf32>
    %608 = vector.broadcast %600 : vector<68x1xf32> to vector<68x32xf32>
    %609 = arith.subf %592, %608 : vector<68x32xf32>
    %cst_190 = arith.constant 9.99999974E-6 : f32
    %610 = vector.broadcast %cst_190 : f32 to vector<68x1xf32>
    %611 = arith.addf %607, %610 : vector<68x1xf32>
    %612 = math.rsqrt %611 : vector<68x1xf32>
    %613 = vector.broadcast %612 : vector<68x1xf32> to vector<68x32xf32>
    %614 = arith.mulf %609, %613 : vector<68x32xf32>
    %615 = vector.broadcast %594 : vector<1x32xf32> to vector<68x32xf32>
    %616 = arith.mulf %614, %615 : vector<68x32xf32>
    %617 = vector.broadcast %596 : vector<1x32xf32> to vector<68x32xf32>
    %618 = arith.addf %616, %617 : vector<68x32xf32>
    %619 = arith.truncf %618 : vector<68x32xf32> to vector<68x32xbf16>
    %c1_191 = arith.constant 1 : index
    %c0_192 = arith.constant 0 : index
    %c0_193 = arith.constant 0 : index
    %620 = vector.load %arg14[%c1_191, %c0_192, %c0_193] : memref<2x32x128xbf16, #tpu.memory_space<vmem>>, vector<1x32x128xbf16>
    %621 = vector.shape_cast %620 : vector<1x32x128xbf16> to vector<32x128xbf16>
    %cst_194 = arith.constant dense<0.000000e+00> : vector<68x128xf32>
    %622 = tpu.matmul %619, %621, %cst_194 {dimension_numbers = #tpu.dot_dimension_numbers<[1], [0], [0], [1], [0, 0, 1, 1], [], []>} : vector<68x32xbf16>, vector<32x128xbf16>, vector<68x128xf32> -> vector<68x128xf32>
    %c1_195 = arith.constant 1 : index
    %c0_196 = arith.constant 0 : index
    %c0_197 = arith.constant 0 : index
    %623 = vector.load %arg15[%c1_195, %c0_196, %c0_197] : memref<2x1x128xf32, #tpu.memory_space<vmem>>, vector<1x1x128xf32>
    %624 = vector.shape_cast %623 : vector<1x1x128xf32> to vector<1x128xf32>
    %625 = vector.broadcast %624 : vector<1x128xf32> to vector<68x128xf32>
    %626 = arith.addf %622, %625 : vector<68x128xf32>
    %627 = arith.mulf %626, %626 : vector<68x128xf32>
    %628 = arith.mulf %626, %627 : vector<68x128xf32>
    %cst_198 = arith.constant 4.471500e-02 : f32
    %629 = vector.broadcast %cst_198 : f32 to vector<68x128xf32>
    %630 = arith.mulf %629, %628 : vector<68x128xf32>
    %631 = arith.addf %626, %630 : vector<68x128xf32>
    %cst_199 = arith.constant 0.797884583 : f32
    %632 = vector.broadcast %cst_199 : f32 to vector<68x128xf32>
    %633 = arith.mulf %632, %631 : vector<68x128xf32>
    %634 = math.tanh %633 : vector<68x128xf32>
    %cst_200 = arith.constant 1.000000e+00 : f32
    %635 = vector.broadcast %cst_200 : f32 to vector<68x128xf32>
    %636 = arith.addf %635, %634 : vector<68x128xf32>
    %cst_201 = arith.constant 5.000000e-01 : f32
    %637 = vector.broadcast %cst_201 : f32 to vector<68x128xf32>
    %638 = arith.mulf %637, %636 : vector<68x128xf32>
    %639 = arith.mulf %626, %638 : vector<68x128xf32>
    %640 = arith.truncf %639 : vector<68x128xf32> to vector<68x128xbf16>
    %c1_202 = arith.constant 1 : index
    %c0_203 = arith.constant 0 : index
    %c0_204 = arith.constant 0 : index
    %641 = vector.load %arg16[%c1_202, %c0_203, %c0_204] : memref<2x128x32xbf16, #tpu.memory_space<vmem>>, vector<1x128x32xbf16>
    %642 = vector.shape_cast %641 : vector<1x128x32xbf16> to vector<128x32xbf16>
    %cst_205 = arith.constant dense<0.000000e+00> : vector<68x32xf32>
    %643 = tpu.matmul %640, %642, %cst_205 {dimension_numbers = #tpu.dot_dimension_numbers<[1], [0], [0], [1], [0, 0, 1, 1], [], []>} : vector<68x128xbf16>, vector<128x32xbf16>, vector<68x32xf32> -> vector<68x32xf32>
    %c1_206 = arith.constant 1 : index
    %c0_207 = arith.constant 0 : index
    %c0_208 = arith.constant 0 : index
    %644 = vector.load %arg17[%c1_206, %c0_207, %c0_208] : memref<2x1x32xf32, #tpu.memory_space<vmem>>, vector<1x1x32xf32>
    %645 = vector.shape_cast %644 : vector<1x1x32xf32> to vector<1x32xf32>
    %646 = vector.broadcast %645 : vector<1x32xf32> to vector<68x32xf32>
    %647 = arith.addf %643, %646 : vector<68x32xf32>
    %648 = arith.addf %592, %647 : vector<68x32xf32>
    %c0_209 = arith.constant 0 : index
    %c0_210 = arith.constant 0 : index
    %649 = vector.load %arg18[%c0_209, %c0_210] : memref<1x32xf32, #tpu.memory_space<vmem>>, vector<1x32xf32>
    %c0_211 = arith.constant 0 : index
    %c0_212 = arith.constant 0 : index
    %650 = vector.load %arg19[%c0_211, %c0_212] : memref<1x32xf32, #tpu.memory_space<vmem>>, vector<1x32xf32>
    %cst_213 = arith.constant dense<0.000000e+00> : vector<68xf32>
    %651 = vector.multi_reduction <add>, %648, %cst_213 [1] : vector<68x32xf32> to vector<68xf32>
    %652 = vector.shape_cast %651 : vector<68xf32> to vector<68x1xf32>
    %cst_214 = arith.constant 3.200000e+01 : f32
    %653 = vector.broadcast %cst_214 : f32 to vector<68x1xf32>
    %654 = arith.divf %652, %653 : vector<68x1xf32>
    %655 = vector.broadcast %654 : vector<68x1xf32> to vector<68x32xf32>
    %656 = arith.subf %648, %655 : vector<68x32xf32>
    %657 = arith.mulf %656, %656 : vector<68x32xf32>
    %cst_215 = arith.constant dense<0.000000e+00> : vector<68xf32>
    %658 = vector.multi_reduction <add>, %657, %cst_215 [1] : vector<68x32xf32> to vector<68xf32>
    %659 = vector.shape_cast %658 : vector<68xf32> to vector<68x1xf32>
    %cst_216 = arith.constant 3.200000e+01 : f32
    %660 = vector.broadcast %cst_216 : f32 to vector<68x1xf32>
    %661 = arith.divf %659, %660 : vector<68x1xf32>
    %662 = vector.broadcast %654 : vector<68x1xf32> to vector<68x32xf32>
    %663 = arith.subf %648, %662 : vector<68x32xf32>
    %cst_217 = arith.constant 9.99999974E-6 : f32
    %664 = vector.broadcast %cst_217 : f32 to vector<68x1xf32>
    %665 = arith.addf %661, %664 : vector<68x1xf32>
    %666 = math.rsqrt %665 : vector<68x1xf32>
    %667 = vector.broadcast %666 : vector<68x1xf32> to vector<68x32xf32>
    %668 = arith.mulf %663, %667 : vector<68x32xf32>
    %669 = vector.broadcast %649 : vector<1x32xf32> to vector<68x32xf32>
    %670 = arith.mulf %668, %669 : vector<68x32xf32>
    %671 = vector.broadcast %650 : vector<1x32xf32> to vector<68x32xf32>
    %672 = arith.addf %670, %671 : vector<68x32xf32>
    %c0_218 = arith.constant 0 : index
    %c0_219 = arith.constant 0 : index
    %673 = vector.load %arg3[%c0_218, %c0_219] : memref<4x68xf32, #tpu.memory_space<vmem>>, vector<4x68xf32>
    %cst_220 = arith.constant dense<0.000000e+00> : vector<4x32xf32>
    %674 = tpu.matmul %673, %672, %cst_220 {dimension_numbers = #tpu.dot_dimension_numbers<[1], [0], [0], [1], [0, 0, 1, 1], [], []>} : vector<4x68xf32>, vector<68x32xf32>, vector<4x32xf32> -> vector<4x32xf32>
    %c0_221 = arith.constant 0 : index
    %c0_222 = arith.constant 0 : index
    %675 = vector.load %arg20[%c0_221, %c0_222] : memref<1x32xf32, #tpu.memory_space<vmem>>, vector<1x32xf32>
    %c0_223 = arith.constant 0 : index
    %c0_224 = arith.constant 0 : index
    %676 = vector.load %arg21[%c0_223, %c0_224] : memref<1x32xf32, #tpu.memory_space<vmem>>, vector<1x32xf32>
    %cst_225 = arith.constant dense<0.000000e+00> : vector<4xf32>
    %677 = vector.multi_reduction <add>, %674, %cst_225 [1] : vector<4x32xf32> to vector<4xf32>
    %678 = vector.shape_cast %677 : vector<4xf32> to vector<4x1xf32>
    %cst_226 = arith.constant 3.200000e+01 : f32
    %679 = vector.broadcast %cst_226 : f32 to vector<4x1xf32>
    %680 = arith.divf %678, %679 : vector<4x1xf32>
    %681 = vector.broadcast %680 : vector<4x1xf32> to vector<4x32xf32>
    %682 = arith.subf %674, %681 : vector<4x32xf32>
    %683 = arith.mulf %682, %682 : vector<4x32xf32>
    %cst_227 = arith.constant dense<0.000000e+00> : vector<4xf32>
    %684 = vector.multi_reduction <add>, %683, %cst_227 [1] : vector<4x32xf32> to vector<4xf32>
    %685 = vector.shape_cast %684 : vector<4xf32> to vector<4x1xf32>
    %cst_228 = arith.constant 3.200000e+01 : f32
    %686 = vector.broadcast %cst_228 : f32 to vector<4x1xf32>
    %687 = arith.divf %685, %686 : vector<4x1xf32>
    %688 = vector.broadcast %680 : vector<4x1xf32> to vector<4x32xf32>
    %689 = arith.subf %674, %688 : vector<4x32xf32>
    %cst_229 = arith.constant 9.99999974E-6 : f32
    %690 = vector.broadcast %cst_229 : f32 to vector<4x1xf32>
    %691 = arith.addf %687, %690 : vector<4x1xf32>
    %692 = math.rsqrt %691 : vector<4x1xf32>
    %693 = vector.broadcast %692 : vector<4x1xf32> to vector<4x32xf32>
    %694 = arith.mulf %689, %693 : vector<4x32xf32>
    %695 = vector.broadcast %675 : vector<1x32xf32> to vector<4x32xf32>
    %696 = arith.mulf %694, %695 : vector<4x32xf32>
    %697 = vector.broadcast %676 : vector<1x32xf32> to vector<4x32xf32>
    %698 = arith.addf %696, %697 : vector<4x32xf32>
    %699 = arith.truncf %698 : vector<4x32xf32> to vector<4x32xbf16>
    %c0_230 = arith.constant 0 : index
    %c0_231 = arith.constant 0 : index
    %700 = vector.load %arg22[%c0_230, %c0_231] : memref<32x128xbf16, #tpu.memory_space<vmem>>, vector<32x128xbf16>
    %cst_232 = arith.constant dense<0.000000e+00> : vector<4x128xf32>
    %701 = tpu.matmul %699, %700, %cst_232 {dimension_numbers = #tpu.dot_dimension_numbers<[1], [0], [0], [1], [0, 0, 1, 1], [], []>} : vector<4x32xbf16>, vector<32x128xbf16>, vector<4x128xf32> -> vector<4x128xf32>
    %c0_233 = arith.constant 0 : index
    %c0_234 = arith.constant 0 : index
    %702 = vector.load %arg23[%c0_233, %c0_234] : memref<1x128xf32, #tpu.memory_space<vmem>>, vector<1x128xf32>
    %703 = vector.broadcast %702 : vector<1x128xf32> to vector<4x128xf32>
    %704 = arith.addf %701, %703 : vector<4x128xf32>
    %c0_235 = arith.constant 0 : index
    %c0_236 = arith.constant 0 : index
    %c0_237 = arith.constant 0 : index
    %705 = vector.load %arg24[%c0_235, %c0_236, %c0_237] : memref<1x4x128xf32, #tpu.memory_space<vmem>>, vector<1x4x128xf32>
    %706 = vector.shape_cast %705 : vector<1x4x128xf32> to vector<4x128xf32>
    %707 = vector.shape_cast %704 : vector<4x128xf32> to vector<1x4x128xf32>
    tpu.vector_store %arg24[%c0_235, %c0_236, %c0_237], %707 {strides = array<i32>} : memref<1x4x128xf32, #tpu.memory_space<vmem>>, vector<1x4x128xf32>,
    return
  }
  func.func @transform_0(%arg0: i32) -> (i32, i32, i32) {
    %c0_i32 = arith.constant 0 : i32
    %c0_i32_0 = arith.constant 0 : i32
    %c0_i32_1 = arith.constant 0 : i32
    return %arg0, %c0_i32, %c0_i32_0 : i32, i32, i32
  }
  func.func @transform_1(%arg0: i32) -> (i32, i32) {
    %c0_i32 = arith.constant 0 : i32
    %c0_i32_0 = arith.constant 0 : i32
    %c0_i32_1 = arith.constant 0 : i32
    return %c0_i32, %c0_i32_0 : i32, i32
  }
  func.func @transform_2(%arg0: i32) -> (i32, i32) {
    %c0_i32 = arith.constant 0 : i32
    %c0_i32_0 = arith.constant 0 : i32
    %c0_i32_1 = arith.constant 0 : i32
    return %c0_i32, %c0_i32_0 : i32, i32
  }
  func.func @transform_3(%arg0: i32) -> (i32, i32) {
    %c0_i32 = arith.constant 0 : i32
    %c0_i32_0 = arith.constant 0 : i32
    %c0_i32_1 = arith.constant 0 : i32
    return %c0_i32, %c0_i32_0 : i32, i32
  }
  func.func @transform_4(%arg0: i32) -> (i32, i32) {
    %c0_i32 = arith.constant 0 : i32
    %c0_i32_0 = arith.constant 0 : i32
    %c0_i32_1 = arith.constant 0 : i32
    return %c0_i32, %c0_i32_0 : i32, i32
  }
  func.func @transform_5(%arg0: i32) -> (i32, i32, i32) {
    %c0_i32 = arith.constant 0 : i32
    %c0_i32_0 = arith.constant 0 : i32
    %c0_i32_1 = arith.constant 0 : i32
    %c0_i32_2 = arith.constant 0 : i32
    return %c0_i32, %c0_i32_0, %c0_i32_1 : i32, i32, i32
  }
  func.func @transform_6(%arg0: i32) -> (i32, i32, i32) {
    %c0_i32 = arith.constant 0 : i32
    %c0_i32_0 = arith.constant 0 : i32
    %c0_i32_1 = arith.constant 0 : i32
    %c0_i32_2 = arith.constant 0 : i32
    return %c0_i32, %c0_i32_0, %c0_i32_1 : i32, i32, i32
  }
  func.func @transform_7(%arg0: i32) -> (i32, i32, i32) {
    %c0_i32 = arith.constant 0 : i32
    %c0_i32_0 = arith.constant 0 : i32
    %c0_i32_1 = arith.constant 0 : i32
    %c0_i32_2 = arith.constant 0 : i32
    return %c0_i32, %c0_i32_0, %c0_i32_1 : i32, i32, i32
  }
  func.func @transform_8(%arg0: i32) -> (i32, i32, i32) {
    %c0_i32 = arith.constant 0 : i32
    %c0_i32_0 = arith.constant 0 : i32
    %c0_i32_1 = arith.constant 0 : i32
    %c0_i32_2 = arith.constant 0 : i32
    return %c0_i32, %c0_i32_0, %c0_i32_1 : i32, i32, i32
  }
  func.func @transform_9(%arg0: i32) -> (i32, i32, i32) {
    %c0_i32 = arith.constant 0 : i32
    %c0_i32_0 = arith.constant 0 : i32
    %c0_i32_1 = arith.constant 0 : i32
    %c0_i32_2 = arith.constant 0 : i32
    return %c0_i32, %c0_i32_0, %c0_i32_1 : i32, i32, i32
  }
  func.func @transform_10(%arg0: i32) -> (i32, i32, i32) {
    %c0_i32 = arith.constant 0 : i32
    %c0_i32_0 = arith.constant 0 : i32
    %c0_i32_1 = arith.constant 0 : i32
    %c0_i32_2 = arith.constant 0 : i32
    return %c0_i32, %c0_i32_0, %c0_i32_1 : i32, i32, i32
  }
  func.func @transform_11(%arg0: i32) -> (i32, i32, i32) {
    %c0_i32 = arith.constant 0 : i32
    %c0_i32_0 = arith.constant 0 : i32
    %c0_i32_1 = arith.constant 0 : i32
    %c0_i32_2 = arith.constant 0 : i32
    return %c0_i32, %c0_i32_0, %c0_i32_1 : i32, i32, i32
  }
  func.func @transform_12(%arg0: i32) -> (i32, i32, i32) {
    %c0_i32 = arith.constant 0 : i32
    %c0_i32_0 = arith.constant 0 : i32
    %c0_i32_1 = arith.constant 0 : i32
    %c0_i32_2 = arith.constant 0 : i32
    return %c0_i32, %c0_i32_0, %c0_i32_1 : i32, i32, i32
  }
  func.func @transform_13(%arg0: i32) -> (i32, i32, i32) {
    %c0_i32 = arith.constant 0 : i32
    %c0_i32_0 = arith.constant 0 : i32
    %c0_i32_1 = arith.constant 0 : i32
    %c0_i32_2 = arith.constant 0 : i32
    return %c0_i32, %c0_i32_0, %c0_i32_1 : i32, i32, i32
  }
  func.func @transform_14(%arg0: i32) -> (i32, i32, i32) {
    %c0_i32 = arith.constant 0 : i32
    %c0_i32_0 = arith.constant 0 : i32
    %c0_i32_1 = arith.constant 0 : i32
    %c0_i32_2 = arith.constant 0 : i32
    return %c0_i32, %c0_i32_0, %c0_i32_1 : i32, i32, i32
  }
  func.func @transform_15(%arg0: i32) -> (i32, i32, i32) {
    %c0_i32 = arith.constant 0 : i32
    %c0_i32_0 = arith.constant 0 : i32
    %c0_i32_1 = arith.constant 0 : i32
    %c0_i32_2 = arith.constant 0 : i32
    return %c0_i32, %c0_i32_0, %c0_i32_1 : i32, i32, i32
  }
  func.func @transform_16(%arg0: i32) -> (i32, i32, i32) {
    %c0_i32 = arith.constant 0 : i32
    %c0_i32_0 = arith.constant 0 : i32
    %c0_i32_1 = arith.constant 0 : i32
    %c0_i32_2 = arith.constant 0 : i32
    return %c0_i32, %c0_i32_0, %c0_i32_1 : i32, i32, i32
  }
  func.func @transform_17(%arg0: i32) -> (i32, i32) {
    %c0_i32 = arith.constant 0 : i32
    %c0_i32_0 = arith.constant 0 : i32
    %c0_i32_1 = arith.constant 0 : i32
    return %c0_i32, %c0_i32_0 : i32, i32
  }
  func.func @transform_18(%arg0: i32) -> (i32, i32) {
    %c0_i32 = arith.constant 0 : i32
    %c0_i32_0 = arith.constant 0 : i32
    %c0_i32_1 = arith.constant 0 : i32
    return %c0_i32, %c0_i32_0 : i32, i32
  }
  func.func @transform_19(%arg0: i32) -> (i32, i32) {
    %c0_i32 = arith.constant 0 : i32
    %c0_i32_0 = arith.constant 0 : i32
    %c0_i32_1 = arith.constant 0 : i32
    return %c0_i32, %c0_i32_0 : i32, i32
  }
  func.func @transform_20(%arg0: i32) -> (i32, i32) {
    %c0_i32 = arith.constant 0 : i32
    %c0_i32_0 = arith.constant 0 : i32
    %c0_i32_1 = arith.constant 0 : i32
    return %c0_i32, %c0_i32_0 : i32, i32
  }
  func.func @transform_21(%arg0: i32) -> (i32, i32) {
    %c0_i32 = arith.constant 0 : i32
    %c0_i32_0 = arith.constant 0 : i32
    %c0_i32_1 = arith.constant 0 : i32
    return %c0_i32, %c0_i32_0 : i32, i32
  }
  func.func @transform_22(%arg0: i32) -> (i32, i32) {
    %c0_i32 = arith.constant 0 : i32
    %c0_i32_0 = arith.constant 0 : i32
    %c0_i32_1 = arith.constant 0 : i32
    return %c0_i32, %c0_i32_0 : i32, i32
  }
  func.func @transform_23(%arg0: i32) -> (i32, i32, i32) {
    %c0_i32 = arith.constant 0 : i32
    %c0_i32_0 = arith.constant 0 : i32
    %c0_i32_1 = arith.constant 0 : i32
    return %arg0, %c0_i32, %c0_i32_0 : i32, i32, i32
  }
}

</mosaic_0001>

<llo_original>
// kernel: tile.9
$region0: #{tile.9}
  %s0 = inlined_call_operand.vmem [shape: f32[4,17,32], index: 0, kind: input, shape index: {}]
  %s1 = inlined_call_operand.vmem [shape: f32[68,32], index: 1, kind: output, shape index: {}]
  $region1: #{tile.9} parent=0
    #allocation0 [shape = 'u8[131072]{0}', space=vmem, size = 0x20000, scoped, tag = 'scoped mem for input reshape']
    %s3 = ssub.s32 16, 1
    %s4 = scalar_lea.vmem %s0, 124
    %v5 = vld [vmem:[%s4] sm:%s3]
    %s6 = scalar_lea.vmem [#allocation0], 248
    %7 = vst [vmem:[%s6] sm:%s3] %v5
    %s8 = scalar_lea.vmem %s0, 120
    %v9 = vld [vmem:[%s8] sm:%s3]
    %s10 = scalar_lea.vmem [#allocation0], 240
    %11 = vst [vmem:[%s10] sm:%s3] %v9
    %s12 = scalar_lea.vmem %s0, 116
    %v13 = vld [vmem:[%s12] sm:%s3]
    %s14 = scalar_lea.vmem [#allocation0], 232
    %15 = vst [vmem:[%s14] sm:%s3] %v13
    %s16 = scalar_lea.vmem %s0, 112
    %v17 = vld [vmem:[%s16] sm:%s3]
    %s18 = scalar_lea.vmem [#allocation0], 224
    %19 = vst [vmem:[%s18] sm:%s3] %v17
    %s20 = scalar_lea.vmem %s0, 108
    %v21 = vld [vmem:[%s20] sm:%s3]
    %s22 = scalar_lea.vmem [#allocation0], 216
    %23 = vst [vmem:[%s22] sm:%s3] %v21
    %s24 = scalar_lea.vmem %s0, 104
    %v25 = vld [vmem:[%s24] sm:%s3]
    %s26 = scalar_lea.vmem [#allocation0], 208
    %27 = vst [vmem:[%s26] sm:%s3] %v25
    %s28 = scalar_lea.vmem %s0, 100
    %v29 = vld [vmem:[%s28] sm:%s3]
    %s30 = scalar_lea.vmem [#allocation0], 200
    %31 = vst [vmem:[%s30] sm:%s3] %v29
    %s32 = scalar_lea.vmem %s0, 96
    %v33 = vld [vmem:[%s32] sm:%s3]
    %s34 = scalar_lea.vmem [#allocation0], 192
    %35 = vst [vmem:[%s34] sm:%s3] %v33
    %s36 = scalar_lea.vmem %s0, 92
    %v37 = vld [vmem:[%s36] sm:%s3]
    %s38 = scalar_lea.vmem [#allocation0], 184
    %39 = vst [vmem:[%s38] sm:%s3] %v37
    %s40 = scalar_lea.vmem %s0, 88
    %v41 = vld [vmem:[%s40] sm:%s3]
    %s42 = scalar_lea.vmem [#allocation0], 176
    %43 = vst [vmem:[%s42] sm:%s3] %v41
    %s44 = scalar_lea.vmem %s0, 84
    %v45 = vld [vmem:[%s44] sm:%s3]
    %s46 = scalar_lea.vmem [#allocation0], 168
    %47 = vst [vmem:[%s46] sm:%s3] %v45
    %s48 = scalar_lea.vmem %s0, 80
    %v49 = vld [vmem:[%s48] sm:%s3]
    %s50 = scalar_lea.vmem [#allocation0], 160
    %51 = vst [vmem:[%s50] sm:%s3] %v49
    %s52 = scalar_lea.vmem %s0, 76
    %v53 = vld [vmem:[%s52] sm:%s3]
    %s54 = scalar_lea.vmem [#allocation0], 152
    %55 = vst [vmem:[%s54] sm:%s3] %v53
    %s56 = scalar_lea.vmem %s0, 72
    %v57 = vld [vmem:[%s56] sm:%s3]
    %s58 = scalar_lea.vmem [#allocation0], 144
    %59 = vst [vmem:[%s58] sm:%s3] %v57
    %s60 = scalar_lea.vmem %s0, 68
    %v61 = vld [vmem:[%s60] sm:%s3]
    %s62 = scalar_lea.vmem [#allocation0], 136
    %63 = vst [vmem:[%s62] sm:%s3] %v61
    %s64 = scalar_lea.vmem %s0, 64
    %v65 = vld [vmem:[%s64] sm:%s3]
    %s66 = scalar_lea.vmem [#allocation0], 128
    %67 = vst [vmem:[%s66] sm:%s3] %v65
    %s68 = scalar_lea.vmem %s0, 60
    %v69 = vld [vmem:[%s68] sm:%s3]
    %s70 = scalar_lea.vmem [#allocation0], 120
    %71 = vst [vmem:[%s70] sm:%s3] %v69
    %s72 = scalar_lea.vmem %s0, 56
    %v73 = vld [vmem:[%s72] sm:%s3]
    %s74 = scalar_lea.vmem [#allocation0], 112
    %75 = vst [vmem:[%s74] sm:%s3] %v73
    %s76 = scalar_lea.vmem %s0, 52
    %v77 = vld [vmem:[%s76] sm:%s3]
    %s78 = scalar_lea.vmem [#allocation0], 104
    %79 = vst [vmem:[%s78] sm:%s3] %v77
    %s80 = scalar_lea.vmem %s0, 48
    %v81 = vld [vmem:[%s80] sm:%s3]
    %s82 = scalar_lea.vmem [#allocation0], 96
    %83 = vst [vmem:[%s82] sm:%s3] %v81
    %s84 = scalar_lea.vmem %s0, 44
    %v85 = vld [vmem:[%s84] sm:%s3]
    %s86 = scalar_lea.vmem [#allocation0], 88
    %87 = vst [vmem:[%s86] sm:%s3] %v85
    %s88 = scalar_lea.vmem %s0, 40
    %v89 = vld [vmem:[%s88] sm:%s3]
    %s90 = scalar_lea.vmem [#allocation0], 80
    %91 = vst [vmem:[%s90] sm:%s3] %v89
    %s92 = scalar_lea.vmem %s0, 36
    %v93 = vld [vmem:[%s92] sm:%s3]
    %s94 = scalar_lea.vmem [#allocation0], 72
    %95 = vst [vmem:[%s94] sm:%s3] %v93
    %s96 = scalar_lea.vmem %s0, 32
    %v97 = vld [vmem:[%s96] sm:%s3]
    %s98 = scalar_lea.vmem [#allocation0], 64
    %99 = vst [vmem:[%s98] sm:%s3] %v97
    %s100 = scalar_lea.vmem %s0, 28
    %v101 = vld [vmem:[%s100] sm:%s3]
    %s102 = scalar_lea.vmem [#allocation0], 56
    %103 = vst [vmem:[%s102] sm:%s3] %v101
    %s104 = scalar_lea.vmem %s0, 24
    %v105 = vld [vmem:[%s104] sm:%s3]
    %s106 = scalar_lea.vmem [#allocation0], 48
    %107 = vst [vmem:[%s106] sm:%s3] %v105
    %s108 = scalar_lea.vmem %s0, 20
    %v109 = vld [vmem:[%s108] sm:%s3]
    %s110 = scalar_lea.vmem [#allocation0], 40
    %111 = vst [vmem:[%s110] sm:%s3] %v109
    %s112 = scalar_lea.vmem %s0, 16
    %v113 = vld [vmem:[%s112] sm:%s3]
    %s114 = scalar_lea.vmem [#allocation0], 32
    %115 = vst [vmem:[%s114] sm:%s3] %v113
    %s116 = scalar_lea.vmem %s0, 12
    %v117 = vld [vmem:[%s116] sm:%s3]
    %s118 = scalar_lea.vmem [#allocation0], 24
    %119 = vst [vmem:[%s118] sm:%s3] %v117
    %s120 = scalar_lea.vmem %s0, 8
    %v121 = vld [vmem:[%s120] sm:%s3]
    %s122 = scalar_lea.vmem [#allocation0], 16
    %123 = vst [vmem:[%s122] sm:%s3] %v121
    %s124 = scalar_lea.vmem %s0, 4
    %v125 = vld [vmem:[%s124] sm:%s3]
    %s126 = scalar_lea.vmem [#allocation0], 8
    %127 = vst [vmem:[%s126] sm:%s3] %v125
    %v128 = vld [vmem:[%s0] sm:%s3]
    %129 = vst [vmem:[#allocation0] sm:%s3] %v128
    %v130 = vld [vmem:[#allocation0] ss:$8 sm:$0xf]
    %v131 = vld [vmem:[#allocation0] ss:$8 sm:$0xf0]
    %vm132 = vcmask 1047556
    %v133 = vsel %vm132, %v131, %v130
    %vm134 = vcmask 138240
    %135 = vst.msk [vmem:[%s1] sm:$0xff] %vm134, %v133
    %s136 = scalar_lea.vmem [#allocation0], 64
    %v137 = vld [vmem:[%s136] ss:$8 sm:$0xf]
    %s138 = scalar_lea.vmem [#allocation0], 64
    %v139 = vld [vmem:[%s138] ss:$8 sm:$0xf0]
    %vm140 = vcmask 1047556
    %v141 = vsel %vm140, %v139, %v137
    %vm142 = vcmask 138240
    %s143 = scalar_lea.vmem %s1, 8
    %144 = vst.msk [vmem:[%s143] sm:$0xff] %vm142, %v141
    %s145 = scalar_lea.vmem [#allocation0], 128
    %v146 = vld [vmem:[%s145] ss:$8 sm:$0xf]
    %s147 = scalar_lea.vmem [#allocation0], 128
    %v148 = vld [vmem:[%s147] ss:$8 sm:$0xf0]
    %vm149 = vcmask 1047556
    %v150 = vsel %vm149, %v148, %v146
    %vm151 = vcmask 138240
    %s152 = scalar_lea.vmem %s1, 16
    %153 = vst.msk [vmem:[%s152] sm:$0xff] %vm151, %v150
    %s154 = scalar_lea.vmem [#allocation0], 192
    %v155 = vld [vmem:[%s154] ss:$8 sm:$0xf]
    %s156 = scalar_lea.vmem [#allocation0], 192
    %v157 = vld [vmem:[%s156] ss:$8 sm:$0xf0]
    %vm158 = vcmask 1047556
    %v159 = vsel %vm158, %v157, %v155
    %vm160 = vcmask 138240
    %s161 = scalar_lea.vmem %s1, 24
    %162 = vst.msk [vmem:[%s161] sm:$0xff] %vm160, %v159
    %s163 = scalar_lea.vmem [#allocation0], 3
    %v164 = vld [vmem:[%s163] ss:$8 sm:$0xf]
    %s165 = scalar_lea.vmem [#allocation0], 3
    %v166 = vld [vmem:[%s165] ss:$8 sm:$0xf0]
    %vm167 = vcmask 1047556
    %v168 = vsel %vm167, %v166, %v164
    %169 = vrot.lane.b32.xlu0 %v168, 51
    %v170 = vpop.permute.xlu0 %169
    %vm171 = vcmask 556440
    %172 = vst.msk [vmem:[%s1] sm:$0xff] %vm171, %v170
    %s173 = scalar_lea.vmem [#allocation0], 67
    %v174 = vld [vmem:[%s173] ss:$8 sm:$0xf]
    %s175 = scalar_lea.vmem [#allocation0], 67
    %v176 = vld [vmem:[%s175] ss:$8 sm:$0xf0]
    %vm177 = vcmask 1047556
    %v178 = vsel %vm177, %v176, %v174
    %179 = vrot.lane.b32.xlu0 %v178, 51
    %v180 = vpop.permute.xlu0 %179
    %vm181 = vcmask 556440
    %s182 = scalar_lea.vmem %s1, 8
    %183 = vst.msk [vmem:[%s182] sm:$0xff] %vm181, %v180
    %s184 = scalar_lea.vmem [#allocation0], 131
    %v185 = vld [vmem:[%s184] ss:$8 sm:$0xf]
    %s186 = scalar_lea.vmem [#allocation0], 131
    %v187 = vld [vmem:[%s186] ss:$8 sm:$0xf0]
    %vm188 = vcmask 1047556
    %v189 = vsel %vm188, %v187, %v185
    %190 = vrot.lane.b32.xlu0 %v189, 51
    %v191 = vpop.permute.xlu0 %190
    %vm192 = vcmask 556440
    %s193 = scalar_lea.vmem %s1, 16
    %194 = vst.msk [vmem:[%s193] sm:$0xff] %vm192, %v191
    %s195 = scalar_lea.vmem [#allocation0], 195
    %v196 = vld [vmem:[%s195] ss:$8 sm:$0xf]
    %s197 = scalar_lea.vmem [#allocation0], 195
    %v198 = vld [vmem:[%s197] ss:$8 sm:$0xf0]
    %vm199 = vcmask 1047556
    %v200 = vsel %vm199, %v198, %v196
    %201 = vrot.lane.b32.xlu0 %v200, 51
    %v202 = vpop.permute.xlu0 %201
    %vm203 = vcmask 556440
    %s204 = scalar_lea.vmem %s1, 24
    %205 = vst.msk [vmem:[%s204] sm:$0xff] %vm203, %v202
    %s206 = scalar_lea.vmem [#allocation0], 2
    %v207 = vld [vmem:[%s206] ss:$8 sm:$0xf]
    %s208 = scalar_lea.vmem [#allocation0], 2
    %v209 = vld [vmem:[%s208] ss:$8 sm:$0xf0]
    %vm210 = vcmask 1047556
    %v211 = vsel %vm210, %v209, %v207
    %212 = vrot.lane.b32.xlu0 %v211, 34
    %v213 = vpop.permute.xlu0 %212
    %vm214 = vcmask 417040
    %215 = vst.msk [vmem:[%s1] sm:$0xff] %vm214, %v213
    %s216 = scalar_lea.vmem [#allocation0], 66
    %v217 = vld [vmem:[%s216] ss:$8 sm:$0xf]
    %s218 = scalar_lea.vmem [#allocation0], 66
    %v219 = vld [vmem:[%s218] ss:$8 sm:$0xf0]
    %vm220 = vcmask 1047556
    %v221 = vsel %vm220, %v219, %v217
    %222 = vrot.lane.b32.xlu0 %v221, 34
    %v223 = vpop.permute.xlu0 %222
    %vm224 = vcmask 417040
    %s225 = scalar_lea.vmem %s1, 8
    %226 = vst.msk [vmem:[%s225] sm:$0xff] %vm224, %v223
    %s227 = scalar_lea.vmem [#allocation0], 130
    %v228 = vld [vmem:[%s227] ss:$8 sm:$0xf]
    %s229 = scalar_lea.vmem [#allocation0], 130
    %v230 = vld [vmem:[%s229] ss:$8 sm:$0xf0]
    %vm231 = vcmask 1047556
    %v232 = vsel %vm231, %v230, %v228
    %233 = vrot.lane.b32.xlu0 %v232, 34
    %v234 = vpop.permute.xlu0 %233
    %vm235 = vcmask 417040
    %s236 = scalar_lea.vmem %s1, 16
    %237 = vst.msk [vmem:[%s236] sm:$0xff] %vm235, %v234
    %s238 = scalar_lea.vmem [#allocation0], 194
    %v239 = vld [vmem:[%s238] ss:$8 sm:$0xf]
    %s240 = scalar_lea.vmem [#allocation0], 194
    %v241 = vld [vmem:[%s240] ss:$8 sm:$0xf0]
    %vm242 = vcmask 1047556
    %v243 = vsel %vm242, %v241, %v239
    %244 = vrot.lane.b32.xlu0 %v243, 34
    %v245 = vpop.permute.xlu0 %244
    %vm246 = vcmask 417040
    %s247 = scalar_lea.vmem %s1, 24
    %248 = vst.msk [vmem:[%s247] sm:$0xff] %vm246, %v245
    %s249 = scalar_lea.vmem [#allocation0], 1
    %v250 = vld [vmem:[%s249] ss:$8 sm:$0xf]
    %s251 = scalar_lea.vmem [#allocation0], 1
    %v252 = vld [vmem:[%s251] ss:$8 sm:$0xf0]
    %vm253 = vcmask 1047556
    %v254 = vsel %vm253, %v252, %v250
    %255 = vrot.lane.b32.xlu0 %v254, 17
    %v256 = vpop.permute.xlu0 %255
    %vm257 = vcmask 277640
    %258 = vst.msk [vmem:[%s1] sm:$0xff] %vm257, %v256
    %s259 = scalar_lea.vmem [#allocation0], 65
    %v260 = vld [vmem:[%s259] ss:$8 sm:$0xf]
    %s261 = scalar_lea.vmem [#allocation0], 65
    %v262 = vld [vmem:[%s261] ss:$8 sm:$0xf0]
    %vm263 = vcmask 1047556
    %v264 = vsel %vm263, %v262, %v260
    %265 = vrot.lane.b32.xlu0 %v264, 17
    %v266 = vpop.permute.xlu0 %265
    %vm267 = vcmask 277640
    %s268 = scalar_lea.vmem %s1, 8
    %269 = vst.msk [vmem:[%s268] sm:$0xff] %vm267, %v266
    %s270 = scalar_lea.vmem [#allocation0], 129
    %v271 = vld [vmem:[%s270] ss:$8 sm:$0xf]
    %s272 = scalar_lea.vmem [#allocation0], 129
    %v273 = vld [vmem:[%s272] ss:$8 sm:$0xf0]
    %vm274 = vcmask 1047556
    %v275 = vsel %vm274, %v273, %v271
    %276 = vrot.lane.b32.xlu0 %v275, 17
    %v277 = vpop.permute.xlu0 %276
    %vm278 = vcmask 277640
    %s279 = scalar_lea.vmem %s1, 16
    %280 = vst.msk [vmem:[%s279] sm:$0xff] %vm278, %v277
    %s281 = scalar_lea.vmem [#allocation0], 193
    %v282 = vld [vmem:[%s281] ss:$8 sm:$0xf]
    %s283 = scalar_lea.vmem [#allocation0], 193
    %v284 = vld [vmem:[%s283] ss:$8 sm:$0xf0]
    %vm285 = vcmask 1047556
    %v286 = vsel %vm285, %v284, %v282
    %287 = vrot.lane.b32.xlu0 %v286, 17
    %v288 = vpop.permute.xlu0 %287
    %vm289 = vcmask 277640
    %s290 = scalar_lea.vmem %s1, 24
    %291 = vst.msk [vmem:[%s290] sm:$0xff] %vm289, %v288

// kernel: chess_piece_predictor_forward.1
$region0: #{chess_piece_predictor_forward.1}
  #allocation0 [shape = 'u32[]', space=smem, size = 0x4, offset = 0x4, fixed_abs, tag = 'smem constant byte address 0x4 - core index']
  #allocation1 [shape = 'u32[72,128]{1,0:T(1,128)}', space=vmem, size = 0x9000, scoped, tag = 'internal scratch']
  #allocation2 [shape = 'f32[68,32]{1,0:T(8,128)}', space=vmem, size = 0x9000, scoped, tag = 'scratch operand']
  %s0 = inlined_call_operand.vmem [shape: bf16[2,68,48], index: 0, kind: input, shape index: {}]
  %s1 = inlined_call_operand.vmem [shape: f32[68,32], index: 1, kind: input, shape index: {}]
  %s2 = inlined_call_operand.vmem [shape: f32[4,68], index: 2, kind: input, shape index: {}]
  %s3 = inlined_call_operand.vmem [shape: bf16[48,32], index: 3, kind: input, shape index: {}]
  %s4 = inlined_call_operand.vmem [shape: f32[1,32], index: 4, kind: input, shape index: {}]
  %s5 = inlined_call_operand.vmem [shape: f32[2,1,32], index: 5, kind: input, shape index: {}]
  %s6 = inlined_call_operand.vmem [shape: f32[2,1,32], index: 6, kind: input, shape index: {}]
  %s7 = inlined_call_operand.vmem [shape: bf16[2,32,96], index: 7, kind: input, shape index: {}]
  %s8 = inlined_call_operand.vmem [shape: f32[2,1,96], index: 8, kind: input, shape index: {}]
  %s9 = inlined_call_operand.vmem [shape: bf16[2,32,32], index: 9, kind: input, shape index: {}]
  %s10 = inlined_call_operand.vmem [shape: f32[2,1,32], index: 10, kind: input, shape index: {}]
  %s11 = inlined_call_operand.vmem [shape: f32[2,1,32], index: 11, kind: input, shape index: {}]
  %s12 = inlined_call_operand.vmem [shape: f32[2,1,32], index: 12, kind: input, shape index: {}]
  %s13 = inlined_call_operand.vmem [shape: bf16[2,32,128], index: 13, kind: input, shape index: {}]
  %s14 = inlined_call_operand.vmem [shape: f32[2,1,128], index: 14, kind: input, shape index: {}]
  %s15 = inlined_call_operand.vmem [shape: bf16[2,128,32], index: 15, kind: input, shape index: {}]
  %s16 = inlined_call_operand.vmem [shape: f32[2,1,32], index: 16, kind: input, shape index: {}]
  %s17 = inlined_call_operand.vmem [shape: f32[1,32], index: 17, kind: input, shape index: {}]
  %s18 = inlined_call_operand.vmem [shape: f32[1,32], index: 18, kind: input, shape index: {}]
  %s19 = inlined_call_operand.vmem [shape: f32[1,32], index: 19, kind: input, shape index: {}]
  %s20 = inlined_call_operand.vmem [shape: f32[1,32], index: 20, kind: input, shape index: {}]
  %s21 = inlined_call_operand.vmem [shape: bf16[32,128], index: 21, kind: input, shape index: {}]
  %s22 = inlined_call_operand.vmem [shape: f32[1,128], index: 22, kind: input, shape index: {}]
  %s23 = inlined_call_operand.hbm [shape: f32[2,4,128], index: 23, kind: output, shape index: {}]
  %s24 = sld [smem:[#allocation0]]
  $region125: #{chess_piece_predictor_forward.1} parent=0
    _
  %s26 = ssub.s32 1, %s24
  %s27 = scalar_select 0, %s26, %s24
  $region1: #{chess_piece_predictor_forward.1} parent=0
    #allocation3 [shape = 'u8[4096]{0}', space=vmem, size = 0x1000, scoped, tag = 'output window, operand 0']
    #allocation4 [shape = 's32[2]{0}', space=sflag, size = 0x8, scoped, tag = 'scoped memory for chess_piece_predictor_forward.1']
    %28 = vsyncpa [#allocation4], 0
    %s29 = scalar_lea.sflag [#allocation4], 1
    %30 = vsyncpa %s29, 0
    loop: start=0, step=1, limit=4
    $region2: #{chess_piece_predictor_forward.1} parent=1 // loop_pre_header
      _
    $region3: #{chess_piece_predictor_forward.1} parent=1 // loop_header
      %s32 = sphi 0, %s36
      %p33 = scmp.ge.s32.totalorder %s32, 4
      %s42 = sphi 0, %s44
      %s45 = sphi 0, %s42
      %s46 = sphi 0, %s45
      %s62 = sphi 0, %s46
      %s66 = sphi 0, %s66
      %s68 = sphi 0, %s66
      %s69 = sphi 0, %s68
      %s83 = sphi 0, %s69
      %s87 = sphi 0, %s87
      %s89 = sphi 0, %s87
      %s90 = sphi 0, %s89
      %s104 = sphi 0, %s90
      %s108 = sphi 0, %s108
      %s110 = sphi 0, %s108
      %s111 = sphi 0, %s110
      %s125 = sphi 0, %s111
      %s129 = sphi 0, %s129
      %s131 = sphi 0, %s129
      %s132 = sphi 0, %s131
      %s146 = sphi 0, %s132
      %s150 = sphi 0, %s150
      %s152 = sphi 0, %s150
      %s153 = sphi 0, %s152
      %s167 = sphi 0, %s153
      %s171 = sphi 0, %s171
      %s173 = sphi 0, %s171
      %s174 = sphi 0, %s173
      %s188 = sphi 0, %s174
      %s192 = sphi 0, %s192
      %s194 = sphi 0, %s192
      %s195 = sphi 0, %s194
      %s209 = sphi 0, %s195
      %s213 = sphi 0, %s213
      %s215 = sphi 0, %s213
      %s216 = sphi 0, %s215
      %s230 = sphi 0, %s216
      %s234 = sphi 0, %s234
      %s236 = sphi 0, %s234
      %s237 = sphi 0, %s236
      %s251 = sphi 0, %s237
      %s255 = sphi 0, %s255
      %s257 = sphi 0, %s255
      %s258 = sphi 0, %s257
      %s272 = sphi 0, %s258
      %s276 = sphi 0, %s276
      %s278 = sphi 0, %s276
      %s279 = sphi 0, %s278
      %s293 = sphi 0, %s279
      %s297 = sphi 0, %s297
      %s299 = sphi 0, %s297
      %s300 = sphi 0, %s299
      %s314 = sphi 0, %s300
      %s318 = sphi 0, %s318
      %s320 = sphi 0, %s318
      %s321 = sphi 0, %s320
      %s335 = sphi 0, %s321
      %s339 = sphi 0, %s339
      %s341 = sphi 0, %s339
      %s342 = sphi 0, %s341
      %s356 = sphi 0, %s342
      %s360 = sphi 0, %s360
      %s362 = sphi 0, %s360
      %s363 = sphi 0, %s362
      %s377 = sphi 0, %s363
      %s381 = sphi 0, %s381
      %s383 = sphi 0, %s381
      %s384 = sphi 0, %s383
      %s398 = sphi 0, %s384
      %s402 = sphi 0, %s402
      %s404 = sphi 0, %s402
      %s405 = sphi 0, %s404
      %s419 = sphi 0, %s405
      %s423 = sphi 0, %s423
      %s425 = sphi 0, %s423
      %s426 = sphi 0, %s425
      %s440 = sphi 0, %s426
      %s444 = sphi 0, %s444
      %s446 = sphi 0, %s444
      %s447 = sphi 0, %s446
      %s461 = sphi 0, %s447
      %s465 = sphi 0, %s465
      %s467 = sphi 0, %s465
      %s468 = sphi 0, %s467
      %s482 = sphi 0, %s468
      %s486 = sphi 0, %s486
      %s488 = sphi 0, %s486
      %s489 = sphi 0, %s488
      %s503 = sphi 0, %s489
      %s507 = sphi 0, %s507
      %s509 = sphi 0, %s507
      %s510 = sphi 0, %s509
      %s524 = sphi 0, %s510
      %s530 = sphi 0, %s532
      %s533 = sphi 0, %s530
      %s534 = sphi 0, %s533
      %s550 = sphi 0, %s534
    $region4: #{chess_piece_predictor_forward.1} parent=1 // loop_header_branch
      %35 = sbr.rel (%p33) target = $region8
    $region5: #{chess_piece_predictor_forward.1} parent=1 // loop_body
      %s37 = ssub.s32 %s32, 1
      %s38 = ssub.s32 %s32, 2
      %s39 = sadd.s32 %s32, 1
      %s40 = ssub.s32 %s32, %s39
      %p41 = scmp.eq.s32.totalorder %s40, 0
      %s43 = sadd.s32 %s42, 1
      %s44 = scalar_select %p41, %s42, %s43
      %p47 = pneg %p41
      %p48 = scmp.eq.s32.totalorder %s32, 1
      %p49 = por %p47, %p48
      %p50 = scmp.ne.s32.totalorder %s42, %s45
      %p51 = scmp.eq.s32.totalorder %s32, 0
      %p52 = por %p50, %p51
      %p53 = scmp.ne.s32.totalorder %s42, %s45
      %p54 = scmp.eq.s32.totalorder %s37, 1
      %p55 = por %p53, %p54
      %p56 = scmp.ne.s32.totalorder %s45, %s46
      %p57 = scmp.eq.s32.totalorder %s37, 0
      %p58 = por %p56, %p57
      %p59 = scmp.ne.s32.totalorder %s45, %s46
      %p60 = scmp.eq.s32.totalorder %s38, 1
      %p61 = por %p59, %p60
      %p63 = scmp.ne.s32.totalorder %s46, %s62
      %p64 = scmp.eq.s32.totalorder %s38, 0
      %p65 = por %p63, %p64
      %s67 = sadd.s32 %s66, 1
      %p70 = scmp.eq.s32.totalorder %s32, 1
      %p71 = scmp.ne.s32.totalorder %s66, %s68
      %p72 = scmp.eq.s32.totalorder %s32, 0
      %p73 = por %p71, %p72
      %p74 = scmp.ne.s32.totalorder %s66, %s68
      %p75 = scmp.eq.s32.totalorder %s37, 1
      %p76 = por %p74, %p75
      %p77 = scmp.ne.s32.totalorder %s68, %s69
      %p78 = scmp.eq.s32.totalorder %s37, 0
      %p79 = por %p77, %p78
      %p80 = scmp.ne.s32.totalorder %s68, %s69
      %p81 = scmp.eq.s32.totalorder %s38, 1
      %p82 = por %p80, %p81
      %p84 = scmp.ne.s32.totalorder %s69, %s83
      %p85 = scmp.eq.s32.totalorder %s38, 0
      %p86 = por %p84, %p85
      %s88 = sadd.s32 %s87, 1
      %p91 = scmp.eq.s32.totalorder %s32, 1
      %p92 = scmp.ne.s32.totalorder %s87, %s89
      %p93 = scmp.eq.s32.totalorder %s32, 0
      %p94 = por %p92, %p93
      %p95 = scmp.ne.s32.totalorder %s87, %s89
      %p96 = scmp.eq.s32.totalorder %s37, 1
      %p97 = por %p95, %p96
      %p98 = scmp.ne.s32.totalorder %s89, %s90
      %p99 = scmp.eq.s32.totalorder %s37, 0
      %p100 = por %p98, %p99
      %p101 = scmp.ne.s32.totalorder %s89, %s90
      %p102 = scmp.eq.s32.totalorder %s38, 1
      %p103 = por %p101, %p102
      %p105 = scmp.ne.s32.totalorder %s90, %s104
      %p106 = scmp.eq.s32.totalorder %s38, 0
      %p107 = por %p105, %p106
      %s109 = sadd.s32 %s108, 1
      %p112 = scmp.eq.s32.totalorder %s32, 1
      %p113 = scmp.ne.s32.totalorder %s108, %s110
      %p114 = scmp.eq.s32.totalorder %s32, 0
      %p115 = por %p113, %p114
      %p116 = scmp.ne.s32.totalorder %s108, %s110
      %p117 = scmp.eq.s32.totalorder %s37, 1
      %p118 = por %p116, %p117
      %p119 = scmp.ne.s32.totalorder %s110, %s111
      %p120 = scmp.eq.s32.totalorder %s37, 0
      %p121 = por %p119, %p120
      %p122 = scmp.ne.s32.totalorder %s110, %s111
      %p123 = scmp.eq.s32.totalorder %s38, 1
      %p124 = por %p122, %p123
      %p126 = scmp.ne.s32.totalorder %s111, %s125
      %p127 = scmp.eq.s32.totalorder %s38, 0
      %p128 = por %p126, %p127
      %s130 = sadd.s32 %s129, 1
      %p133 = scmp.eq.s32.totalorder %s32, 1
      %p134 = scmp.ne.s32.totalorder %s129, %s131
      %p135 = scmp.eq.s32.totalorder %s32, 0
      %p136 = por %p134, %p135
      %p137 = scmp.ne.s32.totalorder %s129, %s131
      %p138 = scmp.eq.s32.totalorder %s37, 1
      %p139 = por %p137, %p138
      %p140 = scmp.ne.s32.totalorder %s131, %s132
      %p141 = scmp.eq.s32.totalorder %s37, 0
      %p142 = por %p140, %p141
      %p143 = scmp.ne.s32.totalorder %s131, %s132
      %p144 = scmp.eq.s32.totalorder %s38, 1
      %p145 = por %p143, %p144
      %p147 = scmp.ne.s32.totalorder %s132, %s146
      %p148 = scmp.eq.s32.totalorder %s38, 0
      %p149 = por %p147, %p148
      %s151 = sadd.s32 %s150, 1
      %p154 = scmp.eq.s32.totalorder %s32, 1
      %p155 = scmp.ne.s32.totalorder %s150, %s152
      %p156 = scmp.eq.s32.totalorder %s32, 0
      %p157 = por %p155, %p156
      %p158 = scmp.ne.s32.totalorder %s150, %s152
      %p159 = scmp.eq.s32.totalorder %s37, 1
      %p160 = por %p158, %p159
      %p161 = scmp.ne.s32.totalorder %s152, %s153
      %p162 = scmp.eq.s32.totalorder %s37, 0
      %p163 = por %p161, %p162
      %p164 = scmp.ne.s32.totalorder %s152, %s153
      %p165 = scmp.eq.s32.totalorder %s38, 1
      %p166 = por %p164, %p165
      %p168 = scmp.ne.s32.totalorder %s153, %s167
      %p169 = scmp.eq.s32.totalorder %s38, 0
      %p170 = por %p168, %p169
      %s172 = sadd.s32 %s171, 1
      %p175 = scmp.eq.s32.totalorder %s32, 1
      %p176 = scmp.ne.s32.totalorder %s171, %s173
      %p177 = scmp.eq.s32.totalorder %s32, 0
      %p178 = por %p176, %p177
      %p179 = scmp.ne.s32.totalorder %s171, %s173
      %p180 = scmp.eq.s32.totalorder %s37, 1
      %p181 = por %p179, %p180
      %p182 = scmp.ne.s32.totalorder %s173, %s174
      %p183 = scmp.eq.s32.totalorder %s37, 0
      %p184 = por %p182, %p183
      %p185 = scmp.ne.s32.totalorder %s173, %s174
      %p186 = scmp.eq.s32.totalorder %s38, 1
      %p187 = por %p185, %p186
      %p189 = scmp.ne.s32.totalorder %s174, %s188
      %p190 = scmp.eq.s32.totalorder %s38, 0
      %p191 = por %p189, %p190
      %s193 = sadd.s32 %s192, 1
      %p196 = scmp.eq.s32.totalorder %s32, 1
      %p197 = scmp.ne.s32.totalorder %s192, %s194
      %p198 = scmp.eq.s32.totalorder %s32, 0
      %p199 = por %p197, %p198
      %p200 = scmp.ne.s32.totalorder %s192, %s194
      %p201 = scmp.eq.s32.totalorder %s37, 1
      %p202 = por %p200, %p201
      %p203 = scmp.ne.s32.totalorder %s194, %s195
      %p204 = scmp.eq.s32.totalorder %s37, 0
      %p205 = por %p203, %p204
      %p206 = scmp.ne.s32.totalorder %s194, %s195
      %p207 = scmp.eq.s32.totalorder %s38, 1
      %p208 = por %p206, %p207
      %p210 = scmp.ne.s32.totalorder %s195, %s209
      %p211 = scmp.eq.s32.totalorder %s38, 0
      %p212 = por %p210, %p211
      %s214 = sadd.s32 %s213, 1
      %p217 = scmp.eq.s32.totalorder %s32, 1
      %p218 = scmp.ne.s32.totalorder %s213, %s215
      %p219 = scmp.eq.s32.totalorder %s32, 0
      %p220 = por %p218, %p219
      %p221 = scmp.ne.s32.totalorder %s213, %s215
      %p222 = scmp.eq.s32.totalorder %s37, 1
      %p223 = por %p221, %p222
      %p224 = scmp.ne.s32.totalorder %s215, %s216
      %p225 = scmp.eq.s32.totalorder %s37, 0
      %p226 = por %p224, %p225
      %p227 = scmp.ne.s32.totalorder %s215, %s216
      %p228 = scmp.eq.s32.totalorder %s38, 1
      %p229 = por %p227, %p228
      %p231 = scmp.ne.s32.totalorder %s216, %s230
      %p232 = scmp.eq.s32.totalorder %s38, 0
      %p233 = por %p231, %p232
      %s235 = sadd.s32 %s234, 1
      %p238 = scmp.eq.s32.totalorder %s32, 1
      %p239 = scmp.ne.s32.totalorder %s234, %s236
      %p240 = scmp.eq.s32.totalorder %s32, 0
      %p241 = por %p239, %p240
      %p242 = scmp.ne.s32.totalorder %s234, %s236
      %p243 = scmp.eq.s32.totalorder %s37, 1
      %p244 = por %p242, %p243
      %p245 = scmp.ne.s32.totalorder %s236, %s237
      %p246 = scmp.eq.s32.totalorder %s37, 0
      %p247 = por %p245, %p246
      %p248 = scmp.ne.s32.totalorder %s236, %s237
      %p249 = scmp.eq.s32.totalorder %s38, 1
      %p250 = por %p248, %p249
      %p252 = scmp.ne.s32.totalorder %s237, %s251
      %p253 = scmp.eq.s32.totalorder %s38, 0
      %p254 = por %p252, %p253
      %s256 = sadd.s32 %s255, 1
      %p259 = scmp.eq.s32.totalorder %s32, 1
      %p260 = scmp.ne.s32.totalorder %s255, %s257
      %p261 = scmp.eq.s32.totalorder %s32, 0
      %p262 = por %p260, %p261
      %p263 = scmp.ne.s32.totalorder %s255, %s257
      %p264 = scmp.eq.s32.totalorder %s37, 1
      %p265 = por %p263, %p264
      %p266 = scmp.ne.s32.totalorder %s257, %s258
      %p267 = scmp.eq.s32.totalorder %s37, 0
      %p268 = por %p266, %p267
      %p269 = scmp.ne.s32.totalorder %s257, %s258
      %p270 = scmp.eq.s32.totalorder %s38, 1
      %p271 = por %p269, %p270
      %p273 = scmp.ne.s32.totalorder %s258, %s272
      %p274 = scmp.eq.s32.totalorder %s38, 0
      %p275 = por %p273, %p274
      %s277 = sadd.s32 %s276, 1
      %p280 = scmp.eq.s32.totalorder %s32, 1
      %p281 = scmp.ne.s32.totalorder %s276, %s278
      %p282 = scmp.eq.s32.totalorder %s32, 0
      %p283 = por %p281, %p282
      %p284 = scmp.ne.s32.totalorder %s276, %s278
      %p285 = scmp.eq.s32.totalorder %s37, 1
      %p286 = por %p284, %p285
      %p287 = scmp.ne.s32.totalorder %s278, %s279
      %p288 = scmp.eq.s32.totalorder %s37, 0
      %p289 = por %p287, %p288
      %p290 = scmp.ne.s32.totalorder %s278, %s279
      %p291 = scmp.eq.s32.totalorder %s38, 1
      %p292 = por %p290, %p291
      %p294 = scmp.ne.s32.totalorder %s279, %s293
      %p295 = scmp.eq.s32.totalorder %s38, 0
      %p296 = por %p294, %p295
      %s298 = sadd.s32 %s297, 1
      %p301 = scmp.eq.s32.totalorder %s32, 1
      %p302 = scmp.ne.s32.totalorder %s297, %s299
      %p303 = scmp.eq.s32.totalorder %s32, 0
      %p304 = por %p302, %p303
      %p305 = scmp.ne.s32.totalorder %s297, %s299
      %p306 = scmp.eq.s32.totalorder %s37, 1
      %p307 = por %p305, %p306
      %p308 = scmp.ne.s32.totalorder %s299, %s300
      %p309 = scmp.eq.s32.totalorder %s37, 0
      %p310 = por %p308, %p309
      %p311 = scmp.ne.s32.totalorder %s299, %s300
      %p312 = scmp.eq.s32.totalorder %s38, 1
      %p313 = por %p311, %p312
      %p315 = scmp.ne.s32.totalorder %s300, %s314
      %p316 = scmp.eq.s32.totalorder %s38, 0
      %p317 = por %p315, %p316
      %s319 = sadd.s32 %s318, 1
      %p322 = scmp.eq.s32.totalorder %s32, 1
      %p323 = scmp.ne.s32.totalorder %s318, %s320
      %p324 = scmp.eq.s32.totalorder %s32, 0
      %p325 = por %p323, %p324
      %p326 = scmp.ne.s32.totalorder %s318, %s320
      %p327 = scmp.eq.s32.totalorder %s37, 1
      %p328 = por %p326, %p327
      %p329 = scmp.ne.s32.totalorder %s320, %s321
      %p330 = scmp.eq.s32.totalorder %s37, 0
      %p331 = por %p329, %p330
      %p332 = scmp.ne.s32.totalorder %s320, %s321
      %p333 = scmp.eq.s32.totalorder %s38, 1
      %p334 = por %p332, %p333
      %p336 = scmp.ne.s32.totalorder %s321, %s335
      %p337 = scmp.eq.s32.totalorder %s38, 0
      %p338 = por %p336, %p337
      %s340 = sadd.s32 %s339, 1
      %p343 = scmp.eq.s32.totalorder %s32, 1
      %p344 = scmp.ne.s32.totalorder %s339, %s341
      %p345 = scmp.eq.s32.totalorder %s32, 0
      %p346 = por %p344, %p345
      %p347 = scmp.ne.s32.totalorder %s339, %s341
      %p348 = scmp.eq.s32.totalorder %s37, 1
      %p349 = por %p347, %p348
      %p350 = scmp.ne.s32.totalorder %s341, %s342
      %p351 = scmp.eq.s32.totalorder %s37, 0
      %p352 = por %p350, %p351
      %p353 = scmp.ne.s32.totalorder %s341, %s342
      %p354 = scmp.eq.s32.totalorder %s38, 1
      %p355 = por %p353, %p354
      %p357 = scmp.ne.s32.totalorder %s342, %s356
      %p358 = scmp.eq.s32.totalorder %s38, 0
      %p359 = por %p357, %p358
      %s361 = sadd.s32 %s360, 1
      %p364 = scmp.eq.s32.totalorder %s32, 1
      %p365 = scmp.ne.s32.totalorder %s360, %s362
      %p366 = scmp.eq.s32.totalorder %s32, 0
      %p367 = por %p365, %p366
      %p368 = scmp.ne.s32.totalorder %s360, %s362
      %p369 = scmp.eq.s32.totalorder %s37, 1
      %p370 = por %p368, %p369
      %p371 = scmp.ne.s32.totalorder %s362, %s363
      %p372 = scmp.eq.s32.totalorder %s37, 0
      %p373 = por %p371, %p372
      %p374 = scmp.ne.s32.totalorder %s362, %s363
      %p375 = scmp.eq.s32.totalorder %s38, 1
      %p376 = por %p374, %p375
      %p378 = scmp.ne.s32.totalorder %s363, %s377
      %p379 = scmp.eq.s32.totalorder %s38, 0
      %p380 = por %p378, %p379
      %s382 = sadd.s32 %s381, 1
      %p385 = scmp.eq.s32.totalorder %s32, 1
      %p386 = scmp.ne.s32.totalorder %s381, %s383
      %p387 = scmp.eq.s32.totalorder %s32, 0
      %p388 = por %p386, %p387
      %p389 = scmp.ne.s32.totalorder %s381, %s383
      %p390 = scmp.eq.s32.totalorder %s37, 1
      %p391 = por %p389, %p390
      %p392 = scmp.ne.s32.totalorder %s383, %s384
      %p393 = scmp.eq.s32.totalorder %s37, 0
      %p394 = por %p392, %p393
      %p395 = scmp.ne.s32.totalorder %s383, %s384
      %p396 = scmp.eq.s32.totalorder %s38, 1
      %p397 = por %p395, %p396
      %p399 = scmp.ne.s32.totalorder %s384, %s398
      %p400 = scmp.eq.s32.totalorder %s38, 0
      %p401 = por %p399, %p400
      %s403 = sadd.s32 %s402, 1
      %p406 = scmp.eq.s32.totalorder %s32, 1
      %p407 = scmp.ne.s32.totalorder %s402, %s404
      %p408 = scmp.eq.s32.totalorder %s32, 0
      %p409 = por %p407, %p408
      %p410 = scmp.ne.s32.totalorder %s402, %s404
      %p411 = scmp.eq.s32.totalorder %s37, 1
      %p412 = por %p410, %p411
      %p413 = scmp.ne.s32.totalorder %s404, %s405
      %p414 = scmp.eq.s32.totalorder %s37, 0
      %p415 = por %p413, %p414
      %p416 = scmp.ne.s32.totalorder %s404, %s405
      %p417 = scmp.eq.s32.totalorder %s38, 1
      %p418 = por %p416, %p417
      %p420 = scmp.ne.s32.totalorder %s405, %s419
      %p421 = scmp.eq.s32.totalorder %s38, 0
      %p422 = por %p420, %p421
      %s424 = sadd.s32 %s423, 1
      %p427 = scmp.eq.s32.totalorder %s32, 1
      %p428 = scmp.ne.s32.totalorder %s423, %s425
      %p429 = scmp.eq.s32.totalorder %s32, 0
      %p430 = por %p428, %p429
      %p431 = scmp.ne.s32.totalorder %s423, %s425
      %p432 = scmp.eq.s32.totalorder %s37, 1
      %p433 = por %p431, %p432
      %p434 = scmp.ne.s32.totalorder %s425, %s426
      %p435 = scmp.eq.s32.totalorder %s37, 0
      %p436 = por %p434, %p435
      %p437 = scmp.ne.s32.totalorder %s425, %s426
      %p438 = scmp.eq.s32.totalorder %s38, 1
      %p439 = por %p437, %p438
      %p441 = scmp.ne.s32.totalorder %s426, %s440
      %p442 = scmp.eq.s32.totalorder %s38, 0
      %p443 = por %p441, %p442
      %s445 = sadd.s32 %s444, 1
      %p448 = scmp.eq.s32.totalorder %s32, 1
      %p449 = scmp.ne.s32.totalorder %s444, %s446
      %p450 = scmp.eq.s32.totalorder %s32, 0
      %p451 = por %p449, %p450
      %p452 = scmp.ne.s32.totalorder %s444, %s446
      %p453 = scmp.eq.s32.totalorder %s37, 1
      %p454 = por %p452, %p453
      %p455 = scmp.ne.s32.totalorder %s446, %s447
      %p456 = scmp.eq.s32.totalorder %s37, 0
      %p457 = por %p455, %p456
      %p458 = scmp.ne.s32.totalorder %s446, %s447
      %p459 = scmp.eq.s32.totalorder %s38, 1
      %p460 = por %p458, %p459
      %p462 = scmp.ne.s32.totalorder %s447, %s461
      %p463 = scmp.eq.s32.totalorder %s38, 0
      %p464 = por %p462, %p463
      %s466 = sadd.s32 %s465, 1
      %p469 = scmp.eq.s32.totalorder %s32, 1
      %p470 = scmp.ne.s32.totalorder %s465, %s467
      %p471 = scmp.eq.s32.totalorder %s32, 0
      %p472 = por %p470, %p471
      %p473 = scmp.ne.s32.totalorder %s465, %s467
      %p474 = scmp.eq.s32.totalorder %s37, 1
      %p475 = por %p473, %p474
      %p476 = scmp.ne.s32.totalorder %s467, %s468
      %p477 = scmp.eq.s32.totalorder %s37, 0
      %p478 = por %p476, %p477
      %p479 = scmp.ne.s32.totalorder %s467, %s468
      %p480 = scmp.eq.s32.totalorder %s38, 1
      %p481 = por %p479, %p480
      %p483 = scmp.ne.s32.totalorder %s468, %s482
      %p484 = scmp.eq.s32.totalorder %s38, 0
      %p485 = por %p483, %p484
      %s487 = sadd.s32 %s486, 1
      %p490 = scmp.eq.s32.totalorder %s32, 1
      %p491 = scmp.ne.s32.totalorder %s486, %s488
      %p492 = scmp.eq.s32.totalorder %s32, 0
      %p493 = por %p491, %p492
      %p494 = scmp.ne.s32.totalorder %s486, %s488
      %p495 = scmp.eq.s32.totalorder %s37, 1
      %p496 = por %p494, %p495
      %p497 = scmp.ne.s32.totalorder %s488, %s489
      %p498 = scmp.eq.s32.totalorder %s37, 0
      %p499 = por %p497, %p498
      %p500 = scmp.ne.s32.totalorder %s488, %s489
      %p501 = scmp.eq.s32.totalorder %s38, 1
      %p502 = por %p500, %p501
      %p504 = scmp.ne.s32.totalorder %s489, %s503
      %p505 = scmp.eq.s32.totalorder %s38, 0
      %p506 = por %p504, %p505
      %s508 = sadd.s32 %s507, 1
      %p511 = scmp.eq.s32.totalorder %s32, 1
      %p512 = scmp.ne.s32.totalorder %s507, %s509
      %p513 = scmp.eq.s32.totalorder %s32, 0
      %p514 = por %p512, %p513
      %p515 = scmp.ne.s32.totalorder %s507, %s509
      %p516 = scmp.eq.s32.totalorder %s37, 1
      %p517 = por %p515, %p516
      %p518 = scmp.ne.s32.totalorder %s509, %s510
      %p519 = scmp.eq.s32.totalorder %s37, 0
      %p520 = por %p518, %p519
      %p521 = scmp.ne.s32.totalorder %s509, %s510
      %p522 = scmp.eq.s32.totalorder %s38, 1
      %p523 = por %p521, %p522
      %p525 = scmp.ne.s32.totalorder %s510, %s524
      %p526 = scmp.eq.s32.totalorder %s38, 0
      %p527 = por %p525, %p526
      %s528 = ssub.s32 %s32, %s39
      %p529 = scmp.eq.s32.totalorder %s528, 0
      %s531 = sadd.s32 %s530, 1
      %s532 = scalar_select %p529, %s530, %s531
      %p535 = pneg %p529
      %p536 = scmp.eq.s32.totalorder %s32, 1
      %p537 = por %p535, %p536
      %p538 = scmp.ne.s32.totalorder %s530, %s533
      %p539 = scmp.eq.s32.totalorder %s32, 0
      %p540 = por %p538, %p539
      %p541 = scmp.ne.s32.totalorder %s530, %s533
      %p542 = scmp.eq.s32.totalorder %s37, 1
      %p543 = por %p541, %p542
      %p544 = scmp.ne.s32.totalorder %s533, %s534
      %p545 = scmp.eq.s32.totalorder %s37, 0
      %p546 = por %p544, %p545
      %p547 = scmp.ne.s32.totalorder %s533, %s534
      %p548 = scmp.eq.s32.totalorder %s38, 1
      %p549 = por %p547, %p548
      %p551 = scmp.ne.s32.totalorder %s534, %s550
      %p552 = scmp.eq.s32.totalorder %s38, 0
      %p553 = por %p551, %p552
      %p554 = scmp.le.s32.totalorder 1, %s32
      %p555 = scmp.lt.s32.totalorder %s32, 3
      %p556 = pnand %p554, %p555
      %p557 = pneg %p556
      // Predicated region
      $region9: #{chess_piece_predictor_forward.1} parent=5 // pred_check
        _
      $region10: #{chess_piece_predictor_forward.1} parent=5 // pred_check_branch
        %559 = sbr.rel (%p556) target = $region12
      $region11: #{chess_piece_predictor_forward.1} parent=5 // pred_region
        %s560 = ssub.s32 %s32, 1
        // Predicated region
        $region13: #{chess_piece_predictor_forward.1} parent=11 // pred_check
          %p561 = pneg %p79
        $region14: #{chess_piece_predictor_forward.1} parent=11 // pred_check_branch
          %563 = sbr.rel (%p561) target = $region16
        $region15: #{chess_piece_predictor_forward.1} parent=11 // pred_region
          _
        $region16: #{chess_piece_predictor_forward.1} parent=11 // pred_fallthru
          _
        // Predicated region
        $region17: #{chess_piece_predictor_forward.1} parent=11 // pred_check
          %p564 = pneg %p100
        $region18: #{chess_piece_predictor_forward.1} parent=11 // pred_check_branch
          %566 = sbr.rel (%p564) target = $region20
        $region19: #{chess_piece_predictor_forward.1} parent=11 // pred_region
          _
        $region20: #{chess_piece_predictor_forward.1} parent=11 // pred_fallthru
          _
        // Predicated region
        $region21: #{chess_piece_predictor_forward.1} parent=11 // pred_check
          %p567 = pneg %p121
        $region22: #{chess_piece_predictor_forward.1} parent=11 // pred_check_branch
          %569 = sbr.rel (%p567) target = $region24
        $region23: #{chess_piece_predictor_forward.1} parent=11 // pred_region
          _
        $region24: #{chess_piece_predictor_forward.1} parent=11 // pred_fallthru
          _
        // Predicated region
        $region25: #{chess_piece_predictor_forward.1} parent=11 // pred_check
          %p570 = pneg %p142
        $region26: #{chess_piece_predictor_forward.1} parent=11 // pred_check_branch
          %572 = sbr.rel (%p570) target = $region28
        $region27: #{chess_piece_predictor_forward.1} parent=11 // pred_region
          _
        $region28: #{chess_piece_predictor_forward.1} parent=11 // pred_fallthru
          _
        // Predicated region
        $region29: #{chess_piece_predictor_forward.1} parent=11 // pred_check
          %p573 = pneg %p163
        $region30: #{chess_piece_predictor_forward.1} parent=11 // pred_check_branch
          %575 = sbr.rel (%p573) target = $region32
        $region31: #{chess_piece_predictor_forward.1} parent=11 // pred_region
          _
        $region32: #{chess_piece_predictor_forward.1} parent=11 // pred_fallthru
          _
        // Predicated region
        $region33: #{chess_piece_predictor_forward.1} parent=11 // pred_check
          %p576 = pneg %p184
        $region34: #{chess_piece_predictor_forward.1} parent=11 // pred_check_branch
          %578 = sbr.rel (%p576) target = $region36
        $region35: #{chess_piece_predictor_forward.1} parent=11 // pred_region
          _
        $region36: #{chess_piece_predictor_forward.1} parent=11 // pred_fallthru
          _
        // Predicated region
        $region37: #{chess_piece_predictor_forward.1} parent=11 // pred_check
          %p579 = pneg %p205
        $region38: #{chess_piece_predictor_forward.1} parent=11 // pred_check_branch
          %581 = sbr.rel (%p579) target = $region40
        $region39: #{chess_piece_predictor_forward.1} parent=11 // pred_region
          _
        $region40: #{chess_piece_predictor_forward.1} parent=11 // pred_fallthru
          _
        // Predicated region
        $region41: #{chess_piece_predictor_forward.1} parent=11 // pred_check
          %p582 = pneg %p226
        $region42: #{chess_piece_predictor_forward.1} parent=11 // pred_check_branch
          %584 = sbr.rel (%p582) target = $region44
        $region43: #{chess_piece_predictor_forward.1} parent=11 // pred_region
          _
        $region44: #{chess_piece_predictor_forward.1} parent=11 // pred_fallthru
          _
        // Predicated region
        $region45: #{chess_piece_predictor_forward.1} parent=11 // pred_check
          %p585 = pneg %p247
        $region46: #{chess_piece_predictor_forward.1} parent=11 // pred_check_branch
          %587 = sbr.rel (%p585) target = $region48
        $region47: #{chess_piece_predictor_forward.1} parent=11 // pred_region
          _
        $region48: #{chess_piece_predictor_forward.1} parent=11 // pred_fallthru
          _
        // Predicated region
        $region49: #{chess_piece_predictor_forward.1} parent=11 // pred_check
          %p588 = pneg %p268
        $region50: #{chess_piece_predictor_forward.1} parent=11 // pred_check_branch
          %590 = sbr.rel (%p588) target = $region52
        $region51: #{chess_piece_predictor_forward.1} parent=11 // pred_region
          _
        $region52: #{chess_piece_predictor_forward.1} parent=11 // pred_fallthru
          _
        // Predicated region
        $region53: #{chess_piece_predictor_forward.1} parent=11 // pred_check
          %p591 = pneg %p289
        $region54: #{chess_piece_predictor_forward.1} parent=11 // pred_check_branch
          %593 = sbr.rel (%p591) target = $region56
        $region55: #{chess_piece_predictor_forward.1} parent=11 // pred_region
          _
        $region56: #{chess_piece_predictor_forward.1} parent=11 // pred_fallthru
          _
        // Predicated region
        $region57: #{chess_piece_predictor_forward.1} parent=11 // pred_check
          %p594 = pneg %p310
        $region58: #{chess_piece_predictor_forward.1} parent=11 // pred_check_branch
          %596 = sbr.rel (%p594) target = $region60
        $region59: #{chess_piece_predictor_forward.1} parent=11 // pred_region
          _
        $region60: #{chess_piece_predictor_forward.1} parent=11 // pred_fallthru
          _
        // Predicated region
        $region61: #{chess_piece_predictor_forward.1} parent=11 // pred_check
          %p597 = pneg %p331
        $region62: #{chess_piece_predictor_forward.1} parent=11 // pred_check_branch
          %599 = sbr.rel (%p597) target = $region64
        $region63: #{chess_piece_predictor_forward.1} parent=11 // pred_region
          _
        $region64: #{chess_piece_predictor_forward.1} parent=11 // pred_fallthru
          _
        // Predicated region
        $region65: #{chess_piece_predictor_forward.1} parent=11 // pred_check
          %p600 = pneg %p352
        $region66: #{chess_piece_predictor_forward.1} parent=11 // pred_check_branch
          %602 = sbr.rel (%p600) target = $region68
        $region67: #{chess_piece_predictor_forward.1} parent=11 // pred_region
          _
        $region68: #{chess_piece_predictor_forward.1} parent=11 // pred_fallthru
          _
        // Predicated region
        $region69: #{chess_piece_predictor_forward.1} parent=11 // pred_check
          %p603 = pneg %p373
        $region70: #{chess_piece_predictor_forward.1} parent=11 // pred_check_branch
          %605 = sbr.rel (%p603) target = $region72
        $region71: #{chess_piece_predictor_forward.1} parent=11 // pred_region
          _
        $region72: #{chess_piece_predictor_forward.1} parent=11 // pred_fallthru
          _
        // Predicated region
        $region73: #{chess_piece_predictor_forward.1} parent=11 // pred_check
          %p606 = pneg %p394
        $region74: #{chess_piece_predictor_forward.1} parent=11 // pred_check_branch
          %608 = sbr.rel (%p606) target = $region76
        $region75: #{chess_piece_predictor_forward.1} parent=11 // pred_region
          _
        $region76: #{chess_piece_predictor_forward.1} parent=11 // pred_fallthru
          _
        // Predicated region
        $region77: #{chess_piece_predictor_forward.1} parent=11 // pred_check
          %p609 = pneg %p415
        $region78: #{chess_piece_predictor_forward.1} parent=11 // pred_check_branch
          %611 = sbr.rel (%p609) target = $region80
        $region79: #{chess_piece_predictor_forward.1} parent=11 // pred_region
          _
        $region80: #{chess_piece_predictor_forward.1} parent=11 // pred_fallthru
          _
        // Predicated region
        $region81: #{chess_piece_predictor_forward.1} parent=11 // pred_check
          %p612 = pneg %p436
        $region82: #{chess_piece_predictor_forward.1} parent=11 // pred_check_branch
          %614 = sbr.rel (%p612) target = $region84
        $region83: #{chess_piece_predictor_forward.1} parent=11 // pred_region
          _
        $region84: #{chess_piece_predictor_forward.1} parent=11 // pred_fallthru
          _
        // Predicated region
        $region85: #{chess_piece_predictor_forward.1} parent=11 // pred_check
          %p615 = pneg %p457
        $region86: #{chess_piece_predictor_forward.1} parent=11 // pred_check_branch
          %617 = sbr.rel (%p615) target = $region88
        $region87: #{chess_piece_predictor_forward.1} parent=11 // pred_region
          _
        $region88: #{chess_piece_predictor_forward.1} parent=11 // pred_fallthru
          _
        // Predicated region
        $region89: #{chess_piece_predictor_forward.1} parent=11 // pred_check
          %p618 = pneg %p478
        $region90: #{chess_piece_predictor_forward.1} parent=11 // pred_check_branch
          %620 = sbr.rel (%p618) target = $region92
        $region91: #{chess_piece_predictor_forward.1} parent=11 // pred_region
          _
        $region92: #{chess_piece_predictor_forward.1} parent=11 // pred_fallthru
          _
        // Predicated region
        $region93: #{chess_piece_predictor_forward.1} parent=11 // pred_check
          %p621 = pneg %p499
        $region94: #{chess_piece_predictor_forward.1} parent=11 // pred_check_branch
          %623 = sbr.rel (%p621) target = $region96
        $region95: #{chess_piece_predictor_forward.1} parent=11 // pred_region
          _
        $region96: #{chess_piece_predictor_forward.1} parent=11 // pred_fallthru
          _
        // Predicated region
        $region97: #{chess_piece_predictor_forward.1} parent=11 // pred_check
          %p624 = pneg %p520
        $region98: #{chess_piece_predictor_forward.1} parent=11 // pred_check_branch
          %626 = sbr.rel (%p624) target = $region100
        $region99: #{chess_piece_predictor_forward.1} parent=11 // pred_region
          _
        $region100: #{chess_piece_predictor_forward.1} parent=11 // pred_fallthru
          _
      $region12: #{chess_piece_predictor_forward.1} parent=5 // pred_fallthru
        _
      %p627 = scmp.lt.s32.totalorder %s32, 2
      // Predicated region
      $region101: #{chess_piece_predictor_forward.1} parent=5 // pred_check
        %p628 = pneg %p627
      $region102: #{chess_piece_predictor_forward.1} parent=5 // pred_check_branch
        %630 = sbr.rel (%p628) target = $region104
      $region103: #{chess_piece_predictor_forward.1} parent=5 // pred_region
        // Predicated region
        $region105: #{chess_piece_predictor_forward.1} parent=103 // pred_check
          %p631 = pneg %p52
        $region106: #{chess_piece_predictor_forward.1} parent=103 // pred_check_branch
          %633 = sbr.rel (%p631) target = $region108
        $region107: #{chess_piece_predictor_forward.1} parent=103 // pred_region
          %p634 = scmp.lt.s32.totalorder %s32, 1
          %s635 = scalar_select %p634, %s32, 1
          %s636 = smul.addr %s635, 9
          %s637 = smul.addr %s636, 4
          %s638 = scalar_lea.vmem %s0, %s637
        $region108: #{chess_piece_predictor_forward.1} parent=103 // pred_fallthru
          _
      $region104: #{chess_piece_predictor_forward.1} parent=5 // pred_fallthru
        _
      %p639 = scmp.le.s32.totalorder 1, %s32
      %p640 = scmp.lt.s32.totalorder %s32, 3
      %p641 = pnand %p639, %p640
      %p642 = pneg %p641
      // Predicated region
      $region109: #{chess_piece_predictor_forward.1} parent=5 // pred_check
        _
      $region110: #{chess_piece_predictor_forward.1} parent=5 // pred_check_branch
        %644 = sbr.rel (%p641) target = $region112
      $region111: #{chess_piece_predictor_forward.1} parent=5 // pred_region
        %s645 = ssub.s32 %s32, 1
        %p646 = scmp.lt.s32.totalorder %s37, 1
        %s647 = scalar_select %p646, %s37, 1
        %s648 = smul.addr %s647, 9
        %s649 = smul.addr %s648, 4
        %s650 = scalar_lea.vmem %s0, %s649
        %p651 = pneg %p58
        %p652 = pneg %p55
        %p653 = pneg %p79
        %p654 = pneg %p76
        %p655 = pneg %p100
        %p656 = pneg %p97
        %p657 = pneg %p121
        %p658 = pneg %p118
        %p659 = pneg %p142
        %p660 = pneg %p139
        %p661 = pneg %p163
        %p662 = pneg %p160
        %p663 = pneg %p184
        %p664 = pneg %p181
        %p665 = pneg %p205
        %p666 = pneg %p202
        %p667 = pneg %p226
        %p668 = pneg %p223
        %p669 = pneg %p247
        %p670 = pneg %p244
        %p671 = pneg %p268
        %p672 = pneg %p265
        %p673 = pneg %p289
        %p674 = pneg %p286
        %p675 = pneg %p310
        %p676 = pneg %p307
        %p677 = pneg %p331
        %p678 = pneg %p328
        %p679 = pneg %p352
        %p680 = pneg %p349
        %p681 = pneg %p373
        %p682 = pneg %p370
        %p683 = pneg %p394
        %p684 = pneg %p391
        %p685 = pneg %p415
        %p686 = pneg %p412
        %p687 = pneg %p436
        %p688 = pneg %p433
        %p689 = pneg %p457
        %p690 = pneg %p454
        %p691 = pneg %p478
        %p692 = pneg %p475
        %p693 = pneg %p499
        %p694 = pneg %p496
        %p695 = pneg %p520
        %p696 = pneg %p517
        %p697 = pneg %p546
        %p698 = pneg %p543
        %s699 = sand.u32 %s533, 1
        %s700 = scalar_lea.sflag [#allocation4], %s699
        %s701 = sand.u32 %s533, 1
        %s702 = smul.addr %s701, 4
        %s703 = scalar_lea.vmem [#allocation3], %s702
        %p704 = scmp.lt.s32.totalorder %s37, 1
        %s705 = scalar_select %p704, %s37, 1
        %s706 = smul.addr %s705, 9
        %s707 = smul.addr %s706, 4
        %s708 = scalar_lea.vmem %s0, %s707
        %v710 = vld [vmem:[%s708] sm:$0xf]
        %v711 = vld [vmem:[%s708 + $0x4] sm:$0xf]
        %v712 = vld [vmem:[%s708 + $0x8] sm:$0xf]
        %v713 = vld [vmem:[%s708 + $0xc] sm:$0xf]
        %v714 = vld [vmem:[%s708 + $0x10] sm:$0xf]
        %v715 = vld [vmem:[%s708 + $0x14] sm:$0xf]
        %v716 = vld [vmem:[%s708 + $0x18] sm:$0xf]
        %v717 = vld [vmem:[%s708 + $0x1c] sm:$0xf]
        %v718 = vld [vmem:[%s708 + $0x20] sm:$0x3]
        %v719 = vld [vmem:[%s3] sm:$0xf]
        %v720 = vld [vmem:[%s3 + $0x4] sm:$0xf]
        %v721 = vld [vmem:[%s3 + $0x8] sm:$0xf]
        %v722 = vld [vmem:[%s3 + $0xc] sm:$0xf]
        %v723 = vld [vmem:[%s3 + $0x10] sm:$0xf]
        %v724 = vld [vmem:[%s3 + $0x14] sm:$0xf]
        %v725 = vld [vmem:[%s4] sm:$0x1]
        %v727 = vperm.slane %v725, 0
        %v738 = vunpack.c.l.b16 %v710
        %v739 = vunpack.c.l.b16 %v711
        %v740 = vunpack.c.l.b16 %v712
        %v741 = vunpack.c.l.b16 %v713
        %v742 = vunpack.c.l.b16 %v714
        %v743 = vunpack.c.l.b16 %v715
        %v744 = vunpack.c.l.b16 %v716
        %v745 = vunpack.c.l.b16 %v717
        %v746 = vunpack.c.l.b16 %v718
        %v747 = vpack.c.b16 %v739, %v738
        %v748 = vpack.c.b16 %v741, %v740
        %v749 = vpack.c.b16 %v743, %v742
        %v750 = vpack.c.b16 %v745, %v744
        %v751 = vpack.c.b16 %v746, %v746
        %v758 = vunpack.c.l.b16 %v719
        %v759 = vunpack.c.l.b16 %v720
        %v760 = vunpack.c.l.b16 %v721
        %v761 = vunpack.c.l.b16 %v722
        %v762 = vunpack.c.l.b16 %v723
        %v763 = vunpack.c.l.b16 %v724
        %v764 = vpack.c.b16 %v759, %v758
        %v765 = vpack.c.b16 %v761, %v760
        %v766 = vpack.c.b16 %v763, %v762
        %vm770 = vcmask 392192
        %v772 = vsel %vm770, %v747, 0
        %v775 = vsel %vm770, %v748, 0
        %v778 = vsel %vm770, %v749, 0
        %v781 = vsel %vm770, %v750, 0
        %v784 = vsel %vm770, %v751, 0
        %786 = vmatpush.bf16.msra.mxu0 0
        %787 = vmatpush.bf16.msra.mxu0 0
        %788 = vmatpush.bf16.msra.mxu0 0
        %789 = vmatpush.bf16.msra.mxu0 0
        %790 = vmatpush.bf16.msra.mxu0 0
        %791 = vmatpush.bf16.msra.mxu0 %v766
        %792 = vmatpush.bf16.msra.mxu0 %v765
        %793 = vmatpush.bf16.msra.mxu0 %v764
        %794 = vmatmul.bf16.gmra.mxu0 %v772
        %v795 = vpop.f32.mrf.mxu0
        %v796 = vadd.f32 %v727, %v795
        %v797 = vpop.f32.mrf.mxu0
        %v798 = vadd.f32 %v727, %v797
        %799 = vmatmul.bf16.gmra.mxu0 %v775
        %v800 = vpop.f32.mrf.mxu0
        %v801 = vadd.f32 %v727, %v800
        %v802 = vpop.f32.mrf.mxu0
        %v803 = vadd.f32 %v727, %v802
        %804 = vmatmul.bf16.gmra.mxu0 %v778
        %v805 = vpop.f32.mrf.mxu0
        %v806 = vadd.f32 %v727, %v805
        %v807 = vpop.f32.mrf.mxu0
        %v808 = vadd.f32 %v727, %v807
        %809 = vmatmul.bf16.gmra.mxu0 %v781
        %v810 = vpop.f32.mrf.mxu0
        %v811 = vadd.f32 %v727, %v810
        %v812 = vpop.f32.mrf.mxu0
        %v813 = vadd.f32 %v727, %v812
        %814 = vmatmul.bf16.gmra.mxu0 %v784
        %v815 = vpop.f32.mrf.mxu0
        %v816 = vadd.f32 %v727, %v815
        %v817 = vpop.f32.mrf.mxu0
        %818 = vdwg.mxu0
        %v819 = vld [vmem:[%s1] sm:$0xff]
        %v820 = vld [vmem:[%s1 + $0x8] sm:$0xff]
        %v821 = vld [vmem:[%s1 + $0x10] sm:$0xff]
        %v822 = vld [vmem:[%s1 + $0x18] sm:$0xff]
        %v823 = vld [vmem:[%s1 + $0x20] sm:$0xff]
        %v824 = vld [vmem:[%s1 + $0x28] sm:$0xff]
        %v825 = vld [vmem:[%s1 + $0x30] sm:$0xff]
        %v826 = vld [vmem:[%s1 + $0x38] sm:$0xff]
        %v827 = vld [vmem:[%s1 + $0x40] sm:$0xf]
        %v828 = vadd.f32 %v796, %v819
        %v829 = vadd.f32 %v798, %v820
        %v830 = vadd.f32 %v801, %v821
        %v831 = vadd.f32 %v803, %v822
        %v832 = vadd.f32 %v806, %v823
        %v833 = vadd.f32 %v808, %v824
        %v834 = vadd.f32 %v811, %v825
        %v835 = vadd.f32 %v813, %v826
        %v836 = vadd.f32 %v816, %v827
        %v837 = vld [vmem:[%s5] sm:$0x1]
        %v838 = vld [vmem:[%s6] sm:$0x1]
        %vm839 = vcmask 261120
        %v840 = vsel %vm839, %v828, 0.0
        %841 = vadd.xlane.f32.xlu0 %v840
        %v842 = vpop.xlane.xlu0 %841
        %v843 = vsel %vm839, %v829, 0.0
        %844 = vadd.xlane.f32.xlu0 %v843
        %v845 = vpop.xlane.xlu0 %844
        %v846 = vsel %vm839, %v830, 0.0
        %847 = vadd.xlane.f32.xlu0 %v846
        %v848 = vpop.xlane.xlu0 %847
        %v849 = vsel %vm839, %v831, 0.0
        %850 = vadd.xlane.f32.xlu0 %v849
        %v851 = vpop.xlane.xlu0 %850
        %v852 = vsel %vm839, %v832, 0.0
        %853 = vadd.xlane.f32.xlu0 %v852
        %v854 = vpop.xlane.xlu0 %853
        %v855 = vsel %vm839, %v833, 0.0
        %856 = vadd.xlane.f32.xlu0 %v855
        %v857 = vpop.xlane.xlu0 %856
        %v858 = vsel %vm839, %v834, 0.0
        %859 = vadd.xlane.f32.xlu0 %v858
        %v860 = vpop.xlane.xlu0 %859
        %v861 = vsel %vm839, %v835, 0.0
        %862 = vadd.xlane.f32.xlu0 %v861
        %v863 = vpop.xlane.xlu0 %862
        %vm864 = vcmask 257024
        %v865 = vsel %vm864, %v836, 0.0
        %866 = vadd.xlane.f32.xlu0 %v865
        %v867 = vpop.xlane.xlu0 %866
        %v868 = vrcp.pop 32.0
        %v869 = vmul.f32 32.0, %v868
        %v870 = vsub.f32 1.0, %v869
        %v871 = vmul.f32 %v868, %v870
        %v872 = vadd.f32 %v868, %v871
        %vm873 = vweird.f32 %v868
        %v874 = vsel %vm873, %v868, %v872
        %v875 = vmul.f32 %v842, %v874
        %v876 = vmul.f32 %v845, %v874
        %v877 = vmul.f32 %v848, %v874
        %v878 = vmul.f32 %v851, %v874
        %v879 = vmul.f32 %v854, %v874
        %v880 = vmul.f32 %v857, %v874
        %v881 = vmul.f32 %v860, %v874
        %v882 = vmul.f32 %v863, %v874
        %v883 = vmul.f32 %v867, %v874
        %v884 = vsub.f32 %v828, %v875
        %v885 = vsub.f32 %v829, %v876
        %v886 = vsub.f32 %v830, %v877
        %v887 = vsub.f32 %v831, %v878
        %v888 = vsub.f32 %v832, %v879
        %v889 = vsub.f32 %v833, %v880
        %v890 = vsub.f32 %v834, %v881
        %v891 = vsub.f32 %v835, %v882
        %v892 = vsub.f32 %v836, %v883
        %v893 = vmul.f32 %v884, %v884
        %v894 = vmul.f32 %v885, %v885
        %v895 = vmul.f32 %v886, %v886
        %v896 = vmul.f32 %v887, %v887
        %v897 = vmul.f32 %v888, %v888
        %v898 = vmul.f32 %v889, %v889
        %v899 = vmul.f32 %v890, %v890
        %v900 = vmul.f32 %v891, %v891
        %v901 = vmul.f32 %v892, %v892
        %v902 = vsel %vm839, %v893, 0.0
        %903 = vadd.xlane.f32.xlu0 %v902
        %v904 = vpop.xlane.xlu0 %903
        %v905 = vsel %vm839, %v894, 0.0
        %906 = vadd.xlane.f32.xlu0 %v905
        %v907 = vpop.xlane.xlu0 %906
        %v908 = vsel %vm839, %v895, 0.0
        %909 = vadd.xlane.f32.xlu0 %v908
        %v910 = vpop.xlane.xlu0 %909
        %v911 = vsel %vm839, %v896, 0.0
        %912 = vadd.xlane.f32.xlu0 %v911
        %v913 = vpop.xlane.xlu0 %912
        %v914 = vsel %vm839, %v897, 0.0
        %915 = vadd.xlane.f32.xlu0 %v914
        %v916 = vpop.xlane.xlu0 %915
        %v917 = vsel %vm839, %v898, 0.0
        %918 = vadd.xlane.f32.xlu0 %v917
        %v919 = vpop.xlane.xlu0 %918
        %v920 = vsel %vm839, %v899, 0.0
        %921 = vadd.xlane.f32.xlu0 %v920
        %v922 = vpop.xlane.xlu0 %921
        %v923 = vsel %vm839, %v900, 0.0
        %924 = vadd.xlane.f32.xlu0 %v923
        %v925 = vpop.xlane.xlu0 %924
        %v926 = vsel %vm864, %v901, 0.0
        %927 = vadd.xlane.f32.xlu0 %v926
        %v928 = vpop.xlane.xlu0 %927
        %v929 = vmul.f32 %v904, %v874
        %v930 = vmul.f32 %v907, %v874
        %v931 = vmul.f32 %v910, %v874
        %v932 = vmul.f32 %v913, %v874
        %v933 = vmul.f32 %v916, %v874
        %v934 = vmul.f32 %v919, %v874
        %v935 = vmul.f32 %v922, %v874
        %v936 = vmul.f32 %v925, %v874
        %v937 = vmul.f32 %v928, %v874
        %v938 = vadd.f32 %v929, 1e-05
        %v939 = vadd.f32 %v930, 1e-05
        %v940 = vadd.f32 %v931, 1e-05
        %v941 = vadd.f32 %v932, 1e-05
        %v942 = vadd.f32 %v933, 1e-05
        %v943 = vadd.f32 %v934, 1e-05
        %v944 = vadd.f32 %v935, 1e-05
        %v945 = vadd.f32 %v936, 1e-05
        %v946 = vadd.f32 %v937, 1e-05
        %v947 = vrsqrt.pop %v938
        %v948 = vmul.f32 %v947, %v938
        %v949 = vmul.f32 %v948, %v947
        %v950 = vmul.f32 0.5, %v949
        %v951 = vsub.f32 1.5, %v950
        %v952 = vmul.f32 %v947, %v951
        %vm953 = vweird.f32 %v938
        %vm954 = vweird.f32 %v947
        %vm955 = vmor %vm953, %vm954
        %v956 = vsel %vm955, %v947, %v952
        %v957 = vrsqrt.pop %v939
        %v958 = vmul.f32 %v957, %v939
        %v959 = vmul.f32 %v958, %v957
        %v960 = vmul.f32 0.5, %v959
        %v961 = vsub.f32 1.5, %v960
        %v962 = vmul.f32 %v957, %v961
        %vm963 = vweird.f32 %v939
        %vm964 = vweird.f32 %v957
        %vm965 = vmor %vm963, %vm964
        %v966 = vsel %vm965, %v957, %v962
        %v967 = vrsqrt.pop %v940
        %v968 = vmul.f32 %v967, %v940
        %v969 = vmul.f32 %v968, %v967
        %v970 = vmul.f32 0.5, %v969
        %v971 = vsub.f32 1.5, %v970
        %v972 = vmul.f32 %v967, %v971
        %vm973 = vweird.f32 %v940
        %vm974 = vweird.f32 %v967
        %vm975 = vmor %vm973, %vm974
        %v976 = vsel %vm975, %v967, %v972
        %v977 = vrsqrt.pop %v941
        %v978 = vmul.f32 %v977, %v941
        %v979 = vmul.f32 %v978, %v977
        %v980 = vmul.f32 0.5, %v979
        %v981 = vsub.f32 1.5, %v980
        %v982 = vmul.f32 %v977, %v981
        %vm983 = vweird.f32 %v941
        %vm984 = vweird.f32 %v977
        %vm985 = vmor %vm983, %vm984
        %v986 = vsel %vm985, %v977, %v982
        %v987 = vrsqrt.pop %v942
        %v988 = vmul.f32 %v987, %v942
        %v989 = vmul.f32 %v988, %v987
        %v990 = vmul.f32 0.5, %v989
        %v991 = vsub.f32 1.5, %v990
        %v992 = vmul.f32 %v987, %v991
        %vm993 = vweird.f32 %v942
        %vm994 = vweird.f32 %v987
        %vm995 = vmor %vm993, %vm994
        %v996 = vsel %vm995, %v987, %v992
        %v997 = vrsqrt.pop %v943
        %v998 = vmul.f32 %v997, %v943
        %v999 = vmul.f32 %v998, %v997
        %v1000 = vmul.f32 0.5, %v999
        %v1001 = vsub.f32 1.5, %v1000
        %v1002 = vmul.f32 %v997, %v1001
        %vm1003 = vweird.f32 %v943
        %vm1004 = vweird.f32 %v997
        %vm1005 = vmor %vm1003, %vm1004
        %v1006 = vsel %vm1005, %v997, %v1002
        %v1007 = vrsqrt.pop %v944
        %v1008 = vmul.f32 %v1007, %v944
        %v1009 = vmul.f32 %v1008, %v1007
        %v1010 = vmul.f32 0.5, %v1009
        %v1011 = vsub.f32 1.5, %v1010
        %v1012 = vmul.f32 %v1007, %v1011
        %vm1013 = vweird.f32 %v944
        %vm1014 = vweird.f32 %v1007
        %vm1015 = vmor %vm1013, %vm1014
        %v1016 = vsel %vm1015, %v1007, %v1012
        %v1017 = vrsqrt.pop %v945
        %v1018 = vmul.f32 %v1017, %v945
        %v1019 = vmul.f32 %v1018, %v1017
        %v1020 = vmul.f32 0.5, %v1019
        %v1021 = vsub.f32 1.5, %v1020
        %v1022 = vmul.f32 %v1017, %v1021
        %vm1023 = vweird.f32 %v945
        %vm1024 = vweird.f32 %v1017
        %vm1025 = vmor %vm1023, %vm1024
        %v1026 = vsel %vm1025, %v1017, %v1022
        %v1027 = vrsqrt.pop %v946
        %v1028 = vmul.f32 %v1027, %v946
        %v1029 = vmul.f32 %v1028, %v1027
        %v1030 = vmul.f32 0.5, %v1029
        %v1031 = vsub.f32 1.5, %v1030
        %v1032 = vmul.f32 %v1027, %v1031
        %vm1033 = vweird.f32 %v946
        %vm1034 = vweird.f32 %v1027
        %vm1035 = vmor %vm1033, %vm1034
        %v1036 = vsel %vm1035, %v1027, %v1032
        %v1037 = vmul.f32 %v884, %v956
        %v1038 = vmul.f32 %v885, %v966
        %v1039 = vmul.f32 %v886, %v976
        %v1040 = vmul.f32 %v887, %v986
        %v1041 = vmul.f32 %v888, %v996
        %v1042 = vmul.f32 %v889, %v1006
        %v1043 = vmul.f32 %v890, %v1016
        %v1044 = vmul.f32 %v891, %v1026
        %v1045 = vmul.f32 %v892, %v1036
        %v1047 = vperm.slane %v837, 0
        %v1049 = vmul.f32 %v1037, %v1047
        %v1050 = vmul.f32 %v1038, %v1047
        %v1051 = vmul.f32 %v1039, %v1047
        %v1052 = vmul.f32 %v1040, %v1047
        %v1053 = vmul.f32 %v1041, %v1047
        %v1054 = vmul.f32 %v1042, %v1047
        %v1055 = vmul.f32 %v1043, %v1047
        %v1056 = vmul.f32 %v1044, %v1047
        %v1057 = vmul.f32 %v1045, %v1047
        %v1059 = vperm.slane %v838, 0
        %v1061 = vadd.f32 %v1049, %v1059
        %v1062 = vadd.f32 %v1050, %v1059
        %v1063 = vadd.f32 %v1051, %v1059
        %v1064 = vadd.f32 %v1052, %v1059
        %v1065 = vadd.f32 %v1053, %v1059
        %v1066 = vadd.f32 %v1054, %v1059
        %v1067 = vadd.f32 %v1055, %v1059
        %v1068 = vadd.f32 %v1056, %v1059
        %v1069 = vadd.f32 %v1057, %v1059
        %v1070 = vpack.c.bf16 %v1062, %v1061
        %v1071 = vpack.c.bf16 %v1064, %v1063
        %v1072 = vpack.c.bf16 %v1066, %v1065
        %v1073 = vpack.c.bf16 %v1068, %v1067
        %v1074 = vpack.c.bf16 %v1069, %v1069
        %v1075 = vld [vmem:[%s7] sm:$0xf]
        %v1076 = vld [vmem:[%s7 + $0x4] sm:$0xf]
        %v1077 = vld [vmem:[%s7 + $0x8] sm:$0xf]
        %v1078 = vld [vmem:[%s7 + $0xc] sm:$0xf]
        %v1079 = vld [vmem:[%s8] sm:$0x1]
        %v1081 = vperm.slane %v1079, 0
        %v1087 = vunpack.c.l.b16 %v1075
        %v1088 = vunpack.c.l.b16 %v1076
        %v1089 = vunpack.c.l.b16 %v1077
        %v1090 = vunpack.c.l.b16 %v1078
        %v1091 = vpack.c.b16 %v1088, %v1087
        %v1092 = vpack.c.b16 %v1090, %v1089
        %v1096 = vsel %vm839, %v1070, 0
        %v1099 = vsel %vm839, %v1071, 0
        %v1102 = vsel %vm839, %v1072, 0
        %v1105 = vsel %vm839, %v1073, 0
        %v1108 = vsel %vm839, %v1074, 0
        %1110 = vmatpush.bf16.msra.mxu0 0
        %1111 = vmatpush.bf16.msra.mxu0 0
        %1112 = vmatpush.bf16.msra.mxu0 0
        %1113 = vmatpush.bf16.msra.mxu0 0
        %1114 = vmatpush.bf16.msra.mxu0 0
        %1115 = vmatpush.bf16.msra.mxu0 0
        %1116 = vmatpush.bf16.msra.mxu0 %v1092
        %1117 = vmatpush.bf16.msra.mxu0 %v1091
        %1118 = vmatmul.bf16.gmra.mxu0 %v1096
        %v1119 = vpop.f32.mrf.mxu0
        %v1120 = vadd.f32 %v1081, %v1119
        %v1121 = vpop.f32.mrf.mxu0
        %v1122 = vadd.f32 %v1081, %v1121
        %1123 = vmatmul.bf16.gmra.mxu0 %v1099
        %v1124 = vpop.f32.mrf.mxu0
        %v1125 = vadd.f32 %v1081, %v1124
        %v1126 = vpop.f32.mrf.mxu0
        %v1127 = vadd.f32 %v1081, %v1126
        %1128 = vmatmul.bf16.gmra.mxu0 %v1102
        %v1129 = vpop.f32.mrf.mxu0
        %v1130 = vadd.f32 %v1081, %v1129
        %v1131 = vpop.f32.mrf.mxu0
        %v1132 = vadd.f32 %v1081, %v1131
        %1133 = vmatmul.bf16.gmra.mxu0 %v1105
        %v1134 = vpop.f32.mrf.mxu0
        %v1135 = vadd.f32 %v1081, %v1134
        %v1136 = vpop.f32.mrf.mxu0
        %v1137 = vadd.f32 %v1081, %v1136
        %1138 = vmatmul.bf16.gmra.mxu0 %v1108
        %v1139 = vpop.f32.mrf.mxu0
        %v1140 = vadd.f32 %v1081, %v1139
        %v1141 = vpop.f32.mrf.mxu0
        %1142 = vdwg.mxu0
        %1146 = vrot.lane.b32.xlu0 %v1120, 120
        %v1147 = vpop.permute.xlu0 %1146
        %1148 = vrot.lane.b32.xlu0 %v1122, 120
        %v1149 = vpop.permute.xlu0 %1148
        %1150 = vrot.lane.b32.xlu0 %v1125, 120
        %v1151 = vpop.permute.xlu0 %1150
        %1155 = vrot.lane.b32.xlu0 %v1120, 112
        %v1156 = vpop.permute.xlu0 %1155
        %1157 = vrot.lane.b32.xlu0 %v1122, 112
        %v1158 = vpop.permute.xlu0 %1157
        %1159 = vrot.lane.b32.xlu0 %v1125, 112
        %v1160 = vpop.permute.xlu0 %1159
        %1164 = vrot.lane.b32.xlu0 %v1120, 104
        %v1165 = vpop.permute.xlu0 %1164
        %1166 = vrot.lane.b32.xlu0 %v1122, 104
        %v1167 = vpop.permute.xlu0 %1166
        %1168 = vrot.lane.b32.xlu0 %v1125, 104
        %v1169 = vpop.permute.xlu0 %1168
        %v1173 = vpack.c.bf16 %v1120, %v1120
        %v1174 = vpack.c.bf16 %v1122, %v1122
        %v1175 = vpack.c.bf16 %v1125, %v1125
        %v1176 = vpack.c.bf16 %v1147, %v1147
        %v1177 = vpack.c.bf16 %v1149, %v1149
        %v1178 = vpack.c.bf16 %v1151, %v1151
        %v1179 = vpack.c.bf16 %v1156, %v1156
        %v1180 = vpack.c.bf16 %v1158, %v1158
        %v1181 = vpack.c.bf16 %v1160, %v1160
        %v1182 = vpack.c.bf16 %v1165, %v1165
        %v1183 = vpack.c.bf16 %v1167, %v1167
        %v1184 = vpack.c.bf16 %v1169, %v1169
        %v1188 = vunpack.c.l.b16 %v1173
        %v1189 = vunpack.c.l.b16 %v1174
        %v1190 = vunpack.c.l.b16 %v1175
        %v1191 = vpack.c.b16 %v1189, %v1188
        %v1192 = vpack.c.b16 %v1190, %v1190
        %1193 = vrot.lane.b32.xlu0 %v1191, 96
        %v1194 = vpop.permute.xlu0 %1193
        %1195 = vrot.lane.b32.xlu0 %v1192, 96
        %v1196 = vpop.permute.xlu0 %1195
        %vm1197 = vcmask 64512
        %v1199 = vsel %vm1197, %v1191, 0
        %v1202 = vsel %vm1197, %v1192, 0
        %v1205 = vsel %vm1197, %v1194, 0
        %v1208 = vsel %vm1197, %v1196, 0
        %1210 = vmatpush.bf16.xpose.msra.mxu0 0
        %1211 = vmatpush.bf16.xpose.msra.mxu0 0
        %1212 = vmatpush.bf16.xpose.msra.mxu0 0
        %1213 = vmatpush.bf16.xpose.msra.mxu0 0
        %1214 = vmatpush.bf16.xpose.msra.mxu0 0
        %1215 = vmatpush.bf16.xpose.msra.mxu0 0
        %1216 = vmatpush.bf16.xpose.msra.mxu0 %v1208
        %1217 = vmatpush.bf16.xpose.msra.mxu0 %v1205
        %1218 = vmatmul.bf16.gmra.mxu0 %v1199
        %v1219 = vpop.f32.mrf.mxu0
        %v1220 = vadd.f32 0.0, %v1219
        %v1221 = vpop.f32.mrf.mxu0
        %v1222 = vadd.f32 0.0, %v1221
        %1223 = vmatmul.bf16.gmra.mxu0 %v1202
        %v1224 = vpop.f32.mrf.mxu0
        %v1225 = vadd.f32 0.0, %v1224
        %v1226 = vpop.f32.mrf.mxu0
        %1227 = vdwg.mxu0
        %v1231 = vunpack.c.l.b16 %v1176
        %v1232 = vunpack.c.l.b16 %v1177
        %v1233 = vunpack.c.l.b16 %v1178
        %v1234 = vpack.c.b16 %v1232, %v1231
        %v1235 = vpack.c.b16 %v1233, %v1233
        %1236 = vrot.lane.b32.xlu0 %v1234, 96
        %v1237 = vpop.permute.xlu0 %1236
        %1238 = vrot.lane.b32.xlu0 %v1235, 96
        %v1239 = vpop.permute.xlu0 %1238
        %v1241 = vsel %vm1197, %v1234, 0
        %v1244 = vsel %vm1197, %v1235, 0
        %v1247 = vsel %vm1197, %v1237, 0
        %v1250 = vsel %vm1197, %v1239, 0
        %1252 = vmatpush.bf16.xpose.msra.mxu0 0
        %1253 = vmatpush.bf16.xpose.msra.mxu0 0
        %1254 = vmatpush.bf16.xpose.msra.mxu0 0
        %1255 = vmatpush.bf16.xpose.msra.mxu0 0
        %1256 = vmatpush.bf16.xpose.msra.mxu0 0
        %1257 = vmatpush.bf16.xpose.msra.mxu0 0
        %1258 = vmatpush.bf16.xpose.msra.mxu0 %v1250
        %1259 = vmatpush.bf16.xpose.msra.mxu0 %v1247
        %1260 = vmatmul.bf16.gmra.mxu0 %v1241
        %v1261 = vpop.f32.mrf.mxu0
        %v1262 = vadd.f32 0.0, %v1261
        %v1263 = vpop.f32.mrf.mxu0
        %v1264 = vadd.f32 0.0, %v1263
        %1265 = vmatmul.bf16.gmra.mxu0 %v1244
        %v1266 = vpop.f32.mrf.mxu0
        %v1267 = vadd.f32 0.0, %v1266
        %v1268 = vpop.f32.mrf.mxu0
        %1269 = vdwg.mxu0
        %v1273 = vunpack.c.l.b16 %v1179
        %v1274 = vunpack.c.l.b16 %v1180
        %v1275 = vunpack.c.l.b16 %v1181
        %v1276 = vpack.c.b16 %v1274, %v1273
        %v1277 = vpack.c.b16 %v1275, %v1275
        %1278 = vrot.lane.b32.xlu0 %v1276, 96
        %v1279 = vpop.permute.xlu0 %1278
        %1280 = vrot.lane.b32.xlu0 %v1277, 96
        %v1281 = vpop.permute.xlu0 %1280
        %v1283 = vsel %vm1197, %v1276, 0
        %v1286 = vsel %vm1197, %v1277, 0
        %v1289 = vsel %vm1197, %v1279, 0
        %v1292 = vsel %vm1197, %v1281, 0
        %1294 = vmatpush.bf16.xpose.msra.mxu0 0
        %1295 = vmatpush.bf16.xpose.msra.mxu0 0
        %1296 = vmatpush.bf16.xpose.msra.mxu0 0
        %1297 = vmatpush.bf16.xpose.msra.mxu0 0
        %1298 = vmatpush.bf16.xpose.msra.mxu0 0
        %1299 = vmatpush.bf16.xpose.msra.mxu0 0
        %1300 = vmatpush.bf16.xpose.msra.mxu0 %v1292
        %1301 = vmatpush.bf16.xpose.msra.mxu0 %v1289
        %1302 = vmatmul.bf16.gmra.mxu0 %v1283
        %v1303 = vpop.f32.mrf.mxu0
        %v1304 = vadd.f32 0.0, %v1303
        %v1305 = vpop.f32.mrf.mxu0
        %v1306 = vadd.f32 0.0, %v1305
        %1307 = vmatmul.bf16.gmra.mxu0 %v1286
        %v1308 = vpop.f32.mrf.mxu0
        %v1309 = vadd.f32 0.0, %v1308
        %v1310 = vpop.f32.mrf.mxu0
        %1311 = vdwg.mxu0
        %v1315 = vunpack.c.l.b16 %v1182
        %v1316 = vunpack.c.l.b16 %v1183
        %v1317 = vunpack.c.l.b16 %v1184
        %v1318 = vpack.c.b16 %v1316, %v1315
        %v1319 = vpack.c.b16 %v1317, %v1317
        %1320 = vrot.lane.b32.xlu0 %v1318, 96
        %v1321 = vpop.permute.xlu0 %1320
        %1322 = vrot.lane.b32.xlu0 %v1319, 96
        %v1323 = vpop.permute.xlu0 %1322
        %v1325 = vsel %vm1197, %v1318, 0
        %v1328 = vsel %vm1197, %v1319, 0
        %v1331 = vsel %vm1197, %v1321, 0
        %v1334 = vsel %vm1197, %v1323, 0
        %1336 = vmatpush.bf16.xpose.msra.mxu0 0
        %1337 = vmatpush.bf16.xpose.msra.mxu0 0
        %1338 = vmatpush.bf16.xpose.msra.mxu0 0
        %1339 = vmatpush.bf16.xpose.msra.mxu0 0
        %1340 = vmatpush.bf16.xpose.msra.mxu0 0
        %1341 = vmatpush.bf16.xpose.msra.mxu0 0
        %1342 = vmatpush.bf16.xpose.msra.mxu0 %v1334
        %1343 = vmatpush.bf16.xpose.msra.mxu0 %v1331
        %1344 = vmatmul.bf16.gmra.mxu0 %v1325
        %v1345 = vpop.f32.mrf.mxu0
        %v1346 = vadd.f32 0.0, %v1345
        %v1347 = vpop.f32.mrf.mxu0
        %v1348 = vadd.f32 0.0, %v1347
        %1349 = vmatmul.bf16.gmra.mxu0 %v1328
        %v1350 = vpop.f32.mrf.mxu0
        %v1351 = vadd.f32 0.0, %v1350
        %v1352 = vpop.f32.mrf.mxu0
        %1353 = vdwg.mxu0
        %vm1354 = vcmask 138240
        %v1355 = vsel %vm1354, %v1220, -inf
        %1356 = vmax.xlane.f32.xlu0 %v1355
        %v1357 = vpop.xlane.xlu0 %1356
        %v1358 = vsel %vm1354, %v1222, -inf
        %1359 = vmax.xlane.f32.xlu0 %v1358
        %v1360 = vpop.xlane.xlu0 %1359
        %vm1361 = vcmask 131072
        %v1362 = vsel %vm1361, %v1225, -inf
        %1363 = vmax.xlane.f32.xlu0 %v1362
        %v1364 = vpop.xlane.xlu0 %1363
        %v1365 = vsel %vm1354, %v1262, -inf
        %1366 = vmax.xlane.f32.xlu0 %v1365
        %v1367 = vpop.xlane.xlu0 %1366
        %v1368 = vsel %vm1354, %v1264, -inf
        %1369 = vmax.xlane.f32.xlu0 %v1368
        %v1370 = vpop.xlane.xlu0 %1369
        %v1371 = vsel %vm1361, %v1267, -inf
        %1372 = vmax.xlane.f32.xlu0 %v1371
        %v1373 = vpop.xlane.xlu0 %1372
        %v1374 = vsel %vm1354, %v1304, -inf
        %1375 = vmax.xlane.f32.xlu0 %v1374
        %v1376 = vpop.xlane.xlu0 %1375
        %v1377 = vsel %vm1354, %v1306, -inf
        %1378 = vmax.xlane.f32.xlu0 %v1377
        %v1379 = vpop.xlane.xlu0 %1378
        %v1380 = vsel %vm1361, %v1309, -inf
        %1381 = vmax.xlane.f32.xlu0 %v1380
        %v1382 = vpop.xlane.xlu0 %1381
        %v1383 = vsel %vm1354, %v1346, -inf
        %1384 = vmax.xlane.f32.xlu0 %v1383
        %v1385 = vpop.xlane.xlu0 %1384
        %v1386 = vsel %vm1354, %v1348, -inf
        %1387 = vmax.xlane.f32.xlu0 %v1386
        %v1388 = vpop.xlane.xlu0 %1387
        %v1389 = vsel %vm1361, %v1351, -inf
        %1390 = vmax.xlane.f32.xlu0 %v1389
        %v1391 = vpop.xlane.xlu0 %1390
        %v1392 = vsub.f32 %v1220, %v1357
        %v1393 = vsub.f32 %v1222, %v1360
        %v1394 = vsub.f32 %v1225, %v1364
        %v1395 = vsub.f32 %v1262, %v1367
        %v1396 = vsub.f32 %v1264, %v1370
        %v1397 = vsub.f32 %v1267, %v1373
        %v1398 = vsub.f32 %v1304, %v1376
        %v1399 = vsub.f32 %v1306, %v1379
        %v1400 = vsub.f32 %v1309, %v1382
        %v1401 = vsub.f32 %v1346, %v1385
        %v1402 = vsub.f32 %v1348, %v1388
        %v1403 = vsub.f32 %v1351, %v1391
        %v1404 = vmul.f32 %v1392, 1.442695
        %v1405 = vpow.pop %v1404
        %v1406 = vmul.f32 %v1393, 1.442695
        %v1407 = vpow.pop %v1406
        %v1408 = vmul.f32 %v1394, 1.442695
        %v1409 = vpow.pop %v1408
        %v1410 = vmul.f32 %v1395, 1.442695
        %v1411 = vpow.pop %v1410
        %v1412 = vmul.f32 %v1396, 1.442695
        %v1413 = vpow.pop %v1412
        %v1414 = vmul.f32 %v1397, 1.442695
        %v1415 = vpow.pop %v1414
        %v1416 = vmul.f32 %v1398, 1.442695
        %v1417 = vpow.pop %v1416
        %v1418 = vmul.f32 %v1399, 1.442695
        %v1419 = vpow.pop %v1418
        %v1420 = vmul.f32 %v1400, 1.442695
        %v1421 = vpow.pop %v1420
        %v1422 = vmul.f32 %v1401, 1.442695
        %v1423 = vpow.pop %v1422
        %v1424 = vmul.f32 %v1402, 1.442695
        %v1425 = vpow.pop %v1424
        %v1426 = vmul.f32 %v1403, 1.442695
        %v1427 = vpow.pop %v1426
        %v1428 = vsel %vm1354, %v1405, 0.0
        %1429 = vadd.xlane.f32.xlu0 %v1428
        %v1430 = vpop.xlane.xlu0 %1429
        %v1431 = vsel %vm1354, %v1407, 0.0
        %1432 = vadd.xlane.f32.xlu0 %v1431
        %v1433 = vpop.xlane.xlu0 %1432
        %v1434 = vsel %vm1361, %v1409, 0.0
        %1435 = vadd.xlane.f32.xlu0 %v1434
        %v1436 = vpop.xlane.xlu0 %1435
        %v1437 = vsel %vm1354, %v1411, 0.0
        %1438 = vadd.xlane.f32.xlu0 %v1437
        %v1439 = vpop.xlane.xlu0 %1438
        %v1440 = vsel %vm1354, %v1413, 0.0
        %1441 = vadd.xlane.f32.xlu0 %v1440
        %v1442 = vpop.xlane.xlu0 %1441
        %v1443 = vsel %vm1361, %v1415, 0.0
        %1444 = vadd.xlane.f32.xlu0 %v1443
        %v1445 = vpop.xlane.xlu0 %1444
        %v1446 = vsel %vm1354, %v1417, 0.0
        %1447 = vadd.xlane.f32.xlu0 %v1446
        %v1448 = vpop.xlane.xlu0 %1447
        %v1449 = vsel %vm1354, %v1419, 0.0
        %1450 = vadd.xlane.f32.xlu0 %v1449
        %v1451 = vpop.xlane.xlu0 %1450
        %v1452 = vsel %vm1361, %v1421, 0.0
        %1453 = vadd.xlane.f32.xlu0 %v1452
        %v1454 = vpop.xlane.xlu0 %1453
        %v1455 = vsel %vm1354, %v1423, 0.0
        %1456 = vadd.xlane.f32.xlu0 %v1455
        %v1457 = vpop.xlane.xlu0 %1456
        %v1458 = vsel %vm1354, %v1425, 0.0
        %1459 = vadd.xlane.f32.xlu0 %v1458
        %v1460 = vpop.xlane.xlu0 %1459
        %v1461 = vsel %vm1361, %v1427, 0.0
        %1462 = vadd.xlane.f32.xlu0 %v1461
        %v1463 = vpop.xlane.xlu0 %1462
        %v1464 = vrcp.pop %v1430
        %v1465 = vmul.f32 %v1430, %v1464
        %v1466 = vsub.f32 1.0, %v1465
        %v1467 = vmul.f32 %v1464, %v1466
        %v1468 = vadd.f32 %v1464, %v1467
        %vm1469 = vweird.f32 %v1430
        %vm1470 = vweird.f32 %v1464
        %vm1471 = vmor %vm1469, %vm1470
        %v1472 = vsel %vm1471, %v1464, %v1468
        %v1473 = vand.u32 2147483647, %v1430
        %vm1474 = vcmp.eq.f32.partialorder %v1473, 8.507059e+37
        %v1475 = vand.u32 %v1430, 2147483648
        %v1476 = vor.u32 1.1754944e-38, %v1475
        %v1477 = vsel %vm1474, %v1476, %v1472
        %v1478 = vmul.f32 %v1405, %v1477
        %v1479 = vrcp.pop %v1433
        %v1480 = vmul.f32 %v1433, %v1479
        %v1481 = vsub.f32 1.0, %v1480
        %v1482 = vmul.f32 %v1479, %v1481
        %v1483 = vadd.f32 %v1479, %v1482
        %vm1484 = vweird.f32 %v1433
        %vm1485 = vweird.f32 %v1479
        %vm1486 = vmor %vm1484, %vm1485
        %v1487 = vsel %vm1486, %v1479, %v1483
        %v1488 = vand.u32 2147483647, %v1433
        %vm1489 = vcmp.eq.f32.partialorder %v1488, 8.507059e+37
        %v1490 = vand.u32 %v1433, 2147483648
        %v1491 = vor.u32 1.1754944e-38, %v1490
        %v1492 = vsel %vm1489, %v1491, %v1487
        %v1493 = vmul.f32 %v1407, %v1492
        %v1494 = vrcp.pop %v1436
        %v1495 = vmul.f32 %v1436, %v1494
        %v1496 = vsub.f32 1.0, %v1495
        %v1497 = vmul.f32 %v1494, %v1496
        %v1498 = vadd.f32 %v1494, %v1497
        %vm1499 = vweird.f32 %v1436
        %vm1500 = vweird.f32 %v1494
        %vm1501 = vmor %vm1499, %vm1500
        %v1502 = vsel %vm1501, %v1494, %v1498
        %v1503 = vand.u32 2147483647, %v1436
        %vm1504 = vcmp.eq.f32.partialorder %v1503, 8.507059e+37
        %v1505 = vand.u32 %v1436, 2147483648
        %v1506 = vor.u32 1.1754944e-38, %v1505
        %v1507 = vsel %vm1504, %v1506, %v1502
        %v1508 = vmul.f32 %v1409, %v1507
        %v1509 = vrcp.pop %v1439
        %v1510 = vmul.f32 %v1439, %v1509
        %v1511 = vsub.f32 1.0, %v1510
        %v1512 = vmul.f32 %v1509, %v1511
        %v1513 = vadd.f32 %v1509, %v1512
        %vm1514 = vweird.f32 %v1439
        %vm1515 = vweird.f32 %v1509
        %vm1516 = vmor %vm1514, %vm1515
        %v1517 = vsel %vm1516, %v1509, %v1513
        %v1518 = vand.u32 2147483647, %v1439
        %vm1519 = vcmp.eq.f32.partialorder %v1518, 8.507059e+37
        %v1520 = vand.u32 %v1439, 2147483648
        %v1521 = vor.u32 1.1754944e-38, %v1520
        %v1522 = vsel %vm1519, %v1521, %v1517
        %v1523 = vmul.f32 %v1411, %v1522
        %v1524 = vrcp.pop %v1442
        %v1525 = vmul.f32 %v1442, %v1524
        %v1526 = vsub.f32 1.0, %v1525
        %v1527 = vmul.f32 %v1524, %v1526
        %v1528 = vadd.f32 %v1524, %v1527
        %vm1529 = vweird.f32 %v1442
        %vm1530 = vweird.f32 %v1524
        %vm1531 = vmor %vm1529, %vm1530
        %v1532 = vsel %vm1531, %v1524, %v1528
        %v1533 = vand.u32 2147483647, %v1442
        %vm1534 = vcmp.eq.f32.partialorder %v1533, 8.507059e+37
        %v1535 = vand.u32 %v1442, 2147483648
        %v1536 = vor.u32 1.1754944e-38, %v1535
        %v1537 = vsel %vm1534, %v1536, %v1532
        %v1538 = vmul.f32 %v1413, %v1537
        %v1539 = vrcp.pop %v1445
        %v1540 = vmul.f32 %v1445, %v1539
        %v1541 = vsub.f32 1.0, %v1540
        %v1542 = vmul.f32 %v1539, %v1541
        %v1543 = vadd.f32 %v1539, %v1542
        %vm1544 = vweird.f32 %v1445
        %vm1545 = vweird.f32 %v1539
        %vm1546 = vmor %vm1544, %vm1545
        %v1547 = vsel %vm1546, %v1539, %v1543
        %v1548 = vand.u32 2147483647, %v1445
        %vm1549 = vcmp.eq.f32.partialorder %v1548, 8.507059e+37
        %v1550 = vand.u32 %v1445, 2147483648
        %v1551 = vor.u32 1.1754944e-38, %v1550
        %v1552 = vsel %vm1549, %v1551, %v1547
        %v1553 = vmul.f32 %v1415, %v1552
        %v1554 = vrcp.pop %v1448
        %v1555 = vmul.f32 %v1448, %v1554
        %v1556 = vsub.f32 1.0, %v1555
        %v1557 = vmul.f32 %v1554, %v1556
        %v1558 = vadd.f32 %v1554, %v1557
        %vm1559 = vweird.f32 %v1448
        %vm1560 = vweird.f32 %v1554
        %vm1561 = vmor %vm1559, %vm1560
        %v1562 = vsel %vm1561, %v1554, %v1558
        %v1563 = vand.u32 2147483647, %v1448
        %vm1564 = vcmp.eq.f32.partialorder %v1563, 8.507059e+37
        %v1565 = vand.u32 %v1448, 2147483648
        %v1566 = vor.u32 1.1754944e-38, %v1565
        %v1567 = vsel %vm1564, %v1566, %v1562
        %v1568 = vmul.f32 %v1417, %v1567
        %v1569 = vrcp.pop %v1451
        %v1570 = vmul.f32 %v1451, %v1569
        %v1571 = vsub.f32 1.0, %v1570
        %v1572 = vmul.f32 %v1569, %v1571
        %v1573 = vadd.f32 %v1569, %v1572
        %vm1574 = vweird.f32 %v1451
        %vm1575 = vweird.f32 %v1569
        %vm1576 = vmor %vm1574, %vm1575
        %v1577 = vsel %vm1576, %v1569, %v1573
        %v1578 = vand.u32 2147483647, %v1451
        %vm1579 = vcmp.eq.f32.partialorder %v1578, 8.507059e+37
        %v1580 = vand.u32 %v1451, 2147483648
        %v1581 = vor.u32 1.1754944e-38, %v1580
        %v1582 = vsel %vm1579, %v1581, %v1577
        %v1583 = vmul.f32 %v1419, %v1582
        %v1584 = vrcp.pop %v1454
        %v1585 = vmul.f32 %v1454, %v1584
        %v1586 = vsub.f32 1.0, %v1585
        %v1587 = vmul.f32 %v1584, %v1586
        %v1588 = vadd.f32 %v1584, %v1587
        %vm1589 = vweird.f32 %v1454
        %vm1590 = vweird.f32 %v1584
        %vm1591 = vmor %vm1589, %vm1590
        %v1592 = vsel %vm1591, %v1584, %v1588
        %v1593 = vand.u32 2147483647, %v1454
        %vm1594 = vcmp.eq.f32.partialorder %v1593, 8.507059e+37
        %v1595 = vand.u32 %v1454, 2147483648
        %v1596 = vor.u32 1.1754944e-38, %v1595
        %v1597 = vsel %vm1594, %v1596, %v1592
        %v1598 = vmul.f32 %v1421, %v1597
        %v1599 = vrcp.pop %v1457
        %v1600 = vmul.f32 %v1457, %v1599
        %v1601 = vsub.f32 1.0, %v1600
        %v1602 = vmul.f32 %v1599, %v1601
        %v1603 = vadd.f32 %v1599, %v1602
        %vm1604 = vweird.f32 %v1457
        %vm1605 = vweird.f32 %v1599
        %vm1606 = vmor %vm1604, %vm1605
        %v1607 = vsel %vm1606, %v1599, %v1603
        %v1608 = vand.u32 2147483647, %v1457
        %vm1609 = vcmp.eq.f32.partialorder %v1608, 8.507059e+37
        %v1610 = vand.u32 %v1457, 2147483648
        %v1611 = vor.u32 1.1754944e-38, %v1610
        %v1612 = vsel %vm1609, %v1611, %v1607
        %v1613 = vmul.f32 %v1423, %v1612
        %v1614 = vrcp.pop %v1460
        %v1615 = vmul.f32 %v1460, %v1614
        %v1616 = vsub.f32 1.0, %v1615
        %v1617 = vmul.f32 %v1614, %v1616
        %v1618 = vadd.f32 %v1614, %v1617
        %vm1619 = vweird.f32 %v1460
        %vm1620 = vweird.f32 %v1614
        %vm1621 = vmor %vm1619, %vm1620
        %v1622 = vsel %vm1621, %v1614, %v1618
        %v1623 = vand.u32 2147483647, %v1460
        %vm1624 = vcmp.eq.f32.partialorder %v1623, 8.507059e+37
        %v1625 = vand.u32 %v1460, 2147483648
        %v1626 = vor.u32 1.1754944e-38, %v1625
        %v1627 = vsel %vm1624, %v1626, %v1622
        %v1628 = vmul.f32 %v1425, %v1627
        %v1629 = vrcp.pop %v1463
        %v1630 = vmul.f32 %v1463, %v1629
        %v1631 = vsub.f32 1.0, %v1630
        %v1632 = vmul.f32 %v1629, %v1631
        %v1633 = vadd.f32 %v1629, %v1632
        %vm1634 = vweird.f32 %v1463
        %vm1635 = vweird.f32 %v1629
        %vm1636 = vmor %vm1634, %vm1635
        %v1637 = vsel %vm1636, %v1629, %v1633
        %v1638 = vand.u32 2147483647, %v1463
        %vm1639 = vcmp.eq.f32.partialorder %v1638, 8.507059e+37
        %v1640 = vand.u32 %v1463, 2147483648
        %v1641 = vor.u32 1.1754944e-38, %v1640
        %v1642 = vsel %vm1639, %v1641, %v1637
        %v1643 = vmul.f32 %v1427, %v1642
        %v1644 = vpack.c.bf16 %v1478, %v1478
        %v1645 = vpack.c.bf16 %v1493, %v1493
        %v1646 = vpack.c.bf16 %v1508, %v1508
        %v1647 = vpack.c.bf16 %v1523, %v1523
        %v1648 = vpack.c.bf16 %v1538, %v1538
        %v1649 = vpack.c.bf16 %v1553, %v1553
        %v1650 = vpack.c.bf16 %v1568, %v1568
        %v1651 = vpack.c.bf16 %v1583, %v1583
        %v1652 = vpack.c.bf16 %v1598, %v1598
        %v1653 = vpack.c.bf16 %v1613, %v1613
        %v1654 = vpack.c.bf16 %v1628, %v1628
        %v1655 = vpack.c.bf16 %v1643, %v1643
        %v1659 = vunpack.c.l.b16 %v1644
        %v1660 = vunpack.c.l.b16 %v1645
        %v1661 = vunpack.c.l.b16 %v1646
        %v1662 = vpack.c.b16 %v1660, %v1659
        %v1663 = vpack.c.b16 %v1661, %v1661
        %1664 = vrot.lane.b32.xlu0 %v1191, 64
        %v1665 = vpop.permute.xlu0 %1664
        %1666 = vrot.lane.b32.xlu0 %v1192, 64
        %v1667 = vpop.permute.xlu0 %1666
        %v1670 = vsel %vm1354, %v1662, 0
        %v1673 = vsel %vm1354, %v1663, 0
        %vm1675 = vcmask 1040384
        %v1676 = vsel 0, 4294967295, 65535
        %v1677 = vsel %vm1675, %v1676, 0
        %v1679 = vand.u32 %v1667, %v1677
        %1681 = vmatpush.bf16.msra.mxu0 0
        %1682 = vmatpush.bf16.msra.mxu0 0
        %1683 = vmatpush.bf16.msra.mxu0 0
        %1684 = vmatpush.bf16.msra.mxu0 0
        %1685 = vmatpush.bf16.msra.mxu0 0
        %1686 = vmatpush.bf16.msra.mxu0 0
        %1687 = vmatpush.bf16.msra.mxu0 %v1679
        %1688 = vmatpush.bf16.msra.mxu0 %v1665
        %1689 = vmatmul.bf16.gmra.mxu0 %v1670
        %v1690 = vpop.f32.mrf.mxu0
        %v1691 = vadd.f32 0.0, %v1690
        %v1692 = vpop.f32.mrf.mxu0
        %v1693 = vadd.f32 0.0, %v1692
        %1694 = vmatmul.bf16.gmra.mxu0 %v1673
        %v1695 = vpop.f32.mrf.mxu0
        %v1696 = vadd.f32 0.0, %v1695
        %v1697 = vpop.f32.mrf.mxu0
        %1698 = vdwg.mxu0
        %v1702 = vunpack.c.l.b16 %v1647
        %v1703 = vunpack.c.l.b16 %v1648
        %v1704 = vunpack.c.l.b16 %v1649
        %v1705 = vpack.c.b16 %v1703, %v1702
        %v1706 = vpack.c.b16 %v1704, %v1704
        %1707 = vrot.lane.b32.xlu0 %v1234, 64
        %v1708 = vpop.permute.xlu0 %1707
        %1709 = vrot.lane.b32.xlu0 %v1235, 64
        %v1710 = vpop.permute.xlu0 %1709
        %v1713 = vsel %vm1354, %v1705, 0
        %v1716 = vsel %vm1354, %v1706, 0
        %v1719 = vand.u32 %v1710, %v1677
        %1721 = vmatpush.bf16.msra.mxu0 0
        %1722 = vmatpush.bf16.msra.mxu0 0
        %1723 = vmatpush.bf16.msra.mxu0 0
        %1724 = vmatpush.bf16.msra.mxu0 0
        %1725 = vmatpush.bf16.msra.mxu0 0
        %1726 = vmatpush.bf16.msra.mxu0 0
        %1727 = vmatpush.bf16.msra.mxu0 %v1719
        %1728 = vmatpush.bf16.msra.mxu0 %v1708
        %1729 = vmatmul.bf16.gmra.mxu0 %v1713
        %v1730 = vpop.f32.mrf.mxu0
        %v1731 = vadd.f32 0.0, %v1730
        %v1732 = vpop.f32.mrf.mxu0
        %v1733 = vadd.f32 0.0, %v1732
        %1734 = vmatmul.bf16.gmra.mxu0 %v1716
        %v1735 = vpop.f32.mrf.mxu0
        %v1736 = vadd.f32 0.0, %v1735
        %v1737 = vpop.f32.mrf.mxu0
        %1738 = vdwg.mxu0
        %v1742 = vunpack.c.l.b16 %v1650
        %v1743 = vunpack.c.l.b16 %v1651
        %v1744 = vunpack.c.l.b16 %v1652
        %v1745 = vpack.c.b16 %v1743, %v1742
        %v1746 = vpack.c.b16 %v1744, %v1744
        %1747 = vrot.lane.b32.xlu0 %v1276, 64
        %v1748 = vpop.permute.xlu0 %1747
        %1749 = vrot.lane.b32.xlu0 %v1277, 64
        %v1750 = vpop.permute.xlu0 %1749
        %v1753 = vsel %vm1354, %v1745, 0
        %v1756 = vsel %vm1354, %v1746, 0
        %v1759 = vand.u32 %v1750, %v1677
        %1761 = vmatpush.bf16.msra.mxu0 0
        %1762 = vmatpush.bf16.msra.mxu0 0
        %1763 = vmatpush.bf16.msra.mxu0 0
        %1764 = vmatpush.bf16.msra.mxu0 0
        %1765 = vmatpush.bf16.msra.mxu0 0
        %1766 = vmatpush.bf16.msra.mxu0 0
        %1767 = vmatpush.bf16.msra.mxu0 %v1759
        %1768 = vmatpush.bf16.msra.mxu0 %v1748
        %1769 = vmatmul.bf16.gmra.mxu0 %v1753
        %v1770 = vpop.f32.mrf.mxu0
        %v1771 = vadd.f32 0.0, %v1770
        %v1772 = vpop.f32.mrf.mxu0
        %v1773 = vadd.f32 0.0, %v1772
        %1774 = vmatmul.bf16.gmra.mxu0 %v1756
        %v1775 = vpop.f32.mrf.mxu0
        %v1776 = vadd.f32 0.0, %v1775
        %v1777 = vpop.f32.mrf.mxu0
        %1778 = vdwg.mxu0
        %v1782 = vunpack.c.l.b16 %v1653
        %v1783 = vunpack.c.l.b16 %v1654
        %v1784 = vunpack.c.l.b16 %v1655
        %v1785 = vpack.c.b16 %v1783, %v1782
        %v1786 = vpack.c.b16 %v1784, %v1784
        %1787 = vrot.lane.b32.xlu0 %v1318, 64
        %v1788 = vpop.permute.xlu0 %1787
        %1789 = vrot.lane.b32.xlu0 %v1319, 64
        %v1790 = vpop.permute.xlu0 %1789
        %v1793 = vsel %vm1354, %v1785, 0
        %v1796 = vsel %vm1354, %v1786, 0
        %v1799 = vand.u32 %v1790, %v1677
        %1801 = vmatpush.bf16.msra.mxu0 0
        %1802 = vmatpush.bf16.msra.mxu0 0
        %1803 = vmatpush.bf16.msra.mxu0 0
        %1804 = vmatpush.bf16.msra.mxu0 0
        %1805 = vmatpush.bf16.msra.mxu0 0
        %1806 = vmatpush.bf16.msra.mxu0 0
        %1807 = vmatpush.bf16.msra.mxu0 %v1799
        %1808 = vmatpush.bf16.msra.mxu0 %v1788
        %1809 = vmatmul.bf16.gmra.mxu0 %v1793
        %v1810 = vpop.f32.mrf.mxu0
        %v1811 = vadd.f32 0.0, %v1810
        %v1812 = vpop.f32.mrf.mxu0
        %v1813 = vadd.f32 0.0, %v1812
        %1814 = vmatmul.bf16.gmra.mxu0 %v1796
        %v1815 = vpop.f32.mrf.mxu0
        %v1816 = vadd.f32 0.0, %v1815
        %v1817 = vpop.f32.mrf.mxu0
        %1818 = vdwg.mxu0
        %1819 = vst.msk [vmem:[#allocation2] sm:$0xff] %vm1197, %v1691
        %1820 = vst.msk [vmem:[#allocation2 + $0x8] sm:$0xff] %vm1197, %v1693
        %vm1821 = vcmask 57344
        %1822 = vst.msk [vmem:[#allocation2 + $0x10] sm:$0x1] %vm1821, %v1696
        %1826 = vrot.lane.b32.xlu0 %v1731, 8
        %v1827 = vpop.permute.xlu0 %1826
        %1828 = vrot.lane.b32.xlu0 %v1733, 8
        %v1829 = vpop.permute.xlu0 %1828
        %1830 = vrot.lane.b32.xlu0 %v1736, 8
        %v1831 = vpop.permute.xlu0 %1830
        %vm1835 = vcmask 130112
        %1836 = vst.msk [vmem:[#allocation2] sm:$0xff] %vm1835, %v1827
        %1837 = vst.msk [vmem:[#allocation2 + $0x8] sm:$0xff] %vm1835, %v1829
        %vm1838 = vcmask 122944
        %1839 = vst.msk [vmem:[#allocation2 + $0x10] sm:$0x1] %vm1838, %v1831
        %1843 = vrot.lane.b32.xlu0 %v1771, 16
        %v1844 = vpop.permute.xlu0 %1843
        %1845 = vrot.lane.b32.xlu0 %v1773, 16
        %v1846 = vpop.permute.xlu0 %1845
        %1847 = vrot.lane.b32.xlu0 %v1776, 16
        %v1848 = vpop.permute.xlu0 %1847
        %vm1852 = vcmask 195712
        %1853 = vst.msk [vmem:[#allocation2] sm:$0xff] %vm1852, %v1844
        %1854 = vst.msk [vmem:[#allocation2 + $0x8] sm:$0xff] %vm1852, %v1846
        %vm1855 = vcmask 188544
        %1856 = vst.msk [vmem:[#allocation2 + $0x10] sm:$0x1] %vm1855, %v1848
        %1860 = vrot.lane.b32.xlu0 %v1811, 24
        %v1861 = vpop.permute.xlu0 %1860
        %1862 = vrot.lane.b32.xlu0 %v1813, 24
        %v1863 = vpop.permute.xlu0 %1862
        %1864 = vrot.lane.b32.xlu0 %v1816, 24
        %v1865 = vpop.permute.xlu0 %1864
        %vm1869 = vcmask 261312
        %1870 = vst.msk [vmem:[#allocation2] sm:$0xff] %vm1869, %v1861
        %1871 = vst.msk [vmem:[#allocation2 + $0x8] sm:$0xff] %vm1869, %v1863
        %vm1872 = vcmask 254144
        %1873 = vst.msk [vmem:[#allocation2 + $0x10] sm:$0x1] %vm1872, %v1865
        %1876 = vrot.lane.b32.xlu0 %v1127, 120
        %v1877 = vpop.permute.xlu0 %1876
        %1878 = vrot.lane.b32.xlu0 %v1130, 120
        %v1879 = vpop.permute.xlu0 %1878
        %1882 = vrot.lane.b32.xlu0 %v1127, 112
        %v1883 = vpop.permute.xlu0 %1882
        %1884 = vrot.lane.b32.xlu0 %v1130, 112
        %v1885 = vpop.permute.xlu0 %1884
        %1888 = vrot.lane.b32.xlu0 %v1127, 104
        %v1889 = vpop.permute.xlu0 %1888
        %1890 = vrot.lane.b32.xlu0 %v1130, 104
        %v1891 = vpop.permute.xlu0 %1890
        %v1894 = vpack.c.bf16 %v1127, %v1127
        %v1895 = vpack.c.bf16 %v1130, %v1130
        %v1896 = vpack.c.bf16 %v1877, %v1877
        %v1897 = vpack.c.bf16 %v1879, %v1879
        %v1898 = vpack.c.bf16 %v1883, %v1883
        %v1899 = vpack.c.bf16 %v1885, %v1885
        %v1900 = vpack.c.bf16 %v1889, %v1889
        %v1901 = vpack.c.bf16 %v1891, %v1891
        %v1904 = vunpack.c.l.b16 %v1894
        %v1905 = vunpack.c.l.b16 %v1895
        %v1906 = vpack.c.b16 %v1904, %v1190
        %v1907 = vpack.c.b16 %v1905, %v1905
        %vm1908 = vsmask.f32 7424
        %v1910 = vshrl.u32 %v1906, 16
        %v1912 = vshll.u32 %v1906, 16
        %v1914 = vrot.slane %v1912, 1
        %v1915 = vor.u32 %v1910, %v1914
        %v1917 = vshll.u32 %v1907, 16
        %v1919 = vrot.slane %v1917, 1
        %v1920 = vsel %vm1908, %v1915, %v1919
        %v1921 = vshrl.u32 %v1907, 16
        %1923 = vrot.lane.b32.xlu0 %v1920, 96
        %v1924 = vpop.permute.xlu0 %1923
        %1925 = vrot.lane.b32.xlu0 %v1921, 96
        %v1926 = vpop.permute.xlu0 %1925
        %v1928 = vsel %vm1197, %v1920, 0
        %v1931 = vsel %vm1197, %v1921, 0
        %v1934 = vsel %vm1197, %v1924, 0
        %v1937 = vsel %vm1197, %v1926, 0
        %1939 = vmatpush.bf16.xpose.msra.mxu0 0
        %1940 = vmatpush.bf16.xpose.msra.mxu0 0
        %1941 = vmatpush.bf16.xpose.msra.mxu0 0
        %1942 = vmatpush.bf16.xpose.msra.mxu0 0
        %1943 = vmatpush.bf16.xpose.msra.mxu0 0
        %1944 = vmatpush.bf16.xpose.msra.mxu0 0
        %1945 = vmatpush.bf16.xpose.msra.mxu0 %v1937
        %1946 = vmatpush.bf16.xpose.msra.mxu0 %v1934
        %1947 = vmatmul.bf16.gmra.mxu0 %v1928
        %v1948 = vpop.f32.mrf.mxu0
        %v1949 = vadd.f32 0.0, %v1948
        %v1950 = vpop.f32.mrf.mxu0
        %v1951 = vadd.f32 0.0, %v1950
        %1952 = vmatmul.bf16.gmra.mxu0 %v1931
        %v1953 = vpop.f32.mrf.mxu0
        %v1954 = vadd.f32 0.0, %v1953
        %v1955 = vpop.f32.mrf.mxu0
        %1956 = vdwg.mxu0
        %v1959 = vunpack.c.l.b16 %v1896
        %v1960 = vunpack.c.l.b16 %v1897
        %v1961 = vpack.c.b16 %v1959, %v1233
        %v1962 = vpack.c.b16 %v1960, %v1960
        %v1964 = vshrl.u32 %v1961, 16
        %v1966 = vshll.u32 %v1961, 16
        %v1968 = vrot.slane %v1966, 1
        %v1969 = vor.u32 %v1964, %v1968
        %v1971 = vshll.u32 %v1962, 16
        %v1973 = vrot.slane %v1971, 1
        %v1974 = vsel %vm1908, %v1969, %v1973
        %v1975 = vshrl.u32 %v1962, 16
        %1977 = vrot.lane.b32.xlu0 %v1974, 96
        %v1978 = vpop.permute.xlu0 %1977
        %1979 = vrot.lane.b32.xlu0 %v1975, 96
        %v1980 = vpop.permute.xlu0 %1979
        %v1982 = vsel %vm1197, %v1974, 0
        %v1985 = vsel %vm1197, %v1975, 0
        %v1988 = vsel %vm1197, %v1978, 0
        %v1991 = vsel %vm1197, %v1980, 0
        %1993 = vmatpush.bf16.xpose.msra.mxu0 0
        %1994 = vmatpush.bf16.xpose.msra.mxu0 0
        %1995 = vmatpush.bf16.xpose.msra.mxu0 0
        %1996 = vmatpush.bf16.xpose.msra.mxu0 0
        %1997 = vmatpush.bf16.xpose.msra.mxu0 0
        %1998 = vmatpush.bf16.xpose.msra.mxu0 0
        %1999 = vmatpush.bf16.xpose.msra.mxu0 %v1991
        %2000 = vmatpush.bf16.xpose.msra.mxu0 %v1988
        %2001 = vmatmul.bf16.gmra.mxu0 %v1982
        %v2002 = vpop.f32.mrf.mxu0
        %v2003 = vadd.f32 0.0, %v2002
        %v2004 = vpop.f32.mrf.mxu0
        %v2005 = vadd.f32 0.0, %v2004
        %2006 = vmatmul.bf16.gmra.mxu0 %v1985
        %v2007 = vpop.f32.mrf.mxu0
        %v2008 = vadd.f32 0.0, %v2007
        %v2009 = vpop.f32.mrf.mxu0
        %2010 = vdwg.mxu0
        %v2013 = vunpack.c.l.b16 %v1898
        %v2014 = vunpack.c.l.b16 %v1899
        %v2015 = vpack.c.b16 %v2013, %v1275
        %v2016 = vpack.c.b16 %v2014, %v2014
        %v2018 = vshrl.u32 %v2015, 16
        %v2020 = vshll.u32 %v2015, 16
        %v2022 = vrot.slane %v2020, 1
        %v2023 = vor.u32 %v2018, %v2022
        %v2025 = vshll.u32 %v2016, 16
        %v2027 = vrot.slane %v2025, 1
        %v2028 = vsel %vm1908, %v2023, %v2027
        %v2029 = vshrl.u32 %v2016, 16
        %2031 = vrot.lane.b32.xlu0 %v2028, 96
        %v2032 = vpop.permute.xlu0 %2031
        %2033 = vrot.lane.b32.xlu0 %v2029, 96
        %v2034 = vpop.permute.xlu0 %2033
        %v2036 = vsel %vm1197, %v2028, 0
        %v2039 = vsel %vm1197, %v2029, 0
        %v2042 = vsel %vm1197, %v2032, 0
        %v2045 = vsel %vm1197, %v2034, 0
        %2047 = vmatpush.bf16.xpose.msra.mxu0 0
        %2048 = vmatpush.bf16.xpose.msra.mxu0 0
        %2049 = vmatpush.bf16.xpose.msra.mxu0 0
        %2050 = vmatpush.bf16.xpose.msra.mxu0 0
        %2051 = vmatpush.bf16.xpose.msra.mxu0 0
        %2052 = vmatpush.bf16.xpose.msra.mxu0 0
        %2053 = vmatpush.bf16.xpose.msra.mxu0 %v2045
        %2054 = vmatpush.bf16.xpose.msra.mxu0 %v2042
        %2055 = vmatmul.bf16.gmra.mxu0 %v2036
        %v2056 = vpop.f32.mrf.mxu0
        %v2057 = vadd.f32 0.0, %v2056
        %v2058 = vpop.f32.mrf.mxu0
        %v2059 = vadd.f32 0.0, %v2058
        %2060 = vmatmul.bf16.gmra.mxu0 %v2039
        %v2061 = vpop.f32.mrf.mxu0
        %v2062 = vadd.f32 0.0, %v2061
        %v2063 = vpop.f32.mrf.mxu0
        %2064 = vdwg.mxu0
        %v2067 = vunpack.c.l.b16 %v1900
        %v2068 = vunpack.c.l.b16 %v1901
        %v2069 = vpack.c.b16 %v2067, %v1317
        %v2070 = vpack.c.b16 %v2068, %v2068
        %v2072 = vshrl.u32 %v2069, 16
        %v2074 = vshll.u32 %v2069, 16
        %v2076 = vrot.slane %v2074, 1
        %v2077 = vor.u32 %v2072, %v2076
        %v2079 = vshll.u32 %v2070, 16
        %v2081 = vrot.slane %v2079, 1
        %v2082 = vsel %vm1908, %v2077, %v2081
        %v2083 = vshrl.u32 %v2070, 16
        %2085 = vrot.lane.b32.xlu0 %v2082, 96
        %v2086 = vpop.permute.xlu0 %2085
        %2087 = vrot.lane.b32.xlu0 %v2083, 96
        %v2088 = vpop.permute.xlu0 %2087
        %v2090 = vsel %vm1197, %v2082, 0
        %v2093 = vsel %vm1197, %v2083, 0
        %v2096 = vsel %vm1197, %v2086, 0
        %v2099 = vsel %vm1197, %v2088, 0
        %2101 = vmatpush.bf16.xpose.msra.mxu0 0
        %2102 = vmatpush.bf16.xpose.msra.mxu0 0
        %2103 = vmatpush.bf16.xpose.msra.mxu0 0
        %2104 = vmatpush.bf16.xpose.msra.mxu0 0
        %2105 = vmatpush.bf16.xpose.msra.mxu0 0
        %2106 = vmatpush.bf16.xpose.msra.mxu0 0
        %2107 = vmatpush.bf16.xpose.msra.mxu0 %v2099
        %2108 = vmatpush.bf16.xpose.msra.mxu0 %v2096
        %2109 = vmatmul.bf16.gmra.mxu0 %v2090
        %v2110 = vpop.f32.mrf.mxu0
        %v2111 = vadd.f32 0.0, %v2110
        %v2112 = vpop.f32.mrf.mxu0
        %v2113 = vadd.f32 0.0, %v2112
        %2114 = vmatmul.bf16.gmra.mxu0 %v2093
        %v2115 = vpop.f32.mrf.mxu0
        %v2116 = vadd.f32 0.0, %v2115
        %v2117 = vpop.f32.mrf.mxu0
        %2118 = vdwg.mxu0
        %v2119 = vsel %vm1354, %v1949, -inf
        %2120 = vmax.xlane.f32.xlu0 %v2119
        %v2121 = vpop.xlane.xlu0 %2120
        %v2122 = vsel %vm1354, %v1951, -inf
        %2123 = vmax.xlane.f32.xlu0 %v2122
        %v2124 = vpop.xlane.xlu0 %2123
        %v2125 = vsel %vm1361, %v1954, -inf
        %2126 = vmax.xlane.f32.xlu0 %v2125
        %v2127 = vpop.xlane.xlu0 %2126
        %v2128 = vsel %vm1354, %v2003, -inf
        %2129 = vmax.xlane.f32.xlu0 %v2128
        %v2130 = vpop.xlane.xlu0 %2129
        %v2131 = vsel %vm1354, %v2005, -inf
        %2132 = vmax.xlane.f32.xlu0 %v2131
        %v2133 = vpop.xlane.xlu0 %2132
        %v2134 = vsel %vm1361, %v2008, -inf
        %2135 = vmax.xlane.f32.xlu0 %v2134
        %v2136 = vpop.xlane.xlu0 %2135
        %v2137 = vsel %vm1354, %v2057, -inf
        %2138 = vmax.xlane.f32.xlu0 %v2137
        %v2139 = vpop.xlane.xlu0 %2138
        %v2140 = vsel %vm1354, %v2059, -inf
        %2141 = vmax.xlane.f32.xlu0 %v2140
        %v2142 = vpop.xlane.xlu0 %2141
        %v2143 = vsel %vm1361, %v2062, -inf
        %2144 = vmax.xlane.f32.xlu0 %v2143
        %v2145 = vpop.xlane.xlu0 %2144
        %v2146 = vsel %vm1354, %v2111, -inf
        %2147 = vmax.xlane.f32.xlu0 %v2146
        %v2148 = vpop.xlane.xlu0 %2147
        %v2149 = vsel %vm1354, %v2113, -inf
        %2150 = vmax.xlane.f32.xlu0 %v2149
        %v2151 = vpop.xlane.xlu0 %2150
        %v2152 = vsel %vm1361, %v2116, -inf
        %2153 = vmax.xlane.f32.xlu0 %v2152
        %v2154 = vpop.xlane.xlu0 %2153
        %v2155 = vsub.f32 %v1949, %v2121
        %v2156 = vsub.f32 %v1951, %v2124
        %v2157 = vsub.f32 %v1954, %v2127
        %v2158 = vsub.f32 %v2003, %v2130
        %v2159 = vsub.f32 %v2005, %v2133
        %v2160 = vsub.f32 %v2008, %v2136
        %v2161 = vsub.f32 %v2057, %v2139
        %v2162 = vsub.f32 %v2059, %v2142
        %v2163 = vsub.f32 %v2062, %v2145
        %v2164 = vsub.f32 %v2111, %v2148
        %v2165 = vsub.f32 %v2113, %v2151
        %v2166 = vsub.f32 %v2116, %v2154
        %v2167 = vmul.f32 %v2155, 1.442695
        %v2168 = vpow.pop %v2167
        %v2169 = vmul.f32 %v2156, 1.442695
        %v2170 = vpow.pop %v2169
        %v2171 = vmul.f32 %v2157, 1.442695
        %v2172 = vpow.pop %v2171
        %v2173 = vmul.f32 %v2158, 1.442695
        %v2174 = vpow.pop %v2173
        %v2175 = vmul.f32 %v2159, 1.442695
        %v2176 = vpow.pop %v2175
        %v2177 = vmul.f32 %v2160, 1.442695
        %v2178 = vpow.pop %v2177
        %v2179 = vmul.f32 %v2161, 1.442695
        %v2180 = vpow.pop %v2179
        %v2181 = vmul.f32 %v2162, 1.442695
        %v2182 = vpow.pop %v2181
        %v2183 = vmul.f32 %v2163, 1.442695
        %v2184 = vpow.pop %v2183
        %v2185 = vmul.f32 %v2164, 1.442695
        %v2186 = vpow.pop %v2185
        %v2187 = vmul.f32 %v2165, 1.442695
        %v2188 = vpow.pop %v2187
        %v2189 = vmul.f32 %v2166, 1.442695
        %v2190 = vpow.pop %v2189
        %v2191 = vsel %vm1354, %v2168, 0.0
        %2192 = vadd.xlane.f32.xlu0 %v2191
        %v2193 = vpop.xlane.xlu0 %2192
        %v2194 = vsel %vm1354, %v2170, 0.0
        %2195 = vadd.xlane.f32.xlu0 %v2194
        %v2196 = vpop.xlane.xlu0 %2195
        %v2197 = vsel %vm1361, %v2172, 0.0
        %2198 = vadd.xlane.f32.xlu0 %v2197
        %v2199 = vpop.xlane.xlu0 %2198
        %v2200 = vsel %vm1354, %v2174, 0.0
        %2201 = vadd.xlane.f32.xlu0 %v2200
        %v2202 = vpop.xlane.xlu0 %2201
        %v2203 = vsel %vm1354, %v2176, 0.0
        %2204 = vadd.xlane.f32.xlu0 %v2203
        %v2205 = vpop.xlane.xlu0 %2204
        %v2206 = vsel %vm1361, %v2178, 0.0
        %2207 = vadd.xlane.f32.xlu0 %v2206
        %v2208 = vpop.xlane.xlu0 %2207
        %v2209 = vsel %vm1354, %v2180, 0.0
        %2210 = vadd.xlane.f32.xlu0 %v2209
        %v2211 = vpop.xlane.xlu0 %2210
        %v2212 = vsel %vm1354, %v2182, 0.0
        %2213 = vadd.xlane.f32.xlu0 %v2212
        %v2214 = vpop.xlane.xlu0 %2213
        %v2215 = vsel %vm1361, %v2184, 0.0
        %2216 = vadd.xlane.f32.xlu0 %v2215
        %v2217 = vpop.xlane.xlu0 %2216
        %v2218 = vsel %vm1354, %v2186, 0.0
        %2219 = vadd.xlane.f32.xlu0 %v2218
        %v2220 = vpop.xlane.xlu0 %2219
        %v2221 = vsel %vm1354, %v2188, 0.0
        %2222 = vadd.xlane.f32.xlu0 %v2221
        %v2223 = vpop.xlane.xlu0 %2222
        %v2224 = vsel %vm1361, %v2190, 0.0
        %2225 = vadd.xlane.f32.xlu0 %v2224
        %v2226 = vpop.xlane.xlu0 %2225
        %v2227 = vrcp.pop %v2193
        %v2228 = vmul.f32 %v2193, %v2227
        %v2229 = vsub.f32 1.0, %v2228
        %v2230 = vmul.f32 %v2227, %v2229
        %v2231 = vadd.f32 %v2227, %v2230
        %vm2232 = vweird.f32 %v2193
        %vm2233 = vweird.f32 %v2227
        %vm2234 = vmor %vm2232, %vm2233
        %v2235 = vsel %vm2234, %v2227, %v2231
        %v2236 = vand.u32 2147483647, %v2193
        %vm2237 = vcmp.eq.f32.partialorder %v2236, 8.507059e+37
        %v2238 = vand.u32 %v2193, 2147483648
        %v2239 = vor.u32 1.1754944e-38, %v2238
        %v2240 = vsel %vm2237, %v2239, %v2235
        %v2241 = vmul.f32 %v2168, %v2240
        %v2242 = vrcp.pop %v2196
        %v2243 = vmul.f32 %v2196, %v2242
        %v2244 = vsub.f32 1.0, %v2243
        %v2245 = vmul.f32 %v2242, %v2244
        %v2246 = vadd.f32 %v2242, %v2245
        %vm2247 = vweird.f32 %v2196
        %vm2248 = vweird.f32 %v2242
        %vm2249 = vmor %vm2247, %vm2248
        %v2250 = vsel %vm2249, %v2242, %v2246
        %v2251 = vand.u32 2147483647, %v2196
        %vm2252 = vcmp.eq.f32.partialorder %v2251, 8.507059e+37
        %v2253 = vand.u32 %v2196, 2147483648
        %v2254 = vor.u32 1.1754944e-38, %v2253
        %v2255 = vsel %vm2252, %v2254, %v2250
        %v2256 = vmul.f32 %v2170, %v2255
        %v2257 = vrcp.pop %v2199
        %v2258 = vmul.f32 %v2199, %v2257
        %v2259 = vsub.f32 1.0, %v2258
        %v2260 = vmul.f32 %v2257, %v2259
        %v2261 = vadd.f32 %v2257, %v2260
        %vm2262 = vweird.f32 %v2199
        %vm2263 = vweird.f32 %v2257
        %vm2264 = vmor %vm2262, %vm2263
        %v2265 = vsel %vm2264, %v2257, %v2261
        %v2266 = vand.u32 2147483647, %v2199
        %vm2267 = vcmp.eq.f32.partialorder %v2266, 8.507059e+37
        %v2268 = vand.u32 %v2199, 2147483648
        %v2269 = vor.u32 1.1754944e-38, %v2268
        %v2270 = vsel %vm2267, %v2269, %v2265
        %v2271 = vmul.f32 %v2172, %v2270
        %v2272 = vrcp.pop %v2202
        %v2273 = vmul.f32 %v2202, %v2272
        %v2274 = vsub.f32 1.0, %v2273
        %v2275 = vmul.f32 %v2272, %v2274
        %v2276 = vadd.f32 %v2272, %v2275
        %vm2277 = vweird.f32 %v2202
        %vm2278 = vweird.f32 %v2272
        %vm2279 = vmor %vm2277, %vm2278
        %v2280 = vsel %vm2279, %v2272, %v2276
        %v2281 = vand.u32 2147483647, %v2202
        %vm2282 = vcmp.eq.f32.partialorder %v2281, 8.507059e+37
        %v2283 = vand.u32 %v2202, 2147483648
        %v2284 = vor.u32 1.1754944e-38, %v2283
        %v2285 = vsel %vm2282, %v2284, %v2280
        %v2286 = vmul.f32 %v2174, %v2285
        %v2287 = vrcp.pop %v2205
        %v2288 = vmul.f32 %v2205, %v2287
        %v2289 = vsub.f32 1.0, %v2288
        %v2290 = vmul.f32 %v2287, %v2289
        %v2291 = vadd.f32 %v2287, %v2290
        %vm2292 = vweird.f32 %v2205
        %vm2293 = vweird.f32 %v2287
        %vm2294 = vmor %vm2292, %vm2293
        %v2295 = vsel %vm2294, %v2287, %v2291
        %v2296 = vand.u32 2147483647, %v2205
        %vm2297 = vcmp.eq.f32.partialorder %v2296, 8.507059e+37
        %v2298 = vand.u32 %v2205, 2147483648
        %v2299 = vor.u32 1.1754944e-38, %v2298
        %v2300 = vsel %vm2297, %v2299, %v2295
        %v2301 = vmul.f32 %v2176, %v2300
        %v2302 = vrcp.pop %v2208
        %v2303 = vmul.f32 %v2208, %v2302
        %v2304 = vsub.f32 1.0, %v2303
        %v2305 = vmul.f32 %v2302, %v2304
        %v2306 = vadd.f32 %v2302, %v2305
        %vm2307 = vweird.f32 %v2208
        %vm2308 = vweird.f32 %v2302
        %vm2309 = vmor %vm2307, %vm2308
        %v2310 = vsel %vm2309, %v2302, %v2306
        %v2311 = vand.u32 2147483647, %v2208
        %vm2312 = vcmp.eq.f32.partialorder %v2311, 8.507059e+37
        %v2313 = vand.u32 %v2208, 2147483648
        %v2314 = vor.u32 1.1754944e-38, %v2313
        %v2315 = vsel %vm2312, %v2314, %v2310
        %v2316 = vmul.f32 %v2178, %v2315
        %v2317 = vrcp.pop %v2211
        %v2318 = vmul.f32 %v2211, %v2317
        %v2319 = vsub.f32 1.0, %v2318
        %v2320 = vmul.f32 %v2317, %v2319
        %v2321 = vadd.f32 %v2317, %v2320
        %vm2322 = vweird.f32 %v2211
        %vm2323 = vweird.f32 %v2317
        %vm2324 = vmor %vm2322, %vm2323
        %v2325 = vsel %vm2324, %v2317, %v2321
        %v2326 = vand.u32 2147483647, %v2211
        %vm2327 = vcmp.eq.f32.partialorder %v2326, 8.507059e+37
        %v2328 = vand.u32 %v2211, 2147483648
        %v2329 = vor.u32 1.1754944e-38, %v2328
        %v2330 = vsel %vm2327, %v2329, %v2325
        %v2331 = vmul.f32 %v2180, %v2330
        %v2332 = vrcp.pop %v2214
        %v2333 = vmul.f32 %v2214, %v2332
        %v2334 = vsub.f32 1.0, %v2333
        %v2335 = vmul.f32 %v2332, %v2334
        %v2336 = vadd.f32 %v2332, %v2335
        %vm2337 = vweird.f32 %v2214
        %vm2338 = vweird.f32 %v2332
        %vm2339 = vmor %vm2337, %vm2338
        %v2340 = vsel %vm2339, %v2332, %v2336
        %v2341 = vand.u32 2147483647, %v2214
        %vm2342 = vcmp.eq.f32.partialorder %v2341, 8.507059e+37
        %v2343 = vand.u32 %v2214, 2147483648
        %v2344 = vor.u32 1.1754944e-38, %v2343
        %v2345 = vsel %vm2342, %v2344, %v2340
        %v2346 = vmul.f32 %v2182, %v2345
        %v2347 = vrcp.pop %v2217
        %v2348 = vmul.f32 %v2217, %v2347
        %v2349 = vsub.f32 1.0, %v2348
        %v2350 = vmul.f32 %v2347, %v2349
        %v2351 = vadd.f32 %v2347, %v2350
        %vm2352 = vweird.f32 %v2217
        %vm2353 = vweird.f32 %v2347
        %vm2354 = vmor %vm2352, %vm2353
        %v2355 = vsel %vm2354, %v2347, %v2351
        %v2356 = vand.u32 2147483647, %v2217
        %vm2357 = vcmp.eq.f32.partialorder %v2356, 8.507059e+37
        %v2358 = vand.u32 %v2217, 2147483648
        %v2359 = vor.u32 1.1754944e-38, %v2358
        %v2360 = vsel %vm2357, %v2359, %v2355
        %v2361 = vmul.f32 %v2184, %v2360
        %v2362 = vrcp.pop %v2220
        %v2363 = vmul.f32 %v2220, %v2362
        %v2364 = vsub.f32 1.0, %v2363
        %v2365 = vmul.f32 %v2362, %v2364
        %v2366 = vadd.f32 %v2362, %v2365
        %vm2367 = vweird.f32 %v2220
        %vm2368 = vweird.f32 %v2362
        %vm2369 = vmor %vm2367, %vm2368
        %v2370 = vsel %vm2369, %v2362, %v2366
        %v2371 = vand.u32 2147483647, %v2220
        %vm2372 = vcmp.eq.f32.partialorder %v2371, 8.507059e+37
        %v2373 = vand.u32 %v2220, 2147483648
        %v2374 = vor.u32 1.1754944e-38, %v2373
        %v2375 = vsel %vm2372, %v2374, %v2370
        %v2376 = vmul.f32 %v2186, %v2375
        %v2377 = vrcp.pop %v2223
        %v2378 = vmul.f32 %v2223, %v2377
        %v2379 = vsub.f32 1.0, %v2378
        %v2380 = vmul.f32 %v2377, %v2379
        %v2381 = vadd.f32 %v2377, %v2380
        %vm2382 = vweird.f32 %v2223
        %vm2383 = vweird.f32 %v2377
        %vm2384 = vmor %vm2382, %vm2383
        %v2385 = vsel %vm2384, %v2377, %v2381
        %v2386 = vand.u32 2147483647, %v2223
        %vm2387 = vcmp.eq.f32.partialorder %v2386, 8.507059e+37
        %v2388 = vand.u32 %v2223, 2147483648
        %v2389 = vor.u32 1.1754944e-38, %v2388
        %v2390 = vsel %vm2387, %v2389, %v2385
        %v2391 = vmul.f32 %v2188, %v2390
        %v2392 = vrcp.pop %v2226
        %v2393 = vmul.f32 %v2226, %v2392
        %v2394 = vsub.f32 1.0, %v2393
        %v2395 = vmul.f32 %v2392, %v2394
        %v2396 = vadd.f32 %v2392, %v2395
        %vm2397 = vweird.f32 %v2226
        %vm2398 = vweird.f32 %v2392
        %vm2399 = vmor %vm2397, %vm2398
        %v2400 = vsel %vm2399, %v2392, %v2396
        %v2401 = vand.u32 2147483647, %v2226
        %vm2402 = vcmp.eq.f32.partialorder %v2401, 8.507059e+37
        %v2403 = vand.u32 %v2226, 2147483648
        %v2404 = vor.u32 1.1754944e-38, %v2403
        %v2405 = vsel %vm2402, %v2404, %v2400
        %v2406 = vmul.f32 %v2190, %v2405
        %v2407 = vpack.c.bf16 %v2241, %v2241
        %v2408 = vpack.c.bf16 %v2256, %v2256
        %v2409 = vpack.c.bf16 %v2271, %v2271
        %v2410 = vpack.c.bf16 %v2286, %v2286
        %v2411 = vpack.c.bf16 %v2301, %v2301
        %v2412 = vpack.c.bf16 %v2316, %v2316
        %v2413 = vpack.c.bf16 %v2331, %v2331
        %v2414 = vpack.c.bf16 %v2346, %v2346
        %v2415 = vpack.c.bf16 %v2361, %v2361
        %v2416 = vpack.c.bf16 %v2376, %v2376
        %v2417 = vpack.c.bf16 %v2391, %v2391
        %v2418 = vpack.c.bf16 %v2406, %v2406
        %v2422 = vunpack.c.l.b16 %v2407
        %v2423 = vunpack.c.l.b16 %v2408
        %v2424 = vunpack.c.l.b16 %v2409
        %v2425 = vpack.c.b16 %v2423, %v2422
        %v2426 = vpack.c.b16 %v2424, %v2424
        %2427 = vrot.lane.b32.xlu0 %v1920, 64
        %v2428 = vpop.permute.xlu0 %2427
        %2429 = vrot.lane.b32.xlu0 %v1921, 64
        %v2430 = vpop.permute.xlu0 %2429
        %v2433 = vsel %vm1354, %v2425, 0
        %v2436 = vsel %vm1354, %v2426, 0
        %v2439 = vand.u32 %v2430, %v1677
        %2441 = vmatpush.bf16.msra.mxu0 0
        %2442 = vmatpush.bf16.msra.mxu0 0
        %2443 = vmatpush.bf16.msra.mxu0 0
        %2444 = vmatpush.bf16.msra.mxu0 0
        %2445 = vmatpush.bf16.msra.mxu0 0
        %2446 = vmatpush.bf16.msra.mxu0 0
        %2447 = vmatpush.bf16.msra.mxu0 %v2439
        %2448 = vmatpush.bf16.msra.mxu0 %v2428
        %2449 = vmatmul.bf16.gmra.mxu0 %v2433
        %v2450 = vpop.f32.mrf.mxu0
        %v2451 = vadd.f32 0.0, %v2450
        %v2452 = vpop.f32.mrf.mxu0
        %v2453 = vadd.f32 0.0, %v2452
        %2454 = vmatmul.bf16.gmra.mxu0 %v2436
        %v2455 = vpop.f32.mrf.mxu0
        %v2456 = vadd.f32 0.0, %v2455
        %v2457 = vpop.f32.mrf.mxu0
        %2458 = vdwg.mxu0
        %v2462 = vunpack.c.l.b16 %v2410
        %v2463 = vunpack.c.l.b16 %v2411
        %v2464 = vunpack.c.l.b16 %v2412
        %v2465 = vpack.c.b16 %v2463, %v2462
        %v2466 = vpack.c.b16 %v2464, %v2464
        %2467 = vrot.lane.b32.xlu0 %v1974, 64
        %v2468 = vpop.permute.xlu0 %2467
        %2469 = vrot.lane.b32.xlu0 %v1975, 64
        %v2470 = vpop.permute.xlu0 %2469
        %v2473 = vsel %vm1354, %v2465, 0
        %v2476 = vsel %vm1354, %v2466, 0
        %v2479 = vand.u32 %v2470, %v1677
        %2481 = vmatpush.bf16.msra.mxu0 0
        %2482 = vmatpush.bf16.msra.mxu0 0
        %2483 = vmatpush.bf16.msra.mxu0 0
        %2484 = vmatpush.bf16.msra.mxu0 0
        %2485 = vmatpush.bf16.msra.mxu0 0
        %2486 = vmatpush.bf16.msra.mxu0 0
        %2487 = vmatpush.bf16.msra.mxu0 %v2479
        %2488 = vmatpush.bf16.msra.mxu0 %v2468
        %2489 = vmatmul.bf16.gmra.mxu0 %v2473
        %v2490 = vpop.f32.mrf.mxu0
        %v2491 = vadd.f32 0.0, %v2490
        %v2492 = vpop.f32.mrf.mxu0
        %v2493 = vadd.f32 0.0, %v2492
        %2494 = vmatmul.bf16.gmra.mxu0 %v2476
        %v2495 = vpop.f32.mrf.mxu0
        %v2496 = vadd.f32 0.0, %v2495
        %v2497 = vpop.f32.mrf.mxu0
        %2498 = vdwg.mxu0
        %v2502 = vunpack.c.l.b16 %v2413
        %v2503 = vunpack.c.l.b16 %v2414
        %v2504 = vunpack.c.l.b16 %v2415
        %v2505 = vpack.c.b16 %v2503, %v2502
        %v2506 = vpack.c.b16 %v2504, %v2504
        %2507 = vrot.lane.b32.xlu0 %v2028, 64
        %v2508 = vpop.permute.xlu0 %2507
        %2509 = vrot.lane.b32.xlu0 %v2029, 64
        %v2510 = vpop.permute.xlu0 %2509
        %v2513 = vsel %vm1354, %v2505, 0
        %v2516 = vsel %vm1354, %v2506, 0
        %v2519 = vand.u32 %v2510, %v1677
        %2521 = vmatpush.bf16.msra.mxu0 0
        %2522 = vmatpush.bf16.msra.mxu0 0
        %2523 = vmatpush.bf16.msra.mxu0 0
        %2524 = vmatpush.bf16.msra.mxu0 0
        %2525 = vmatpush.bf16.msra.mxu0 0
        %2526 = vmatpush.bf16.msra.mxu0 0
        %2527 = vmatpush.bf16.msra.mxu0 %v2519
        %2528 = vmatpush.bf16.msra.mxu0 %v2508
        %2529 = vmatmul.bf16.gmra.mxu0 %v2513
        %v2530 = vpop.f32.mrf.mxu0
        %v2531 = vadd.f32 0.0, %v2530
        %v2532 = vpop.f32.mrf.mxu0
        %v2533 = vadd.f32 0.0, %v2532
        %2534 = vmatmul.bf16.gmra.mxu0 %v2516
        %v2535 = vpop.f32.mrf.mxu0
        %v2536 = vadd.f32 0.0, %v2535
        %v2537 = vpop.f32.mrf.mxu0
        %2538 = vdwg.mxu0
        %v2542 = vunpack.c.l.b16 %v2416
        %v2543 = vunpack.c.l.b16 %v2417
        %v2544 = vunpack.c.l.b16 %v2418
        %v2545 = vpack.c.b16 %v2543, %v2542
        %v2546 = vpack.c.b16 %v2544, %v2544
        %2547 = vrot.lane.b32.xlu0 %v2082, 64
        %v2548 = vpop.permute.xlu0 %2547
        %2549 = vrot.lane.b32.xlu0 %v2083, 64
        %v2550 = vpop.permute.xlu0 %2549
        %v2553 = vsel %vm1354, %v2545, 0
        %v2556 = vsel %vm1354, %v2546, 0
        %v2559 = vand.u32 %v2550, %v1677
        %2561 = vmatpush.bf16.msra.mxu0 0
        %2562 = vmatpush.bf16.msra.mxu0 0
        %2563 = vmatpush.bf16.msra.mxu0 0
        %2564 = vmatpush.bf16.msra.mxu0 0
        %2565 = vmatpush.bf16.msra.mxu0 0
        %2566 = vmatpush.bf16.msra.mxu0 0
        %2567 = vmatpush.bf16.msra.mxu0 %v2559
        %2568 = vmatpush.bf16.msra.mxu0 %v2548
        %2569 = vmatmul.bf16.gmra.mxu0 %v2553
        %v2570 = vpop.f32.mrf.mxu0
        %v2571 = vadd.f32 0.0, %v2570
        %v2572 = vpop.f32.mrf.mxu0
        %v2573 = vadd.f32 0.0, %v2572
        %2574 = vmatmul.bf16.gmra.mxu0 %v2556
        %v2575 = vpop.f32.mrf.mxu0
        %v2576 = vadd.f32 0.0, %v2575
        %v2577 = vpop.f32.mrf.mxu0
        %2578 = vdwg.mxu0
        %2579 = vst.msk [vmem:[#allocation2 + $0x11] sm:$0xff] %vm1197, %v2451
        %2580 = vst.msk [vmem:[#allocation2 + $0x19] sm:$0xff] %vm1197, %v2453
        %2581 = vst.msk [vmem:[#allocation2 + $0x21] sm:$0x1] %vm1821, %v2456
        %2585 = vrot.lane.b32.xlu0 %v2491, 8
        %v2586 = vpop.permute.xlu0 %2585
        %2587 = vrot.lane.b32.xlu0 %v2493, 8
        %v2588 = vpop.permute.xlu0 %2587
        %2589 = vrot.lane.b32.xlu0 %v2496, 8
        %v2590 = vpop.permute.xlu0 %2589
        %2594 = vst.msk [vmem:[#allocation2 + $0x11] sm:$0xff] %vm1835, %v2586
        %2595 = vst.msk [vmem:[#allocation2 + $0x19] sm:$0xff] %vm1835, %v2588
        %2596 = vst.msk [vmem:[#allocation2 + $0x21] sm:$0x1] %vm1838, %v2590
        %2600 = vrot.lane.b32.xlu0 %v2531, 16
        %v2601 = vpop.permute.xlu0 %2600
        %2602 = vrot.lane.b32.xlu0 %v2533, 16
        %v2603 = vpop.permute.xlu0 %2602
        %2604 = vrot.lane.b32.xlu0 %v2536, 16
        %v2605 = vpop.permute.xlu0 %2604
        %2609 = vst.msk [vmem:[#allocation2 + $0x11] sm:$0xff] %vm1852, %v2601
        %2610 = vst.msk [vmem:[#allocation2 + $0x19] sm:$0xff] %vm1852, %v2603
        %2611 = vst.msk [vmem:[#allocation2 + $0x21] sm:$0x1] %vm1855, %v2605
        %2615 = vrot.lane.b32.xlu0 %v2571, 24
        %v2616 = vpop.permute.xlu0 %2615
        %2617 = vrot.lane.b32.xlu0 %v2573, 24
        %v2618 = vpop.permute.xlu0 %2617
        %2619 = vrot.lane.b32.xlu0 %v2576, 24
        %v2620 = vpop.permute.xlu0 %2619
        %2624 = vst.msk [vmem:[#allocation2 + $0x11] sm:$0xff] %vm1869, %v2616
        %2625 = vst.msk [vmem:[#allocation2 + $0x19] sm:$0xff] %vm1869, %v2618
        %2626 = vst.msk [vmem:[#allocation2 + $0x21] sm:$0x1] %vm1872, %v2620
        %2629 = vrot.lane.b32.xlu0 %v1132, 120
        %v2630 = vpop.permute.xlu0 %2629
        %2631 = vrot.lane.b32.xlu0 %v1135, 120
        %v2632 = vpop.permute.xlu0 %2631
        %2635 = vrot.lane.b32.xlu0 %v1132, 112
        %v2636 = vpop.permute.xlu0 %2635
        %2637 = vrot.lane.b32.xlu0 %v1135, 112
        %v2638 = vpop.permute.xlu0 %2637
        %2641 = vrot.lane.b32.xlu0 %v1132, 104
        %v2642 = vpop.permute.xlu0 %2641
        %2643 = vrot.lane.b32.xlu0 %v1135, 104
        %v2644 = vpop.permute.xlu0 %2643
        %v2647 = vpack.c.bf16 %v1132, %v1132
        %v2648 = vpack.c.bf16 %v1135, %v1135
        %v2649 = vpack.c.bf16 %v2630, %v2630
        %v2650 = vpack.c.bf16 %v2632, %v2632
        %v2651 = vpack.c.bf16 %v2636, %v2636
        %v2652 = vpack.c.bf16 %v2638, %v2638
        %v2653 = vpack.c.bf16 %v2642, %v2642
        %v2654 = vpack.c.bf16 %v2644, %v2644
        %v2657 = vunpack.c.l.b16 %v2647
        %v2658 = vunpack.c.l.b16 %v2648
        %v2659 = vpack.c.b16 %v2657, %v1905
        %v2660 = vpack.c.b16 %v2658, %v2658
        %vm2661 = vcmask 1046528
        %v2662 = vrot.slane %v2659, 1
        %v2663 = vrot.slane %v2660, 1
        %v2664 = vsel %vm2661, %v2662, %v2663
        %2665 = vrot.lane.b32.xlu0 %v2664, 96
        %v2666 = vpop.permute.xlu0 %2665
        %2667 = vrot.lane.b32.xlu0 %v2663, 96
        %v2668 = vpop.permute.xlu0 %2667
        %v2670 = vsel %vm1197, %v2664, 0
        %v2673 = vsel %vm1197, %v2663, 0
        %v2676 = vsel %vm1197, %v2666, 0
        %v2679 = vsel %vm1197, %v2668, 0
        %2681 = vmatpush.bf16.xpose.msra.mxu0 0
        %2682 = vmatpush.bf16.xpose.msra.mxu0 0
        %2683 = vmatpush.bf16.xpose.msra.mxu0 0
        %2684 = vmatpush.bf16.xpose.msra.mxu0 0
        %2685 = vmatpush.bf16.xpose.msra.mxu0 0
        %2686 = vmatpush.bf16.xpose.msra.mxu0 0
        %2687 = vmatpush.bf16.xpose.msra.mxu0 %v2679
        %2688 = vmatpush.bf16.xpose.msra.mxu0 %v2676
        %2689 = vmatmul.bf16.gmra.mxu0 %v2670
        %v2690 = vpop.f32.mrf.mxu0
        %v2691 = vadd.f32 0.0, %v2690
        %v2692 = vpop.f32.mrf.mxu0
        %v2693 = vadd.f32 0.0, %v2692
        %2694 = vmatmul.bf16.gmra.mxu0 %v2673
        %v2695 = vpop.f32.mrf.mxu0
        %v2696 = vadd.f32 0.0, %v2695
        %v2697 = vpop.f32.mrf.mxu0
        %2698 = vdwg.mxu0
        %v2701 = vunpack.c.l.b16 %v2649
        %v2702 = vunpack.c.l.b16 %v2650
        %v2703 = vpack.c.b16 %v2701, %v1960
        %v2704 = vpack.c.b16 %v2702, %v2702
        %v2705 = vrot.slane %v2703, 1
        %v2706 = vrot.slane %v2704, 1
        %v2707 = vsel %vm2661, %v2705, %v2706
        %2708 = vrot.lane.b32.xlu0 %v2707, 96
        %v2709 = vpop.permute.xlu0 %2708
        %2710 = vrot.lane.b32.xlu0 %v2706, 96
        %v2711 = vpop.permute.xlu0 %2710
        %v2713 = vsel %vm1197, %v2707, 0
        %v2716 = vsel %vm1197, %v2706, 0
        %v2719 = vsel %vm1197, %v2709, 0
        %v2722 = vsel %vm1197, %v2711, 0
        %2724 = vmatpush.bf16.xpose.msra.mxu0 0
        %2725 = vmatpush.bf16.xpose.msra.mxu0 0
        %2726 = vmatpush.bf16.xpose.msra.mxu0 0
        %2727 = vmatpush.bf16.xpose.msra.mxu0 0
        %2728 = vmatpush.bf16.xpose.msra.mxu0 0
        %2729 = vmatpush.bf16.xpose.msra.mxu0 0
        %2730 = vmatpush.bf16.xpose.msra.mxu0 %v2722
        %2731 = vmatpush.bf16.xpose.msra.mxu0 %v2719
        %2732 = vmatmul.bf16.gmra.mxu0 %v2713
        %v2733 = vpop.f32.mrf.mxu0
        %v2734 = vadd.f32 0.0, %v2733
        %v2735 = vpop.f32.mrf.mxu0
        %v2736 = vadd.f32 0.0, %v2735
        %2737 = vmatmul.bf16.gmra.mxu0 %v2716
        %v2738 = vpop.f32.mrf.mxu0
        %v2739 = vadd.f32 0.0, %v2738
        %v2740 = vpop.f32.mrf.mxu0
        %2741 = vdwg.mxu0
        %v2744 = vunpack.c.l.b16 %v2651
        %v2745 = vunpack.c.l.b16 %v2652
        %v2746 = vpack.c.b16 %v2744, %v2014
        %v2747 = vpack.c.b16 %v2745, %v2745
        %v2748 = vrot.slane %v2746, 1
        %v2749 = vrot.slane %v2747, 1
        %v2750 = vsel %vm2661, %v2748, %v2749
        %2751 = vrot.lane.b32.xlu0 %v2750, 96
        %v2752 = vpop.permute.xlu0 %2751
        %2753 = vrot.lane.b32.xlu0 %v2749, 96
        %v2754 = vpop.permute.xlu0 %2753
        %v2756 = vsel %vm1197, %v2750, 0
        %v2759 = vsel %vm1197, %v2749, 0
        %v2762 = vsel %vm1197, %v2752, 0
        %v2765 = vsel %vm1197, %v2754, 0
        %2767 = vmatpush.bf16.xpose.msra.mxu0 0
        %2768 = vmatpush.bf16.xpose.msra.mxu0 0
        %2769 = vmatpush.bf16.xpose.msra.mxu0 0
        %2770 = vmatpush.bf16.xpose.msra.mxu0 0
        %2771 = vmatpush.bf16.xpose.msra.mxu0 0
        %2772 = vmatpush.bf16.xpose.msra.mxu0 0
        %2773 = vmatpush.bf16.xpose.msra.mxu0 %v2765
        %2774 = vmatpush.bf16.xpose.msra.mxu0 %v2762
        %2775 = vmatmul.bf16.gmra.mxu0 %v2756
        %v2776 = vpop.f32.mrf.mxu0
        %v2777 = vadd.f32 0.0, %v2776
        %v2778 = vpop.f32.mrf.mxu0
        %v2779 = vadd.f32 0.0, %v2778
        %2780 = vmatmul.bf16.gmra.mxu0 %v2759
        %v2781 = vpop.f32.mrf.mxu0
        %v2782 = vadd.f32 0.0, %v2781
        %v2783 = vpop.f32.mrf.mxu0
        %2784 = vdwg.mxu0
        %v2787 = vunpack.c.l.b16 %v2653
        %v2788 = vunpack.c.l.b16 %v2654
        %v2789 = vpack.c.b16 %v2787, %v2068
        %v2790 = vpack.c.b16 %v2788, %v2788
        %v2791 = vrot.slane %v2789, 1
        %v2792 = vrot.slane %v2790, 1
        %v2793 = vsel %vm2661, %v2791, %v2792
        %2794 = vrot.lane.b32.xlu0 %v2793, 96
        %v2795 = vpop.permute.xlu0 %2794
        %2796 = vrot.lane.b32.xlu0 %v2792, 96
        %v2797 = vpop.permute.xlu0 %2796
        %v2799 = vsel %vm1197, %v2793, 0
        %v2802 = vsel %vm1197, %v2792, 0
        %v2805 = vsel %vm1197, %v2795, 0
        %v2808 = vsel %vm1197, %v2797, 0
        %2810 = vmatpush.bf16.xpose.msra.mxu0 0
        %2811 = vmatpush.bf16.xpose.msra.mxu0 0
        %2812 = vmatpush.bf16.xpose.msra.mxu0 0
        %2813 = vmatpush.bf16.xpose.msra.mxu0 0
        %2814 = vmatpush.bf16.xpose.msra.mxu0 0
        %2815 = vmatpush.bf16.xpose.msra.mxu0 0
        %2816 = vmatpush.bf16.xpose.msra.mxu0 %v2808
        %2817 = vmatpush.bf16.xpose.msra.mxu0 %v2805
        %2818 = vmatmul.bf16.gmra.mxu0 %v2799
        %v2819 = vpop.f32.mrf.mxu0
        %v2820 = vadd.f32 0.0, %v2819
        %v2821 = vpop.f32.mrf.mxu0
        %v2822 = vadd.f32 0.0, %v2821
        %2823 = vmatmul.bf16.gmra.mxu0 %v2802
        %v2824 = vpop.f32.mrf.mxu0
        %v2825 = vadd.f32 0.0, %v2824
        %v2826 = vpop.f32.mrf.mxu0
        %2827 = vdwg.mxu0
        %v2828 = vsel %vm1354, %v2691, -inf
        %2829 = vmax.xlane.f32.xlu0 %v2828
        %v2830 = vpop.xlane.xlu0 %2829
        %v2831 = vsel %vm1354, %v2693, -inf
        %2832 = vmax.xlane.f32.xlu0 %v2831
        %v2833 = vpop.xlane.xlu0 %2832
        %v2834 = vsel %vm1361, %v2696, -inf
        %2835 = vmax.xlane.f32.xlu0 %v2834
        %v2836 = vpop.xlane.xlu0 %2835
        %v2837 = vsel %vm1354, %v2734, -inf
        %2838 = vmax.xlane.f32.xlu0 %v2837
        %v2839 = vpop.xlane.xlu0 %2838
        %v2840 = vsel %vm1354, %v2736, -inf
        %2841 = vmax.xlane.f32.xlu0 %v2840
        %v2842 = vpop.xlane.xlu0 %2841
        %v2843 = vsel %vm1361, %v2739, -inf
        %2844 = vmax.xlane.f32.xlu0 %v2843
        %v2845 = vpop.xlane.xlu0 %2844
        %v2846 = vsel %vm1354, %v2777, -inf
        %2847 = vmax.xlane.f32.xlu0 %v2846
        %v2848 = vpop.xlane.xlu0 %2847
        %v2849 = vsel %vm1354, %v2779, -inf
        %2850 = vmax.xlane.f32.xlu0 %v2849
        %v2851 = vpop.xlane.xlu0 %2850
        %v2852 = vsel %vm1361, %v2782, -inf
        %2853 = vmax.xlane.f32.xlu0 %v2852
        %v2854 = vpop.xlane.xlu0 %2853
        %v2855 = vsel %vm1354, %v2820, -inf
        %2856 = vmax.xlane.f32.xlu0 %v2855
        %v2857 = vpop.xlane.xlu0 %2856
        %v2858 = vsel %vm1354, %v2822, -inf
        %2859 = vmax.xlane.f32.xlu0 %v2858
        %v2860 = vpop.xlane.xlu0 %2859
        %v2861 = vsel %vm1361, %v2825, -inf
        %2862 = vmax.xlane.f32.xlu0 %v2861
        %v2863 = vpop.xlane.xlu0 %2862
        %v2864 = vsub.f32 %v2691, %v2830
        %v2865 = vsub.f32 %v2693, %v2833
        %v2866 = vsub.f32 %v2696, %v2836
        %v2867 = vsub.f32 %v2734, %v2839
        %v2868 = vsub.f32 %v2736, %v2842
        %v2869 = vsub.f32 %v2739, %v2845
        %v2870 = vsub.f32 %v2777, %v2848
        %v2871 = vsub.f32 %v2779, %v2851
        %v2872 = vsub.f32 %v2782, %v2854
        %v2873 = vsub.f32 %v2820, %v2857
        %v2874 = vsub.f32 %v2822, %v2860
        %v2875 = vsub.f32 %v2825, %v2863
        %v2876 = vmul.f32 %v2864, 1.442695
        %v2877 = vpow.pop %v2876
        %v2878 = vmul.f32 %v2865, 1.442695
        %v2879 = vpow.pop %v2878
        %v2880 = vmul.f32 %v2866, 1.442695
        %v2881 = vpow.pop %v2880
        %v2882 = vmul.f32 %v2867, 1.442695
        %v2883 = vpow.pop %v2882
        %v2884 = vmul.f32 %v2868, 1.442695
        %v2885 = vpow.pop %v2884
        %v2886 = vmul.f32 %v2869, 1.442695
        %v2887 = vpow.pop %v2886
        %v2888 = vmul.f32 %v2870, 1.442695
        %v2889 = vpow.pop %v2888
        %v2890 = vmul.f32 %v2871, 1.442695
        %v2891 = vpow.pop %v2890
        %v2892 = vmul.f32 %v2872, 1.442695
        %v2893 = vpow.pop %v2892
        %v2894 = vmul.f32 %v2873, 1.442695
        %v2895 = vpow.pop %v2894
        %v2896 = vmul.f32 %v2874, 1.442695
        %v2897 = vpow.pop %v2896
        %v2898 = vmul.f32 %v2875, 1.442695
        %v2899 = vpow.pop %v2898
        %v2900 = vsel %vm1354, %v2877, 0.0
        %2901 = vadd.xlane.f32.xlu0 %v2900
        %v2902 = vpop.xlane.xlu0 %2901
        %v2903 = vsel %vm1354, %v2879, 0.0
        %2904 = vadd.xlane.f32.xlu0 %v2903
        %v2905 = vpop.xlane.xlu0 %2904
        %v2906 = vsel %vm1361, %v2881, 0.0
        %2907 = vadd.xlane.f32.xlu0 %v2906
        %v2908 = vpop.xlane.xlu0 %2907
        %v2909 = vsel %vm1354, %v2883, 0.0
        %2910 = vadd.xlane.f32.xlu0 %v2909
        %v2911 = vpop.xlane.xlu0 %2910
        %v2912 = vsel %vm1354, %v2885, 0.0
        %2913 = vadd.xlane.f32.xlu0 %v2912
        %v2914 = vpop.xlane.xlu0 %2913
        %v2915 = vsel %vm1361, %v2887, 0.0
        %2916 = vadd.xlane.f32.xlu0 %v2915
        %v2917 = vpop.xlane.xlu0 %2916
        %v2918 = vsel %vm1354, %v2889, 0.0
        %2919 = vadd.xlane.f32.xlu0 %v2918
        %v2920 = vpop.xlane.xlu0 %2919
        %v2921 = vsel %vm1354, %v2891, 0.0
        %2922 = vadd.xlane.f32.xlu0 %v2921
        %v2923 = vpop.xlane.xlu0 %2922
        %v2924 = vsel %vm1361, %v2893, 0.0
        %2925 = vadd.xlane.f32.xlu0 %v2924
        %v2926 = vpop.xlane.xlu0 %2925
        %v2927 = vsel %vm1354, %v2895, 0.0
        %2928 = vadd.xlane.f32.xlu0 %v2927
        %v2929 = vpop.xlane.xlu0 %2928
        %v2930 = vsel %vm1354, %v2897, 0.0
        %2931 = vadd.xlane.f32.xlu0 %v2930
        %v2932 = vpop.xlane.xlu0 %2931
        %v2933 = vsel %vm1361, %v2899, 0.0
        %2934 = vadd.xlane.f32.xlu0 %v2933
        %v2935 = vpop.xlane.xlu0 %2934
        %v2936 = vrcp.pop %v2902
        %v2937 = vmul.f32 %v2902, %v2936
        %v2938 = vsub.f32 1.0, %v2937
        %v2939 = vmul.f32 %v2936, %v2938
        %v2940 = vadd.f32 %v2936, %v2939
        %vm2941 = vweird.f32 %v2902
        %vm2942 = vweird.f32 %v2936
        %vm2943 = vmor %vm2941, %vm2942
        %v2944 = vsel %vm2943, %v2936, %v2940
        %v2945 = vand.u32 2147483647, %v2902
        %vm2946 = vcmp.eq.f32.partialorder %v2945, 8.507059e+37
        %v2947 = vand.u32 %v2902, 2147483648
        %v2948 = vor.u32 1.1754944e-38, %v2947
        %v2949 = vsel %vm2946, %v2948, %v2944
        %v2950 = vmul.f32 %v2877, %v2949
        %v2951 = vrcp.pop %v2905
        %v2952 = vmul.f32 %v2905, %v2951
        %v2953 = vsub.f32 1.0, %v2952
        %v2954 = vmul.f32 %v2951, %v2953
        %v2955 = vadd.f32 %v2951, %v2954
        %vm2956 = vweird.f32 %v2905
        %vm2957 = vweird.f32 %v2951
        %vm2958 = vmor %vm2956, %vm2957
        %v2959 = vsel %vm2958, %v2951, %v2955
        %v2960 = vand.u32 2147483647, %v2905
        %vm2961 = vcmp.eq.f32.partialorder %v2960, 8.507059e+37
        %v2962 = vand.u32 %v2905, 2147483648
        %v2963 = vor.u32 1.1754944e-38, %v2962
        %v2964 = vsel %vm2961, %v2963, %v2959
        %v2965 = vmul.f32 %v2879, %v2964
        %v2966 = vrcp.pop %v2908
        %v2967 = vmul.f32 %v2908, %v2966
        %v2968 = vsub.f32 1.0, %v2967
        %v2969 = vmul.f32 %v2966, %v2968
        %v2970 = vadd.f32 %v2966, %v2969
        %vm2971 = vweird.f32 %v2908
        %vm2972 = vweird.f32 %v2966
        %vm2973 = vmor %vm2971, %vm2972
        %v2974 = vsel %vm2973, %v2966, %v2970
        %v2975 = vand.u32 2147483647, %v2908
        %vm2976 = vcmp.eq.f32.partialorder %v2975, 8.507059e+37
        %v2977 = vand.u32 %v2908, 2147483648
        %v2978 = vor.u32 1.1754944e-38, %v2977
        %v2979 = vsel %vm2976, %v2978, %v2974
        %v2980 = vmul.f32 %v2881, %v2979
        %v2981 = vrcp.pop %v2911
        %v2982 = vmul.f32 %v2911, %v2981
        %v2983 = vsub.f32 1.0, %v2982
        %v2984 = vmul.f32 %v2981, %v2983
        %v2985 = vadd.f32 %v2981, %v2984
        %vm2986 = vweird.f32 %v2911
        %vm2987 = vweird.f32 %v2981
        %vm2988 = vmor %vm2986, %vm2987
        %v2989 = vsel %vm2988, %v2981, %v2985
        %v2990 = vand.u32 2147483647, %v2911
        %vm2991 = vcmp.eq.f32.partialorder %v2990, 8.507059e+37
        %v2992 = vand.u32 %v2911, 2147483648
        %v2993 = vor.u32 1.1754944e-38, %v2992
        %v2994 = vsel %vm2991, %v2993, %v2989
        %v2995 = vmul.f32 %v2883, %v2994
        %v2996 = vrcp.pop %v2914
        %v2997 = vmul.f32 %v2914, %v2996
        %v2998 = vsub.f32 1.0, %v2997
        %v2999 = vmul.f32 %v2996, %v2998
        %v3000 = vadd.f32 %v2996, %v2999
        %vm3001 = vweird.f32 %v2914
        %vm3002 = vweird.f32 %v2996
        %vm3003 = vmor %vm3001, %vm3002
        %v3004 = vsel %vm3003, %v2996, %v3000
        %v3005 = vand.u32 2147483647, %v2914
        %vm3006 = vcmp.eq.f32.partialorder %v3005, 8.507059e+37
        %v3007 = vand.u32 %v2914, 2147483648
        %v3008 = vor.u32 1.1754944e-38, %v3007
        %v3009 = vsel %vm3006, %v3008, %v3004
        %v3010 = vmul.f32 %v2885, %v3009
        %v3011 = vrcp.pop %v2917
        %v3012 = vmul.f32 %v2917, %v3011
        %v3013 = vsub.f32 1.0, %v3012
        %v3014 = vmul.f32 %v3011, %v3013
        %v3015 = vadd.f32 %v3011, %v3014
        %vm3016 = vweird.f32 %v2917
        %vm3017 = vweird.f32 %v3011
        %vm3018 = vmor %vm3016, %vm3017
        %v3019 = vsel %vm3018, %v3011, %v3015
        %v3020 = vand.u32 2147483647, %v2917
        %vm3021 = vcmp.eq.f32.partialorder %v3020, 8.507059e+37
        %v3022 = vand.u32 %v2917, 2147483648
        %v3023 = vor.u32 1.1754944e-38, %v3022
        %v3024 = vsel %vm3021, %v3023, %v3019
        %v3025 = vmul.f32 %v2887, %v3024
        %v3026 = vrcp.pop %v2920
        %v3027 = vmul.f32 %v2920, %v3026
        %v3028 = vsub.f32 1.0, %v3027
        %v3029 = vmul.f32 %v3026, %v3028
        %v3030 = vadd.f32 %v3026, %v3029
        %vm3031 = vweird.f32 %v2920
        %vm3032 = vweird.f32 %v3026
        %vm3033 = vmor %vm3031, %vm3032
        %v3034 = vsel %vm3033, %v3026, %v3030
        %v3035 = vand.u32 2147483647, %v2920
        %vm3036 = vcmp.eq.f32.partialorder %v3035, 8.507059e+37
        %v3037 = vand.u32 %v2920, 2147483648
        %v3038 = vor.u32 1.1754944e-38, %v3037
        %v3039 = vsel %vm3036, %v3038, %v3034
        %v3040 = vmul.f32 %v2889, %v3039
        %v3041 = vrcp.pop %v2923
        %v3042 = vmul.f32 %v2923, %v3041
        %v3043 = vsub.f32 1.0, %v3042
        %v3044 = vmul.f32 %v3041, %v3043
        %v3045 = vadd.f32 %v3041, %v3044
        %vm3046 = vweird.f32 %v2923
        %vm3047 = vweird.f32 %v3041
        %vm3048 = vmor %vm3046, %vm3047
        %v3049 = vsel %vm3048, %v3041, %v3045
        %v3050 = vand.u32 2147483647, %v2923
        %vm3051 = vcmp.eq.f32.partialorder %v3050, 8.507059e+37
        %v3052 = vand.u32 %v2923, 2147483648
        %v3053 = vor.u32 1.1754944e-38, %v3052
        %v3054 = vsel %vm3051, %v3053, %v3049
        %v3055 = vmul.f32 %v2891, %v3054
        %v3056 = vrcp.pop %v2926
        %v3057 = vmul.f32 %v2926, %v3056
        %v3058 = vsub.f32 1.0, %v3057
        %v3059 = vmul.f32 %v3056, %v3058
        %v3060 = vadd.f32 %v3056, %v3059
        %vm3061 = vweird.f32 %v2926
        %vm3062 = vweird.f32 %v3056
        %vm3063 = vmor %vm3061, %vm3062
        %v3064 = vsel %vm3063, %v3056, %v3060
        %v3065 = vand.u32 2147483647, %v2926
        %vm3066 = vcmp.eq.f32.partialorder %v3065, 8.507059e+37
        %v3067 = vand.u32 %v2926, 2147483648
        %v3068 = vor.u32 1.1754944e-38, %v3067
        %v3069 = vsel %vm3066, %v3068, %v3064
        %v3070 = vmul.f32 %v2893, %v3069
        %v3071 = vrcp.pop %v2929
        %v3072 = vmul.f32 %v2929, %v3071
        %v3073 = vsub.f32 1.0, %v3072
        %v3074 = vmul.f32 %v3071, %v3073
        %v3075 = vadd.f32 %v3071, %v3074
        %vm3076 = vweird.f32 %v2929
        %vm3077 = vweird.f32 %v3071
        %vm3078 = vmor %vm3076, %vm3077
        %v3079 = vsel %vm3078, %v3071, %v3075
        %v3080 = vand.u32 2147483647, %v2929
        %vm3081 = vcmp.eq.f32.partialorder %v3080, 8.507059e+37
        %v3082 = vand.u32 %v2929, 2147483648
        %v3083 = vor.u32 1.1754944e-38, %v3082
        %v3084 = vsel %vm3081, %v3083, %v3079
        %v3085 = vmul.f32 %v2895, %v3084
        %v3086 = vrcp.pop %v2932
        %v3087 = vmul.f32 %v2932, %v3086
        %v3088 = vsub.f32 1.0, %v3087
        %v3089 = vmul.f32 %v3086, %v3088
        %v3090 = vadd.f32 %v3086, %v3089
        %vm3091 = vweird.f32 %v2932
        %vm3092 = vweird.f32 %v3086
        %vm3093 = vmor %vm3091, %vm3092
        %v3094 = vsel %vm3093, %v3086, %v3090
        %v3095 = vand.u32 2147483647, %v2932
        %vm3096 = vcmp.eq.f32.partialorder %v3095, 8.507059e+37
        %v3097 = vand.u32 %v2932, 2147483648
        %v3098 = vor.u32 1.1754944e-38, %v3097
        %v3099 = vsel %vm3096, %v3098, %v3094
        %v3100 = vmul.f32 %v2897, %v3099
        %v3101 = vrcp.pop %v2935
        %v3102 = vmul.f32 %v2935, %v3101
        %v3103 = vsub.f32 1.0, %v3102
        %v3104 = vmul.f32 %v3101, %v3103
        %v3105 = vadd.f32 %v3101, %v3104
        %vm3106 = vweird.f32 %v2935
        %vm3107 = vweird.f32 %v3101
        %vm3108 = vmor %vm3106, %vm3107
        %v3109 = vsel %vm3108, %v3101, %v3105
        %v3110 = vand.u32 2147483647, %v2935
        %vm3111 = vcmp.eq.f32.partialorder %v3110, 8.507059e+37
        %v3112 = vand.u32 %v2935, 2147483648
        %v3113 = vor.u32 1.1754944e-38, %v3112
        %v3114 = vsel %vm3111, %v3113, %v3109
        %v3115 = vmul.f32 %v2899, %v3114
        %v3116 = vpack.c.bf16 %v2950, %v2950
        %v3117 = vpack.c.bf16 %v2965, %v2965
        %v3118 = vpack.c.bf16 %v2980, %v2980
        %v3119 = vpack.c.bf16 %v2995, %v2995
        %v3120 = vpack.c.bf16 %v3010, %v3010
        %v3121 = vpack.c.bf16 %v3025, %v3025
        %v3122 = vpack.c.bf16 %v3040, %v3040
        %v3123 = vpack.c.bf16 %v3055, %v3055
        %v3124 = vpack.c.bf16 %v3070, %v3070
        %v3125 = vpack.c.bf16 %v3085, %v3085
        %v3126 = vpack.c.bf16 %v3100, %v3100
        %v3127 = vpack.c.bf16 %v3115, %v3115
        %v3131 = vunpack.c.l.b16 %v3116
        %v3132 = vunpack.c.l.b16 %v3117
        %v3133 = vunpack.c.l.b16 %v3118
        %v3134 = vpack.c.b16 %v3132, %v3131
        %v3135 = vpack.c.b16 %v3133, %v3133
        %3136 = vrot.lane.b32.xlu0 %v2664, 64
        %v3137 = vpop.permute.xlu0 %3136
        %3138 = vrot.lane.b32.xlu0 %v2663, 64
        %v3139 = vpop.permute.xlu0 %3138
        %v3142 = vsel %vm1354, %v3134, 0
        %v3145 = vsel %vm1354, %v3135, 0
        %v3148 = vand.u32 %v3139, %v1677
        %3150 = vmatpush.bf16.msra.mxu0 0
        %3151 = vmatpush.bf16.msra.mxu0 0
        %3152 = vmatpush.bf16.msra.mxu0 0
        %3153 = vmatpush.bf16.msra.mxu0 0
        %3154 = vmatpush.bf16.msra.mxu0 0
        %3155 = vmatpush.bf16.msra.mxu0 0
        %3156 = vmatpush.bf16.msra.mxu0 %v3148
        %3157 = vmatpush.bf16.msra.mxu0 %v3137
        %3158 = vmatmul.bf16.gmra.mxu0 %v3142
        %v3159 = vpop.f32.mrf.mxu0
        %v3160 = vadd.f32 0.0, %v3159
        %v3161 = vpop.f32.mrf.mxu0
        %v3162 = vadd.f32 0.0, %v3161
        %3163 = vmatmul.bf16.gmra.mxu0 %v3145
        %v3164 = vpop.f32.mrf.mxu0
        %v3165 = vadd.f32 0.0, %v3164
        %v3166 = vpop.f32.mrf.mxu0
        %3167 = vdwg.mxu0
        %v3171 = vunpack.c.l.b16 %v3119
        %v3172 = vunpack.c.l.b16 %v3120
        %v3173 = vunpack.c.l.b16 %v3121
        %v3174 = vpack.c.b16 %v3172, %v3171
        %v3175 = vpack.c.b16 %v3173, %v3173
        %3176 = vrot.lane.b32.xlu0 %v2707, 64
        %v3177 = vpop.permute.xlu0 %3176
        %3178 = vrot.lane.b32.xlu0 %v2706, 64
        %v3179 = vpop.permute.xlu0 %3178
        %v3182 = vsel %vm1354, %v3174, 0
        %v3185 = vsel %vm1354, %v3175, 0
        %v3188 = vand.u32 %v3179, %v1677
        %3190 = vmatpush.bf16.msra.mxu0 0
        %3191 = vmatpush.bf16.msra.mxu0 0
        %3192 = vmatpush.bf16.msra.mxu0 0
        %3193 = vmatpush.bf16.msra.mxu0 0
        %3194 = vmatpush.bf16.msra.mxu0 0
        %3195 = vmatpush.bf16.msra.mxu0 0
        %3196 = vmatpush.bf16.msra.mxu0 %v3188
        %3197 = vmatpush.bf16.msra.mxu0 %v3177
        %3198 = vmatmul.bf16.gmra.mxu0 %v3182
        %v3199 = vpop.f32.mrf.mxu0
        %v3200 = vadd.f32 0.0, %v3199
        %v3201 = vpop.f32.mrf.mxu0
        %v3202 = vadd.f32 0.0, %v3201
        %3203 = vmatmul.bf16.gmra.mxu0 %v3185
        %v3204 = vpop.f32.mrf.mxu0
        %v3205 = vadd.f32 0.0, %v3204
        %v3206 = vpop.f32.mrf.mxu0
        %3207 = vdwg.mxu0
        %v3211 = vunpack.c.l.b16 %v3122
        %v3212 = vunpack.c.l.b16 %v3123
        %v3213 = vunpack.c.l.b16 %v3124
        %v3214 = vpack.c.b16 %v3212, %v3211
        %v3215 = vpack.c.b16 %v3213, %v3213
        %3216 = vrot.lane.b32.xlu0 %v2750, 64
        %v3217 = vpop.permute.xlu0 %3216
        %3218 = vrot.lane.b32.xlu0 %v2749, 64
        %v3219 = vpop.permute.xlu0 %3218
        %v3222 = vsel %vm1354, %v3214, 0
        %v3225 = vsel %vm1354, %v3215, 0
        %v3228 = vand.u32 %v3219, %v1677
        %3230 = vmatpush.bf16.msra.mxu0 0
        %3231 = vmatpush.bf16.msra.mxu0 0
        %3232 = vmatpush.bf16.msra.mxu0 0
        %3233 = vmatpush.bf16.msra.mxu0 0
        %3234 = vmatpush.bf16.msra.mxu0 0
        %3235 = vmatpush.bf16.msra.mxu0 0
        %3236 = vmatpush.bf16.msra.mxu0 %v3228
        %3237 = vmatpush.bf16.msra.mxu0 %v3217
        %3238 = vmatmul.bf16.gmra.mxu0 %v3222
        %v3239 = vpop.f32.mrf.mxu0
        %v3240 = vadd.f32 0.0, %v3239
        %v3241 = vpop.f32.mrf.mxu0
        %v3242 = vadd.f32 0.0, %v3241
        %3243 = vmatmul.bf16.gmra.mxu0 %v3225
        %v3244 = vpop.f32.mrf.mxu0
        %v3245 = vadd.f32 0.0, %v3244
        %v3246 = vpop.f32.mrf.mxu0
        %3247 = vdwg.mxu0
        %v3251 = vunpack.c.l.b16 %v3125
        %v3252 = vunpack.c.l.b16 %v3126
        %v3253 = vunpack.c.l.b16 %v3127
        %v3254 = vpack.c.b16 %v3252, %v3251
        %v3255 = vpack.c.b16 %v3253, %v3253
        %3256 = vrot.lane.b32.xlu0 %v2793, 64
        %v3257 = vpop.permute.xlu0 %3256
        %3258 = vrot.lane.b32.xlu0 %v2792, 64
        %v3259 = vpop.permute.xlu0 %3258
        %v3262 = vsel %vm1354, %v3254, 0
        %v3265 = vsel %vm1354, %v3255, 0
        %v3268 = vand.u32 %v3259, %v1677
        %3270 = vmatpush.bf16.msra.mxu0 0
        %3271 = vmatpush.bf16.msra.mxu0 0
        %3272 = vmatpush.bf16.msra.mxu0 0
        %3273 = vmatpush.bf16.msra.mxu0 0
        %3274 = vmatpush.bf16.msra.mxu0 0
        %3275 = vmatpush.bf16.msra.mxu0 0
        %3276 = vmatpush.bf16.msra.mxu0 %v3268
        %3277 = vmatpush.bf16.msra.mxu0 %v3257
        %3278 = vmatmul.bf16.gmra.mxu0 %v3262
        %v3279 = vpop.f32.mrf.mxu0
        %v3280 = vadd.f32 0.0, %v3279
        %v3281 = vpop.f32.mrf.mxu0
        %v3282 = vadd.f32 0.0, %v3281
        %3283 = vmatmul.bf16.gmra.mxu0 %v3265
        %v3284 = vpop.f32.mrf.mxu0
        %v3285 = vadd.f32 0.0, %v3284
        %v3286 = vpop.f32.mrf.mxu0
        %3287 = vdwg.mxu0
        %3288 = vst.msk [vmem:[#allocation2 + $0x22] sm:$0xff] %vm1197, %v3160
        %3289 = vst.msk [vmem:[#allocation2 + $0x2a] sm:$0xff] %vm1197, %v3162
        %3290 = vst.msk [vmem:[#allocation2 + $0x32] sm:$0x1] %vm1821, %v3165
        %3294 = vrot.lane.b32.xlu0 %v3200, 8
        %v3295 = vpop.permute.xlu0 %3294
        %3296 = vrot.lane.b32.xlu0 %v3202, 8
        %v3297 = vpop.permute.xlu0 %3296
        %3298 = vrot.lane.b32.xlu0 %v3205, 8
        %v3299 = vpop.permute.xlu0 %3298
        %3303 = vst.msk [vmem:[#allocation2 + $0x22] sm:$0xff] %vm1835, %v3295
        %3304 = vst.msk [vmem:[#allocation2 + $0x2a] sm:$0xff] %vm1835, %v3297
        %3305 = vst.msk [vmem:[#allocation2 + $0x32] sm:$0x1] %vm1838, %v3299
        %3309 = vrot.lane.b32.xlu0 %v3240, 16
        %v3310 = vpop.permute.xlu0 %3309
        %3311 = vrot.lane.b32.xlu0 %v3242, 16
        %v3312 = vpop.permute.xlu0 %3311
        %3313 = vrot.lane.b32.xlu0 %v3245, 16
        %v3314 = vpop.permute.xlu0 %3313
        %3318 = vst.msk [vmem:[#allocation2 + $0x22] sm:$0xff] %vm1852, %v3310
        %3319 = vst.msk [vmem:[#allocation2 + $0x2a] sm:$0xff] %vm1852, %v3312
        %3320 = vst.msk [vmem:[#allocation2 + $0x32] sm:$0x1] %vm1855, %v3314
        %3324 = vrot.lane.b32.xlu0 %v3280, 24
        %v3325 = vpop.permute.xlu0 %3324
        %3326 = vrot.lane.b32.xlu0 %v3282, 24
        %v3327 = vpop.permute.xlu0 %3326
        %3328 = vrot.lane.b32.xlu0 %v3285, 24
        %v3329 = vpop.permute.xlu0 %3328
        %3333 = vst.msk [vmem:[#allocation2 + $0x22] sm:$0xff] %vm1869, %v3325
        %3334 = vst.msk [vmem:[#allocation2 + $0x2a] sm:$0xff] %vm1869, %v3327
        %3335 = vst.msk [vmem:[#allocation2 + $0x32] sm:$0x1] %vm1872, %v3329
        %3338 = vrot.lane.b32.xlu0 %v1137, 120
        %v3339 = vpop.permute.xlu0 %3338
        %3340 = vrot.lane.b32.xlu0 %v1140, 120
        %v3341 = vpop.permute.xlu0 %3340
        %3344 = vrot.lane.b32.xlu0 %v1137, 112
        %v3345 = vpop.permute.xlu0 %3344
        %3346 = vrot.lane.b32.xlu0 %v1140, 112
        %v3347 = vpop.permute.xlu0 %3346
        %3350 = vrot.lane.b32.xlu0 %v1137, 104
        %v3351 = vpop.permute.xlu0 %3350
        %3352 = vrot.lane.b32.xlu0 %v1140, 104
        %v3353 = vpop.permute.xlu0 %3352
        %v3356 = vpack.c.bf16 %v1137, %v1137
        %v3357 = vpack.c.bf16 %v1140, %v1140
        %v3358 = vpack.c.bf16 %v3339, %v3339
        %v3359 = vpack.c.bf16 %v3341, %v3341
        %v3360 = vpack.c.bf16 %v3345, %v3345
        %v3361 = vpack.c.bf16 %v3347, %v3347
        %v3362 = vpack.c.bf16 %v3351, %v3351
        %v3363 = vpack.c.bf16 %v3353, %v3353
        %v3366 = vunpack.c.l.b16 %v3356
        %v3367 = vunpack.c.l.b16 %v3357
        %v3368 = vpack.c.b16 %v3366, %v2658
        %v3369 = vpack.c.b16 %v3367, %v3367
        %vm3370 = vsmask.f32 6400
        %v3372 = vshrl.u32 %v3368, 16
        %v3374 = vrot.slane %v3372, 1
        %v3375 = vshll.u32 %v3368, 16
        %v3377 = vrot.slane %v3375, 2
        %v3378 = vor.u32 %v3374, %v3377
        %v3380 = vshrl.u32 %v3369, 16
        %v3382 = vrot.slane %v3380, 1
        %v3383 = vshll.u32 %v3369, 16
        %v3385 = vrot.slane %v3383, 2
        %v3386 = vor.u32 %v3382, %v3385
        %v3387 = vsel %vm3370, %v3378, %v3386
        %3388 = vrot.lane.b32.xlu0 %v3387, 96
        %v3389 = vpop.permute.xlu0 %3388
        %3390 = vrot.lane.b32.xlu0 %v3382, 96
        %v3391 = vpop.permute.xlu0 %3390
        %v3393 = vsel %vm1197, %v3387, 0
        %v3396 = vsel %vm1197, %v3382, 0
        %v3399 = vsel %vm1197, %v3389, 0
        %v3402 = vsel %vm1197, %v3391, 0
        %3404 = vmatpush.bf16.xpose.msra.mxu0 0
        %3405 = vmatpush.bf16.xpose.msra.mxu0 0
        %3406 = vmatpush.bf16.xpose.msra.mxu0 0
        %3407 = vmatpush.bf16.xpose.msra.mxu0 0
        %3408 = vmatpush.bf16.xpose.msra.mxu0 0
        %3409 = vmatpush.bf16.xpose.msra.mxu0 0
        %3410 = vmatpush.bf16.xpose.msra.mxu0 %v3402
        %3411 = vmatpush.bf16.xpose.msra.mxu0 %v3399
        %3412 = vmatmul.bf16.gmra.mxu0 %v3393
        %v3413 = vpop.f32.mrf.mxu0
        %v3414 = vadd.f32 0.0, %v3413
        %v3415 = vpop.f32.mrf.mxu0
        %v3416 = vadd.f32 0.0, %v3415
        %3417 = vmatmul.bf16.gmra.mxu0 %v3396
        %v3418 = vpop.f32.mrf.mxu0
        %v3419 = vadd.f32 0.0, %v3418
        %v3420 = vpop.f32.mrf.mxu0
        %3421 = vdwg.mxu0
        %v3424 = vunpack.c.l.b16 %v3358
        %v3425 = vunpack.c.l.b16 %v3359
        %v3426 = vpack.c.b16 %v3424, %v2702
        %v3427 = vpack.c.b16 %v3425, %v3425
        %v3429 = vshrl.u32 %v3426, 16
        %v3431 = vrot.slane %v3429, 1
        %v3432 = vshll.u32 %v3426, 16
        %v3434 = vrot.slane %v3432, 2
        %v3435 = vor.u32 %v3431, %v3434
        %v3437 = vshrl.u32 %v3427, 16
        %v3439 = vrot.slane %v3437, 1
        %v3440 = vshll.u32 %v3427, 16
        %v3442 = vrot.slane %v3440, 2
        %v3443 = vor.u32 %v3439, %v3442
        %v3444 = vsel %vm3370, %v3435, %v3443
        %3445 = vrot.lane.b32.xlu0 %v3444, 96
        %v3446 = vpop.permute.xlu0 %3445
        %3447 = vrot.lane.b32.xlu0 %v3439, 96
        %v3448 = vpop.permute.xlu0 %3447
        %v3450 = vsel %vm1197, %v3444, 0
        %v3453 = vsel %vm1197, %v3439, 0
        %v3456 = vsel %vm1197, %v3446, 0
        %v3459 = vsel %vm1197, %v3448, 0
        %3461 = vmatpush.bf16.xpose.msra.mxu0 0
        %3462 = vmatpush.bf16.xpose.msra.mxu0 0
        %3463 = vmatpush.bf16.xpose.msra.mxu0 0
        %3464 = vmatpush.bf16.xpose.msra.mxu0 0
        %3465 = vmatpush.bf16.xpose.msra.mxu0 0
        %3466 = vmatpush.bf16.xpose.msra.mxu0 0
        %3467 = vmatpush.bf16.xpose.msra.mxu0 %v3459
        %3468 = vmatpush.bf16.xpose.msra.mxu0 %v3456
        %3469 = vmatmul.bf16.gmra.mxu0 %v3450
        %v3470 = vpop.f32.mrf.mxu0
        %v3471 = vadd.f32 0.0, %v3470
        %v3472 = vpop.f32.mrf.mxu0
        %v3473 = vadd.f32 0.0, %v3472
        %3474 = vmatmul.bf16.gmra.mxu0 %v3453
        %v3475 = vpop.f32.mrf.mxu0
        %v3476 = vadd.f32 0.0, %v3475
        %v3477 = vpop.f32.mrf.mxu0
        %3478 = vdwg.mxu0
        %v3481 = vunpack.c.l.b16 %v3360
        %v3482 = vunpack.c.l.b16 %v3361
        %v3483 = vpack.c.b16 %v3481, %v2745
        %v3484 = vpack.c.b16 %v3482, %v3482
        %v3486 = vshrl.u32 %v3483, 16
        %v3488 = vrot.slane %v3486, 1
        %v3489 = vshll.u32 %v3483, 16
        %v3491 = vrot.slane %v3489, 2
        %v3492 = vor.u32 %v3488, %v3491
        %v3494 = vshrl.u32 %v3484, 16
        %v3496 = vrot.slane %v3494, 1
        %v3497 = vshll.u32 %v3484, 16
        %v3499 = vrot.slane %v3497, 2
        %v3500 = vor.u32 %v3496, %v3499
        %v3501 = vsel %vm3370, %v3492, %v3500
        %3502 = vrot.lane.b32.xlu0 %v3501, 96
        %v3503 = vpop.permute.xlu0 %3502
        %3504 = vrot.lane.b32.xlu0 %v3496, 96
        %v3505 = vpop.permute.xlu0 %3504
        %v3507 = vsel %vm1197, %v3501, 0
        %v3510 = vsel %vm1197, %v3496, 0
        %v3513 = vsel %vm1197, %v3503, 0
        %v3516 = vsel %vm1197, %v3505, 0
        %3518 = vmatpush.bf16.xpose.msra.mxu0 0
        %3519 = vmatpush.bf16.xpose.msra.mxu0 0
        %3520 = vmatpush.bf16.xpose.msra.mxu0 0
        %3521 = vmatpush.bf16.xpose.msra.mxu0 0
        %3522 = vmatpush.bf16.xpose.msra.mxu0 0
        %3523 = vmatpush.bf16.xpose.msra.mxu0 0
        %3524 = vmatpush.bf16.xpose.msra.mxu0 %v3516
        %3525 = vmatpush.bf16.xpose.msra.mxu0 %v3513
        %3526 = vmatmul.bf16.gmra.mxu0 %v3507
        %v3527 = vpop.f32.mrf.mxu0
        %v3528 = vadd.f32 0.0, %v3527
        %v3529 = vpop.f32.mrf.mxu0
        %v3530 = vadd.f32 0.0, %v3529
        %3531 = vmatmul.bf16.gmra.mxu0 %v3510
        %v3532 = vpop.f32.mrf.mxu0
        %v3533 = vadd.f32 0.0, %v3532
        %v3534 = vpop.f32.mrf.mxu0
        %3535 = vdwg.mxu0
        %v3538 = vunpack.c.l.b16 %v3362
        %v3539 = vunpack.c.l.b16 %v3363
        %v3540 = vpack.c.b16 %v3538, %v2788
        %v3541 = vpack.c.b16 %v3539, %v3539
        %v3543 = vshrl.u32 %v3540, 16
        %v3545 = vrot.slane %v3543, 1
        %v3546 = vshll.u32 %v3540, 16
        %v3548 = vrot.slane %v3546, 2
        %v3549 = vor.u32 %v3545, %v3548
        %v3551 = vshrl.u32 %v3541, 16
        %v3553 = vrot.slane %v3551, 1
        %v3554 = vshll.u32 %v3541, 16
        %v3556 = vrot.slane %v3554, 2
        %v3557 = vor.u32 %v3553, %v3556
        %v3558 = vsel %vm3370, %v3549, %v3557
        %3559 = vrot.lane.b32.xlu0 %v3558, 96
        %v3560 = vpop.permute.xlu0 %3559
        %3561 = vrot.lane.b32.xlu0 %v3553, 96
        %v3562 = vpop.permute.xlu0 %3561
        %v3564 = vsel %vm1197, %v3558, 0
        %v3567 = vsel %vm1197, %v3553, 0
        %v3570 = vsel %vm1197, %v3560, 0
        %v3573 = vsel %vm1197, %v3562, 0
        %3575 = vmatpush.bf16.xpose.msra.mxu0 0
        %3576 = vmatpush.bf16.xpose.msra.mxu0 0
        %3577 = vmatpush.bf16.xpose.msra.mxu0 0
        %3578 = vmatpush.bf16.xpose.msra.mxu0 0
        %3579 = vmatpush.bf16.xpose.msra.mxu0 0
        %3580 = vmatpush.bf16.xpose.msra.mxu0 0
        %3581 = vmatpush.bf16.xpose.msra.mxu0 %v3573
        %3582 = vmatpush.bf16.xpose.msra.mxu0 %v3570
        %3583 = vmatmul.bf16.gmra.mxu0 %v3564
        %v3584 = vpop.f32.mrf.mxu0
        %v3585 = vadd.f32 0.0, %v3584
        %v3586 = vpop.f32.mrf.mxu0
        %v3587 = vadd.f32 0.0, %v3586
        %3588 = vmatmul.bf16.gmra.mxu0 %v3567
        %v3589 = vpop.f32.mrf.mxu0
        %v3590 = vadd.f32 0.0, %v3589
        %v3591 = vpop.f32.mrf.mxu0
        %3592 = vdwg.mxu0
        %v3593 = vsel %vm1354, %v3414, -inf
        %3594 = vmax.xlane.f32.xlu0 %v3593
        %v3595 = vpop.xlane.xlu0 %3594
        %v3596 = vsel %vm1354, %v3416, -inf
        %3597 = vmax.xlane.f32.xlu0 %v3596
        %v3598 = vpop.xlane.xlu0 %3597
        %v3599 = vsel %vm1361, %v3419, -inf
        %3600 = vmax.xlane.f32.xlu0 %v3599
        %v3601 = vpop.xlane.xlu0 %3600
        %v3602 = vsel %vm1354, %v3471, -inf
        %3603 = vmax.xlane.f32.xlu0 %v3602
        %v3604 = vpop.xlane.xlu0 %3603
        %v3605 = vsel %vm1354, %v3473, -inf
        %3606 = vmax.xlane.f32.xlu0 %v3605
        %v3607 = vpop.xlane.xlu0 %3606
        %v3608 = vsel %vm1361, %v3476, -inf
        %3609 = vmax.xlane.f32.xlu0 %v3608
        %v3610 = vpop.xlane.xlu0 %3609
        %v3611 = vsel %vm1354, %v3528, -inf
        %3612 = vmax.xlane.f32.xlu0 %v3611
        %v3613 = vpop.xlane.xlu0 %3612
        %v3614 = vsel %vm1354, %v3530, -inf
        %3615 = vmax.xlane.f32.xlu0 %v3614
        %v3616 = vpop.xlane.xlu0 %3615
        %v3617 = vsel %vm1361, %v3533, -inf
        %3618 = vmax.xlane.f32.xlu0 %v3617
        %v3619 = vpop.xlane.xlu0 %3618
        %v3620 = vsel %vm1354, %v3585, -inf
        %3621 = vmax.xlane.f32.xlu0 %v3620
        %v3622 = vpop.xlane.xlu0 %3621
        %v3623 = vsel %vm1354, %v3587, -inf
        %3624 = vmax.xlane.f32.xlu0 %v3623
        %v3625 = vpop.xlane.xlu0 %3624
        %v3626 = vsel %vm1361, %v3590, -inf
        %3627 = vmax.xlane.f32.xlu0 %v3626
        %v3628 = vpop.xlane.xlu0 %3627
        %v3629 = vsub.f32 %v3414, %v3595
        %v3630 = vsub.f32 %v3416, %v3598
        %v3631 = vsub.f32 %v3419, %v3601
        %v3632 = vsub.f32 %v3471, %v3604
        %v3633 = vsub.f32 %v3473, %v3607
        %v3634 = vsub.f32 %v3476, %v3610
        %v3635 = vsub.f32 %v3528, %v3613
        %v3636 = vsub.f32 %v3530, %v3616
        %v3637 = vsub.f32 %v3533, %v3619
        %v3638 = vsub.f32 %v3585, %v3622
        %v3639 = vsub.f32 %v3587, %v3625
        %v3640 = vsub.f32 %v3590, %v3628
        %v3641 = vmul.f32 %v3629, 1.442695
        %v3642 = vpow.pop %v3641
        %v3643 = vmul.f32 %v3630, 1.442695
        %v3644 = vpow.pop %v3643
        %v3645 = vmul.f32 %v3631, 1.442695
        %v3646 = vpow.pop %v3645
        %v3647 = vmul.f32 %v3632, 1.442695
        %v3648 = vpow.pop %v3647
        %v3649 = vmul.f32 %v3633, 1.442695
        %v3650 = vpow.pop %v3649
        %v3651 = vmul.f32 %v3634, 1.442695
        %v3652 = vpow.pop %v3651
        %v3653 = vmul.f32 %v3635, 1.442695
        %v3654 = vpow.pop %v3653
        %v3655 = vmul.f32 %v3636, 1.442695
        %v3656 = vpow.pop %v3655
        %v3657 = vmul.f32 %v3637, 1.442695
        %v3658 = vpow.pop %v3657
        %v3659 = vmul.f32 %v3638, 1.442695
        %v3660 = vpow.pop %v3659
        %v3661 = vmul.f32 %v3639, 1.442695
        %v3662 = vpow.pop %v3661
        %v3663 = vmul.f32 %v3640, 1.442695
        %v3664 = vpow.pop %v3663
        %v3665 = vsel %vm1354, %v3642, 0.0
        %3666 = vadd.xlane.f32.xlu0 %v3665
        %v3667 = vpop.xlane.xlu0 %3666
        %v3668 = vsel %vm1354, %v3644, 0.0
        %3669 = vadd.xlane.f32.xlu0 %v3668
        %v3670 = vpop.xlane.xlu0 %3669
        %v3671 = vsel %vm1361, %v3646, 0.0
        %3672 = vadd.xlane.f32.xlu0 %v3671
        %v3673 = vpop.xlane.xlu0 %3672
        %v3674 = vsel %vm1354, %v3648, 0.0
        %3675 = vadd.xlane.f32.xlu0 %v3674
        %v3676 = vpop.xlane.xlu0 %3675
        %v3677 = vsel %vm1354, %v3650, 0.0
        %3678 = vadd.xlane.f32.xlu0 %v3677
        %v3679 = vpop.xlane.xlu0 %3678
        %v3680 = vsel %vm1361, %v3652, 0.0
        %3681 = vadd.xlane.f32.xlu0 %v3680
        %v3682 = vpop.xlane.xlu0 %3681
        %v3683 = vsel %vm1354, %v3654, 0.0
        %3684 = vadd.xlane.f32.xlu0 %v3683
        %v3685 = vpop.xlane.xlu0 %3684
        %v3686 = vsel %vm1354, %v3656, 0.0
        %3687 = vadd.xlane.f32.xlu0 %v3686
        %v3688 = vpop.xlane.xlu0 %3687
        %v3689 = vsel %vm1361, %v3658, 0.0
        %3690 = vadd.xlane.f32.xlu0 %v3689
        %v3691 = vpop.xlane.xlu0 %3690
        %v3692 = vsel %vm1354, %v3660, 0.0
        %3693 = vadd.xlane.f32.xlu0 %v3692
        %v3694 = vpop.xlane.xlu0 %3693
        %v3695 = vsel %vm1354, %v3662, 0.0
        %3696 = vadd.xlane.f32.xlu0 %v3695
        %v3697 = vpop.xlane.xlu0 %3696
        %v3698 = vsel %vm1361, %v3664, 0.0
        %3699 = vadd.xlane.f32.xlu0 %v3698
        %v3700 = vpop.xlane.xlu0 %3699
        %v3701 = vrcp.pop %v3667
        %v3702 = vmul.f32 %v3667, %v3701
        %v3703 = vsub.f32 1.0, %v3702
        %v3704 = vmul.f32 %v3701, %v3703
        %v3705 = vadd.f32 %v3701, %v3704
        %vm3706 = vweird.f32 %v3667
        %vm3707 = vweird.f32 %v3701
        %vm3708 = vmor %vm3706, %vm3707
        %v3709 = vsel %vm3708, %v3701, %v3705
        %v3710 = vand.u32 2147483647, %v3667
        %vm3711 = vcmp.eq.f32.partialorder %v3710, 8.507059e+37
        %v3712 = vand.u32 %v3667, 2147483648
        %v3713 = vor.u32 1.1754944e-38, %v3712
        %v3714 = vsel %vm3711, %v3713, %v3709
        %v3715 = vmul.f32 %v3642, %v3714
        %v3716 = vrcp.pop %v3670
        %v3717 = vmul.f32 %v3670, %v3716
        %v3718 = vsub.f32 1.0, %v3717
        %v3719 = vmul.f32 %v3716, %v3718
        %v3720 = vadd.f32 %v3716, %v3719
        %vm3721 = vweird.f32 %v3670
        %vm3722 = vweird.f32 %v3716
        %vm3723 = vmor %vm3721, %vm3722
        %v3724 = vsel %vm3723, %v3716, %v3720
        %v3725 = vand.u32 2147483647, %v3670
        %vm3726 = vcmp.eq.f32.partialorder %v3725, 8.507059e+37
        %v3727 = vand.u32 %v3670, 2147483648
        %v3728 = vor.u32 1.1754944e-38, %v3727
        %v3729 = vsel %vm3726, %v3728, %v3724
        %v3730 = vmul.f32 %v3644, %v3729
        %v3731 = vrcp.pop %v3673
        %v3732 = vmul.f32 %v3673, %v3731
        %v3733 = vsub.f32 1.0, %v3732
        %v3734 = vmul.f32 %v3731, %v3733
        %v3735 = vadd.f32 %v3731, %v3734
        %vm3736 = vweird.f32 %v3673
        %vm3737 = vweird.f32 %v3731
        %vm3738 = vmor %vm3736, %vm3737
        %v3739 = vsel %vm3738, %v3731, %v3735
        %v3740 = vand.u32 2147483647, %v3673
        %vm3741 = vcmp.eq.f32.partialorder %v3740, 8.507059e+37
        %v3742 = vand.u32 %v3673, 2147483648
        %v3743 = vor.u32 1.1754944e-38, %v3742
        %v3744 = vsel %vm3741, %v3743, %v3739
        %v3745 = vmul.f32 %v3646, %v3744
        %v3746 = vrcp.pop %v3676
        %v3747 = vmul.f32 %v3676, %v3746
        %v3748 = vsub.f32 1.0, %v3747
        %v3749 = vmul.f32 %v3746, %v3748
        %v3750 = vadd.f32 %v3746, %v3749
        %vm3751 = vweird.f32 %v3676
        %vm3752 = vweird.f32 %v3746
        %vm3753 = vmor %vm3751, %vm3752
        %v3754 = vsel %vm3753, %v3746, %v3750
        %v3755 = vand.u32 2147483647, %v3676
        %vm3756 = vcmp.eq.f32.partialorder %v3755, 8.507059e+37
        %v3757 = vand.u32 %v3676, 2147483648
        %v3758 = vor.u32 1.1754944e-38, %v3757
        %v3759 = vsel %vm3756, %v3758, %v3754
        %v3760 = vmul.f32 %v3648, %v3759
        %v3761 = vrcp.pop %v3679
        %v3762 = vmul.f32 %v3679, %v3761
        %v3763 = vsub.f32 1.0, %v3762
        %v3764 = vmul.f32 %v3761, %v3763
        %v3765 = vadd.f32 %v3761, %v3764
        %vm3766 = vweird.f32 %v3679
        %vm3767 = vweird.f32 %v3761
        %vm3768 = vmor %vm3766, %vm3767
        %v3769 = vsel %vm3768, %v3761, %v3765
        %v3770 = vand.u32 2147483647, %v3679
        %vm3771 = vcmp.eq.f32.partialorder %v3770, 8.507059e+37
        %v3772 = vand.u32 %v3679, 2147483648
        %v3773 = vor.u32 1.1754944e-38, %v3772
        %v3774 = vsel %vm3771, %v3773, %v3769
        %v3775 = vmul.f32 %v3650, %v3774
        %v3776 = vrcp.pop %v3682
        %v3777 = vmul.f32 %v3682, %v3776
        %v3778 = vsub.f32 1.0, %v3777
        %v3779 = vmul.f32 %v3776, %v3778
        %v3780 = vadd.f32 %v3776, %v3779
        %vm3781 = vweird.f32 %v3682
        %vm3782 = vweird.f32 %v3776
        %vm3783 = vmor %vm3781, %vm3782
        %v3784 = vsel %vm3783, %v3776, %v3780
        %v3785 = vand.u32 2147483647, %v3682
        %vm3786 = vcmp.eq.f32.partialorder %v3785, 8.507059e+37
        %v3787 = vand.u32 %v3682, 2147483648
        %v3788 = vor.u32 1.1754944e-38, %v3787
        %v3789 = vsel %vm3786, %v3788, %v3784
        %v3790 = vmul.f32 %v3652, %v3789
        %v3791 = vrcp.pop %v3685
        %v3792 = vmul.f32 %v3685, %v3791
        %v3793 = vsub.f32 1.0, %v3792
        %v3794 = vmul.f32 %v3791, %v3793
        %v3795 = vadd.f32 %v3791, %v3794
        %vm3796 = vweird.f32 %v3685
        %vm3797 = vweird.f32 %v3791
        %vm3798 = vmor %vm3796, %vm3797
        %v3799 = vsel %vm3798, %v3791, %v3795
        %v3800 = vand.u32 2147483647, %v3685
        %vm3801 = vcmp.eq.f32.partialorder %v3800, 8.507059e+37
        %v3802 = vand.u32 %v3685, 2147483648
        %v3803 = vor.u32 1.1754944e-38, %v3802
        %v3804 = vsel %vm3801, %v3803, %v3799
        %v3805 = vmul.f32 %v3654, %v3804
        %v3806 = vrcp.pop %v3688
        %v3807 = vmul.f32 %v3688, %v3806
        %v3808 = vsub.f32 1.0, %v3807
        %v3809 = vmul.f32 %v3806, %v3808
        %v3810 = vadd.f32 %v3806, %v3809
        %vm3811 = vweird.f32 %v3688
        %vm3812 = vweird.f32 %v3806
        %vm3813 = vmor %vm3811, %vm3812
        %v3814 = vsel %vm3813, %v3806, %v3810
        %v3815 = vand.u32 2147483647, %v3688
        %vm3816 = vcmp.eq.f32.partialorder %v3815, 8.507059e+37
        %v3817 = vand.u32 %v3688, 2147483648
        %v3818 = vor.u32 1.1754944e-38, %v3817
        %v3819 = vsel %vm3816, %v3818, %v3814
        %v3820 = vmul.f32 %v3656, %v3819
        %v3821 = vrcp.pop %v3691
        %v3822 = vmul.f32 %v3691, %v3821
        %v3823 = vsub.f32 1.0, %v3822
        %v3824 = vmul.f32 %v3821, %v3823
        %v3825 = vadd.f32 %v3821, %v3824
        %vm3826 = vweird.f32 %v3691
        %vm3827 = vweird.f32 %v3821
        %vm3828 = vmor %vm3826, %vm3827
        %v3829 = vsel %vm3828, %v3821, %v3825
        %v3830 = vand.u32 2147483647, %v3691
        %vm3831 = vcmp.eq.f32.partialorder %v3830, 8.507059e+37
        %v3832 = vand.u32 %v3691, 2147483648
        %v3833 = vor.u32 1.1754944e-38, %v3832
        %v3834 = vsel %vm3831, %v3833, %v3829
        %v3835 = vmul.f32 %v3658, %v3834
        %v3836 = vrcp.pop %v3694
        %v3837 = vmul.f32 %v3694, %v3836
        %v3838 = vsub.f32 1.0, %v3837
        %v3839 = vmul.f32 %v3836, %v3838
        %v3840 = vadd.f32 %v3836, %v3839
        %vm3841 = vweird.f32 %v3694
        %vm3842 = vweird.f32 %v3836
        %vm3843 = vmor %vm3841, %vm3842
        %v3844 = vsel %vm3843, %v3836, %v3840
        %v3845 = vand.u32 2147483647, %v3694
        %vm3846 = vcmp.eq.f32.partialorder %v3845, 8.507059e+37
        %v3847 = vand.u32 %v3694, 2147483648
        %v3848 = vor.u32 1.1754944e-38, %v3847
        %v3849 = vsel %vm3846, %v3848, %v3844
        %v3850 = vmul.f32 %v3660, %v3849
        %v3851 = vrcp.pop %v3697
        %v3852 = vmul.f32 %v3697, %v3851
        %v3853 = vsub.f32 1.0, %v3852
        %v3854 = vmul.f32 %v3851, %v3853
        %v3855 = vadd.f32 %v3851, %v3854
        %vm3856 = vweird.f32 %v3697
        %vm3857 = vweird.f32 %v3851
        %vm3858 = vmor %vm3856, %vm3857
        %v3859 = vsel %vm3858, %v3851, %v3855
        %v3860 = vand.u32 2147483647, %v3697
        %vm3861 = vcmp.eq.f32.partialorder %v3860, 8.507059e+37
        %v3862 = vand.u32 %v3697, 2147483648
        %v3863 = vor.u32 1.1754944e-38, %v3862
        %v3864 = vsel %vm3861, %v3863, %v3859
        %v3865 = vmul.f32 %v3662, %v3864
        %v3866 = vrcp.pop %v3700
        %v3867 = vmul.f32 %v3700, %v3866
        %v3868 = vsub.f32 1.0, %v3867
        %v3869 = vmul.f32 %v3866, %v3868
        %v3870 = vadd.f32 %v3866, %v3869
        %vm3871 = vweird.f32 %v3700
        %vm3872 = vweird.f32 %v3866
        %vm3873 = vmor %vm3871, %vm3872
        %v3874 = vsel %vm3873, %v3866, %v3870
        %v3875 = vand.u32 2147483647, %v3700
        %vm3876 = vcmp.eq.f32.partialorder %v3875, 8.507059e+37
        %v3877 = vand.u32 %v3700, 2147483648
        %v3878 = vor.u32 1.1754944e-38, %v3877
        %v3879 = vsel %vm3876, %v3878, %v3874
        %v3880 = vmul.f32 %v3664, %v3879
        %v3881 = vpack.c.bf16 %v3715, %v3715
        %v3882 = vpack.c.bf16 %v3730, %v3730
        %v3883 = vpack.c.bf16 %v3745, %v3745
        %v3884 = vpack.c.bf16 %v3760, %v3760
        %v3885 = vpack.c.bf16 %v3775, %v3775
        %v3886 = vpack.c.bf16 %v3790, %v3790
        %v3887 = vpack.c.bf16 %v3805, %v3805
        %v3888 = vpack.c.bf16 %v3820, %v3820
        %v3889 = vpack.c.bf16 %v3835, %v3835
        %v3890 = vpack.c.bf16 %v3850, %v3850
        %v3891 = vpack.c.bf16 %v3865, %v3865
        %v3892 = vpack.c.bf16 %v3880, %v3880
        %v3896 = vunpack.c.l.b16 %v3881
        %v3897 = vunpack.c.l.b16 %v3882
        %v3898 = vunpack.c.l.b16 %v3883
        %v3899 = vpack.c.b16 %v3897, %v3896
        %v3900 = vpack.c.b16 %v3898, %v3898
        %3901 = vrot.lane.b32.xlu0 %v3387, 64
        %v3902 = vpop.permute.xlu0 %3901
        %3903 = vrot.lane.b32.xlu0 %v3382, 64
        %v3904 = vpop.permute.xlu0 %3903
        %v3907 = vsel %vm1354, %v3899, 0
        %v3910 = vsel %vm1354, %v3900, 0
        %v3913 = vand.u32 %v3904, %v1677
        %3915 = vmatpush.bf16.msra.mxu0 0
        %3916 = vmatpush.bf16.msra.mxu0 0
        %3917 = vmatpush.bf16.msra.mxu0 0
        %3918 = vmatpush.bf16.msra.mxu0 0
        %3919 = vmatpush.bf16.msra.mxu0 0
        %3920 = vmatpush.bf16.msra.mxu0 0
        %3921 = vmatpush.bf16.msra.mxu0 %v3913
        %3922 = vmatpush.bf16.msra.mxu0 %v3902
        %3923 = vmatmul.bf16.gmra.mxu0 %v3907
        %v3924 = vpop.f32.mrf.mxu0
        %v3925 = vadd.f32 0.0, %v3924
        %v3926 = vpop.f32.mrf.mxu0
        %v3927 = vadd.f32 0.0, %v3926
        %3928 = vmatmul.bf16.gmra.mxu0 %v3910
        %v3929 = vpop.f32.mrf.mxu0
        %v3930 = vadd.f32 0.0, %v3929
        %v3931 = vpop.f32.mrf.mxu0
        %3932 = vdwg.mxu0
        %v3936 = vunpack.c.l.b16 %v3884
        %v3937 = vunpack.c.l.b16 %v3885
        %v3938 = vunpack.c.l.b16 %v3886
        %v3939 = vpack.c.b16 %v3937, %v3936
        %v3940 = vpack.c.b16 %v3938, %v3938
        %3941 = vrot.lane.b32.xlu0 %v3444, 64
        %v3942 = vpop.permute.xlu0 %3941
        %3943 = vrot.lane.b32.xlu0 %v3439, 64
        %v3944 = vpop.permute.xlu0 %3943
        %v3947 = vsel %vm1354, %v3939, 0
        %v3950 = vsel %vm1354, %v3940, 0
        %v3953 = vand.u32 %v3944, %v1677
        %3955 = vmatpush.bf16.msra.mxu0 0
        %3956 = vmatpush.bf16.msra.mxu0 0
        %3957 = vmatpush.bf16.msra.mxu0 0
        %3958 = vmatpush.bf16.msra.mxu0 0
        %3959 = vmatpush.bf16.msra.mxu0 0
        %3960 = vmatpush.bf16.msra.mxu0 0
        %3961 = vmatpush.bf16.msra.mxu0 %v3953
        %3962 = vmatpush.bf16.msra.mxu0 %v3942
        %3963 = vmatmul.bf16.gmra.mxu0 %v3947
        %v3964 = vpop.f32.mrf.mxu0
        %v3965 = vadd.f32 0.0, %v3964
        %v3966 = vpop.f32.mrf.mxu0
        %v3967 = vadd.f32 0.0, %v3966
        %3968 = vmatmul.bf16.gmra.mxu0 %v3950
        %v3969 = vpop.f32.mrf.mxu0
        %v3970 = vadd.f32 0.0, %v3969
        %v3971 = vpop.f32.mrf.mxu0
        %3972 = vdwg.mxu0
        %v3976 = vunpack.c.l.b16 %v3887
        %v3977 = vunpack.c.l.b16 %v3888
        %v3978 = vunpack.c.l.b16 %v3889
        %v3979 = vpack.c.b16 %v3977, %v3976
        %v3980 = vpack.c.b16 %v3978, %v3978
        %3981 = vrot.lane.b32.xlu0 %v3501, 64
        %v3982 = vpop.permute.xlu0 %3981
        %3983 = vrot.lane.b32.xlu0 %v3496, 64
        %v3984 = vpop.permute.xlu0 %3983
        %v3987 = vsel %vm1354, %v3979, 0
        %v3990 = vsel %vm1354, %v3980, 0
        %v3993 = vand.u32 %v3984, %v1677
        %3995 = vmatpush.bf16.msra.mxu0 0
        %3996 = vmatpush.bf16.msra.mxu0 0
        %3997 = vmatpush.bf16.msra.mxu0 0
        %3998 = vmatpush.bf16.msra.mxu0 0
        %3999 = vmatpush.bf16.msra.mxu0 0
        %4000 = vmatpush.bf16.msra.mxu0 0
        %4001 = vmatpush.bf16.msra.mxu0 %v3993
        %4002 = vmatpush.bf16.msra.mxu0 %v3982
        %4003 = vmatmul.bf16.gmra.mxu0 %v3987
        %v4004 = vpop.f32.mrf.mxu0
        %v4005 = vadd.f32 0.0, %v4004
        %v4006 = vpop.f32.mrf.mxu0
        %v4007 = vadd.f32 0.0, %v4006
        %4008 = vmatmul.bf16.gmra.mxu0 %v3990
        %v4009 = vpop.f32.mrf.mxu0
        %v4010 = vadd.f32 0.0, %v4009
        %v4011 = vpop.f32.mrf.mxu0
        %4012 = vdwg.mxu0
        %v4016 = vunpack.c.l.b16 %v3890
        %v4017 = vunpack.c.l.b16 %v3891
        %v4018 = vunpack.c.l.b16 %v3892
        %v4019 = vpack.c.b16 %v4017, %v4016
        %v4020 = vpack.c.b16 %v4018, %v4018
        %4021 = vrot.lane.b32.xlu0 %v3558, 64
        %v4022 = vpop.permute.xlu0 %4021
        %4023 = vrot.lane.b32.xlu0 %v3553, 64
        %v4024 = vpop.permute.xlu0 %4023
        %v4027 = vsel %vm1354, %v4019, 0
        %v4030 = vsel %vm1354, %v4020, 0
        %v4033 = vand.u32 %v4024, %v1677
        %4035 = vmatpush.bf16.msra.mxu0 0
        %4036 = vmatpush.bf16.msra.mxu0 0
        %4037 = vmatpush.bf16.msra.mxu0 0
        %4038 = vmatpush.bf16.msra.mxu0 0
        %4039 = vmatpush.bf16.msra.mxu0 0
        %4040 = vmatpush.bf16.msra.mxu0 0
        %4041 = vmatpush.bf16.msra.mxu0 %v4033
        %4042 = vmatpush.bf16.msra.mxu0 %v4022
        %4043 = vmatmul.bf16.gmra.mxu0 %v4027
        %v4044 = vpop.f32.mrf.mxu0
        %v4045 = vadd.f32 0.0, %v4044
        %v4046 = vpop.f32.mrf.mxu0
        %v4047 = vadd.f32 0.0, %v4046
        %4048 = vmatmul.bf16.gmra.mxu0 %v4030
        %v4049 = vpop.f32.mrf.mxu0
        %v4050 = vadd.f32 0.0, %v4049
        %v4051 = vpop.f32.mrf.mxu0
        %4052 = vdwg.mxu0
        %4053 = vst.msk [vmem:[#allocation2 + $0x33] sm:$0xff] %vm1197, %v3925
        %4054 = vst.msk [vmem:[#allocation2 + $0x3b] sm:$0xff] %vm1197, %v3927
        %4055 = vst.msk [vmem:[#allocation2 + $0x43] sm:$0x1] %vm1821, %v3930
        %4059 = vrot.lane.b32.xlu0 %v3965, 8
        %v4060 = vpop.permute.xlu0 %4059
        %4061 = vrot.lane.b32.xlu0 %v3967, 8
        %v4062 = vpop.permute.xlu0 %4061
        %4063 = vrot.lane.b32.xlu0 %v3970, 8
        %v4064 = vpop.permute.xlu0 %4063
        %4068 = vst.msk [vmem:[#allocation2 + $0x33] sm:$0xff] %vm1835, %v4060
        %4069 = vst.msk [vmem:[#allocation2 + $0x3b] sm:$0xff] %vm1835, %v4062
        %4070 = vst.msk [vmem:[#allocation2 + $0x43] sm:$0x1] %vm1838, %v4064
        %4074 = vrot.lane.b32.xlu0 %v4005, 16
        %v4075 = vpop.permute.xlu0 %4074
        %4076 = vrot.lane.b32.xlu0 %v4007, 16
        %v4077 = vpop.permute.xlu0 %4076
        %4078 = vrot.lane.b32.xlu0 %v4010, 16
        %v4079 = vpop.permute.xlu0 %4078
        %4083 = vst.msk [vmem:[#allocation2 + $0x33] sm:$0xff] %vm1852, %v4075
        %4084 = vst.msk [vmem:[#allocation2 + $0x3b] sm:$0xff] %vm1852, %v4077
        %4085 = vst.msk [vmem:[#allocation2 + $0x43] sm:$0x1] %vm1855, %v4079
        %4089 = vrot.lane.b32.xlu0 %v4045, 24
        %v4090 = vpop.permute.xlu0 %4089
        %4091 = vrot.lane.b32.xlu0 %v4047, 24
        %v4092 = vpop.permute.xlu0 %4091
        %4093 = vrot.lane.b32.xlu0 %v4050, 24
        %v4094 = vpop.permute.xlu0 %4093
        %4098 = vst.msk [vmem:[#allocation2 + $0x33] sm:$0xff] %vm1869, %v4090
        %4099 = vst.msk [vmem:[#allocation2 + $0x3b] sm:$0xff] %vm1869, %v4092
        %4100 = vst.msk [vmem:[#allocation2 + $0x43] sm:$0x1] %vm1872, %v4094
        %v4101 = vld [vmem:[#allocation2] sm:$0xff]
        %v4102 = vld [vmem:[#allocation2 + $0x8] sm:$0xff]
        %v4103 = vld [vmem:[#allocation2 + $0x10] sm:$0xff]
        %v4104 = vld [vmem:[#allocation2 + $0x18] sm:$0xff]
        %v4105 = vld [vmem:[#allocation2 + $0x20] sm:$0xff]
        %v4106 = vld [vmem:[#allocation2 + $0x28] sm:$0xff]
        %v4107 = vld [vmem:[#allocation2 + $0x30] sm:$0xff]
        %v4108 = vld [vmem:[#allocation2 + $0x38] sm:$0xff]
        %v4109 = vld [vmem:[#allocation2 + $0x40] sm:$0xf]
        %v4110 = vpack.c.bf16 %v4102, %v4101
        %v4111 = vpack.c.bf16 %v4104, %v4103
        %v4112 = vpack.c.bf16 %v4106, %v4105
        %v4113 = vpack.c.bf16 %v4108, %v4107
        %v4114 = vpack.c.bf16 %v4109, %v4109
        %v4115 = vld [vmem:[%s9] sm:$0xf]
        %v4116 = vld [vmem:[%s9 + $0x4] sm:$0xf]
        %v4117 = vld [vmem:[%s9 + $0x8] sm:$0xf]
        %v4118 = vld [vmem:[%s9 + $0xc] sm:$0xf]
        %v4119 = vld [vmem:[%s10] sm:$0x1]
        %v4121 = vperm.slane %v4119, 0
        %v4127 = vunpack.c.l.b16 %v4115
        %v4128 = vunpack.c.l.b16 %v4116
        %v4129 = vunpack.c.l.b16 %v4117
        %v4130 = vunpack.c.l.b16 %v4118
        %v4131 = vpack.c.b16 %v4128, %v4127
        %v4132 = vpack.c.b16 %v4130, %v4129
        %v4136 = vsel %vm839, %v4110, 0
        %v4139 = vsel %vm839, %v4111, 0
        %v4142 = vsel %vm839, %v4112, 0
        %v4145 = vsel %vm839, %v4113, 0
        %v4148 = vsel %vm839, %v4114, 0
        %4150 = vmatpush.bf16.msra.mxu0 0
        %4151 = vmatpush.bf16.msra.mxu0 0
        %4152 = vmatpush.bf16.msra.mxu0 0
        %4153 = vmatpush.bf16.msra.mxu0 0
        %4154 = vmatpush.bf16.msra.mxu0 0
        %4155 = vmatpush.bf16.msra.mxu0 0
        %4156 = vmatpush.bf16.msra.mxu0 %v4132
        %4157 = vmatpush.bf16.msra.mxu0 %v4131
        %4158 = vmatmul.bf16.gmra.mxu0 %v4136
        %v4159 = vpop.f32.mrf.mxu0
        %v4160 = vadd.f32 %v4121, %v4159
        %v4161 = vpop.f32.mrf.mxu0
        %v4162 = vadd.f32 %v4121, %v4161
        %4163 = vmatmul.bf16.gmra.mxu0 %v4139
        %v4164 = vpop.f32.mrf.mxu0
        %v4165 = vadd.f32 %v4121, %v4164
        %v4166 = vpop.f32.mrf.mxu0
        %v4167 = vadd.f32 %v4121, %v4166
        %4168 = vmatmul.bf16.gmra.mxu0 %v4142
        %v4169 = vpop.f32.mrf.mxu0
        %v4170 = vadd.f32 %v4121, %v4169
        %v4171 = vpop.f32.mrf.mxu0
        %v4172 = vadd.f32 %v4121, %v4171
        %4173 = vmatmul.bf16.gmra.mxu0 %v4145
        %v4174 = vpop.f32.mrf.mxu0
        %v4175 = vadd.f32 %v4121, %v4174
        %v4176 = vpop.f32.mrf.mxu0
        %v4177 = vadd.f32 %v4121, %v4176
        %4178 = vmatmul.bf16.gmra.mxu0 %v4148
        %v4179 = vpop.f32.mrf.mxu0
        %v4180 = vadd.f32 %v4121, %v4179
        %v4181 = vpop.f32.mrf.mxu0
        %4182 = vdwg.mxu0
        %v4183 = vadd.f32 %v828, %v4160
        %v4184 = vadd.f32 %v829, %v4162
        %v4185 = vadd.f32 %v830, %v4165
        %v4186 = vadd.f32 %v831, %v4167
        %v4187 = vadd.f32 %v832, %v4170
        %v4188 = vadd.f32 %v833, %v4172
        %v4189 = vadd.f32 %v834, %v4175
        %v4190 = vadd.f32 %v835, %v4177
        %v4191 = vadd.f32 %v836, %v4180
        %v4192 = vld [vmem:[%s11] sm:$0x1]
        %v4193 = vld [vmem:[%s12] sm:$0x1]
        %v4194 = vsel %vm839, %v4183, 0.0
        %4195 = vadd.xlane.f32.xlu0 %v4194
        %v4196 = vpop.xlane.xlu0 %4195
        %v4197 = vsel %vm839, %v4184, 0.0
        %4198 = vadd.xlane.f32.xlu0 %v4197
        %v4199 = vpop.xlane.xlu0 %4198
        %v4200 = vsel %vm839, %v4185, 0.0
        %4201 = vadd.xlane.f32.xlu0 %v4200
        %v4202 = vpop.xlane.xlu0 %4201
        %v4203 = vsel %vm839, %v4186, 0.0
        %4204 = vadd.xlane.f32.xlu0 %v4203
        %v4205 = vpop.xlane.xlu0 %4204
        %v4206 = vsel %vm839, %v4187, 0.0
        %4207 = vadd.xlane.f32.xlu0 %v4206
        %v4208 = vpop.xlane.xlu0 %4207
        %v4209 = vsel %vm839, %v4188, 0.0
        %4210 = vadd.xlane.f32.xlu0 %v4209
        %v4211 = vpop.xlane.xlu0 %4210
        %v4212 = vsel %vm839, %v4189, 0.0
        %4213 = vadd.xlane.f32.xlu0 %v4212
        %v4214 = vpop.xlane.xlu0 %4213
        %v4215 = vsel %vm839, %v4190, 0.0
        %4216 = vadd.xlane.f32.xlu0 %v4215
        %v4217 = vpop.xlane.xlu0 %4216
        %v4218 = vsel %vm864, %v4191, 0.0
        %4219 = vadd.xlane.f32.xlu0 %v4218
        %v4220 = vpop.xlane.xlu0 %4219
        %v4221 = vmul.f32 %v4196, %v874
        %v4222 = vmul.f32 %v4199, %v874
        %v4223 = vmul.f32 %v4202, %v874
        %v4224 = vmul.f32 %v4205, %v874
        %v4225 = vmul.f32 %v4208, %v874
        %v4226 = vmul.f32 %v4211, %v874
        %v4227 = vmul.f32 %v4214, %v874
        %v4228 = vmul.f32 %v4217, %v874
        %v4229 = vmul.f32 %v4220, %v874
        %v4230 = vsub.f32 %v4183, %v4221
        %v4231 = vsub.f32 %v4184, %v4222
        %v4232 = vsub.f32 %v4185, %v4223
        %v4233 = vsub.f32 %v4186, %v4224
        %v4234 = vsub.f32 %v4187, %v4225
        %v4235 = vsub.f32 %v4188, %v4226
        %v4236 = vsub.f32 %v4189, %v4227
        %v4237 = vsub.f32 %v4190, %v4228
        %v4238 = vsub.f32 %v4191, %v4229
        %v4239 = vmul.f32 %v4230, %v4230
        %v4240 = vmul.f32 %v4231, %v4231
        %v4241 = vmul.f32 %v4232, %v4232
        %v4242 = vmul.f32 %v4233, %v4233
        %v4243 = vmul.f32 %v4234, %v4234
        %v4244 = vmul.f32 %v4235, %v4235
        %v4245 = vmul.f32 %v4236, %v4236
        %v4246 = vmul.f32 %v4237, %v4237
        %v4247 = vmul.f32 %v4238, %v4238
        %v4248 = vsel %vm839, %v4239, 0.0
        %4249 = vadd.xlane.f32.xlu0 %v4248
        %v4250 = vpop.xlane.xlu0 %4249
        %v4251 = vsel %vm839, %v4240, 0.0
        %4252 = vadd.xlane.f32.xlu0 %v4251
        %v4253 = vpop.xlane.xlu0 %4252
        %v4254 = vsel %vm839, %v4241, 0.0
        %4255 = vadd.xlane.f32.xlu0 %v4254
        %v4256 = vpop.xlane.xlu0 %4255
        %v4257 = vsel %vm839, %v4242, 0.0
        %4258 = vadd.xlane.f32.xlu0 %v4257
        %v4259 = vpop.xlane.xlu0 %4258
        %v4260 = vsel %vm839, %v4243, 0.0
        %4261 = vadd.xlane.f32.xlu0 %v4260
        %v4262 = vpop.xlane.xlu0 %4261
        %v4263 = vsel %vm839, %v4244, 0.0
        %4264 = vadd.xlane.f32.xlu0 %v4263
        %v4265 = vpop.xlane.xlu0 %4264
        %v4266 = vsel %vm839, %v4245, 0.0
        %4267 = vadd.xlane.f32.xlu0 %v4266
        %v4268 = vpop.xlane.xlu0 %4267
        %v4269 = vsel %vm839, %v4246, 0.0
        %4270 = vadd.xlane.f32.xlu0 %v4269
        %v4271 = vpop.xlane.xlu0 %4270
        %v4272 = vsel %vm864, %v4247, 0.0
        %4273 = vadd.xlane.f32.xlu0 %v4272
        %v4274 = vpop.xlane.xlu0 %4273
        %v4275 = vmul.f32 %v4250, %v874
        %v4276 = vmul.f32 %v4253, %v874
        %v4277 = vmul.f32 %v4256, %v874
        %v4278 = vmul.f32 %v4259, %v874
        %v4279 = vmul.f32 %v4262, %v874
        %v4280 = vmul.f32 %v4265, %v874
        %v4281 = vmul.f32 %v4268, %v874
        %v4282 = vmul.f32 %v4271, %v874
        %v4283 = vmul.f32 %v4274, %v874
        %v4284 = vadd.f32 %v4275, 1e-05
        %v4285 = vadd.f32 %v4276, 1e-05
        %v4286 = vadd.f32 %v4277, 1e-05
        %v4287 = vadd.f32 %v4278, 1e-05
        %v4288 = vadd.f32 %v4279, 1e-05
        %v4289 = vadd.f32 %v4280, 1e-05
        %v4290 = vadd.f32 %v4281, 1e-05
        %v4291 = vadd.f32 %v4282, 1e-05
        %v4292 = vadd.f32 %v4283, 1e-05
        %v4293 = vrsqrt.pop %v4284
        %v4294 = vmul.f32 %v4293, %v4284
        %v4295 = vmul.f32 %v4294, %v4293
        %v4296 = vmul.f32 0.5, %v4295
        %v4297 = vsub.f32 1.5, %v4296
        %v4298 = vmul.f32 %v4293, %v4297
        %vm4299 = vweird.f32 %v4284
        %vm4300 = vweird.f32 %v4293
        %vm4301 = vmor %vm4299, %vm4300
        %v4302 = vsel %vm4301, %v4293, %v4298
        %v4303 = vrsqrt.pop %v4285
        %v4304 = vmul.f32 %v4303, %v4285
        %v4305 = vmul.f32 %v4304, %v4303
        %v4306 = vmul.f32 0.5, %v4305
        %v4307 = vsub.f32 1.5, %v4306
        %v4308 = vmul.f32 %v4303, %v4307
        %vm4309 = vweird.f32 %v4285
        %vm4310 = vweird.f32 %v4303
        %vm4311 = vmor %vm4309, %vm4310
        %v4312 = vsel %vm4311, %v4303, %v4308
        %v4313 = vrsqrt.pop %v4286
        %v4314 = vmul.f32 %v4313, %v4286
        %v4315 = vmul.f32 %v4314, %v4313
        %v4316 = vmul.f32 0.5, %v4315
        %v4317 = vsub.f32 1.5, %v4316
        %v4318 = vmul.f32 %v4313, %v4317
        %vm4319 = vweird.f32 %v4286
        %vm4320 = vweird.f32 %v4313
        %vm4321 = vmor %vm4319, %vm4320
        %v4322 = vsel %vm4321, %v4313, %v4318
        %v4323 = vrsqrt.pop %v4287
        %v4324 = vmul.f32 %v4323, %v4287
        %v4325 = vmul.f32 %v4324, %v4323
        %v4326 = vmul.f32 0.5, %v4325
        %v4327 = vsub.f32 1.5, %v4326
        %v4328 = vmul.f32 %v4323, %v4327
        %vm4329 = vweird.f32 %v4287
        %vm4330 = vweird.f32 %v4323
        %vm4331 = vmor %vm4329, %vm4330
        %v4332 = vsel %vm4331, %v4323, %v4328
        %v4333 = vrsqrt.pop %v4288
        %v4334 = vmul.f32 %v4333, %v4288
        %v4335 = vmul.f32 %v4334, %v4333
        %v4336 = vmul.f32 0.5, %v4335
        %v4337 = vsub.f32 1.5, %v4336
        %v4338 = vmul.f32 %v4333, %v4337
        %vm4339 = vweird.f32 %v4288
        %vm4340 = vweird.f32 %v4333
        %vm4341 = vmor %vm4339, %vm4340
        %v4342 = vsel %vm4341, %v4333, %v4338
        %v4343 = vrsqrt.pop %v4289
        %v4344 = vmul.f32 %v4343, %v4289
        %v4345 = vmul.f32 %v4344, %v4343
        %v4346 = vmul.f32 0.5, %v4345
        %v4347 = vsub.f32 1.5, %v4346
        %v4348 = vmul.f32 %v4343, %v4347
        %vm4349 = vweird.f32 %v4289
        %vm4350 = vweird.f32 %v4343
        %vm4351 = vmor %vm4349, %vm4350
        %v4352 = vsel %vm4351, %v4343, %v4348
        %v4353 = vrsqrt.pop %v4290
        %v4354 = vmul.f32 %v4353, %v4290
        %v4355 = vmul.f32 %v4354, %v4353
        %v4356 = vmul.f32 0.5, %v4355
        %v4357 = vsub.f32 1.5, %v4356
        %v4358 = vmul.f32 %v4353, %v4357
        %vm4359 = vweird.f32 %v4290
        %vm4360 = vweird.f32 %v4353
        %vm4361 = vmor %vm4359, %vm4360
        %v4362 = vsel %vm4361, %v4353, %v4358
        %v4363 = vrsqrt.pop %v4291
        %v4364 = vmul.f32 %v4363, %v4291
        %v4365 = vmul.f32 %v4364, %v4363
        %v4366 = vmul.f32 0.5, %v4365
        %v4367 = vsub.f32 1.5, %v4366
        %v4368 = vmul.f32 %v4363, %v4367
        %vm4369 = vweird.f32 %v4291
        %vm4370 = vweird.f32 %v4363
        %vm4371 = vmor %vm4369, %vm4370
        %v4372 = vsel %vm4371, %v4363, %v4368
        %v4373 = vrsqrt.pop %v4292
        %v4374 = vmul.f32 %v4373, %v4292
        %v4375 = vmul.f32 %v4374, %v4373
        %v4376 = vmul.f32 0.5, %v4375
        %v4377 = vsub.f32 1.5, %v4376
        %v4378 = vmul.f32 %v4373, %v4377
        %vm4379 = vweird.f32 %v4292
        %vm4380 = vweird.f32 %v4373
        %vm4381 = vmor %vm4379, %vm4380
        %v4382 = vsel %vm4381, %v4373, %v4378
        %v4383 = vmul.f32 %v4230, %v4302
        %v4384 = vmul.f32 %v4231, %v4312
        %v4385 = vmul.f32 %v4232, %v4322
        %v4386 = vmul.f32 %v4233, %v4332
        %v4387 = vmul.f32 %v4234, %v4342
        %v4388 = vmul.f32 %v4235, %v4352
        %v4389 = vmul.f32 %v4236, %v4362
        %v4390 = vmul.f32 %v4237, %v4372
        %v4391 = vmul.f32 %v4238, %v4382
        %v4393 = vperm.slane %v4192, 0
        %v4395 = vmul.f32 %v4383, %v4393
        %v4396 = vmul.f32 %v4384, %v4393
        %v4397 = vmul.f32 %v4385, %v4393
        %v4398 = vmul.f32 %v4386, %v4393
        %v4399 = vmul.f32 %v4387, %v4393
        %v4400 = vmul.f32 %v4388, %v4393
        %v4401 = vmul.f32 %v4389, %v4393
        %v4402 = vmul.f32 %v4390, %v4393
        %v4403 = vmul.f32 %v4391, %v4393
        %v4405 = vperm.slane %v4193, 0
        %v4407 = vadd.f32 %v4395, %v4405
        %v4408 = vadd.f32 %v4396, %v4405
        %v4409 = vadd.f32 %v4397, %v4405
        %v4410 = vadd.f32 %v4398, %v4405
        %v4411 = vadd.f32 %v4399, %v4405
        %v4412 = vadd.f32 %v4400, %v4405
        %v4413 = vadd.f32 %v4401, %v4405
        %v4414 = vadd.f32 %v4402, %v4405
        %v4415 = vadd.f32 %v4403, %v4405
        %v4416 = vpack.c.bf16 %v4408, %v4407
        %v4417 = vpack.c.bf16 %v4410, %v4409
        %v4418 = vpack.c.bf16 %v4412, %v4411
        %v4419 = vpack.c.bf16 %v4414, %v4413
        %v4420 = vpack.c.bf16 %v4415, %v4415
        %v4421 = vld [vmem:[%s13] sm:$0xf]
        %v4422 = vld [vmem:[%s13 + $0x4] sm:$0xf]
        %v4423 = vld [vmem:[%s13 + $0x8] sm:$0xf]
        %v4424 = vld [vmem:[%s13 + $0xc] sm:$0xf]
        %v4425 = vld [vmem:[%s14] sm:$0x1]
        %v4427 = vperm.slane %v4425, 0
        %v4433 = vunpack.c.l.b16 %v4421
        %v4434 = vunpack.c.l.b16 %v4422
        %v4435 = vunpack.c.l.b16 %v4423
        %v4436 = vunpack.c.l.b16 %v4424
        %v4437 = vpack.c.b16 %v4434, %v4433
        %v4438 = vpack.c.b16 %v4436, %v4435
        %v4442 = vsel %vm839, %v4416, 0
        %v4445 = vsel %vm839, %v4417, 0
        %v4448 = vsel %vm839, %v4418, 0
        %v4451 = vsel %vm839, %v4419, 0
        %v4454 = vsel %vm839, %v4420, 0
        %4456 = vmatpush.bf16.msra.mxu0 0
        %4457 = vmatpush.bf16.msra.mxu0 0
        %4458 = vmatpush.bf16.msra.mxu0 0
        %4459 = vmatpush.bf16.msra.mxu0 0
        %4460 = vmatpush.bf16.msra.mxu0 0
        %4461 = vmatpush.bf16.msra.mxu0 0
        %4462 = vmatpush.bf16.msra.mxu0 %v4438
        %4463 = vmatpush.bf16.msra.mxu0 %v4437
        %4464 = vmatmul.bf16.gmra.mxu0 %v4442
        %v4465 = vpop.f32.mrf.mxu0
        %v4466 = vadd.f32 %v4427, %v4465
        %v4467 = vpop.f32.mrf.mxu0
        %v4468 = vadd.f32 %v4427, %v4467
        %4469 = vmatmul.bf16.gmra.mxu0 %v4445
        %v4470 = vpop.f32.mrf.mxu0
        %v4471 = vadd.f32 %v4427, %v4470
        %v4472 = vpop.f32.mrf.mxu0
        %v4473 = vadd.f32 %v4427, %v4472
        %4474 = vmatmul.bf16.gmra.mxu0 %v4448
        %v4475 = vpop.f32.mrf.mxu0
        %v4476 = vadd.f32 %v4427, %v4475
        %v4477 = vpop.f32.mrf.mxu0
        %v4478 = vadd.f32 %v4427, %v4477
        %4479 = vmatmul.bf16.gmra.mxu0 %v4451
        %v4480 = vpop.f32.mrf.mxu0
        %v4481 = vadd.f32 %v4427, %v4480
        %v4482 = vpop.f32.mrf.mxu0
        %v4483 = vadd.f32 %v4427, %v4482
        %4484 = vmatmul.bf16.gmra.mxu0 %v4454
        %v4485 = vpop.f32.mrf.mxu0
        %v4486 = vadd.f32 %v4427, %v4485
        %v4487 = vpop.f32.mrf.mxu0
        %4488 = vdwg.mxu0
        %v4489 = vmul.f32 %v4466, %v4466
        %v4490 = vmul.f32 %v4468, %v4468
        %v4491 = vmul.f32 %v4471, %v4471
        %v4492 = vmul.f32 %v4473, %v4473
        %v4493 = vmul.f32 %v4476, %v4476
        %v4494 = vmul.f32 %v4478, %v4478
        %v4495 = vmul.f32 %v4481, %v4481
        %v4496 = vmul.f32 %v4483, %v4483
        %v4497 = vmul.f32 %v4486, %v4486
        %v4498 = vmul.f32 %v4466, %v4489
        %v4499 = vmul.f32 %v4468, %v4490
        %v4500 = vmul.f32 %v4471, %v4491
        %v4501 = vmul.f32 %v4473, %v4492
        %v4502 = vmul.f32 %v4476, %v4493
        %v4503 = vmul.f32 %v4478, %v4494
        %v4504 = vmul.f32 %v4481, %v4495
        %v4505 = vmul.f32 %v4483, %v4496
        %v4506 = vmul.f32 %v4486, %v4497
        %v4507 = vmul.f32 %v4498, 0.044715
        %v4508 = vmul.f32 %v4499, 0.044715
        %v4509 = vmul.f32 %v4500, 0.044715
        %v4510 = vmul.f32 %v4501, 0.044715
        %v4511 = vmul.f32 %v4502, 0.044715
        %v4512 = vmul.f32 %v4503, 0.044715
        %v4513 = vmul.f32 %v4504, 0.044715
        %v4514 = vmul.f32 %v4505, 0.044715
        %v4515 = vmul.f32 %v4506, 0.044715
        %v4516 = vadd.f32 %v4466, %v4507
        %v4517 = vadd.f32 %v4468, %v4508
        %v4518 = vadd.f32 %v4471, %v4509
        %v4519 = vadd.f32 %v4473, %v4510
        %v4520 = vadd.f32 %v4476, %v4511
        %v4521 = vadd.f32 %v4478, %v4512
        %v4522 = vadd.f32 %v4481, %v4513
        %v4523 = vadd.f32 %v4483, %v4514
        %v4524 = vadd.f32 %v4486, %v4515
        %v4525 = vmul.f32 %v4516, 0.7978846
        %v4526 = vmul.f32 %v4517, 0.7978846
        %v4527 = vmul.f32 %v4518, 0.7978846
        %v4528 = vmul.f32 %v4519, 0.7978846
        %v4529 = vmul.f32 %v4520, 0.7978846
        %v4530 = vmul.f32 %v4521, 0.7978846
        %v4531 = vmul.f32 %v4522, 0.7978846
        %v4532 = vmul.f32 %v4523, 0.7978846
        %v4533 = vmul.f32 %v4524, 0.7978846
        %v4534 = vtanh.pop %v4525
        %v4535 = vtanh.pop %v4526
        %v4536 = vtanh.pop %v4527
        %v4537 = vtanh.pop %v4528
        %v4538 = vtanh.pop %v4529
        %v4539 = vtanh.pop %v4530
        %v4540 = vtanh.pop %v4531
        %v4541 = vtanh.pop %v4532
        %v4542 = vtanh.pop %v4533
        %v4543 = vadd.f32 %v4534, 1.0
        %v4544 = vadd.f32 %v4535, 1.0
        %v4545 = vadd.f32 %v4536, 1.0
        %v4546 = vadd.f32 %v4537, 1.0
        %v4547 = vadd.f32 %v4538, 1.0
        %v4548 = vadd.f32 %v4539, 1.0
        %v4549 = vadd.f32 %v4540, 1.0
        %v4550 = vadd.f32 %v4541, 1.0
        %v4551 = vadd.f32 %v4542, 1.0
        %v4552 = vmul.f32 %v4543, 0.5
        %v4553 = vmul.f32 %v4544, 0.5
        %v4554 = vmul.f32 %v4545, 0.5
        %v4555 = vmul.f32 %v4546, 0.5
        %v4556 = vmul.f32 %v4547, 0.5
        %v4557 = vmul.f32 %v4548, 0.5
        %v4558 = vmul.f32 %v4549, 0.5
        %v4559 = vmul.f32 %v4550, 0.5
        %v4560 = vmul.f32 %v4551, 0.5
        %v4561 = vmul.f32 %v4466, %v4552
        %v4562 = vmul.f32 %v4468, %v4553
        %v4563 = vmul.f32 %v4471, %v4554
        %v4564 = vmul.f32 %v4473, %v4555
        %v4565 = vmul.f32 %v4476, %v4556
        %v4566 = vmul.f32 %v4478, %v4557
        %v4567 = vmul.f32 %v4481, %v4558
        %v4568 = vmul.f32 %v4483, %v4559
        %v4569 = vmul.f32 %v4486, %v4560
        %v4570 = vpack.c.bf16 %v4562, %v4561
        %v4571 = vpack.c.bf16 %v4564, %v4563
        %v4572 = vpack.c.bf16 %v4566, %v4565
        %v4573 = vpack.c.bf16 %v4568, %v4567
        %v4574 = vpack.c.bf16 %v4569, %v4569
        %v4575 = vld [vmem:[%s15] sm:$0xf]
        %v4576 = vld [vmem:[%s15 + $0x4] sm:$0xf]
        %v4577 = vld [vmem:[%s15 + $0x8] sm:$0xf]
        %v4578 = vld [vmem:[%s15 + $0xc] sm:$0xf]
        %v4579 = vld [vmem:[%s15 + $0x10] sm:$0xf]
        %v4580 = vld [vmem:[%s15 + $0x14] sm:$0xf]
        %v4581 = vld [vmem:[%s15 + $0x18] sm:$0xf]
        %v4582 = vld [vmem:[%s15 + $0x1c] sm:$0xf]
        %v4583 = vld [vmem:[%s15 + $0x20] sm:$0xf]
        %v4584 = vld [vmem:[%s15 + $0x24] sm:$0xf]
        %v4585 = vld [vmem:[%s15 + $0x28] sm:$0xf]
        %v4586 = vld [vmem:[%s15 + $0x2c] sm:$0xf]
        %v4587 = vld [vmem:[%s15 + $0x30] sm:$0xf]
        %v4588 = vld [vmem:[%s15 + $0x34] sm:$0xf]
        %v4589 = vld [vmem:[%s15 + $0x38] sm:$0xf]
        %v4590 = vld [vmem:[%s15 + $0x3c] sm:$0xf]
        %v4591 = vld [vmem:[%s16] sm:$0x1]
        %v4593 = vperm.slane %v4591, 0
        %v4611 = vunpack.c.l.b16 %v4575
        %v4612 = vunpack.c.l.b16 %v4576
        %v4613 = vunpack.c.l.b16 %v4577
        %v4614 = vunpack.c.l.b16 %v4578
        %v4615 = vunpack.c.l.b16 %v4579
        %v4616 = vunpack.c.l.b16 %v4580
        %v4617 = vunpack.c.l.b16 %v4581
        %v4618 = vunpack.c.l.b16 %v4582
        %v4619 = vunpack.c.l.b16 %v4583
        %v4620 = vunpack.c.l.b16 %v4584
        %v4621 = vunpack.c.l.b16 %v4585
        %v4622 = vunpack.c.l.b16 %v4586
        %v4623 = vunpack.c.l.b16 %v4587
        %v4624 = vunpack.c.l.b16 %v4588
        %v4625 = vunpack.c.l.b16 %v4589
        %v4626 = vunpack.c.l.b16 %v4590
        %v4627 = vpack.c.b16 %v4612, %v4611
        %v4628 = vpack.c.b16 %v4614, %v4613
        %v4629 = vpack.c.b16 %v4616, %v4615
        %v4630 = vpack.c.b16 %v4618, %v4617
        %v4631 = vpack.c.b16 %v4620, %v4619
        %v4632 = vpack.c.b16 %v4622, %v4621
        %v4633 = vpack.c.b16 %v4624, %v4623
        %v4634 = vpack.c.b16 %v4626, %v4625
        %4643 = vmatpush.bf16.msra.mxu0 %v4634
        %4644 = vmatpush.bf16.msra.mxu0 %v4633
        %4645 = vmatpush.bf16.msra.mxu0 %v4632
        %4646 = vmatpush.bf16.msra.mxu0 %v4631
        %4647 = vmatpush.bf16.msra.mxu0 %v4630
        %4648 = vmatpush.bf16.msra.mxu0 %v4629
        %4649 = vmatpush.bf16.msra.mxu0 %v4628
        %4650 = vmatpush.bf16.msra.mxu0 %v4627
        %4651 = vmatmul.bf16.gmra.mxu0 %v4570
        %v4652 = vpop.f32.mrf.mxu0
        %v4653 = vadd.f32 %v4593, %v4652
        %v4654 = vpop.f32.mrf.mxu0
        %v4655 = vadd.f32 %v4593, %v4654
        %4656 = vmatmul.bf16.gmra.mxu0 %v4571
        %v4657 = vpop.f32.mrf.mxu0
        %v4658 = vadd.f32 %v4593, %v4657
        %v4659 = vpop.f32.mrf.mxu0
        %v4660 = vadd.f32 %v4593, %v4659
        %4661 = vmatmul.bf16.gmra.mxu0 %v4572
        %v4662 = vpop.f32.mrf.mxu0
        %v4663 = vadd.f32 %v4593, %v4662
        %v4664 = vpop.f32.mrf.mxu0
        %v4665 = vadd.f32 %v4593, %v4664
        %4666 = vmatmul.bf16.gmra.mxu0 %v4573
        %v4667 = vpop.f32.mrf.mxu0
        %v4668 = vadd.f32 %v4593, %v4667
        %v4669 = vpop.f32.mrf.mxu0
        %v4670 = vadd.f32 %v4593, %v4669
        %4671 = vmatmul.bf16.gmra.mxu0 %v4574
        %v4672 = vpop.f32.mrf.mxu0
        %v4673 = vadd.f32 %v4593, %v4672
        %v4674 = vpop.f32.mrf.mxu0
        %4675 = vdwg.mxu0
        %v4676 = vadd.f32 %v4183, %v4653
        %v4677 = vadd.f32 %v4184, %v4655
        %v4678 = vadd.f32 %v4185, %v4658
        %v4679 = vadd.f32 %v4186, %v4660
        %v4680 = vadd.f32 %v4187, %v4663
        %v4681 = vadd.f32 %v4188, %v4665
        %v4682 = vadd.f32 %v4189, %v4668
        %v4683 = vadd.f32 %v4190, %v4670
        %v4684 = vadd.f32 %v4191, %v4673
        %s4685 = scalar_lea.vmem %s5, 1
        %v4686 = vld [vmem:[%s4685] sm:$0x1]
        %s4687 = scalar_lea.vmem %s6, 1
        %v4688 = vld [vmem:[%s4687] sm:$0x1]
        %v4689 = vsel %vm839, %v4676, 0.0
        %4690 = vadd.xlane.f32.xlu0 %v4689
        %v4691 = vpop.xlane.xlu0 %4690
        %v4692 = vsel %vm839, %v4677, 0.0
        %4693 = vadd.xlane.f32.xlu0 %v4692
        %v4694 = vpop.xlane.xlu0 %4693
        %v4695 = vsel %vm839, %v4678, 0.0
        %4696 = vadd.xlane.f32.xlu0 %v4695
        %v4697 = vpop.xlane.xlu0 %4696
        %v4698 = vsel %vm839, %v4679, 0.0
        %4699 = vadd.xlane.f32.xlu0 %v4698
        %v4700 = vpop.xlane.xlu0 %4699
        %v4701 = vsel %vm839, %v4680, 0.0
        %4702 = vadd.xlane.f32.xlu0 %v4701
        %v4703 = vpop.xlane.xlu0 %4702
        %v4704 = vsel %vm839, %v4681, 0.0
        %4705 = vadd.xlane.f32.xlu0 %v4704
        %v4706 = vpop.xlane.xlu0 %4705
        %v4707 = vsel %vm839, %v4682, 0.0
        %4708 = vadd.xlane.f32.xlu0 %v4707
        %v4709 = vpop.xlane.xlu0 %4708
        %v4710 = vsel %vm839, %v4683, 0.0
        %4711 = vadd.xlane.f32.xlu0 %v4710
        %v4712 = vpop.xlane.xlu0 %4711
        %v4713 = vsel %vm864, %v4684, 0.0
        %4714 = vadd.xlane.f32.xlu0 %v4713
        %v4715 = vpop.xlane.xlu0 %4714
        %v4716 = vmul.f32 %v4691, %v874
        %v4717 = vmul.f32 %v4694, %v874
        %v4718 = vmul.f32 %v4697, %v874
        %v4719 = vmul.f32 %v4700, %v874
        %v4720 = vmul.f32 %v4703, %v874
        %v4721 = vmul.f32 %v4706, %v874
        %v4722 = vmul.f32 %v4709, %v874
        %v4723 = vmul.f32 %v4712, %v874
        %v4724 = vmul.f32 %v4715, %v874
        %v4725 = vsub.f32 %v4676, %v4716
        %v4726 = vsub.f32 %v4677, %v4717
        %v4727 = vsub.f32 %v4678, %v4718
        %v4728 = vsub.f32 %v4679, %v4719
        %v4729 = vsub.f32 %v4680, %v4720
        %v4730 = vsub.f32 %v4681, %v4721
        %v4731 = vsub.f32 %v4682, %v4722
        %v4732 = vsub.f32 %v4683, %v4723
        %v4733 = vsub.f32 %v4684, %v4724
        %v4734 = vmul.f32 %v4725, %v4725
        %v4735 = vmul.f32 %v4726, %v4726
        %v4736 = vmul.f32 %v4727, %v4727
        %v4737 = vmul.f32 %v4728, %v4728
        %v4738 = vmul.f32 %v4729, %v4729
        %v4739 = vmul.f32 %v4730, %v4730
        %v4740 = vmul.f32 %v4731, %v4731
        %v4741 = vmul.f32 %v4732, %v4732
        %v4742 = vmul.f32 %v4733, %v4733
        %v4743 = vsel %vm839, %v4734, 0.0
        %4744 = vadd.xlane.f32.xlu0 %v4743
        %v4745 = vpop.xlane.xlu0 %4744
        %v4746 = vsel %vm839, %v4735, 0.0
        %4747 = vadd.xlane.f32.xlu0 %v4746
        %v4748 = vpop.xlane.xlu0 %4747
        %v4749 = vsel %vm839, %v4736, 0.0
        %4750 = vadd.xlane.f32.xlu0 %v4749
        %v4751 = vpop.xlane.xlu0 %4750
        %v4752 = vsel %vm839, %v4737, 0.0
        %4753 = vadd.xlane.f32.xlu0 %v4752
        %v4754 = vpop.xlane.xlu0 %4753
        %v4755 = vsel %vm839, %v4738, 0.0
        %4756 = vadd.xlane.f32.xlu0 %v4755
        %v4757 = vpop.xlane.xlu0 %4756
        %v4758 = vsel %vm839, %v4739, 0.0
        %4759 = vadd.xlane.f32.xlu0 %v4758
        %v4760 = vpop.xlane.xlu0 %4759
        %v4761 = vsel %vm839, %v4740, 0.0
        %4762 = vadd.xlane.f32.xlu0 %v4761
        %v4763 = vpop.xlane.xlu0 %4762
        %v4764 = vsel %vm839, %v4741, 0.0
        %4765 = vadd.xlane.f32.xlu0 %v4764
        %v4766 = vpop.xlane.xlu0 %4765
        %v4767 = vsel %vm864, %v4742, 0.0
        %4768 = vadd.xlane.f32.xlu0 %v4767
        %v4769 = vpop.xlane.xlu0 %4768
        %v4770 = vmul.f32 %v4745, %v874
        %v4771 = vmul.f32 %v4748, %v874
        %v4772 = vmul.f32 %v4751, %v874
        %v4773 = vmul.f32 %v4754, %v874
        %v4774 = vmul.f32 %v4757, %v874
        %v4775 = vmul.f32 %v4760, %v874
        %v4776 = vmul.f32 %v4763, %v874
        %v4777 = vmul.f32 %v4766, %v874
        %v4778 = vmul.f32 %v4769, %v874
        %v4779 = vadd.f32 %v4770, 1e-05
        %v4780 = vadd.f32 %v4771, 1e-05
        %v4781 = vadd.f32 %v4772, 1e-05
        %v4782 = vadd.f32 %v4773, 1e-05
        %v4783 = vadd.f32 %v4774, 1e-05
        %v4784 = vadd.f32 %v4775, 1e-05
        %v4785 = vadd.f32 %v4776, 1e-05
        %v4786 = vadd.f32 %v4777, 1e-05
        %v4787 = vadd.f32 %v4778, 1e-05
        %v4788 = vrsqrt.pop %v4779
        %v4789 = vmul.f32 %v4788, %v4779
        %v4790 = vmul.f32 %v4789, %v4788
        %v4791 = vmul.f32 0.5, %v4790
        %v4792 = vsub.f32 1.5, %v4791
        %v4793 = vmul.f32 %v4788, %v4792
        %vm4794 = vweird.f32 %v4779
        %vm4795 = vweird.f32 %v4788
        %vm4796 = vmor %vm4794, %vm4795
        %v4797 = vsel %vm4796, %v4788, %v4793
        %v4798 = vrsqrt.pop %v4780
        %v4799 = vmul.f32 %v4798, %v4780
        %v4800 = vmul.f32 %v4799, %v4798
        %v4801 = vmul.f32 0.5, %v4800
        %v4802 = vsub.f32 1.5, %v4801
        %v4803 = vmul.f32 %v4798, %v4802
        %vm4804 = vweird.f32 %v4780
        %vm4805 = vweird.f32 %v4798
        %vm4806 = vmor %vm4804, %vm4805
        %v4807 = vsel %vm4806, %v4798, %v4803
        %v4808 = vrsqrt.pop %v4781
        %v4809 = vmul.f32 %v4808, %v4781
        %v4810 = vmul.f32 %v4809, %v4808
        %v4811 = vmul.f32 0.5, %v4810
        %v4812 = vsub.f32 1.5, %v4811
        %v4813 = vmul.f32 %v4808, %v4812
        %vm4814 = vweird.f32 %v4781
        %vm4815 = vweird.f32 %v4808
        %vm4816 = vmor %vm4814, %vm4815
        %v4817 = vsel %vm4816, %v4808, %v4813
        %v4818 = vrsqrt.pop %v4782
        %v4819 = vmul.f32 %v4818, %v4782
        %v4820 = vmul.f32 %v4819, %v4818
        %v4821 = vmul.f32 0.5, %v4820
        %v4822 = vsub.f32 1.5, %v4821
        %v4823 = vmul.f32 %v4818, %v4822
        %vm4824 = vweird.f32 %v4782
        %vm4825 = vweird.f32 %v4818
        %vm4826 = vmor %vm4824, %vm4825
        %v4827 = vsel %vm4826, %v4818, %v4823
        %v4828 = vrsqrt.pop %v4783
        %v4829 = vmul.f32 %v4828, %v4783
        %v4830 = vmul.f32 %v4829, %v4828
        %v4831 = vmul.f32 0.5, %v4830
        %v4832 = vsub.f32 1.5, %v4831
        %v4833 = vmul.f32 %v4828, %v4832
        %vm4834 = vweird.f32 %v4783
        %vm4835 = vweird.f32 %v4828
        %vm4836 = vmor %vm4834, %vm4835
        %v4837 = vsel %vm4836, %v4828, %v4833
        %v4838 = vrsqrt.pop %v4784
        %v4839 = vmul.f32 %v4838, %v4784
        %v4840 = vmul.f32 %v4839, %v4838
        %v4841 = vmul.f32 0.5, %v4840
        %v4842 = vsub.f32 1.5, %v4841
        %v4843 = vmul.f32 %v4838, %v4842
        %vm4844 = vweird.f32 %v4784
        %vm4845 = vweird.f32 %v4838
        %vm4846 = vmor %vm4844, %vm4845
        %v4847 = vsel %vm4846, %v4838, %v4843
        %v4848 = vrsqrt.pop %v4785
        %v4849 = vmul.f32 %v4848, %v4785
        %v4850 = vmul.f32 %v4849, %v4848
        %v4851 = vmul.f32 0.5, %v4850
        %v4852 = vsub.f32 1.5, %v4851
        %v4853 = vmul.f32 %v4848, %v4852
        %vm4854 = vweird.f32 %v4785
        %vm4855 = vweird.f32 %v4848
        %vm4856 = vmor %vm4854, %vm4855
        %v4857 = vsel %vm4856, %v4848, %v4853
        %v4858 = vrsqrt.pop %v4786
        %v4859 = vmul.f32 %v4858, %v4786
        %v4860 = vmul.f32 %v4859, %v4858
        %v4861 = vmul.f32 0.5, %v4860
        %v4862 = vsub.f32 1.5, %v4861
        %v4863 = vmul.f32 %v4858, %v4862
        %vm4864 = vweird.f32 %v4786
        %vm4865 = vweird.f32 %v4858
        %vm4866 = vmor %vm4864, %vm4865
        %v4867 = vsel %vm4866, %v4858, %v4863
        %v4868 = vrsqrt.pop %v4787
        %v4869 = vmul.f32 %v4868, %v4787
        %v4870 = vmul.f32 %v4869, %v4868
        %v4871 = vmul.f32 0.5, %v4870
        %v4872 = vsub.f32 1.5, %v4871
        %v4873 = vmul.f32 %v4868, %v4872
        %vm4874 = vweird.f32 %v4787
        %vm4875 = vweird.f32 %v4868
        %vm4876 = vmor %vm4874, %vm4875
        %v4877 = vsel %vm4876, %v4868, %v4873
        %v4878 = vmul.f32 %v4725, %v4797
        %v4879 = vmul.f32 %v4726, %v4807
        %v4880 = vmul.f32 %v4727, %v4817
        %v4881 = vmul.f32 %v4728, %v4827
        %v4882 = vmul.f32 %v4729, %v4837
        %v4883 = vmul.f32 %v4730, %v4847
        %v4884 = vmul.f32 %v4731, %v4857
        %v4885 = vmul.f32 %v4732, %v4867
        %v4886 = vmul.f32 %v4733, %v4877
        %v4888 = vperm.slane %v4686, 0
        %v4890 = vmul.f32 %v4878, %v4888
        %v4891 = vmul.f32 %v4879, %v4888
        %v4892 = vmul.f32 %v4880, %v4888
        %v4893 = vmul.f32 %v4881, %v4888
        %v4894 = vmul.f32 %v4882, %v4888
        %v4895 = vmul.f32 %v4883, %v4888
        %v4896 = vmul.f32 %v4884, %v4888
        %v4897 = vmul.f32 %v4885, %v4888
        %v4898 = vmul.f32 %v4886, %v4888
        %v4900 = vperm.slane %v4688, 0
        %v4902 = vadd.f32 %v4890, %v4900
        %v4903 = vadd.f32 %v4891, %v4900
        %v4904 = vadd.f32 %v4892, %v4900
        %v4905 = vadd.f32 %v4893, %v4900
        %v4906 = vadd.f32 %v4894, %v4900
        %v4907 = vadd.f32 %v4895, %v4900
        %v4908 = vadd.f32 %v4896, %v4900
        %v4909 = vadd.f32 %v4897, %v4900
        %v4910 = vadd.f32 %v4898, %v4900
        %v4911 = vpack.c.bf16 %v4903, %v4902
        %v4912 = vpack.c.bf16 %v4905, %v4904
        %v4913 = vpack.c.bf16 %v4907, %v4906
        %v4914 = vpack.c.bf16 %v4909, %v4908
        %v4915 = vpack.c.bf16 %v4910, %v4910
        %s4916 = scalar_lea.vmem %s7, 16
        %v4917 = vld [vmem:[%s4916] sm:$0xf]
        %v4918 = vld [vmem:[%s4916 + $0x4] sm:$0xf]
        %v4919 = vld [vmem:[%s4916 + $0x8] sm:$0xf]
        %v4920 = vld [vmem:[%s4916 + $0xc] sm:$0xf]
        %s4921 = scalar_lea.vmem %s8, 1
        %v4922 = vld [vmem:[%s4921] sm:$0x1]
        %v4924 = vperm.slane %v4922, 0
        %v4930 = vunpack.c.l.b16 %v4917
        %v4931 = vunpack.c.l.b16 %v4918
        %v4932 = vunpack.c.l.b16 %v4919
        %v4933 = vunpack.c.l.b16 %v4920
        %v4934 = vpack.c.b16 %v4931, %v4930
        %v4935 = vpack.c.b16 %v4933, %v4932
        %v4939 = vsel %vm839, %v4911, 0
        %v4942 = vsel %vm839, %v4912, 0
        %v4945 = vsel %vm839, %v4913, 0
        %v4948 = vsel %vm839, %v4914, 0
        %v4951 = vsel %vm839, %v4915, 0
        %4953 = vmatpush.bf16.msra.mxu0 0
        %4954 = vmatpush.bf16.msra.mxu0 0
        %4955 = vmatpush.bf16.msra.mxu0 0
        %4956 = vmatpush.bf16.msra.mxu0 0
        %4957 = vmatpush.bf16.msra.mxu0 0
        %4958 = vmatpush.bf16.msra.mxu0 0
        %4959 = vmatpush.bf16.msra.mxu0 %v4935
        %4960 = vmatpush.bf16.msra.mxu0 %v4934
        %4961 = vmatmul.bf16.gmra.mxu0 %v4939
        %v4962 = vpop.f32.mrf.mxu0
        %v4963 = vadd.f32 %v4924, %v4962
        %v4964 = vpop.f32.mrf.mxu0
        %v4965 = vadd.f32 %v4924, %v4964
        %4966 = vmatmul.bf16.gmra.mxu0 %v4942
        %v4967 = vpop.f32.mrf.mxu0
        %v4968 = vadd.f32 %v4924, %v4967
        %v4969 = vpop.f32.mrf.mxu0
        %v4970 = vadd.f32 %v4924, %v4969
        %4971 = vmatmul.bf16.gmra.mxu0 %v4945
        %v4972 = vpop.f32.mrf.mxu0
        %v4973 = vadd.f32 %v4924, %v4972
        %v4974 = vpop.f32.mrf.mxu0
        %v4975 = vadd.f32 %v4924, %v4974
        %4976 = vmatmul.bf16.gmra.mxu0 %v4948
        %v4977 = vpop.f32.mrf.mxu0
        %v4978 = vadd.f32 %v4924, %v4977
        %v4979 = vpop.f32.mrf.mxu0
        %v4980 = vadd.f32 %v4924, %v4979
        %4981 = vmatmul.bf16.gmra.mxu0 %v4951
        %v4982 = vpop.f32.mrf.mxu0
        %v4983 = vadd.f32 %v4924, %v4982
        %v4984 = vpop.f32.mrf.mxu0
        %4985 = vdwg.mxu0
        %4989 = vrot.lane.b32.xlu0 %v4963, 120
        %v4990 = vpop.permute.xlu0 %4989
        %4991 = vrot.lane.b32.xlu0 %v4965, 120
        %v4992 = vpop.permute.xlu0 %4991
        %4993 = vrot.lane.b32.xlu0 %v4968, 120
        %v4994 = vpop.permute.xlu0 %4993
        %4998 = vrot.lane.b32.xlu0 %v4963, 112
        %v4999 = vpop.permute.xlu0 %4998
        %5000 = vrot.lane.b32.xlu0 %v4965, 112
        %v5001 = vpop.permute.xlu0 %5000
        %5002 = vrot.lane.b32.xlu0 %v4968, 112
        %v5003 = vpop.permute.xlu0 %5002
        %5007 = vrot.lane.b32.xlu0 %v4963, 104
        %v5008 = vpop.permute.xlu0 %5007
        %5009 = vrot.lane.b32.xlu0 %v4965, 104
        %v5010 = vpop.permute.xlu0 %5009
        %5011 = vrot.lane.b32.xlu0 %v4968, 104
        %v5012 = vpop.permute.xlu0 %5011
        %v5016 = vpack.c.bf16 %v4963, %v4963
        %v5017 = vpack.c.bf16 %v4965, %v4965
        %v5018 = vpack.c.bf16 %v4968, %v4968
        %v5019 = vpack.c.bf16 %v4990, %v4990
        %v5020 = vpack.c.bf16 %v4992, %v4992
        %v5021 = vpack.c.bf16 %v4994, %v4994
        %v5022 = vpack.c.bf16 %v4999, %v4999
        %v5023 = vpack.c.bf16 %v5001, %v5001
        %v5024 = vpack.c.bf16 %v5003, %v5003
        %v5025 = vpack.c.bf16 %v5008, %v5008
        %v5026 = vpack.c.bf16 %v5010, %v5010
        %v5027 = vpack.c.bf16 %v5012, %v5012
        %v5031 = vunpack.c.l.b16 %v5016
        %v5032 = vunpack.c.l.b16 %v5017
        %v5033 = vunpack.c.l.b16 %v5018
        %v5034 = vpack.c.b16 %v5032, %v5031
        %v5035 = vpack.c.b16 %v5033, %v5033
        %5036 = vrot.lane.b32.xlu0 %v5034, 96
        %v5037 = vpop.permute.xlu0 %5036
        %5038 = vrot.lane.b32.xlu0 %v5035, 96
        %v5039 = vpop.permute.xlu0 %5038
        %v5041 = vsel %vm1197, %v5034, 0
        %v5044 = vsel %vm1197, %v5035, 0
        %v5047 = vsel %vm1197, %v5037, 0
        %v5050 = vsel %vm1197, %v5039, 0
        %5052 = vmatpush.bf16.xpose.msra.mxu0 0
        %5053 = vmatpush.bf16.xpose.msra.mxu0 0
        %5054 = vmatpush.bf16.xpose.msra.mxu0 0
        %5055 = vmatpush.bf16.xpose.msra.mxu0 0
        %5056 = vmatpush.bf16.xpose.msra.mxu0 0
        %5057 = vmatpush.bf16.xpose.msra.mxu0 0
        %5058 = vmatpush.bf16.xpose.msra.mxu0 %v5050
        %5059 = vmatpush.bf16.xpose.msra.mxu0 %v5047
        %5060 = vmatmul.bf16.gmra.mxu0 %v5041
        %v5061 = vpop.f32.mrf.mxu0
        %v5062 = vadd.f32 0.0, %v5061
        %v5063 = vpop.f32.mrf.mxu0
        %v5064 = vadd.f32 0.0, %v5063
        %5065 = vmatmul.bf16.gmra.mxu0 %v5044
        %v5066 = vpop.f32.mrf.mxu0
        %v5067 = vadd.f32 0.0, %v5066
        %v5068 = vpop.f32.mrf.mxu0
        %5069 = vdwg.mxu0
        %v5073 = vunpack.c.l.b16 %v5019
        %v5074 = vunpack.c.l.b16 %v5020
        %v5075 = vunpack.c.l.b16 %v5021
        %v5076 = vpack.c.b16 %v5074, %v5073
        %v5077 = vpack.c.b16 %v5075, %v5075
        %5078 = vrot.lane.b32.xlu0 %v5076, 96
        %v5079 = vpop.permute.xlu0 %5078
        %5080 = vrot.lane.b32.xlu0 %v5077, 96
        %v5081 = vpop.permute.xlu0 %5080
        %v5083 = vsel %vm1197, %v5076, 0
        %v5086 = vsel %vm1197, %v5077, 0
        %v5089 = vsel %vm1197, %v5079, 0
        %v5092 = vsel %vm1197, %v5081, 0
        %5094 = vmatpush.bf16.xpose.msra.mxu0 0
        %5095 = vmatpush.bf16.xpose.msra.mxu0 0
        %5096 = vmatpush.bf16.xpose.msra.mxu0 0
        %5097 = vmatpush.bf16.xpose.msra.mxu0 0
        %5098 = vmatpush.bf16.xpose.msra.mxu0 0
        %5099 = vmatpush.bf16.xpose.msra.mxu0 0
        %5100 = vmatpush.bf16.xpose.msra.mxu0 %v5092
        %5101 = vmatpush.bf16.xpose.msra.mxu0 %v5089
        %5102 = vmatmul.bf16.gmra.mxu0 %v5083
        %v5103 = vpop.f32.mrf.mxu0
        %v5104 = vadd.f32 0.0, %v5103
        %v5105 = vpop.f32.mrf.mxu0
        %v5106 = vadd.f32 0.0, %v5105
        %5107 = vmatmul.bf16.gmra.mxu0 %v5086
        %v5108 = vpop.f32.mrf.mxu0
        %v5109 = vadd.f32 0.0, %v5108
        %v5110 = vpop.f32.mrf.mxu0
        %5111 = vdwg.mxu0
        %v5115 = vunpack.c.l.b16 %v5022
        %v5116 = vunpack.c.l.b16 %v5023
        %v5117 = vunpack.c.l.b16 %v5024
        %v5118 = vpack.c.b16 %v5116, %v5115
        %v5119 = vpack.c.b16 %v5117, %v5117
        %5120 = vrot.lane.b32.xlu0 %v5118, 96
        %v5121 = vpop.permute.xlu0 %5120
        %5122 = vrot.lane.b32.xlu0 %v5119, 96
        %v5123 = vpop.permute.xlu0 %5122
        %v5125 = vsel %vm1197, %v5118, 0
        %v5128 = vsel %vm1197, %v5119, 0
        %v5131 = vsel %vm1197, %v5121, 0
        %v5134 = vsel %vm1197, %v5123, 0
        %5136 = vmatpush.bf16.xpose.msra.mxu0 0
        %5137 = vmatpush.bf16.xpose.msra.mxu0 0
        %5138 = vmatpush.bf16.xpose.msra.mxu0 0
        %5139 = vmatpush.bf16.xpose.msra.mxu0 0
        %5140 = vmatpush.bf16.xpose.msra.mxu0 0
        %5141 = vmatpush.bf16.xpose.msra.mxu0 0
        %5142 = vmatpush.bf16.xpose.msra.mxu0 %v5134
        %5143 = vmatpush.bf16.xpose.msra.mxu0 %v5131
        %5144 = vmatmul.bf16.gmra.mxu0 %v5125
        %v5145 = vpop.f32.mrf.mxu0
        %v5146 = vadd.f32 0.0, %v5145
        %v5147 = vpop.f32.mrf.mxu0
        %v5148 = vadd.f32 0.0, %v5147
        %5149 = vmatmul.bf16.gmra.mxu0 %v5128
        %v5150 = vpop.f32.mrf.mxu0
        %v5151 = vadd.f32 0.0, %v5150
        %v5152 = vpop.f32.mrf.mxu0
        %5153 = vdwg.mxu0
        %v5157 = vunpack.c.l.b16 %v5025
        %v5158 = vunpack.c.l.b16 %v5026
        %v5159 = vunpack.c.l.b16 %v5027
        %v5160 = vpack.c.b16 %v5158, %v5157
        %v5161 = vpack.c.b16 %v5159, %v5159
        %5162 = vrot.lane.b32.xlu0 %v5160, 96
        %v5163 = vpop.permute.xlu0 %5162
        %5164 = vrot.lane.b32.xlu0 %v5161, 96
        %v5165 = vpop.permute.xlu0 %5164
        %v5167 = vsel %vm1197, %v5160, 0
        %v5170 = vsel %vm1197, %v5161, 0
        %v5173 = vsel %vm1197, %v5163, 0
        %v5176 = vsel %vm1197, %v5165, 0
        %5178 = vmatpush.bf16.xpose.msra.mxu0 0
        %5179 = vmatpush.bf16.xpose.msra.mxu0 0
        %5180 = vmatpush.bf16.xpose.msra.mxu0 0
        %5181 = vmatpush.bf16.xpose.msra.mxu0 0
        %5182 = vmatpush.bf16.xpose.msra.mxu0 0
        %5183 = vmatpush.bf16.xpose.msra.mxu0 0
        %5184 = vmatpush.bf16.xpose.msra.mxu0 %v5176
        %5185 = vmatpush.bf16.xpose.msra.mxu0 %v5173
        %5186 = vmatmul.bf16.gmra.mxu0 %v5167
        %v5187 = vpop.f32.mrf.mxu0
        %v5188 = vadd.f32 0.0, %v5187
        %v5189 = vpop.f32.mrf.mxu0
        %v5190 = vadd.f32 0.0, %v5189
        %5191 = vmatmul.bf16.gmra.mxu0 %v5170
        %v5192 = vpop.f32.mrf.mxu0
        %v5193 = vadd.f32 0.0, %v5192
        %v5194 = vpop.f32.mrf.mxu0
        %5195 = vdwg.mxu0
        %v5196 = vsel %vm1354, %v5062, -inf
        %5197 = vmax.xlane.f32.xlu0 %v5196
        %v5198 = vpop.xlane.xlu0 %5197
        %v5199 = vsel %vm1354, %v5064, -inf
        %5200 = vmax.xlane.f32.xlu0 %v5199
        %v5201 = vpop.xlane.xlu0 %5200
        %v5202 = vsel %vm1361, %v5067, -inf
        %5203 = vmax.xlane.f32.xlu0 %v5202
        %v5204 = vpop.xlane.xlu0 %5203
        %v5205 = vsel %vm1354, %v5104, -inf
        %5206 = vmax.xlane.f32.xlu0 %v5205
        %v5207 = vpop.xlane.xlu0 %5206
        %v5208 = vsel %vm1354, %v5106, -inf
        %5209 = vmax.xlane.f32.xlu0 %v5208
        %v5210 = vpop.xlane.xlu0 %5209
        %v5211 = vsel %vm1361, %v5109, -inf
        %5212 = vmax.xlane.f32.xlu0 %v5211
        %v5213 = vpop.xlane.xlu0 %5212
        %v5214 = vsel %vm1354, %v5146, -inf
        %5215 = vmax.xlane.f32.xlu0 %v5214
        %v5216 = vpop.xlane.xlu0 %5215
        %v5217 = vsel %vm1354, %v5148, -inf
        %5218 = vmax.xlane.f32.xlu0 %v5217
        %v5219 = vpop.xlane.xlu0 %5218
        %v5220 = vsel %vm1361, %v5151, -inf
        %5221 = vmax.xlane.f32.xlu0 %v5220
        %v5222 = vpop.xlane.xlu0 %5221
        %v5223 = vsel %vm1354, %v5188, -inf
        %5224 = vmax.xlane.f32.xlu0 %v5223
        %v5225 = vpop.xlane.xlu0 %5224
        %v5226 = vsel %vm1354, %v5190, -inf
        %5227 = vmax.xlane.f32.xlu0 %v5226
        %v5228 = vpop.xlane.xlu0 %5227
        %v5229 = vsel %vm1361, %v5193, -inf
        %5230 = vmax.xlane.f32.xlu0 %v5229
        %v5231 = vpop.xlane.xlu0 %5230
        %v5232 = vsub.f32 %v5062, %v5198
        %v5233 = vsub.f32 %v5064, %v5201
        %v5234 = vsub.f32 %v5067, %v5204
        %v5235 = vsub.f32 %v5104, %v5207
        %v5236 = vsub.f32 %v5106, %v5210
        %v5237 = vsub.f32 %v5109, %v5213
        %v5238 = vsub.f32 %v5146, %v5216
        %v5239 = vsub.f32 %v5148, %v5219
        %v5240 = vsub.f32 %v5151, %v5222
        %v5241 = vsub.f32 %v5188, %v5225
        %v5242 = vsub.f32 %v5190, %v5228
        %v5243 = vsub.f32 %v5193, %v5231
        %v5244 = vmul.f32 %v5232, 1.442695
        %v5245 = vpow.pop %v5244
        %v5246 = vmul.f32 %v5233, 1.442695
        %v5247 = vpow.pop %v5246
        %v5248 = vmul.f32 %v5234, 1.442695
        %v5249 = vpow.pop %v5248
        %v5250 = vmul.f32 %v5235, 1.442695
        %v5251 = vpow.pop %v5250
        %v5252 = vmul.f32 %v5236, 1.442695
        %v5253 = vpow.pop %v5252
        %v5254 = vmul.f32 %v5237, 1.442695
        %v5255 = vpow.pop %v5254
        %v5256 = vmul.f32 %v5238, 1.442695
        %v5257 = vpow.pop %v5256
        %v5258 = vmul.f32 %v5239, 1.442695
        %v5259 = vpow.pop %v5258
        %v5260 = vmul.f32 %v5240, 1.442695
        %v5261 = vpow.pop %v5260
        %v5262 = vmul.f32 %v5241, 1.442695
        %v5263 = vpow.pop %v5262
        %v5264 = vmul.f32 %v5242, 1.442695
        %v5265 = vpow.pop %v5264
        %v5266 = vmul.f32 %v5243, 1.442695
        %v5267 = vpow.pop %v5266
        %v5268 = vsel %vm1354, %v5245, 0.0
        %5269 = vadd.xlane.f32.xlu0 %v5268
        %v5270 = vpop.xlane.xlu0 %5269
        %v5271 = vsel %vm1354, %v5247, 0.0
        %5272 = vadd.xlane.f32.xlu0 %v5271
        %v5273 = vpop.xlane.xlu0 %5272
        %v5274 = vsel %vm1361, %v5249, 0.0
        %5275 = vadd.xlane.f32.xlu0 %v5274
        %v5276 = vpop.xlane.xlu0 %5275
        %v5277 = vsel %vm1354, %v5251, 0.0
        %5278 = vadd.xlane.f32.xlu0 %v5277
        %v5279 = vpop.xlane.xlu0 %5278
        %v5280 = vsel %vm1354, %v5253, 0.0
        %5281 = vadd.xlane.f32.xlu0 %v5280
        %v5282 = vpop.xlane.xlu0 %5281
        %v5283 = vsel %vm1361, %v5255, 0.0
        %5284 = vadd.xlane.f32.xlu0 %v5283
        %v5285 = vpop.xlane.xlu0 %5284
        %v5286 = vsel %vm1354, %v5257, 0.0
        %5287 = vadd.xlane.f32.xlu0 %v5286
        %v5288 = vpop.xlane.xlu0 %5287
        %v5289 = vsel %vm1354, %v5259, 0.0
        %5290 = vadd.xlane.f32.xlu0 %v5289
        %v5291 = vpop.xlane.xlu0 %5290
        %v5292 = vsel %vm1361, %v5261, 0.0
        %5293 = vadd.xlane.f32.xlu0 %v5292
        %v5294 = vpop.xlane.xlu0 %5293
        %v5295 = vsel %vm1354, %v5263, 0.0
        %5296 = vadd.xlane.f32.xlu0 %v5295
        %v5297 = vpop.xlane.xlu0 %5296
        %v5298 = vsel %vm1354, %v5265, 0.0
        %5299 = vadd.xlane.f32.xlu0 %v5298
        %v5300 = vpop.xlane.xlu0 %5299
        %v5301 = vsel %vm1361, %v5267, 0.0
        %5302 = vadd.xlane.f32.xlu0 %v5301
        %v5303 = vpop.xlane.xlu0 %5302
        %v5304 = vrcp.pop %v5270
        %v5305 = vmul.f32 %v5270, %v5304
        %v5306 = vsub.f32 1.0, %v5305
        %v5307 = vmul.f32 %v5304, %v5306
        %v5308 = vadd.f32 %v5304, %v5307
        %vm5309 = vweird.f32 %v5270
        %vm5310 = vweird.f32 %v5304
        %vm5311 = vmor %vm5309, %vm5310
        %v5312 = vsel %vm5311, %v5304, %v5308
        %v5313 = vand.u32 2147483647, %v5270
        %vm5314 = vcmp.eq.f32.partialorder %v5313, 8.507059e+37
        %v5315 = vand.u32 %v5270, 2147483648
        %v5316 = vor.u32 1.1754944e-38, %v5315
        %v5317 = vsel %vm5314, %v5316, %v5312
        %v5318 = vmul.f32 %v5245, %v5317
        %v5319 = vrcp.pop %v5273
        %v5320 = vmul.f32 %v5273, %v5319
        %v5321 = vsub.f32 1.0, %v5320
        %v5322 = vmul.f32 %v5319, %v5321
        %v5323 = vadd.f32 %v5319, %v5322
        %vm5324 = vweird.f32 %v5273
        %vm5325 = vweird.f32 %v5319
        %vm5326 = vmor %vm5324, %vm5325
        %v5327 = vsel %vm5326, %v5319, %v5323
        %v5328 = vand.u32 2147483647, %v5273
        %vm5329 = vcmp.eq.f32.partialorder %v5328, 8.507059e+37
        %v5330 = vand.u32 %v5273, 2147483648
        %v5331 = vor.u32 1.1754944e-38, %v5330
        %v5332 = vsel %vm5329, %v5331, %v5327
        %v5333 = vmul.f32 %v5247, %v5332
        %v5334 = vrcp.pop %v5276
        %v5335 = vmul.f32 %v5276, %v5334
        %v5336 = vsub.f32 1.0, %v5335
        %v5337 = vmul.f32 %v5334, %v5336
        %v5338 = vadd.f32 %v5334, %v5337
        %vm5339 = vweird.f32 %v5276
        %vm5340 = vweird.f32 %v5334
        %vm5341 = vmor %vm5339, %vm5340
        %v5342 = vsel %vm5341, %v5334, %v5338
        %v5343 = vand.u32 2147483647, %v5276
        %vm5344 = vcmp.eq.f32.partialorder %v5343, 8.507059e+37
        %v5345 = vand.u32 %v5276, 2147483648
        %v5346 = vor.u32 1.1754944e-38, %v5345
        %v5347 = vsel %vm5344, %v5346, %v5342
        %v5348 = vmul.f32 %v5249, %v5347
        %v5349 = vrcp.pop %v5279
        %v5350 = vmul.f32 %v5279, %v5349
        %v5351 = vsub.f32 1.0, %v5350
        %v5352 = vmul.f32 %v5349, %v5351
        %v5353 = vadd.f32 %v5349, %v5352
        %vm5354 = vweird.f32 %v5279
        %vm5355 = vweird.f32 %v5349
        %vm5356 = vmor %vm5354, %vm5355
        %v5357 = vsel %vm5356, %v5349, %v5353
        %v5358 = vand.u32 2147483647, %v5279
        %vm5359 = vcmp.eq.f32.partialorder %v5358, 8.507059e+37
        %v5360 = vand.u32 %v5279, 2147483648
        %v5361 = vor.u32 1.1754944e-38, %v5360
        %v5362 = vsel %vm5359, %v5361, %v5357
        %v5363 = vmul.f32 %v5251, %v5362
        %v5364 = vrcp.pop %v5282
        %v5365 = vmul.f32 %v5282, %v5364
        %v5366 = vsub.f32 1.0, %v5365
        %v5367 = vmul.f32 %v5364, %v5366
        %v5368 = vadd.f32 %v5364, %v5367
        %vm5369 = vweird.f32 %v5282
        %vm5370 = vweird.f32 %v5364
        %vm5371 = vmor %vm5369, %vm5370
        %v5372 = vsel %vm5371, %v5364, %v5368
        %v5373 = vand.u32 2147483647, %v5282
        %vm5374 = vcmp.eq.f32.partialorder %v5373, 8.507059e+37
        %v5375 = vand.u32 %v5282, 2147483648
        %v5376 = vor.u32 1.1754944e-38, %v5375
        %v5377 = vsel %vm5374, %v5376, %v5372
        %v5378 = vmul.f32 %v5253, %v5377
        %v5379 = vrcp.pop %v5285
        %v5380 = vmul.f32 %v5285, %v5379
        %v5381 = vsub.f32 1.0, %v5380
        %v5382 = vmul.f32 %v5379, %v5381
        %v5383 = vadd.f32 %v5379, %v5382
        %vm5384 = vweird.f32 %v5285
        %vm5385 = vweird.f32 %v5379
        %vm5386 = vmor %vm5384, %vm5385
        %v5387 = vsel %vm5386, %v5379, %v5383
        %v5388 = vand.u32 2147483647, %v5285
        %vm5389 = vcmp.eq.f32.partialorder %v5388, 8.507059e+37
        %v5390 = vand.u32 %v5285, 2147483648
        %v5391 = vor.u32 1.1754944e-38, %v5390
        %v5392 = vsel %vm5389, %v5391, %v5387
        %v5393 = vmul.f32 %v5255, %v5392
        %v5394 = vrcp.pop %v5288
        %v5395 = vmul.f32 %v5288, %v5394
        %v5396 = vsub.f32 1.0, %v5395
        %v5397 = vmul.f32 %v5394, %v5396
        %v5398 = vadd.f32 %v5394, %v5397
        %vm5399 = vweird.f32 %v5288
        %vm5400 = vweird.f32 %v5394
        %vm5401 = vmor %vm5399, %vm5400
        %v5402 = vsel %vm5401, %v5394, %v5398
        %v5403 = vand.u32 2147483647, %v5288
        %vm5404 = vcmp.eq.f32.partialorder %v5403, 8.507059e+37
        %v5405 = vand.u32 %v5288, 2147483648
        %v5406 = vor.u32 1.1754944e-38, %v5405
        %v5407 = vsel %vm5404, %v5406, %v5402
        %v5408 = vmul.f32 %v5257, %v5407
        %v5409 = vrcp.pop %v5291
        %v5410 = vmul.f32 %v5291, %v5409
        %v5411 = vsub.f32 1.0, %v5410
        %v5412 = vmul.f32 %v5409, %v5411
        %v5413 = vadd.f32 %v5409, %v5412
        %vm5414 = vweird.f32 %v5291
        %vm5415 = vweird.f32 %v5409
        %vm5416 = vmor %vm5414, %vm5415
        %v5417 = vsel %vm5416, %v5409, %v5413
        %v5418 = vand.u32 2147483647, %v5291
        %vm5419 = vcmp.eq.f32.partialorder %v5418, 8.507059e+37
        %v5420 = vand.u32 %v5291, 2147483648
        %v5421 = vor.u32 1.1754944e-38, %v5420
        %v5422 = vsel %vm5419, %v5421, %v5417
        %v5423 = vmul.f32 %v5259, %v5422
        %v5424 = vrcp.pop %v5294
        %v5425 = vmul.f32 %v5294, %v5424
        %v5426 = vsub.f32 1.0, %v5425
        %v5427 = vmul.f32 %v5424, %v5426
        %v5428 = vadd.f32 %v5424, %v5427
        %vm5429 = vweird.f32 %v5294
        %vm5430 = vweird.f32 %v5424
        %vm5431 = vmor %vm5429, %vm5430
        %v5432 = vsel %vm5431, %v5424, %v5428
        %v5433 = vand.u32 2147483647, %v5294
        %vm5434 = vcmp.eq.f32.partialorder %v5433, 8.507059e+37
        %v5435 = vand.u32 %v5294, 2147483648
        %v5436 = vor.u32 1.1754944e-38, %v5435
        %v5437 = vsel %vm5434, %v5436, %v5432
        %v5438 = vmul.f32 %v5261, %v5437
        %v5439 = vrcp.pop %v5297
        %v5440 = vmul.f32 %v5297, %v5439
        %v5441 = vsub.f32 1.0, %v5440
        %v5442 = vmul.f32 %v5439, %v5441
        %v5443 = vadd.f32 %v5439, %v5442
        %vm5444 = vweird.f32 %v5297
        %vm5445 = vweird.f32 %v5439
        %vm5446 = vmor %vm5444, %vm5445
        %v5447 = vsel %vm5446, %v5439, %v5443
        %v5448 = vand.u32 2147483647, %v5297
        %vm5449 = vcmp.eq.f32.partialorder %v5448, 8.507059e+37
        %v5450 = vand.u32 %v5297, 2147483648
        %v5451 = vor.u32 1.1754944e-38, %v5450
        %v5452 = vsel %vm5449, %v5451, %v5447
        %v5453 = vmul.f32 %v5263, %v5452
        %v5454 = vrcp.pop %v5300
        %v5455 = vmul.f32 %v5300, %v5454
        %v5456 = vsub.f32 1.0, %v5455
        %v5457 = vmul.f32 %v5454, %v5456
        %v5458 = vadd.f32 %v5454, %v5457
        %vm5459 = vweird.f32 %v5300
        %vm5460 = vweird.f32 %v5454
        %vm5461 = vmor %vm5459, %vm5460
        %v5462 = vsel %vm5461, %v5454, %v5458
        %v5463 = vand.u32 2147483647, %v5300
        %vm5464 = vcmp.eq.f32.partialorder %v5463, 8.507059e+37
        %v5465 = vand.u32 %v5300, 2147483648
        %v5466 = vor.u32 1.1754944e-38, %v5465
        %v5467 = vsel %vm5464, %v5466, %v5462
        %v5468 = vmul.f32 %v5265, %v5467
        %v5469 = vrcp.pop %v5303
        %v5470 = vmul.f32 %v5303, %v5469
        %v5471 = vsub.f32 1.0, %v5470
        %v5472 = vmul.f32 %v5469, %v5471
        %v5473 = vadd.f32 %v5469, %v5472
        %vm5474 = vweird.f32 %v5303
        %vm5475 = vweird.f32 %v5469
        %vm5476 = vmor %vm5474, %vm5475
        %v5477 = vsel %vm5476, %v5469, %v5473
        %v5478 = vand.u32 2147483647, %v5303
        %vm5479 = vcmp.eq.f32.partialorder %v5478, 8.507059e+37
        %v5480 = vand.u32 %v5303, 2147483648
        %v5481 = vor.u32 1.1754944e-38, %v5480
        %v5482 = vsel %vm5479, %v5481, %v5477
        %v5483 = vmul.f32 %v5267, %v5482
        %v5484 = vpack.c.bf16 %v5318, %v5318
        %v5485 = vpack.c.bf16 %v5333, %v5333
        %v5486 = vpack.c.bf16 %v5348, %v5348
        %v5487 = vpack.c.bf16 %v5363, %v5363
        %v5488 = vpack.c.bf16 %v5378, %v5378
        %v5489 = vpack.c.bf16 %v5393, %v5393
        %v5490 = vpack.c.bf16 %v5408, %v5408
        %v5491 = vpack.c.bf16 %v5423, %v5423
        %v5492 = vpack.c.bf16 %v5438, %v5438
        %v5493 = vpack.c.bf16 %v5453, %v5453
        %v5494 = vpack.c.bf16 %v5468, %v5468
        %v5495 = vpack.c.bf16 %v5483, %v5483
        %v5499 = vunpack.c.l.b16 %v5484
        %v5500 = vunpack.c.l.b16 %v5485
        %v5501 = vunpack.c.l.b16 %v5486
        %v5502 = vpack.c.b16 %v5500, %v5499
        %v5503 = vpack.c.b16 %v5501, %v5501
        %5504 = vrot.lane.b32.xlu0 %v5034, 64
        %v5505 = vpop.permute.xlu0 %5504
        %5506 = vrot.lane.b32.xlu0 %v5035, 64
        %v5507 = vpop.permute.xlu0 %5506
        %v5510 = vsel %vm1354, %v5502, 0
        %v5513 = vsel %vm1354, %v5503, 0
        %v5516 = vand.u32 %v5507, %v1677
        %5518 = vmatpush.bf16.msra.mxu0 0
        %5519 = vmatpush.bf16.msra.mxu0 0
        %5520 = vmatpush.bf16.msra.mxu0 0
        %5521 = vmatpush.bf16.msra.mxu0 0
        %5522 = vmatpush.bf16.msra.mxu0 0
        %5523 = vmatpush.bf16.msra.mxu0 0
        %5524 = vmatpush.bf16.msra.mxu0 %v5516
        %5525 = vmatpush.bf16.msra.mxu0 %v5505
        %5526 = vmatmul.bf16.gmra.mxu0 %v5510
        %v5527 = vpop.f32.mrf.mxu0
        %v5528 = vadd.f32 0.0, %v5527
        %v5529 = vpop.f32.mrf.mxu0
        %v5530 = vadd.f32 0.0, %v5529
        %5531 = vmatmul.bf16.gmra.mxu0 %v5513
        %v5532 = vpop.f32.mrf.mxu0
        %v5533 = vadd.f32 0.0, %v5532
        %v5534 = vpop.f32.mrf.mxu0
        %5535 = vdwg.mxu0
        %v5539 = vunpack.c.l.b16 %v5487
        %v5540 = vunpack.c.l.b16 %v5488
        %v5541 = vunpack.c.l.b16 %v5489
        %v5542 = vpack.c.b16 %v5540, %v5539
        %v5543 = vpack.c.b16 %v5541, %v5541
        %5544 = vrot.lane.b32.xlu0 %v5076, 64
        %v5545 = vpop.permute.xlu0 %5544
        %5546 = vrot.lane.b32.xlu0 %v5077, 64
        %v5547 = vpop.permute.xlu0 %5546
        %v5550 = vsel %vm1354, %v5542, 0
        %v5553 = vsel %vm1354, %v5543, 0
        %v5556 = vand.u32 %v5547, %v1677
        %5558 = vmatpush.bf16.msra.mxu0 0
        %5559 = vmatpush.bf16.msra.mxu0 0
        %5560 = vmatpush.bf16.msra.mxu0 0
        %5561 = vmatpush.bf16.msra.mxu0 0
        %5562 = vmatpush.bf16.msra.mxu0 0
        %5563 = vmatpush.bf16.msra.mxu0 0
        %5564 = vmatpush.bf16.msra.mxu0 %v5556
        %5565 = vmatpush.bf16.msra.mxu0 %v5545
        %5566 = vmatmul.bf16.gmra.mxu0 %v5550
        %v5567 = vpop.f32.mrf.mxu0
        %v5568 = vadd.f32 0.0, %v5567
        %v5569 = vpop.f32.mrf.mxu0
        %v5570 = vadd.f32 0.0, %v5569
        %5571 = vmatmul.bf16.gmra.mxu0 %v5553
        %v5572 = vpop.f32.mrf.mxu0
        %v5573 = vadd.f32 0.0, %v5572
        %v5574 = vpop.f32.mrf.mxu0
        %5575 = vdwg.mxu0
        %v5579 = vunpack.c.l.b16 %v5490
        %v5580 = vunpack.c.l.b16 %v5491
        %v5581 = vunpack.c.l.b16 %v5492
        %v5582 = vpack.c.b16 %v5580, %v5579
        %v5583 = vpack.c.b16 %v5581, %v5581
        %5584 = vrot.lane.b32.xlu0 %v5118, 64
        %v5585 = vpop.permute.xlu0 %5584
        %5586 = vrot.lane.b32.xlu0 %v5119, 64
        %v5587 = vpop.permute.xlu0 %5586
        %v5590 = vsel %vm1354, %v5582, 0
        %v5593 = vsel %vm1354, %v5583, 0
        %v5596 = vand.u32 %v5587, %v1677
        %5598 = vmatpush.bf16.msra.mxu0 0
        %5599 = vmatpush.bf16.msra.mxu0 0
        %5600 = vmatpush.bf16.msra.mxu0 0
        %5601 = vmatpush.bf16.msra.mxu0 0
        %5602 = vmatpush.bf16.msra.mxu0 0
        %5603 = vmatpush.bf16.msra.mxu0 0
        %5604 = vmatpush.bf16.msra.mxu0 %v5596
        %5605 = vmatpush.bf16.msra.mxu0 %v5585
        %5606 = vmatmul.bf16.gmra.mxu0 %v5590
        %v5607 = vpop.f32.mrf.mxu0
        %v5608 = vadd.f32 0.0, %v5607
        %v5609 = vpop.f32.mrf.mxu0
        %v5610 = vadd.f32 0.0, %v5609
        %5611 = vmatmul.bf16.gmra.mxu0 %v5593
        %v5612 = vpop.f32.mrf.mxu0
        %v5613 = vadd.f32 0.0, %v5612
        %v5614 = vpop.f32.mrf.mxu0
        %5615 = vdwg.mxu0
        %v5619 = vunpack.c.l.b16 %v5493
        %v5620 = vunpack.c.l.b16 %v5494
        %v5621 = vunpack.c.l.b16 %v5495
        %v5622 = vpack.c.b16 %v5620, %v5619
        %v5623 = vpack.c.b16 %v5621, %v5621
        %5624 = vrot.lane.b32.xlu0 %v5160, 64
        %v5625 = vpop.permute.xlu0 %5624
        %5626 = vrot.lane.b32.xlu0 %v5161, 64
        %v5627 = vpop.permute.xlu0 %5626
        %v5630 = vsel %vm1354, %v5622, 0
        %v5633 = vsel %vm1354, %v5623, 0
        %v5636 = vand.u32 %v5627, %v1677
        %5638 = vmatpush.bf16.msra.mxu0 0
        %5639 = vmatpush.bf16.msra.mxu0 0
        %5640 = vmatpush.bf16.msra.mxu0 0
        %5641 = vmatpush.bf16.msra.mxu0 0
        %5642 = vmatpush.bf16.msra.mxu0 0
        %5643 = vmatpush.bf16.msra.mxu0 0
        %5644 = vmatpush.bf16.msra.mxu0 %v5636
        %5645 = vmatpush.bf16.msra.mxu0 %v5625
        %5646 = vmatmul.bf16.gmra.mxu0 %v5630
        %v5647 = vpop.f32.mrf.mxu0
        %v5648 = vadd.f32 0.0, %v5647
        %v5649 = vpop.f32.mrf.mxu0
        %v5650 = vadd.f32 0.0, %v5649
        %5651 = vmatmul.bf16.gmra.mxu0 %v5633
        %v5652 = vpop.f32.mrf.mxu0
        %v5653 = vadd.f32 0.0, %v5652
        %v5654 = vpop.f32.mrf.mxu0
        %5655 = vdwg.mxu0
        %5656 = vst.msk [vmem:[#allocation2] sm:$0xff] %vm1197, %v5528
        %5657 = vst.msk [vmem:[#allocation2 + $0x8] sm:$0xff] %vm1197, %v5530
        %5658 = vst.msk [vmem:[#allocation2 + $0x10] sm:$0x1] %vm1821, %v5533
        %5662 = vrot.lane.b32.xlu0 %v5568, 8
        %v5663 = vpop.permute.xlu0 %5662
        %5664 = vrot.lane.b32.xlu0 %v5570, 8
        %v5665 = vpop.permute.xlu0 %5664
        %5666 = vrot.lane.b32.xlu0 %v5573, 8
        %v5667 = vpop.permute.xlu0 %5666
        %5671 = vst.msk [vmem:[#allocation2] sm:$0xff] %vm1835, %v5663
        %5672 = vst.msk [vmem:[#allocation2 + $0x8] sm:$0xff] %vm1835, %v5665
        %5673 = vst.msk [vmem:[#allocation2 + $0x10] sm:$0x1] %vm1838, %v5667
        %5677 = vrot.lane.b32.xlu0 %v5608, 16
        %v5678 = vpop.permute.xlu0 %5677
        %5679 = vrot.lane.b32.xlu0 %v5610, 16
        %v5680 = vpop.permute.xlu0 %5679
        %5681 = vrot.lane.b32.xlu0 %v5613, 16
        %v5682 = vpop.permute.xlu0 %5681
        %5686 = vst.msk [vmem:[#allocation2] sm:$0xff] %vm1852, %v5678
        %5687 = vst.msk [vmem:[#allocation2 + $0x8] sm:$0xff] %vm1852, %v5680
        %5688 = vst.msk [vmem:[#allocation2 + $0x10] sm:$0x1] %vm1855, %v5682
        %5692 = vrot.lane.b32.xlu0 %v5648, 24
        %v5693 = vpop.permute.xlu0 %5692
        %5694 = vrot.lane.b32.xlu0 %v5650, 24
        %v5695 = vpop.permute.xlu0 %5694
        %5696 = vrot.lane.b32.xlu0 %v5653, 24
        %v5697 = vpop.permute.xlu0 %5696
        %5701 = vst.msk [vmem:[#allocation2] sm:$0xff] %vm1869, %v5693
        %5702 = vst.msk [vmem:[#allocation2 + $0x8] sm:$0xff] %vm1869, %v5695
        %5703 = vst.msk [vmem:[#allocation2 + $0x10] sm:$0x1] %vm1872, %v5697
        %5706 = vrot.lane.b32.xlu0 %v4970, 120
        %v5707 = vpop.permute.xlu0 %5706
        %5708 = vrot.lane.b32.xlu0 %v4973, 120
        %v5709 = vpop.permute.xlu0 %5708
        %5712 = vrot.lane.b32.xlu0 %v4970, 112
        %v5713 = vpop.permute.xlu0 %5712
        %5714 = vrot.lane.b32.xlu0 %v4973, 112
        %v5715 = vpop.permute.xlu0 %5714
        %5718 = vrot.lane.b32.xlu0 %v4970, 104
        %v5719 = vpop.permute.xlu0 %5718
        %5720 = vrot.lane.b32.xlu0 %v4973, 104
        %v5721 = vpop.permute.xlu0 %5720
        %v5724 = vpack.c.bf16 %v4970, %v4970
        %v5725 = vpack.c.bf16 %v4973, %v4973
        %v5726 = vpack.c.bf16 %v5707, %v5707
        %v5727 = vpack.c.bf16 %v5709, %v5709
        %v5728 = vpack.c.bf16 %v5713, %v5713
        %v5729 = vpack.c.bf16 %v5715, %v5715
        %v5730 = vpack.c.bf16 %v5719, %v5719
        %v5731 = vpack.c.bf16 %v5721, %v5721
        %v5734 = vunpack.c.l.b16 %v5724
        %v5735 = vunpack.c.l.b16 %v5725
        %v5736 = vpack.c.b16 %v5734, %v5033
        %v5737 = vpack.c.b16 %v5735, %v5735
        %v5739 = vshrl.u32 %v5736, 16
        %v5741 = vshll.u32 %v5736, 16
        %v5743 = vrot.slane %v5741, 1
        %v5744 = vor.u32 %v5739, %v5743
        %v5746 = vshll.u32 %v5737, 16
        %v5748 = vrot.slane %v5746, 1
        %v5749 = vsel %vm1908, %v5744, %v5748
        %v5750 = vshrl.u32 %v5737, 16
        %5752 = vrot.lane.b32.xlu0 %v5749, 96
        %v5753 = vpop.permute.xlu0 %5752
        %5754 = vrot.lane.b32.xlu0 %v5750, 96
        %v5755 = vpop.permute.xlu0 %5754
        %v5757 = vsel %vm1197, %v5749, 0
        %v5760 = vsel %vm1197, %v5750, 0
        %v5763 = vsel %vm1197, %v5753, 0
        %v5766 = vsel %vm1197, %v5755, 0
        %5768 = vmatpush.bf16.xpose.msra.mxu0 0
        %5769 = vmatpush.bf16.xpose.msra.mxu0 0
        %5770 = vmatpush.bf16.xpose.msra.mxu0 0
        %5771 = vmatpush.bf16.xpose.msra.mxu0 0
        %5772 = vmatpush.bf16.xpose.msra.mxu0 0
        %5773 = vmatpush.bf16.xpose.msra.mxu0 0
        %5774 = vmatpush.bf16.xpose.msra.mxu0 %v5766
        %5775 = vmatpush.bf16.xpose.msra.mxu0 %v5763
        %5776 = vmatmul.bf16.gmra.mxu0 %v5757
        %v5777 = vpop.f32.mrf.mxu0
        %v5778 = vadd.f32 0.0, %v5777
        %v5779 = vpop.f32.mrf.mxu0
        %v5780 = vadd.f32 0.0, %v5779
        %5781 = vmatmul.bf16.gmra.mxu0 %v5760
        %v5782 = vpop.f32.mrf.mxu0
        %v5783 = vadd.f32 0.0, %v5782
        %v5784 = vpop.f32.mrf.mxu0
        %5785 = vdwg.mxu0
        %v5788 = vunpack.c.l.b16 %v5726
        %v5789 = vunpack.c.l.b16 %v5727
        %v5790 = vpack.c.b16 %v5788, %v5075
        %v5791 = vpack.c.b16 %v5789, %v5789
        %v5793 = vshrl.u32 %v5790, 16
        %v5795 = vshll.u32 %v5790, 16
        %v5797 = vrot.slane %v5795, 1
        %v5798 = vor.u32 %v5793, %v5797
        %v5800 = vshll.u32 %v5791, 16
        %v5802 = vrot.slane %v5800, 1
        %v5803 = vsel %vm1908, %v5798, %v5802
        %v5804 = vshrl.u32 %v5791, 16
        %5806 = vrot.lane.b32.xlu0 %v5803, 96
        %v5807 = vpop.permute.xlu0 %5806
        %5808 = vrot.lane.b32.xlu0 %v5804, 96
        %v5809 = vpop.permute.xlu0 %5808
        %v5811 = vsel %vm1197, %v5803, 0
        %v5814 = vsel %vm1197, %v5804, 0
        %v5817 = vsel %vm1197, %v5807, 0
        %v5820 = vsel %vm1197, %v5809, 0
        %5822 = vmatpush.bf16.xpose.msra.mxu0 0
        %5823 = vmatpush.bf16.xpose.msra.mxu0 0
        %5824 = vmatpush.bf16.xpose.msra.mxu0 0
        %5825 = vmatpush.bf16.xpose.msra.mxu0 0
        %5826 = vmatpush.bf16.xpose.msra.mxu0 0
        %5827 = vmatpush.bf16.xpose.msra.mxu0 0
        %5828 = vmatpush.bf16.xpose.msra.mxu0 %v5820
        %5829 = vmatpush.bf16.xpose.msra.mxu0 %v5817
        %5830 = vmatmul.bf16.gmra.mxu0 %v5811
        %v5831 = vpop.f32.mrf.mxu0
        %v5832 = vadd.f32 0.0, %v5831
        %v5833 = vpop.f32.mrf.mxu0
        %v5834 = vadd.f32 0.0, %v5833
        %5835 = vmatmul.bf16.gmra.mxu0 %v5814
        %v5836 = vpop.f32.mrf.mxu0
        %v5837 = vadd.f32 0.0, %v5836
        %v5838 = vpop.f32.mrf.mxu0
        %5839 = vdwg.mxu0
        %v5842 = vunpack.c.l.b16 %v5728
        %v5843 = vunpack.c.l.b16 %v5729
        %v5844 = vpack.c.b16 %v5842, %v5117
        %v5845 = vpack.c.b16 %v5843, %v5843
        %v5847 = vshrl.u32 %v5844, 16
        %v5849 = vshll.u32 %v5844, 16
        %v5851 = vrot.slane %v5849, 1
        %v5852 = vor.u32 %v5847, %v5851
        %v5854 = vshll.u32 %v5845, 16
        %v5856 = vrot.slane %v5854, 1
        %v5857 = vsel %vm1908, %v5852, %v5856
        %v5858 = vshrl.u32 %v5845, 16
        %5860 = vrot.lane.b32.xlu0 %v5857, 96
        %v5861 = vpop.permute.xlu0 %5860
        %5862 = vrot.lane.b32.xlu0 %v5858, 96
        %v5863 = vpop.permute.xlu0 %5862
        %v5865 = vsel %vm1197, %v5857, 0
        %v5868 = vsel %vm1197, %v5858, 0
        %v5871 = vsel %vm1197, %v5861, 0
        %v5874 = vsel %vm1197, %v5863, 0
        %5876 = vmatpush.bf16.xpose.msra.mxu0 0
        %5877 = vmatpush.bf16.xpose.msra.mxu0 0
        %5878 = vmatpush.bf16.xpose.msra.mxu0 0
        %5879 = vmatpush.bf16.xpose.msra.mxu0 0
        %5880 = vmatpush.bf16.xpose.msra.mxu0 0
        %5881 = vmatpush.bf16.xpose.msra.mxu0 0
        %5882 = vmatpush.bf16.xpose.msra.mxu0 %v5874
        %5883 = vmatpush.bf16.xpose.msra.mxu0 %v5871
        %5884 = vmatmul.bf16.gmra.mxu0 %v5865
        %v5885 = vpop.f32.mrf.mxu0
        %v5886 = vadd.f32 0.0, %v5885
        %v5887 = vpop.f32.mrf.mxu0
        %v5888 = vadd.f32 0.0, %v5887
        %5889 = vmatmul.bf16.gmra.mxu0 %v5868
        %v5890 = vpop.f32.mrf.mxu0
        %v5891 = vadd.f32 0.0, %v5890
        %v5892 = vpop.f32.mrf.mxu0
        %5893 = vdwg.mxu0
        %v5896 = vunpack.c.l.b16 %v5730
        %v5897 = vunpack.c.l.b16 %v5731
        %v5898 = vpack.c.b16 %v5896, %v5159
        %v5899 = vpack.c.b16 %v5897, %v5897
        %v5901 = vshrl.u32 %v5898, 16
        %v5903 = vshll.u32 %v5898, 16
        %v5905 = vrot.slane %v5903, 1
        %v5906 = vor.u32 %v5901, %v5905
        %v5908 = vshll.u32 %v5899, 16
        %v5910 = vrot.slane %v5908, 1
        %v5911 = vsel %vm1908, %v5906, %v5910
        %v5912 = vshrl.u32 %v5899, 16
        %5914 = vrot.lane.b32.xlu0 %v5911, 96
        %v5915 = vpop.permute.xlu0 %5914
        %5916 = vrot.lane.b32.xlu0 %v5912, 96
        %v5917 = vpop.permute.xlu0 %5916
        %v5919 = vsel %vm1197, %v5911, 0
        %v5922 = vsel %vm1197, %v5912, 0
        %v5925 = vsel %vm1197, %v5915, 0
        %v5928 = vsel %vm1197, %v5917, 0
        %5930 = vmatpush.bf16.xpose.msra.mxu0 0
        %5931 = vmatpush.bf16.xpose.msra.mxu0 0
        %5932 = vmatpush.bf16.xpose.msra.mxu0 0
        %5933 = vmatpush.bf16.xpose.msra.mxu0 0
        %5934 = vmatpush.bf16.xpose.msra.mxu0 0
        %5935 = vmatpush.bf16.xpose.msra.mxu0 0
        %5936 = vmatpush.bf16.xpose.msra.mxu0 %v5928
        %5937 = vmatpush.bf16.xpose.msra.mxu0 %v5925
        %5938 = vmatmul.bf16.gmra.mxu0 %v5919
        %v5939 = vpop.f32.mrf.mxu0
        %v5940 = vadd.f32 0.0, %v5939
        %v5941 = vpop.f32.mrf.mxu0
        %v5942 = vadd.f32 0.0, %v5941
        %5943 = vmatmul.bf16.gmra.mxu0 %v5922
        %v5944 = vpop.f32.mrf.mxu0
        %v5945 = vadd.f32 0.0, %v5944
        %v5946 = vpop.f32.mrf.mxu0
        %5947 = vdwg.mxu0
        %v5948 = vsel %vm1354, %v5778, -inf
        %5949 = vmax.xlane.f32.xlu0 %v5948
        %v5950 = vpop.xlane.xlu0 %5949
        %v5951 = vsel %vm1354, %v5780, -inf
        %5952 = vmax.xlane.f32.xlu0 %v5951
        %v5953 = vpop.xlane.xlu0 %5952
        %v5954 = vsel %vm1361, %v5783, -inf
        %5955 = vmax.xlane.f32.xlu0 %v5954
        %v5956 = vpop.xlane.xlu0 %5955
        %v5957 = vsel %vm1354, %v5832, -inf
        %5958 = vmax.xlane.f32.xlu0 %v5957
        %v5959 = vpop.xlane.xlu0 %5958
        %v5960 = vsel %vm1354, %v5834, -inf
        %5961 = vmax.xlane.f32.xlu0 %v5960
        %v5962 = vpop.xlane.xlu0 %5961
        %v5963 = vsel %vm1361, %v5837, -inf
        %5964 = vmax.xlane.f32.xlu0 %v5963
        %v5965 = vpop.xlane.xlu0 %5964
        %v5966 = vsel %vm1354, %v5886, -inf
        %5967 = vmax.xlane.f32.xlu0 %v5966
        %v5968 = vpop.xlane.xlu0 %5967
        %v5969 = vsel %vm1354, %v5888, -inf
        %5970 = vmax.xlane.f32.xlu0 %v5969
        %v5971 = vpop.xlane.xlu0 %5970
        %v5972 = vsel %vm1361, %v5891, -inf
        %5973 = vmax.xlane.f32.xlu0 %v5972
        %v5974 = vpop.xlane.xlu0 %5973
        %v5975 = vsel %vm1354, %v5940, -inf
        %5976 = vmax.xlane.f32.xlu0 %v5975
        %v5977 = vpop.xlane.xlu0 %5976
        %v5978 = vsel %vm1354, %v5942, -inf
        %5979 = vmax.xlane.f32.xlu0 %v5978
        %v5980 = vpop.xlane.xlu0 %5979
        %v5981 = vsel %vm1361, %v5945, -inf
        %5982 = vmax.xlane.f32.xlu0 %v5981
        %v5983 = vpop.xlane.xlu0 %5982
        %v5984 = vsub.f32 %v5778, %v5950
        %v5985 = vsub.f32 %v5780, %v5953
        %v5986 = vsub.f32 %v5783, %v5956
        %v5987 = vsub.f32 %v5832, %v5959
        %v5988 = vsub.f32 %v5834, %v5962
        %v5989 = vsub.f32 %v5837, %v5965
        %v5990 = vsub.f32 %v5886, %v5968
        %v5991 = vsub.f32 %v5888, %v5971
        %v5992 = vsub.f32 %v5891, %v5974
        %v5993 = vsub.f32 %v5940, %v5977
        %v5994 = vsub.f32 %v5942, %v5980
        %v5995 = vsub.f32 %v5945, %v5983
        %v5996 = vmul.f32 %v5984, 1.442695
        %v5997 = vpow.pop %v5996
        %v5998 = vmul.f32 %v5985, 1.442695
        %v5999 = vpow.pop %v5998
        %v6000 = vmul.f32 %v5986, 1.442695
        %v6001 = vpow.pop %v6000
        %v6002 = vmul.f32 %v5987, 1.442695
        %v6003 = vpow.pop %v6002
        %v6004 = vmul.f32 %v5988, 1.442695
        %v6005 = vpow.pop %v6004
        %v6006 = vmul.f32 %v5989, 1.442695
        %v6007 = vpow.pop %v6006
        %v6008 = vmul.f32 %v5990, 1.442695
        %v6009 = vpow.pop %v6008
        %v6010 = vmul.f32 %v5991, 1.442695
        %v6011 = vpow.pop %v6010
        %v6012 = vmul.f32 %v5992, 1.442695
        %v6013 = vpow.pop %v6012
        %v6014 = vmul.f32 %v5993, 1.442695
        %v6015 = vpow.pop %v6014
        %v6016 = vmul.f32 %v5994, 1.442695
        %v6017 = vpow.pop %v6016
        %v6018 = vmul.f32 %v5995, 1.442695
        %v6019 = vpow.pop %v6018
        %v6020 = vsel %vm1354, %v5997, 0.0
        %6021 = vadd.xlane.f32.xlu0 %v6020
        %v6022 = vpop.xlane.xlu0 %6021
        %v6023 = vsel %vm1354, %v5999, 0.0
        %6024 = vadd.xlane.f32.xlu0 %v6023
        %v6025 = vpop.xlane.xlu0 %6024
        %v6026 = vsel %vm1361, %v6001, 0.0
        %6027 = vadd.xlane.f32.xlu0 %v6026
        %v6028 = vpop.xlane.xlu0 %6027
        %v6029 = vsel %vm1354, %v6003, 0.0
        %6030 = vadd.xlane.f32.xlu0 %v6029
        %v6031 = vpop.xlane.xlu0 %6030
        %v6032 = vsel %vm1354, %v6005, 0.0
        %6033 = vadd.xlane.f32.xlu0 %v6032
        %v6034 = vpop.xlane.xlu0 %6033
        %v6035 = vsel %vm1361, %v6007, 0.0
        %6036 = vadd.xlane.f32.xlu0 %v6035
        %v6037 = vpop.xlane.xlu0 %6036
        %v6038 = vsel %vm1354, %v6009, 0.0
        %6039 = vadd.xlane.f32.xlu0 %v6038
        %v6040 = vpop.xlane.xlu0 %6039
        %v6041 = vsel %vm1354, %v6011, 0.0
        %6042 = vadd.xlane.f32.xlu0 %v6041
        %v6043 = vpop.xlane.xlu0 %6042
        %v6044 = vsel %vm1361, %v6013, 0.0
        %6045 = vadd.xlane.f32.xlu0 %v6044
        %v6046 = vpop.xlane.xlu0 %6045
        %v6047 = vsel %vm1354, %v6015, 0.0
        %6048 = vadd.xlane.f32.xlu0 %v6047
        %v6049 = vpop.xlane.xlu0 %6048
        %v6050 = vsel %vm1354, %v6017, 0.0
        %6051 = vadd.xlane.f32.xlu0 %v6050
        %v6052 = vpop.xlane.xlu0 %6051
        %v6053 = vsel %vm1361, %v6019, 0.0
        %6054 = vadd.xlane.f32.xlu0 %v6053
        %v6055 = vpop.xlane.xlu0 %6054
        %v6056 = vrcp.pop %v6022
        %v6057 = vmul.f32 %v6022, %v6056
        %v6058 = vsub.f32 1.0, %v6057
        %v6059 = vmul.f32 %v6056, %v6058
        %v6060 = vadd.f32 %v6056, %v6059
        %vm6061 = vweird.f32 %v6022
        %vm6062 = vweird.f32 %v6056
        %vm6063 = vmor %vm6061, %vm6062
        %v6064 = vsel %vm6063, %v6056, %v6060
        %v6065 = vand.u32 2147483647, %v6022
        %vm6066 = vcmp.eq.f32.partialorder %v6065, 8.507059e+37
        %v6067 = vand.u32 %v6022, 2147483648
        %v6068 = vor.u32 1.1754944e-38, %v6067
        %v6069 = vsel %vm6066, %v6068, %v6064
        %v6070 = vmul.f32 %v5997, %v6069
        %v6071 = vrcp.pop %v6025
        %v6072 = vmul.f32 %v6025, %v6071
        %v6073 = vsub.f32 1.0, %v6072
        %v6074 = vmul.f32 %v6071, %v6073
        %v6075 = vadd.f32 %v6071, %v6074
        %vm6076 = vweird.f32 %v6025
        %vm6077 = vweird.f32 %v6071
        %vm6078 = vmor %vm6076, %vm6077
        %v6079 = vsel %vm6078, %v6071, %v6075
        %v6080 = vand.u32 2147483647, %v6025
        %vm6081 = vcmp.eq.f32.partialorder %v6080, 8.507059e+37
        %v6082 = vand.u32 %v6025, 2147483648
        %v6083 = vor.u32 1.1754944e-38, %v6082
        %v6084 = vsel %vm6081, %v6083, %v6079
        %v6085 = vmul.f32 %v5999, %v6084
        %v6086 = vrcp.pop %v6028
        %v6087 = vmul.f32 %v6028, %v6086
        %v6088 = vsub.f32 1.0, %v6087
        %v6089 = vmul.f32 %v6086, %v6088
        %v6090 = vadd.f32 %v6086, %v6089
        %vm6091 = vweird.f32 %v6028
        %vm6092 = vweird.f32 %v6086
        %vm6093 = vmor %vm6091, %vm6092
        %v6094 = vsel %vm6093, %v6086, %v6090
        %v6095 = vand.u32 2147483647, %v6028
        %vm6096 = vcmp.eq.f32.partialorder %v6095, 8.507059e+37
        %v6097 = vand.u32 %v6028, 2147483648
        %v6098 = vor.u32 1.1754944e-38, %v6097
        %v6099 = vsel %vm6096, %v6098, %v6094
        %v6100 = vmul.f32 %v6001, %v6099
        %v6101 = vrcp.pop %v6031
        %v6102 = vmul.f32 %v6031, %v6101
        %v6103 = vsub.f32 1.0, %v6102
        %v6104 = vmul.f32 %v6101, %v6103
        %v6105 = vadd.f32 %v6101, %v6104
        %vm6106 = vweird.f32 %v6031
        %vm6107 = vweird.f32 %v6101
        %vm6108 = vmor %vm6106, %vm6107
        %v6109 = vsel %vm6108, %v6101, %v6105
        %v6110 = vand.u32 2147483647, %v6031
        %vm6111 = vcmp.eq.f32.partialorder %v6110, 8.507059e+37
        %v6112 = vand.u32 %v6031, 2147483648
        %v6113 = vor.u32 1.1754944e-38, %v6112
        %v6114 = vsel %vm6111, %v6113, %v6109
        %v6115 = vmul.f32 %v6003, %v6114
        %v6116 = vrcp.pop %v6034
        %v6117 = vmul.f32 %v6034, %v6116
        %v6118 = vsub.f32 1.0, %v6117
        %v6119 = vmul.f32 %v6116, %v6118
        %v6120 = vadd.f32 %v6116, %v6119
        %vm6121 = vweird.f32 %v6034
        %vm6122 = vweird.f32 %v6116
        %vm6123 = vmor %vm6121, %vm6122
        %v6124 = vsel %vm6123, %v6116, %v6120
        %v6125 = vand.u32 2147483647, %v6034
        %vm6126 = vcmp.eq.f32.partialorder %v6125, 8.507059e+37
        %v6127 = vand.u32 %v6034, 2147483648
        %v6128 = vor.u32 1.1754944e-38, %v6127
        %v6129 = vsel %vm6126, %v6128, %v6124
        %v6130 = vmul.f32 %v6005, %v6129
        %v6131 = vrcp.pop %v6037
        %v6132 = vmul.f32 %v6037, %v6131
        %v6133 = vsub.f32 1.0, %v6132
        %v6134 = vmul.f32 %v6131, %v6133
        %v6135 = vadd.f32 %v6131, %v6134
        %vm6136 = vweird.f32 %v6037
        %vm6137 = vweird.f32 %v6131
        %vm6138 = vmor %vm6136, %vm6137
        %v6139 = vsel %vm6138, %v6131, %v6135
        %v6140 = vand.u32 2147483647, %v6037
        %vm6141 = vcmp.eq.f32.partialorder %v6140, 8.507059e+37
        %v6142 = vand.u32 %v6037, 2147483648
        %v6143 = vor.u32 1.1754944e-38, %v6142
        %v6144 = vsel %vm6141, %v6143, %v6139
        %v6145 = vmul.f32 %v6007, %v6144
        %v6146 = vrcp.pop %v6040
        %v6147 = vmul.f32 %v6040, %v6146
        %v6148 = vsub.f32 1.0, %v6147
        %v6149 = vmul.f32 %v6146, %v6148
        %v6150 = vadd.f32 %v6146, %v6149
        %vm6151 = vweird.f32 %v6040
        %vm6152 = vweird.f32 %v6146
        %vm6153 = vmor %vm6151, %vm6152
        %v6154 = vsel %vm6153, %v6146, %v6150
        %v6155 = vand.u32 2147483647, %v6040
        %vm6156 = vcmp.eq.f32.partialorder %v6155, 8.507059e+37
        %v6157 = vand.u32 %v6040, 2147483648
        %v6158 = vor.u32 1.1754944e-38, %v6157
        %v6159 = vsel %vm6156, %v6158, %v6154
        %v6160 = vmul.f32 %v6009, %v6159
        %v6161 = vrcp.pop %v6043
        %v6162 = vmul.f32 %v6043, %v6161
        %v6163 = vsub.f32 1.0, %v6162
        %v6164 = vmul.f32 %v6161, %v6163
        %v6165 = vadd.f32 %v6161, %v6164
        %vm6166 = vweird.f32 %v6043
        %vm6167 = vweird.f32 %v6161
        %vm6168 = vmor %vm6166, %vm6167
        %v6169 = vsel %vm6168, %v6161, %v6165
        %v6170 = vand.u32 2147483647, %v6043
        %vm6171 = vcmp.eq.f32.partialorder %v6170, 8.507059e+37
        %v6172 = vand.u32 %v6043, 2147483648
        %v6173 = vor.u32 1.1754944e-38, %v6172
        %v6174 = vsel %vm6171, %v6173, %v6169
        %v6175 = vmul.f32 %v6011, %v6174
        %v6176 = vrcp.pop %v6046
        %v6177 = vmul.f32 %v6046, %v6176
        %v6178 = vsub.f32 1.0, %v6177
        %v6179 = vmul.f32 %v6176, %v6178
        %v6180 = vadd.f32 %v6176, %v6179
        %vm6181 = vweird.f32 %v6046
        %vm6182 = vweird.f32 %v6176
        %vm6183 = vmor %vm6181, %vm6182
        %v6184 = vsel %vm6183, %v6176, %v6180
        %v6185 = vand.u32 2147483647, %v6046
        %vm6186 = vcmp.eq.f32.partialorder %v6185, 8.507059e+37
        %v6187 = vand.u32 %v6046, 2147483648
        %v6188 = vor.u32 1.1754944e-38, %v6187
        %v6189 = vsel %vm6186, %v6188, %v6184
        %v6190 = vmul.f32 %v6013, %v6189
        %v6191 = vrcp.pop %v6049
        %v6192 = vmul.f32 %v6049, %v6191
        %v6193 = vsub.f32 1.0, %v6192
        %v6194 = vmul.f32 %v6191, %v6193
        %v6195 = vadd.f32 %v6191, %v6194
        %vm6196 = vweird.f32 %v6049
        %vm6197 = vweird.f32 %v6191
        %vm6198 = vmor %vm6196, %vm6197
        %v6199 = vsel %vm6198, %v6191, %v6195
        %v6200 = vand.u32 2147483647, %v6049
        %vm6201 = vcmp.eq.f32.partialorder %v6200, 8.507059e+37
        %v6202 = vand.u32 %v6049, 2147483648
        %v6203 = vor.u32 1.1754944e-38, %v6202
        %v6204 = vsel %vm6201, %v6203, %v6199
        %v6205 = vmul.f32 %v6015, %v6204
        %v6206 = vrcp.pop %v6052
        %v6207 = vmul.f32 %v6052, %v6206
        %v6208 = vsub.f32 1.0, %v6207
        %v6209 = vmul.f32 %v6206, %v6208
        %v6210 = vadd.f32 %v6206, %v6209
        %vm6211 = vweird.f32 %v6052
        %vm6212 = vweird.f32 %v6206
        %vm6213 = vmor %vm6211, %vm6212
        %v6214 = vsel %vm6213, %v6206, %v6210
        %v6215 = vand.u32 2147483647, %v6052
        %vm6216 = vcmp.eq.f32.partialorder %v6215, 8.507059e+37
        %v6217 = vand.u32 %v6052, 2147483648
        %v6218 = vor.u32 1.1754944e-38, %v6217
        %v6219 = vsel %vm6216, %v6218, %v6214
        %v6220 = vmul.f32 %v6017, %v6219
        %v6221 = vrcp.pop %v6055
        %v6222 = vmul.f32 %v6055, %v6221
        %v6223 = vsub.f32 1.0, %v6222
        %v6224 = vmul.f32 %v6221, %v6223
        %v6225 = vadd.f32 %v6221, %v6224
        %vm6226 = vweird.f32 %v6055
        %vm6227 = vweird.f32 %v6221
        %vm6228 = vmor %vm6226, %vm6227
        %v6229 = vsel %vm6228, %v6221, %v6225
        %v6230 = vand.u32 2147483647, %v6055
        %vm6231 = vcmp.eq.f32.partialorder %v6230, 8.507059e+37
        %v6232 = vand.u32 %v6055, 2147483648
        %v6233 = vor.u32 1.1754944e-38, %v6232
        %v6234 = vsel %vm6231, %v6233, %v6229
        %v6235 = vmul.f32 %v6019, %v6234
        %v6236 = vpack.c.bf16 %v6070, %v6070
        %v6237 = vpack.c.bf16 %v6085, %v6085
        %v6238 = vpack.c.bf16 %v6100, %v6100
        %v6239 = vpack.c.bf16 %v6115, %v6115
        %v6240 = vpack.c.bf16 %v6130, %v6130
        %v6241 = vpack.c.bf16 %v6145, %v6145
        %v6242 = vpack.c.bf16 %v6160, %v6160
        %v6243 = vpack.c.bf16 %v6175, %v6175
        %v6244 = vpack.c.bf16 %v6190, %v6190
        %v6245 = vpack.c.bf16 %v6205, %v6205
        %v6246 = vpack.c.bf16 %v6220, %v6220
        %v6247 = vpack.c.bf16 %v6235, %v6235
        %v6251 = vunpack.c.l.b16 %v6236
        %v6252 = vunpack.c.l.b16 %v6237
        %v6253 = vunpack.c.l.b16 %v6238
        %v6254 = vpack.c.b16 %v6252, %v6251
        %v6255 = vpack.c.b16 %v6253, %v6253
        %6256 = vrot.lane.b32.xlu0 %v5749, 64
        %v6257 = vpop.permute.xlu0 %6256
        %6258 = vrot.lane.b32.xlu0 %v5750, 64
        %v6259 = vpop.permute.xlu0 %6258
        %v6262 = vsel %vm1354, %v6254, 0
        %v6265 = vsel %vm1354, %v6255, 0
        %v6268 = vand.u32 %v6259, %v1677
        %6270 = vmatpush.bf16.msra.mxu0 0
        %6271 = vmatpush.bf16.msra.mxu0 0
        %6272 = vmatpush.bf16.msra.mxu0 0
        %6273 = vmatpush.bf16.msra.mxu0 0
        %6274 = vmatpush.bf16.msra.mxu0 0
        %6275 = vmatpush.bf16.msra.mxu0 0
        %6276 = vmatpush.bf16.msra.mxu0 %v6268
        %6277 = vmatpush.bf16.msra.mxu0 %v6257
        %6278 = vmatmul.bf16.gmra.mxu0 %v6262
        %v6279 = vpop.f32.mrf.mxu0
        %v6280 = vadd.f32 0.0, %v6279
        %v6281 = vpop.f32.mrf.mxu0
        %v6282 = vadd.f32 0.0, %v6281
        %6283 = vmatmul.bf16.gmra.mxu0 %v6265
        %v6284 = vpop.f32.mrf.mxu0
        %v6285 = vadd.f32 0.0, %v6284
        %v6286 = vpop.f32.mrf.mxu0
        %6287 = vdwg.mxu0
        %v6291 = vunpack.c.l.b16 %v6239
        %v6292 = vunpack.c.l.b16 %v6240
        %v6293 = vunpack.c.l.b16 %v6241
        %v6294 = vpack.c.b16 %v6292, %v6291
        %v6295 = vpack.c.b16 %v6293, %v6293
        %6296 = vrot.lane.b32.xlu0 %v5803, 64
        %v6297 = vpop.permute.xlu0 %6296
        %6298 = vrot.lane.b32.xlu0 %v5804, 64
        %v6299 = vpop.permute.xlu0 %6298
        %v6302 = vsel %vm1354, %v6294, 0
        %v6305 = vsel %vm1354, %v6295, 0
        %v6308 = vand.u32 %v6299, %v1677
        %6310 = vmatpush.bf16.msra.mxu0 0
        %6311 = vmatpush.bf16.msra.mxu0 0
        %6312 = vmatpush.bf16.msra.mxu0 0
        %6313 = vmatpush.bf16.msra.mxu0 0
        %6314 = vmatpush.bf16.msra.mxu0 0
        %6315 = vmatpush.bf16.msra.mxu0 0
        %6316 = vmatpush.bf16.msra.mxu0 %v6308
        %6317 = vmatpush.bf16.msra.mxu0 %v6297
        %6318 = vmatmul.bf16.gmra.mxu0 %v6302
        %v6319 = vpop.f32.mrf.mxu0
        %v6320 = vadd.f32 0.0, %v6319
        %v6321 = vpop.f32.mrf.mxu0
        %v6322 = vadd.f32 0.0, %v6321
        %6323 = vmatmul.bf16.gmra.mxu0 %v6305
        %v6324 = vpop.f32.mrf.mxu0
        %v6325 = vadd.f32 0.0, %v6324
        %v6326 = vpop.f32.mrf.mxu0
        %6327 = vdwg.mxu0
        %v6331 = vunpack.c.l.b16 %v6242
        %v6332 = vunpack.c.l.b16 %v6243
        %v6333 = vunpack.c.l.b16 %v6244
        %v6334 = vpack.c.b16 %v6332, %v6331
        %v6335 = vpack.c.b16 %v6333, %v6333
        %6336 = vrot.lane.b32.xlu0 %v5857, 64
        %v6337 = vpop.permute.xlu0 %6336
        %6338 = vrot.lane.b32.xlu0 %v5858, 64
        %v6339 = vpop.permute.xlu0 %6338
        %v6342 = vsel %vm1354, %v6334, 0
        %v6345 = vsel %vm1354, %v6335, 0
        %v6348 = vand.u32 %v6339, %v1677
        %6350 = vmatpush.bf16.msra.mxu0 0
        %6351 = vmatpush.bf16.msra.mxu0 0
        %6352 = vmatpush.bf16.msra.mxu0 0
        %6353 = vmatpush.bf16.msra.mxu0 0
        %6354 = vmatpush.bf16.msra.mxu0 0
        %6355 = vmatpush.bf16.msra.mxu0 0
        %6356 = vmatpush.bf16.msra.mxu0 %v6348
        %6357 = vmatpush.bf16.msra.mxu0 %v6337
        %6358 = vmatmul.bf16.gmra.mxu0 %v6342
        %v6359 = vpop.f32.mrf.mxu0
        %v6360 = vadd.f32 0.0, %v6359
        %v6361 = vpop.f32.mrf.mxu0
        %v6362 = vadd.f32 0.0, %v6361
        %6363 = vmatmul.bf16.gmra.mxu0 %v6345
        %v6364 = vpop.f32.mrf.mxu0
        %v6365 = vadd.f32 0.0, %v6364
        %v6366 = vpop.f32.mrf.mxu0
        %6367 = vdwg.mxu0
        %v6371 = vunpack.c.l.b16 %v6245
        %v6372 = vunpack.c.l.b16 %v6246
        %v6373 = vunpack.c.l.b16 %v6247
        %v6374 = vpack.c.b16 %v6372, %v6371
        %v6375 = vpack.c.b16 %v6373, %v6373
        %6376 = vrot.lane.b32.xlu0 %v5911, 64
        %v6377 = vpop.permute.xlu0 %6376
        %6378 = vrot.lane.b32.xlu0 %v5912, 64
        %v6379 = vpop.permute.xlu0 %6378
        %v6382 = vsel %vm1354, %v6374, 0
        %v6385 = vsel %vm1354, %v6375, 0
        %v6388 = vand.u32 %v6379, %v1677
        %6390 = vmatpush.bf16.msra.mxu0 0
        %6391 = vmatpush.bf16.msra.mxu0 0
        %6392 = vmatpush.bf16.msra.mxu0 0
        %6393 = vmatpush.bf16.msra.mxu0 0
        %6394 = vmatpush.bf16.msra.mxu0 0
        %6395 = vmatpush.bf16.msra.mxu0 0
        %6396 = vmatpush.bf16.msra.mxu0 %v6388
        %6397 = vmatpush.bf16.msra.mxu0 %v6377
        %6398 = vmatmul.bf16.gmra.mxu0 %v6382
        %v6399 = vpop.f32.mrf.mxu0
        %v6400 = vadd.f32 0.0, %v6399
        %v6401 = vpop.f32.mrf.mxu0
        %v6402 = vadd.f32 0.0, %v6401
        %6403 = vmatmul.bf16.gmra.mxu0 %v6385
        %v6404 = vpop.f32.mrf.mxu0
        %v6405 = vadd.f32 0.0, %v6404
        %v6406 = vpop.f32.mrf.mxu0
        %6407 = vdwg.mxu0
        %6408 = vst.msk [vmem:[#allocation2 + $0x11] sm:$0xff] %vm1197, %v6280
        %6409 = vst.msk [vmem:[#allocation2 + $0x19] sm:$0xff] %vm1197, %v6282
        %6410 = vst.msk [vmem:[#allocation2 + $0x21] sm:$0x1] %vm1821, %v6285
        %6414 = vrot.lane.b32.xlu0 %v6320, 8
        %v6415 = vpop.permute.xlu0 %6414
        %6416 = vrot.lane.b32.xlu0 %v6322, 8
        %v6417 = vpop.permute.xlu0 %6416
        %6418 = vrot.lane.b32.xlu0 %v6325, 8
        %v6419 = vpop.permute.xlu0 %6418
        %6423 = vst.msk [vmem:[#allocation2 + $0x11] sm:$0xff] %vm1835, %v6415
        %6424 = vst.msk [vmem:[#allocation2 + $0x19] sm:$0xff] %vm1835, %v6417
        %6425 = vst.msk [vmem:[#allocation2 + $0x21] sm:$0x1] %vm1838, %v6419
        %6429 = vrot.lane.b32.xlu0 %v6360, 16
        %v6430 = vpop.permute.xlu0 %6429
        %6431 = vrot.lane.b32.xlu0 %v6362, 16
        %v6432 = vpop.permute.xlu0 %6431
        %6433 = vrot.lane.b32.xlu0 %v6365, 16
        %v6434 = vpop.permute.xlu0 %6433
        %6438 = vst.msk [vmem:[#allocation2 + $0x11] sm:$0xff] %vm1852, %v6430
        %6439 = vst.msk [vmem:[#allocation2 + $0x19] sm:$0xff] %vm1852, %v6432
        %6440 = vst.msk [vmem:[#allocation2 + $0x21] sm:$0x1] %vm1855, %v6434
        %6444 = vrot.lane.b32.xlu0 %v6400, 24
        %v6445 = vpop.permute.xlu0 %6444
        %6446 = vrot.lane.b32.xlu0 %v6402, 24
        %v6447 = vpop.permute.xlu0 %6446
        %6448 = vrot.lane.b32.xlu0 %v6405, 24
        %v6449 = vpop.permute.xlu0 %6448
        %6453 = vst.msk [vmem:[#allocation2 + $0x11] sm:$0xff] %vm1869, %v6445
        %6454 = vst.msk [vmem:[#allocation2 + $0x19] sm:$0xff] %vm1869, %v6447
        %6455 = vst.msk [vmem:[#allocation2 + $0x21] sm:$0x1] %vm1872, %v6449
        %6458 = vrot.lane.b32.xlu0 %v4975, 120
        %v6459 = vpop.permute.xlu0 %6458
        %6460 = vrot.lane.b32.xlu0 %v4978, 120
        %v6461 = vpop.permute.xlu0 %6460
        %6464 = vrot.lane.b32.xlu0 %v4975, 112
        %v6465 = vpop.permute.xlu0 %6464
        %6466 = vrot.lane.b32.xlu0 %v4978, 112
        %v6467 = vpop.permute.xlu0 %6466
        %6470 = vrot.lane.b32.xlu0 %v4975, 104
        %v6471 = vpop.permute.xlu0 %6470
        %6472 = vrot.lane.b32.xlu0 %v4978, 104
        %v6473 = vpop.permute.xlu0 %6472
        %v6476 = vpack.c.bf16 %v4975, %v4975
        %v6477 = vpack.c.bf16 %v4978, %v4978
        %v6478 = vpack.c.bf16 %v6459, %v6459
        %v6479 = vpack.c.bf16 %v6461, %v6461
        %v6480 = vpack.c.bf16 %v6465, %v6465
        %v6481 = vpack.c.bf16 %v6467, %v6467
        %v6482 = vpack.c.bf16 %v6471, %v6471
        %v6483 = vpack.c.bf16 %v6473, %v6473
        %v6486 = vunpack.c.l.b16 %v6476
        %v6487 = vunpack.c.l.b16 %v6477
        %v6488 = vpack.c.b16 %v6486, %v5735
        %v6489 = vpack.c.b16 %v6487, %v6487
        %v6490 = vrot.slane %v6488, 1
        %v6491 = vrot.slane %v6489, 1
        %v6492 = vsel %vm2661, %v6490, %v6491
        %6493 = vrot.lane.b32.xlu0 %v6492, 96
        %v6494 = vpop.permute.xlu0 %6493
        %6495 = vrot.lane.b32.xlu0 %v6491, 96
        %v6496 = vpop.permute.xlu0 %6495
        %v6498 = vsel %vm1197, %v6492, 0
        %v6501 = vsel %vm1197, %v6491, 0
        %v6504 = vsel %vm1197, %v6494, 0
        %v6507 = vsel %vm1197, %v6496, 0
        %6509 = vmatpush.bf16.xpose.msra.mxu0 0
        %6510 = vmatpush.bf16.xpose.msra.mxu0 0
        %6511 = vmatpush.bf16.xpose.msra.mxu0 0
        %6512 = vmatpush.bf16.xpose.msra.mxu0 0
        %6513 = vmatpush.bf16.xpose.msra.mxu0 0
        %6514 = vmatpush.bf16.xpose.msra.mxu0 0
        %6515 = vmatpush.bf16.xpose.msra.mxu0 %v6507
        %6516 = vmatpush.bf16.xpose.msra.mxu0 %v6504
        %6517 = vmatmul.bf16.gmra.mxu0 %v6498
        %v6518 = vpop.f32.mrf.mxu0
        %v6519 = vadd.f32 0.0, %v6518
        %v6520 = vpop.f32.mrf.mxu0
        %v6521 = vadd.f32 0.0, %v6520
        %6522 = vmatmul.bf16.gmra.mxu0 %v6501
        %v6523 = vpop.f32.mrf.mxu0
        %v6524 = vadd.f32 0.0, %v6523
        %v6525 = vpop.f32.mrf.mxu0
        %6526 = vdwg.mxu0
        %v6529 = vunpack.c.l.b16 %v6478
        %v6530 = vunpack.c.l.b16 %v6479
        %v6531 = vpack.c.b16 %v6529, %v5789
        %v6532 = vpack.c.b16 %v6530, %v6530
        %v6533 = vrot.slane %v6531, 1
        %v6534 = vrot.slane %v6532, 1
        %v6535 = vsel %vm2661, %v6533, %v6534
        %6536 = vrot.lane.b32.xlu0 %v6535, 96
        %v6537 = vpop.permute.xlu0 %6536
        %6538 = vrot.lane.b32.xlu0 %v6534, 96
        %v6539 = vpop.permute.xlu0 %6538
        %v6541 = vsel %vm1197, %v6535, 0
        %v6544 = vsel %vm1197, %v6534, 0
        %v6547 = vsel %vm1197, %v6537, 0
        %v6550 = vsel %vm1197, %v6539, 0
        %6552 = vmatpush.bf16.xpose.msra.mxu0 0
        %6553 = vmatpush.bf16.xpose.msra.mxu0 0
        %6554 = vmatpush.bf16.xpose.msra.mxu0 0
        %6555 = vmatpush.bf16.xpose.msra.mxu0 0
        %6556 = vmatpush.bf16.xpose.msra.mxu0 0
        %6557 = vmatpush.bf16.xpose.msra.mxu0 0
        %6558 = vmatpush.bf16.xpose.msra.mxu0 %v6550
        %6559 = vmatpush.bf16.xpose.msra.mxu0 %v6547
        %6560 = vmatmul.bf16.gmra.mxu0 %v6541
        %v6561 = vpop.f32.mrf.mxu0
        %v6562 = vadd.f32 0.0, %v6561
        %v6563 = vpop.f32.mrf.mxu0
        %v6564 = vadd.f32 0.0, %v6563
        %6565 = vmatmul.bf16.gmra.mxu0 %v6544
        %v6566 = vpop.f32.mrf.mxu0
        %v6567 = vadd.f32 0.0, %v6566
        %v6568 = vpop.f32.mrf.mxu0
        %6569 = vdwg.mxu0
        %v6572 = vunpack.c.l.b16 %v6480
        %v6573 = vunpack.c.l.b16 %v6481
        %v6574 = vpack.c.b16 %v6572, %v5843
        %v6575 = vpack.c.b16 %v6573, %v6573
        %v6576 = vrot.slane %v6574, 1
        %v6577 = vrot.slane %v6575, 1
        %v6578 = vsel %vm2661, %v6576, %v6577
        %6579 = vrot.lane.b32.xlu0 %v6578, 96
        %v6580 = vpop.permute.xlu0 %6579
        %6581 = vrot.lane.b32.xlu0 %v6577, 96
        %v6582 = vpop.permute.xlu0 %6581
        %v6584 = vsel %vm1197, %v6578, 0
        %v6587 = vsel %vm1197, %v6577, 0
        %v6590 = vsel %vm1197, %v6580, 0
        %v6593 = vsel %vm1197, %v6582, 0
        %6595 = vmatpush.bf16.xpose.msra.mxu0 0
        %6596 = vmatpush.bf16.xpose.msra.mxu0 0
        %6597 = vmatpush.bf16.xpose.msra.mxu0 0
        %6598 = vmatpush.bf16.xpose.msra.mxu0 0
        %6599 = vmatpush.bf16.xpose.msra.mxu0 0
        %6600 = vmatpush.bf16.xpose.msra.mxu0 0
        %6601 = vmatpush.bf16.xpose.msra.mxu0 %v6593
        %6602 = vmatpush.bf16.xpose.msra.mxu0 %v6590
        %6603 = vmatmul.bf16.gmra.mxu0 %v6584
        %v6604 = vpop.f32.mrf.mxu0
        %v6605 = vadd.f32 0.0, %v6604
        %v6606 = vpop.f32.mrf.mxu0
        %v6607 = vadd.f32 0.0, %v6606
        %6608 = vmatmul.bf16.gmra.mxu0 %v6587
        %v6609 = vpop.f32.mrf.mxu0
        %v6610 = vadd.f32 0.0, %v6609
        %v6611 = vpop.f32.mrf.mxu0
        %6612 = vdwg.mxu0
        %v6615 = vunpack.c.l.b16 %v6482
        %v6616 = vunpack.c.l.b16 %v6483
        %v6617 = vpack.c.b16 %v6615, %v5897
        %v6618 = vpack.c.b16 %v6616, %v6616
        %v6619 = vrot.slane %v6617, 1
        %v6620 = vrot.slane %v6618, 1
        %v6621 = vsel %vm2661, %v6619, %v6620
        %6622 = vrot.lane.b32.xlu0 %v6621, 96
        %v6623 = vpop.permute.xlu0 %6622
        %6624 = vrot.lane.b32.xlu0 %v6620, 96
        %v6625 = vpop.permute.xlu0 %6624
        %v6627 = vsel %vm1197, %v6621, 0
        %v6630 = vsel %vm1197, %v6620, 0
        %v6633 = vsel %vm1197, %v6623, 0
        %v6636 = vsel %vm1197, %v6625, 0
        %6638 = vmatpush.bf16.xpose.msra.mxu0 0
        %6639 = vmatpush.bf16.xpose.msra.mxu0 0
        %6640 = vmatpush.bf16.xpose.msra.mxu0 0
        %6641 = vmatpush.bf16.xpose.msra.mxu0 0
        %6642 = vmatpush.bf16.xpose.msra.mxu0 0
        %6643 = vmatpush.bf16.xpose.msra.mxu0 0
        %6644 = vmatpush.bf16.xpose.msra.mxu0 %v6636
        %6645 = vmatpush.bf16.xpose.msra.mxu0 %v6633
        %6646 = vmatmul.bf16.gmra.mxu0 %v6627
        %v6647 = vpop.f32.mrf.mxu0
        %v6648 = vadd.f32 0.0, %v6647
        %v6649 = vpop.f32.mrf.mxu0
        %v6650 = vadd.f32 0.0, %v6649
        %6651 = vmatmul.bf16.gmra.mxu0 %v6630
        %v6652 = vpop.f32.mrf.mxu0
        %v6653 = vadd.f32 0.0, %v6652
        %v6654 = vpop.f32.mrf.mxu0
        %6655 = vdwg.mxu0
        %v6656 = vsel %vm1354, %v6519, -inf
        %6657 = vmax.xlane.f32.xlu0 %v6656
        %v6658 = vpop.xlane.xlu0 %6657
        %v6659 = vsel %vm1354, %v6521, -inf
        %6660 = vmax.xlane.f32.xlu0 %v6659
        %v6661 = vpop.xlane.xlu0 %6660
        %v6662 = vsel %vm1361, %v6524, -inf
        %6663 = vmax.xlane.f32.xlu0 %v6662
        %v6664 = vpop.xlane.xlu0 %6663
        %v6665 = vsel %vm1354, %v6562, -inf
        %6666 = vmax.xlane.f32.xlu0 %v6665
        %v6667 = vpop.xlane.xlu0 %6666
        %v6668 = vsel %vm1354, %v6564, -inf
        %6669 = vmax.xlane.f32.xlu0 %v6668
        %v6670 = vpop.xlane.xlu0 %6669
        %v6671 = vsel %vm1361, %v6567, -inf
        %6672 = vmax.xlane.f32.xlu0 %v6671
        %v6673 = vpop.xlane.xlu0 %6672
        %v6674 = vsel %vm1354, %v6605, -inf
        %6675 = vmax.xlane.f32.xlu0 %v6674
        %v6676 = vpop.xlane.xlu0 %6675
        %v6677 = vsel %vm1354, %v6607, -inf
        %6678 = vmax.xlane.f32.xlu0 %v6677
        %v6679 = vpop.xlane.xlu0 %6678
        %v6680 = vsel %vm1361, %v6610, -inf
        %6681 = vmax.xlane.f32.xlu0 %v6680
        %v6682 = vpop.xlane.xlu0 %6681
        %v6683 = vsel %vm1354, %v6648, -inf
        %6684 = vmax.xlane.f32.xlu0 %v6683
        %v6685 = vpop.xlane.xlu0 %6684
        %v6686 = vsel %vm1354, %v6650, -inf
        %6687 = vmax.xlane.f32.xlu0 %v6686
        %v6688 = vpop.xlane.xlu0 %6687
        %v6689 = vsel %vm1361, %v6653, -inf
        %6690 = vmax.xlane.f32.xlu0 %v6689
        %v6691 = vpop.xlane.xlu0 %6690
        %v6692 = vsub.f32 %v6519, %v6658
        %v6693 = vsub.f32 %v6521, %v6661
        %v6694 = vsub.f32 %v6524, %v6664
        %v6695 = vsub.f32 %v6562, %v6667
        %v6696 = vsub.f32 %v6564, %v6670
        %v6697 = vsub.f32 %v6567, %v6673
        %v6698 = vsub.f32 %v6605, %v6676
        %v6699 = vsub.f32 %v6607, %v6679
        %v6700 = vsub.f32 %v6610, %v6682
        %v6701 = vsub.f32 %v6648, %v6685
        %v6702 = vsub.f32 %v6650, %v6688
        %v6703 = vsub.f32 %v6653, %v6691
        %v6704 = vmul.f32 %v6692, 1.442695
        %v6705 = vpow.pop %v6704
        %v6706 = vmul.f32 %v6693, 1.442695
        %v6707 = vpow.pop %v6706
        %v6708 = vmul.f32 %v6694, 1.442695
        %v6709 = vpow.pop %v6708
        %v6710 = vmul.f32 %v6695, 1.442695
        %v6711 = vpow.pop %v6710
        %v6712 = vmul.f32 %v6696, 1.442695
        %v6713 = vpow.pop %v6712
        %v6714 = vmul.f32 %v6697, 1.442695
        %v6715 = vpow.pop %v6714
        %v6716 = vmul.f32 %v6698, 1.442695
        %v6717 = vpow.pop %v6716
        %v6718 = vmul.f32 %v6699, 1.442695
        %v6719 = vpow.pop %v6718
        %v6720 = vmul.f32 %v6700, 1.442695
        %v6721 = vpow.pop %v6720
        %v6722 = vmul.f32 %v6701, 1.442695
        %v6723 = vpow.pop %v6722
        %v6724 = vmul.f32 %v6702, 1.442695
        %v6725 = vpow.pop %v6724
        %v6726 = vmul.f32 %v6703, 1.442695
        %v6727 = vpow.pop %v6726
        %v6728 = vsel %vm1354, %v6705, 0.0
        %6729 = vadd.xlane.f32.xlu0 %v6728
        %v6730 = vpop.xlane.xlu0 %6729
        %v6731 = vsel %vm1354, %v6707, 0.0
        %6732 = vadd.xlane.f32.xlu0 %v6731
        %v6733 = vpop.xlane.xlu0 %6732
        %v6734 = vsel %vm1361, %v6709, 0.0
        %6735 = vadd.xlane.f32.xlu0 %v6734
        %v6736 = vpop.xlane.xlu0 %6735
        %v6737 = vsel %vm1354, %v6711, 0.0
        %6738 = vadd.xlane.f32.xlu0 %v6737
        %v6739 = vpop.xlane.xlu0 %6738
        %v6740 = vsel %vm1354, %v6713, 0.0
        %6741 = vadd.xlane.f32.xlu0 %v6740
        %v6742 = vpop.xlane.xlu0 %6741
        %v6743 = vsel %vm1361, %v6715, 0.0
        %6744 = vadd.xlane.f32.xlu0 %v6743
        %v6745 = vpop.xlane.xlu0 %6744
        %v6746 = vsel %vm1354, %v6717, 0.0
        %6747 = vadd.xlane.f32.xlu0 %v6746
        %v6748 = vpop.xlane.xlu0 %6747
        %v6749 = vsel %vm1354, %v6719, 0.0
        %6750 = vadd.xlane.f32.xlu0 %v6749
        %v6751 = vpop.xlane.xlu0 %6750
        %v6752 = vsel %vm1361, %v6721, 0.0
        %6753 = vadd.xlane.f32.xlu0 %v6752
        %v6754 = vpop.xlane.xlu0 %6753
        %v6755 = vsel %vm1354, %v6723, 0.0
        %6756 = vadd.xlane.f32.xlu0 %v6755
        %v6757 = vpop.xlane.xlu0 %6756
        %v6758 = vsel %vm1354, %v6725, 0.0
        %6759 = vadd.xlane.f32.xlu0 %v6758
        %v6760 = vpop.xlane.xlu0 %6759
        %v6761 = vsel %vm1361, %v6727, 0.0
        %6762 = vadd.xlane.f32.xlu0 %v6761
        %v6763 = vpop.xlane.xlu0 %6762
        %v6764 = vrcp.pop %v6730
        %v6765 = vmul.f32 %v6730, %v6764
        %v6766 = vsub.f32 1.0, %v6765
        %v6767 = vmul.f32 %v6764, %v6766
        %v6768 = vadd.f32 %v6764, %v6767
        %vm6769 = vweird.f32 %v6730
        %vm6770 = vweird.f32 %v6764
        %vm6771 = vmor %vm6769, %vm6770
        %v6772 = vsel %vm6771, %v6764, %v6768
        %v6773 = vand.u32 2147483647, %v6730
        %vm6774 = vcmp.eq.f32.partialorder %v6773, 8.507059e+37
        %v6775 = vand.u32 %v6730, 2147483648
        %v6776 = vor.u32 1.1754944e-38, %v6775
        %v6777 = vsel %vm6774, %v6776, %v6772
        %v6778 = vmul.f32 %v6705, %v6777
        %v6779 = vrcp.pop %v6733
        %v6780 = vmul.f32 %v6733, %v6779
        %v6781 = vsub.f32 1.0, %v6780
        %v6782 = vmul.f32 %v6779, %v6781
        %v6783 = vadd.f32 %v6779, %v6782
        %vm6784 = vweird.f32 %v6733
        %vm6785 = vweird.f32 %v6779
        %vm6786 = vmor %vm6784, %vm6785
        %v6787 = vsel %vm6786, %v6779, %v6783
        %v6788 = vand.u32 2147483647, %v6733
        %vm6789 = vcmp.eq.f32.partialorder %v6788, 8.507059e+37
        %v6790 = vand.u32 %v6733, 2147483648
        %v6791 = vor.u32 1.1754944e-38, %v6790
        %v6792 = vsel %vm6789, %v6791, %v6787
        %v6793 = vmul.f32 %v6707, %v6792
        %v6794 = vrcp.pop %v6736
        %v6795 = vmul.f32 %v6736, %v6794
        %v6796 = vsub.f32 1.0, %v6795
        %v6797 = vmul.f32 %v6794, %v6796
        %v6798 = vadd.f32 %v6794, %v6797
        %vm6799 = vweird.f32 %v6736
        %vm6800 = vweird.f32 %v6794
        %vm6801 = vmor %vm6799, %vm6800
        %v6802 = vsel %vm6801, %v6794, %v6798
        %v6803 = vand.u32 2147483647, %v6736
        %vm6804 = vcmp.eq.f32.partialorder %v6803, 8.507059e+37
        %v6805 = vand.u32 %v6736, 2147483648
        %v6806 = vor.u32 1.1754944e-38, %v6805
        %v6807 = vsel %vm6804, %v6806, %v6802
        %v6808 = vmul.f32 %v6709, %v6807
        %v6809 = vrcp.pop %v6739
        %v6810 = vmul.f32 %v6739, %v6809
        %v6811 = vsub.f32 1.0, %v6810
        %v6812 = vmul.f32 %v6809, %v6811
        %v6813 = vadd.f32 %v6809, %v6812
        %vm6814 = vweird.f32 %v6739
        %vm6815 = vweird.f32 %v6809
        %vm6816 = vmor %vm6814, %vm6815
        %v6817 = vsel %vm6816, %v6809, %v6813
        %v6818 = vand.u32 2147483647, %v6739
        %vm6819 = vcmp.eq.f32.partialorder %v6818, 8.507059e+37
        %v6820 = vand.u32 %v6739, 2147483648
        %v6821 = vor.u32 1.1754944e-38, %v6820
        %v6822 = vsel %vm6819, %v6821, %v6817
        %v6823 = vmul.f32 %v6711, %v6822
        %v6824 = vrcp.pop %v6742
        %v6825 = vmul.f32 %v6742, %v6824
        %v6826 = vsub.f32 1.0, %v6825
        %v6827 = vmul.f32 %v6824, %v6826
        %v6828 = vadd.f32 %v6824, %v6827
        %vm6829 = vweird.f32 %v6742
        %vm6830 = vweird.f32 %v6824
        %vm6831 = vmor %vm6829, %vm6830
        %v6832 = vsel %vm6831, %v6824, %v6828
        %v6833 = vand.u32 2147483647, %v6742
        %vm6834 = vcmp.eq.f32.partialorder %v6833, 8.507059e+37
        %v6835 = vand.u32 %v6742, 2147483648
        %v6836 = vor.u32 1.1754944e-38, %v6835
        %v6837 = vsel %vm6834, %v6836, %v6832
        %v6838 = vmul.f32 %v6713, %v6837
        %v6839 = vrcp.pop %v6745
        %v6840 = vmul.f32 %v6745, %v6839
        %v6841 = vsub.f32 1.0, %v6840
        %v6842 = vmul.f32 %v6839, %v6841
        %v6843 = vadd.f32 %v6839, %v6842
        %vm6844 = vweird.f32 %v6745
        %vm6845 = vweird.f32 %v6839
        %vm6846 = vmor %vm6844, %vm6845
        %v6847 = vsel %vm6846, %v6839, %v6843
        %v6848 = vand.u32 2147483647, %v6745
        %vm6849 = vcmp.eq.f32.partialorder %v6848, 8.507059e+37
        %v6850 = vand.u32 %v6745, 2147483648
        %v6851 = vor.u32 1.1754944e-38, %v6850
        %v6852 = vsel %vm6849, %v6851, %v6847
        %v6853 = vmul.f32 %v6715, %v6852
        %v6854 = vrcp.pop %v6748
        %v6855 = vmul.f32 %v6748, %v6854
        %v6856 = vsub.f32 1.0, %v6855
        %v6857 = vmul.f32 %v6854, %v6856
        %v6858 = vadd.f32 %v6854, %v6857
        %vm6859 = vweird.f32 %v6748
        %vm6860 = vweird.f32 %v6854
        %vm6861 = vmor %vm6859, %vm6860
        %v6862 = vsel %vm6861, %v6854, %v6858
        %v6863 = vand.u32 2147483647, %v6748
        %vm6864 = vcmp.eq.f32.partialorder %v6863, 8.507059e+37
        %v6865 = vand.u32 %v6748, 2147483648
        %v6866 = vor.u32 1.1754944e-38, %v6865
        %v6867 = vsel %vm6864, %v6866, %v6862
        %v6868 = vmul.f32 %v6717, %v6867
        %v6869 = vrcp.pop %v6751
        %v6870 = vmul.f32 %v6751, %v6869
        %v6871 = vsub.f32 1.0, %v6870
        %v6872 = vmul.f32 %v6869, %v6871
        %v6873 = vadd.f32 %v6869, %v6872
        %vm6874 = vweird.f32 %v6751
        %vm6875 = vweird.f32 %v6869
        %vm6876 = vmor %vm6874, %vm6875
        %v6877 = vsel %vm6876, %v6869, %v6873
        %v6878 = vand.u32 2147483647, %v6751
        %vm6879 = vcmp.eq.f32.partialorder %v6878, 8.507059e+37
        %v6880 = vand.u32 %v6751, 2147483648
        %v6881 = vor.u32 1.1754944e-38, %v6880
        %v6882 = vsel %vm6879, %v6881, %v6877
        %v6883 = vmul.f32 %v6719, %v6882
        %v6884 = vrcp.pop %v6754
        %v6885 = vmul.f32 %v6754, %v6884
        %v6886 = vsub.f32 1.0, %v6885
        %v6887 = vmul.f32 %v6884, %v6886
        %v6888 = vadd.f32 %v6884, %v6887
        %vm6889 = vweird.f32 %v6754
        %vm6890 = vweird.f32 %v6884
        %vm6891 = vmor %vm6889, %vm6890
        %v6892 = vsel %vm6891, %v6884, %v6888
        %v6893 = vand.u32 2147483647, %v6754
        %vm6894 = vcmp.eq.f32.partialorder %v6893, 8.507059e+37
        %v6895 = vand.u32 %v6754, 2147483648
        %v6896 = vor.u32 1.1754944e-38, %v6895
        %v6897 = vsel %vm6894, %v6896, %v6892
        %v6898 = vmul.f32 %v6721, %v6897
        %v6899 = vrcp.pop %v6757
        %v6900 = vmul.f32 %v6757, %v6899
        %v6901 = vsub.f32 1.0, %v6900
        %v6902 = vmul.f32 %v6899, %v6901
        %v6903 = vadd.f32 %v6899, %v6902
        %vm6904 = vweird.f32 %v6757
        %vm6905 = vweird.f32 %v6899
        %vm6906 = vmor %vm6904, %vm6905
        %v6907 = vsel %vm6906, %v6899, %v6903
        %v6908 = vand.u32 2147483647, %v6757
        %vm6909 = vcmp.eq.f32.partialorder %v6908, 8.507059e+37
        %v6910 = vand.u32 %v6757, 2147483648
        %v6911 = vor.u32 1.1754944e-38, %v6910
        %v6912 = vsel %vm6909, %v6911, %v6907
        %v6913 = vmul.f32 %v6723, %v6912
        %v6914 = vrcp.pop %v6760
        %v6915 = vmul.f32 %v6760, %v6914
        %v6916 = vsub.f32 1.0, %v6915
        %v6917 = vmul.f32 %v6914, %v6916
        %v6918 = vadd.f32 %v6914, %v6917
        %vm6919 = vweird.f32 %v6760
        %vm6920 = vweird.f32 %v6914
        %vm6921 = vmor %vm6919, %vm6920
        %v6922 = vsel %vm6921, %v6914, %v6918
        %v6923 = vand.u32 2147483647, %v6760
        %vm6924 = vcmp.eq.f32.partialorder %v6923, 8.507059e+37
        %v6925 = vand.u32 %v6760, 2147483648
        %v6926 = vor.u32 1.1754944e-38, %v6925
        %v6927 = vsel %vm6924, %v6926, %v6922
        %v6928 = vmul.f32 %v6725, %v6927
        %v6929 = vrcp.pop %v6763
        %v6930 = vmul.f32 %v6763, %v6929
        %v6931 = vsub.f32 1.0, %v6930
        %v6932 = vmul.f32 %v6929, %v6931
        %v6933 = vadd.f32 %v6929, %v6932
        %vm6934 = vweird.f32 %v6763
        %vm6935 = vweird.f32 %v6929
        %vm6936 = vmor %vm6934, %vm6935
        %v6937 = vsel %vm6936, %v6929, %v6933
        %v6938 = vand.u32 2147483647, %v6763
        %vm6939 = vcmp.eq.f32.partialorder %v6938, 8.507059e+37
        %v6940 = vand.u32 %v6763, 2147483648
        %v6941 = vor.u32 1.1754944e-38, %v6940
        %v6942 = vsel %vm6939, %v6941, %v6937
        %v6943 = vmul.f32 %v6727, %v6942
        %v6944 = vpack.c.bf16 %v6778, %v6778
        %v6945 = vpack.c.bf16 %v6793, %v6793
        %v6946 = vpack.c.bf16 %v6808, %v6808
        %v6947 = vpack.c.bf16 %v6823, %v6823
        %v6948 = vpack.c.bf16 %v6838, %v6838
        %v6949 = vpack.c.bf16 %v6853, %v6853
        %v6950 = vpack.c.bf16 %v6868, %v6868
        %v6951 = vpack.c.bf16 %v6883, %v6883
        %v6952 = vpack.c.bf16 %v6898, %v6898
        %v6953 = vpack.c.bf16 %v6913, %v6913
        %v6954 = vpack.c.bf16 %v6928, %v6928
        %v6955 = vpack.c.bf16 %v6943, %v6943
        %v6959 = vunpack.c.l.b16 %v6944
        %v6960 = vunpack.c.l.b16 %v6945
        %v6961 = vunpack.c.l.b16 %v6946
        %v6962 = vpack.c.b16 %v6960, %v6959
        %v6963 = vpack.c.b16 %v6961, %v6961
        %6964 = vrot.lane.b32.xlu0 %v6492, 64
        %v6965 = vpop.permute.xlu0 %6964
        %6966 = vrot.lane.b32.xlu0 %v6491, 64
        %v6967 = vpop.permute.xlu0 %6966
        %v6970 = vsel %vm1354, %v6962, 0
        %v6973 = vsel %vm1354, %v6963, 0
        %v6976 = vand.u32 %v6967, %v1677
        %6978 = vmatpush.bf16.msra.mxu0 0
        %6979 = vmatpush.bf16.msra.mxu0 0
        %6980 = vmatpush.bf16.msra.mxu0 0
        %6981 = vmatpush.bf16.msra.mxu0 0
        %6982 = vmatpush.bf16.msra.mxu0 0
        %6983 = vmatpush.bf16.msra.mxu0 0
        %6984 = vmatpush.bf16.msra.mxu0 %v6976
        %6985 = vmatpush.bf16.msra.mxu0 %v6965
        %6986 = vmatmul.bf16.gmra.mxu0 %v6970
        %v6987 = vpop.f32.mrf.mxu0
        %v6988 = vadd.f32 0.0, %v6987
        %v6989 = vpop.f32.mrf.mxu0
        %v6990 = vadd.f32 0.0, %v6989
        %6991 = vmatmul.bf16.gmra.mxu0 %v6973
        %v6992 = vpop.f32.mrf.mxu0
        %v6993 = vadd.f32 0.0, %v6992
        %v6994 = vpop.f32.mrf.mxu0
        %6995 = vdwg.mxu0
        %v6999 = vunpack.c.l.b16 %v6947
        %v7000 = vunpack.c.l.b16 %v6948
        %v7001 = vunpack.c.l.b16 %v6949
        %v7002 = vpack.c.b16 %v7000, %v6999
        %v7003 = vpack.c.b16 %v7001, %v7001
        %7004 = vrot.lane.b32.xlu0 %v6535, 64
        %v7005 = vpop.permute.xlu0 %7004
        %7006 = vrot.lane.b32.xlu0 %v6534, 64
        %v7007 = vpop.permute.xlu0 %7006
        %v7010 = vsel %vm1354, %v7002, 0
        %v7013 = vsel %vm1354, %v7003, 0
        %v7016 = vand.u32 %v7007, %v1677
        %7018 = vmatpush.bf16.msra.mxu0 0
        %7019 = vmatpush.bf16.msra.mxu0 0
        %7020 = vmatpush.bf16.msra.mxu0 0
        %7021 = vmatpush.bf16.msra.mxu0 0
        %7022 = vmatpush.bf16.msra.mxu0 0
        %7023 = vmatpush.bf16.msra.mxu0 0
        %7024 = vmatpush.bf16.msra.mxu0 %v7016
        %7025 = vmatpush.bf16.msra.mxu0 %v7005
        %7026 = vmatmul.bf16.gmra.mxu0 %v7010
        %v7027 = vpop.f32.mrf.mxu0
        %v7028 = vadd.f32 0.0, %v7027
        %v7029 = vpop.f32.mrf.mxu0
        %v7030 = vadd.f32 0.0, %v7029
        %7031 = vmatmul.bf16.gmra.mxu0 %v7013
        %v7032 = vpop.f32.mrf.mxu0
        %v7033 = vadd.f32 0.0, %v7032
        %v7034 = vpop.f32.mrf.mxu0
        %7035 = vdwg.mxu0
        %v7039 = vunpack.c.l.b16 %v6950
        %v7040 = vunpack.c.l.b16 %v6951
        %v7041 = vunpack.c.l.b16 %v6952
        %v7042 = vpack.c.b16 %v7040, %v7039
        %v7043 = vpack.c.b16 %v7041, %v7041
        %7044 = vrot.lane.b32.xlu0 %v6578, 64
        %v7045 = vpop.permute.xlu0 %7044
        %7046 = vrot.lane.b32.xlu0 %v6577, 64
        %v7047 = vpop.permute.xlu0 %7046
        %v7050 = vsel %vm1354, %v7042, 0
        %v7053 = vsel %vm1354, %v7043, 0
        %v7056 = vand.u32 %v7047, %v1677
        %7058 = vmatpush.bf16.msra.mxu0 0
        %7059 = vmatpush.bf16.msra.mxu0 0
        %7060 = vmatpush.bf16.msra.mxu0 0
        %7061 = vmatpush.bf16.msra.mxu0 0
        %7062 = vmatpush.bf16.msra.mxu0 0
        %7063 = vmatpush.bf16.msra.mxu0 0
        %7064 = vmatpush.bf16.msra.mxu0 %v7056
        %7065 = vmatpush.bf16.msra.mxu0 %v7045
        %7066 = vmatmul.bf16.gmra.mxu0 %v7050
        %v7067 = vpop.f32.mrf.mxu0
        %v7068 = vadd.f32 0.0, %v7067
        %v7069 = vpop.f32.mrf.mxu0
        %v7070 = vadd.f32 0.0, %v7069
        %7071 = vmatmul.bf16.gmra.mxu0 %v7053
        %v7072 = vpop.f32.mrf.mxu0
        %v7073 = vadd.f32 0.0, %v7072
        %v7074 = vpop.f32.mrf.mxu0
        %7075 = vdwg.mxu0
        %v7079 = vunpack.c.l.b16 %v6953
        %v7080 = vunpack.c.l.b16 %v6954
        %v7081 = vunpack.c.l.b16 %v6955
        %v7082 = vpack.c.b16 %v7080, %v7079
        %v7083 = vpack.c.b16 %v7081, %v7081
        %7084 = vrot.lane.b32.xlu0 %v6621, 64
        %v7085 = vpop.permute.xlu0 %7084
        %7086 = vrot.lane.b32.xlu0 %v6620, 64
        %v7087 = vpop.permute.xlu0 %7086
        %v7090 = vsel %vm1354, %v7082, 0
        %v7093 = vsel %vm1354, %v7083, 0
        %v7096 = vand.u32 %v7087, %v1677
        %7098 = vmatpush.bf16.msra.mxu0 0
        %7099 = vmatpush.bf16.msra.mxu0 0
        %7100 = vmatpush.bf16.msra.mxu0 0
        %7101 = vmatpush.bf16.msra.mxu0 0
        %7102 = vmatpush.bf16.msra.mxu0 0
        %7103 = vmatpush.bf16.msra.mxu0 0
        %7104 = vmatpush.bf16.msra.mxu0 %v7096
        %7105 = vmatpush.bf16.msra.mxu0 %v7085
        %7106 = vmatmul.bf16.gmra.mxu0 %v7090
        %v7107 = vpop.f32.mrf.mxu0
        %v7108 = vadd.f32 0.0, %v7107
        %v7109 = vpop.f32.mrf.mxu0
        %v7110 = vadd.f32 0.0, %v7109
        %7111 = vmatmul.bf16.gmra.mxu0 %v7093
        %v7112 = vpop.f32.mrf.mxu0
        %v7113 = vadd.f32 0.0, %v7112
        %v7114 = vpop.f32.mrf.mxu0
        %7115 = vdwg.mxu0
        %7116 = vst.msk [vmem:[#allocation2 + $0x22] sm:$0xff] %vm1197, %v6988
        %7117 = vst.msk [vmem:[#allocation2 + $0x2a] sm:$0xff] %vm1197, %v6990
        %7118 = vst.msk [vmem:[#allocation2 + $0x32] sm:$0x1] %vm1821, %v6993
        %7122 = vrot.lane.b32.xlu0 %v7028, 8
        %v7123 = vpop.permute.xlu0 %7122
        %7124 = vrot.lane.b32.xlu0 %v7030, 8
        %v7125 = vpop.permute.xlu0 %7124
        %7126 = vrot.lane.b32.xlu0 %v7033, 8
        %v7127 = vpop.permute.xlu0 %7126
        %7131 = vst.msk [vmem:[#allocation2 + $0x22] sm:$0xff] %vm1835, %v7123
        %7132 = vst.msk [vmem:[#allocation2 + $0x2a] sm:$0xff] %vm1835, %v7125
        %7133 = vst.msk [vmem:[#allocation2 + $0x32] sm:$0x1] %vm1838, %v7127
        %7137 = vrot.lane.b32.xlu0 %v7068, 16
        %v7138 = vpop.permute.xlu0 %7137
        %7139 = vrot.lane.b32.xlu0 %v7070, 16
        %v7140 = vpop.permute.xlu0 %7139
        %7141 = vrot.lane.b32.xlu0 %v7073, 16
        %v7142 = vpop.permute.xlu0 %7141
        %7146 = vst.msk [vmem:[#allocation2 + $0x22] sm:$0xff] %vm1852, %v7138
        %7147 = vst.msk [vmem:[#allocation2 + $0x2a] sm:$0xff] %vm1852, %v7140
        %7148 = vst.msk [vmem:[#allocation2 + $0x32] sm:$0x1] %vm1855, %v7142
        %7152 = vrot.lane.b32.xlu0 %v7108, 24
        %v7153 = vpop.permute.xlu0 %7152
        %7154 = vrot.lane.b32.xlu0 %v7110, 24
        %v7155 = vpop.permute.xlu0 %7154
        %7156 = vrot.lane.b32.xlu0 %v7113, 24
        %v7157 = vpop.permute.xlu0 %7156
        %7161 = vst.msk [vmem:[#allocation2 + $0x22] sm:$0xff] %vm1869, %v7153
        %7162 = vst.msk [vmem:[#allocation2 + $0x2a] sm:$0xff] %vm1869, %v7155
        %7163 = vst.msk [vmem:[#allocation2 + $0x32] sm:$0x1] %vm1872, %v7157
        %7166 = vrot.lane.b32.xlu0 %v4980, 120
        %v7167 = vpop.permute.xlu0 %7166
        %7168 = vrot.lane.b32.xlu0 %v4983, 120
        %v7169 = vpop.permute.xlu0 %7168
        %7172 = vrot.lane.b32.xlu0 %v4980, 112
        %v7173 = vpop.permute.xlu0 %7172
        %7174 = vrot.lane.b32.xlu0 %v4983, 112
        %v7175 = vpop.permute.xlu0 %7174
        %7178 = vrot.lane.b32.xlu0 %v4980, 104
        %v7179 = vpop.permute.xlu0 %7178
        %7180 = vrot.lane.b32.xlu0 %v4983, 104
        %v7181 = vpop.permute.xlu0 %7180
        %v7184 = vpack.c.bf16 %v4980, %v4980
        %v7185 = vpack.c.bf16 %v4983, %v4983
        %v7186 = vpack.c.bf16 %v7167, %v7167
        %v7187 = vpack.c.bf16 %v7169, %v7169
        %v7188 = vpack.c.bf16 %v7173, %v7173
        %v7189 = vpack.c.bf16 %v7175, %v7175
        %v7190 = vpack.c.bf16 %v7179, %v7179
        %v7191 = vpack.c.bf16 %v7181, %v7181
        %v7194 = vunpack.c.l.b16 %v7184
        %v7195 = vunpack.c.l.b16 %v7185
        %v7196 = vpack.c.b16 %v7194, %v6487
        %v7197 = vpack.c.b16 %v7195, %v7195
        %v7199 = vshrl.u32 %v7196, 16
        %v7201 = vrot.slane %v7199, 1
        %v7202 = vshll.u32 %v7196, 16
        %v7204 = vrot.slane %v7202, 2
        %v7205 = vor.u32 %v7201, %v7204
        %v7207 = vshrl.u32 %v7197, 16
        %v7209 = vrot.slane %v7207, 1
        %v7210 = vshll.u32 %v7197, 16
        %v7212 = vrot.slane %v7210, 2
        %v7213 = vor.u32 %v7209, %v7212
        %v7214 = vsel %vm3370, %v7205, %v7213
        %7215 = vrot.lane.b32.xlu0 %v7214, 96
        %v7216 = vpop.permute.xlu0 %7215
        %7217 = vrot.lane.b32.xlu0 %v7209, 96
        %v7218 = vpop.permute.xlu0 %7217
        %v7220 = vsel %vm1197, %v7214, 0
        %v7223 = vsel %vm1197, %v7209, 0
        %v7226 = vsel %vm1197, %v7216, 0
        %v7229 = vsel %vm1197, %v7218, 0
        %7231 = vmatpush.bf16.xpose.msra.mxu0 0
        %7232 = vmatpush.bf16.xpose.msra.mxu0 0
        %7233 = vmatpush.bf16.xpose.msra.mxu0 0
        %7234 = vmatpush.bf16.xpose.msra.mxu0 0
        %7235 = vmatpush.bf16.xpose.msra.mxu0 0
        %7236 = vmatpush.bf16.xpose.msra.mxu0 0
        %7237 = vmatpush.bf16.xpose.msra.mxu0 %v7229
        %7238 = vmatpush.bf16.xpose.msra.mxu0 %v7226
        %7239 = vmatmul.bf16.gmra.mxu0 %v7220
        %v7240 = vpop.f32.mrf.mxu0
        %v7241 = vadd.f32 0.0, %v7240
        %v7242 = vpop.f32.mrf.mxu0
        %v7243 = vadd.f32 0.0, %v7242
        %7244 = vmatmul.bf16.gmra.mxu0 %v7223
        %v7245 = vpop.f32.mrf.mxu0
        %v7246 = vadd.f32 0.0, %v7245
        %v7247 = vpop.f32.mrf.mxu0
        %7248 = vdwg.mxu0
        %v7251 = vunpack.c.l.b16 %v7186
        %v7252 = vunpack.c.l.b16 %v7187
        %v7253 = vpack.c.b16 %v7251, %v6530
        %v7254 = vpack.c.b16 %v7252, %v7252
        %v7256 = vshrl.u32 %v7253, 16
        %v7258 = vrot.slane %v7256, 1
        %v7259 = vshll.u32 %v7253, 16
        %v7261 = vrot.slane %v7259, 2
        %v7262 = vor.u32 %v7258, %v7261
        %v7264 = vshrl.u32 %v7254, 16
        %v7266 = vrot.slane %v7264, 1
        %v7267 = vshll.u32 %v7254, 16
        %v7269 = vrot.slane %v7267, 2
        %v7270 = vor.u32 %v7266, %v7269
        %v7271 = vsel %vm3370, %v7262, %v7270
        %7272 = vrot.lane.b32.xlu0 %v7271, 96
        %v7273 = vpop.permute.xlu0 %7272
        %7274 = vrot.lane.b32.xlu0 %v7266, 96
        %v7275 = vpop.permute.xlu0 %7274
        %v7277 = vsel %vm1197, %v7271, 0
        %v7280 = vsel %vm1197, %v7266, 0
        %v7283 = vsel %vm1197, %v7273, 0
        %v7286 = vsel %vm1197, %v7275, 0
        %7288 = vmatpush.bf16.xpose.msra.mxu0 0
        %7289 = vmatpush.bf16.xpose.msra.mxu0 0
        %7290 = vmatpush.bf16.xpose.msra.mxu0 0
        %7291 = vmatpush.bf16.xpose.msra.mxu0 0
        %7292 = vmatpush.bf16.xpose.msra.mxu0 0
        %7293 = vmatpush.bf16.xpose.msra.mxu0 0
        %7294 = vmatpush.bf16.xpose.msra.mxu0 %v7286
        %7295 = vmatpush.bf16.xpose.msra.mxu0 %v7283
        %7296 = vmatmul.bf16.gmra.mxu0 %v7277
        %v7297 = vpop.f32.mrf.mxu0
        %v7298 = vadd.f32 0.0, %v7297
        %v7299 = vpop.f32.mrf.mxu0
        %v7300 = vadd.f32 0.0, %v7299
        %7301 = vmatmul.bf16.gmra.mxu0 %v7280
        %v7302 = vpop.f32.mrf.mxu0
        %v7303 = vadd.f32 0.0, %v7302
        %v7304 = vpop.f32.mrf.mxu0
        %7305 = vdwg.mxu0
        %v7308 = vunpack.c.l.b16 %v7188
        %v7309 = vunpack.c.l.b16 %v7189
        %v7310 = vpack.c.b16 %v7308, %v6573
        %v7311 = vpack.c.b16 %v7309, %v7309
        %v7313 = vshrl.u32 %v7310, 16
        %v7315 = vrot.slane %v7313, 1
        %v7316 = vshll.u32 %v7310, 16
        %v7318 = vrot.slane %v7316, 2
        %v7319 = vor.u32 %v7315, %v7318
        %v7321 = vshrl.u32 %v7311, 16
        %v7323 = vrot.slane %v7321, 1
        %v7324 = vshll.u32 %v7311, 16
        %v7326 = vrot.slane %v7324, 2
        %v7327 = vor.u32 %v7323, %v7326
        %v7328 = vsel %vm3370, %v7319, %v7327
        %7329 = vrot.lane.b32.xlu0 %v7328, 96
        %v7330 = vpop.permute.xlu0 %7329
        %7331 = vrot.lane.b32.xlu0 %v7323, 96
        %v7332 = vpop.permute.xlu0 %7331
        %v7334 = vsel %vm1197, %v7328, 0
        %v7337 = vsel %vm1197, %v7323, 0
        %v7340 = vsel %vm1197, %v7330, 0
        %v7343 = vsel %vm1197, %v7332, 0
        %7345 = vmatpush.bf16.xpose.msra.mxu0 0
        %7346 = vmatpush.bf16.xpose.msra.mxu0 0
        %7347 = vmatpush.bf16.xpose.msra.mxu0 0
        %7348 = vmatpush.bf16.xpose.msra.mxu0 0
        %7349 = vmatpush.bf16.xpose.msra.mxu0 0
        %7350 = vmatpush.bf16.xpose.msra.mxu0 0
        %7351 = vmatpush.bf16.xpose.msra.mxu0 %v7343
        %7352 = vmatpush.bf16.xpose.msra.mxu0 %v7340
        %7353 = vmatmul.bf16.gmra.mxu0 %v7334
        %v7354 = vpop.f32.mrf.mxu0
        %v7355 = vadd.f32 0.0, %v7354
        %v7356 = vpop.f32.mrf.mxu0
        %v7357 = vadd.f32 0.0, %v7356
        %7358 = vmatmul.bf16.gmra.mxu0 %v7337
        %v7359 = vpop.f32.mrf.mxu0
        %v7360 = vadd.f32 0.0, %v7359
        %v7361 = vpop.f32.mrf.mxu0
        %7362 = vdwg.mxu0
        %v7365 = vunpack.c.l.b16 %v7190
        %v7366 = vunpack.c.l.b16 %v7191
        %v7367 = vpack.c.b16 %v7365, %v6616
        %v7368 = vpack.c.b16 %v7366, %v7366
        %v7370 = vshrl.u32 %v7367, 16
        %v7372 = vrot.slane %v7370, 1
        %v7373 = vshll.u32 %v7367, 16
        %v7375 = vrot.slane %v7373, 2
        %v7376 = vor.u32 %v7372, %v7375
        %v7378 = vshrl.u32 %v7368, 16
        %v7380 = vrot.slane %v7378, 1
        %v7381 = vshll.u32 %v7368, 16
        %v7383 = vrot.slane %v7381, 2
        %v7384 = vor.u32 %v7380, %v7383
        %v7385 = vsel %vm3370, %v7376, %v7384
        %7386 = vrot.lane.b32.xlu0 %v7385, 96
        %v7387 = vpop.permute.xlu0 %7386
        %7388 = vrot.lane.b32.xlu0 %v7380, 96
        %v7389 = vpop.permute.xlu0 %7388
        %v7391 = vsel %vm1197, %v7385, 0
        %v7394 = vsel %vm1197, %v7380, 0
        %v7397 = vsel %vm1197, %v7387, 0
        %v7400 = vsel %vm1197, %v7389, 0
        %7402 = vmatpush.bf16.xpose.msra.mxu0 0
        %7403 = vmatpush.bf16.xpose.msra.mxu0 0
        %7404 = vmatpush.bf16.xpose.msra.mxu0 0
        %7405 = vmatpush.bf16.xpose.msra.mxu0 0
        %7406 = vmatpush.bf16.xpose.msra.mxu0 0
        %7407 = vmatpush.bf16.xpose.msra.mxu0 0
        %7408 = vmatpush.bf16.xpose.msra.mxu0 %v7400
        %7409 = vmatpush.bf16.xpose.msra.mxu0 %v7397
        %7410 = vmatmul.bf16.gmra.mxu0 %v7391
        %v7411 = vpop.f32.mrf.mxu0
        %v7412 = vadd.f32 0.0, %v7411
        %v7413 = vpop.f32.mrf.mxu0
        %v7414 = vadd.f32 0.0, %v7413
        %7415 = vmatmul.bf16.gmra.mxu0 %v7394
        %v7416 = vpop.f32.mrf.mxu0
        %v7417 = vadd.f32 0.0, %v7416
        %v7418 = vpop.f32.mrf.mxu0
        %7419 = vdwg.mxu0
        %v7420 = vsel %vm1354, %v7241, -inf
        %7421 = vmax.xlane.f32.xlu0 %v7420
        %v7422 = vpop.xlane.xlu0 %7421
        %v7423 = vsel %vm1354, %v7243, -inf
        %7424 = vmax.xlane.f32.xlu0 %v7423
        %v7425 = vpop.xlane.xlu0 %7424
        %v7426 = vsel %vm1361, %v7246, -inf
        %7427 = vmax.xlane.f32.xlu0 %v7426
        %v7428 = vpop.xlane.xlu0 %7427
        %v7429 = vsel %vm1354, %v7298, -inf
        %7430 = vmax.xlane.f32.xlu0 %v7429
        %v7431 = vpop.xlane.xlu0 %7430
        %v7432 = vsel %vm1354, %v7300, -inf
        %7433 = vmax.xlane.f32.xlu0 %v7432
        %v7434 = vpop.xlane.xlu0 %7433
        %v7435 = vsel %vm1361, %v7303, -inf
        %7436 = vmax.xlane.f32.xlu0 %v7435
        %v7437 = vpop.xlane.xlu0 %7436
        %v7438 = vsel %vm1354, %v7355, -inf
        %7439 = vmax.xlane.f32.xlu0 %v7438
        %v7440 = vpop.xlane.xlu0 %7439
        %v7441 = vsel %vm1354, %v7357, -inf
        %7442 = vmax.xlane.f32.xlu0 %v7441
        %v7443 = vpop.xlane.xlu0 %7442
        %v7444 = vsel %vm1361, %v7360, -inf
        %7445 = vmax.xlane.f32.xlu0 %v7444
        %v7446 = vpop.xlane.xlu0 %7445
        %v7447 = vsel %vm1354, %v7412, -inf
        %7448 = vmax.xlane.f32.xlu0 %v7447
        %v7449 = vpop.xlane.xlu0 %7448
        %v7450 = vsel %vm1354, %v7414, -inf
        %7451 = vmax.xlane.f32.xlu0 %v7450
        %v7452 = vpop.xlane.xlu0 %7451
        %v7453 = vsel %vm1361, %v7417, -inf
        %7454 = vmax.xlane.f32.xlu0 %v7453
        %v7455 = vpop.xlane.xlu0 %7454
        %v7456 = vsub.f32 %v7241, %v7422
        %v7457 = vsub.f32 %v7243, %v7425
        %v7458 = vsub.f32 %v7246, %v7428
        %v7459 = vsub.f32 %v7298, %v7431
        %v7460 = vsub.f32 %v7300, %v7434
        %v7461 = vsub.f32 %v7303, %v7437
        %v7462 = vsub.f32 %v7355, %v7440
        %v7463 = vsub.f32 %v7357, %v7443
        %v7464 = vsub.f32 %v7360, %v7446
        %v7465 = vsub.f32 %v7412, %v7449
        %v7466 = vsub.f32 %v7414, %v7452
        %v7467 = vsub.f32 %v7417, %v7455
        %v7468 = vmul.f32 %v7456, 1.442695
        %v7469 = vpow.pop %v7468
        %v7470 = vmul.f32 %v7457, 1.442695
        %v7471 = vpow.pop %v7470
        %v7472 = vmul.f32 %v7458, 1.442695
        %v7473 = vpow.pop %v7472
        %v7474 = vmul.f32 %v7459, 1.442695
        %v7475 = vpow.pop %v7474
        %v7476 = vmul.f32 %v7460, 1.442695
        %v7477 = vpow.pop %v7476
        %v7478 = vmul.f32 %v7461, 1.442695
        %v7479 = vpow.pop %v7478
        %v7480 = vmul.f32 %v7462, 1.442695
        %v7481 = vpow.pop %v7480
        %v7482 = vmul.f32 %v7463, 1.442695
        %v7483 = vpow.pop %v7482
        %v7484 = vmul.f32 %v7464, 1.442695
        %v7485 = vpow.pop %v7484
        %v7486 = vmul.f32 %v7465, 1.442695
        %v7487 = vpow.pop %v7486
        %v7488 = vmul.f32 %v7466, 1.442695
        %v7489 = vpow.pop %v7488
        %v7490 = vmul.f32 %v7467, 1.442695
        %v7491 = vpow.pop %v7490
        %v7492 = vsel %vm1354, %v7469, 0.0
        %7493 = vadd.xlane.f32.xlu0 %v7492
        %v7494 = vpop.xlane.xlu0 %7493
        %v7495 = vsel %vm1354, %v7471, 0.0
        %7496 = vadd.xlane.f32.xlu0 %v7495
        %v7497 = vpop.xlane.xlu0 %7496
        %v7498 = vsel %vm1361, %v7473, 0.0
        %7499 = vadd.xlane.f32.xlu0 %v7498
        %v7500 = vpop.xlane.xlu0 %7499
        %v7501 = vsel %vm1354, %v7475, 0.0
        %7502 = vadd.xlane.f32.xlu0 %v7501
        %v7503 = vpop.xlane.xlu0 %7502
        %v7504 = vsel %vm1354, %v7477, 0.0
        %7505 = vadd.xlane.f32.xlu0 %v7504
        %v7506 = vpop.xlane.xlu0 %7505
        %v7507 = vsel %vm1361, %v7479, 0.0
        %7508 = vadd.xlane.f32.xlu0 %v7507
        %v7509 = vpop.xlane.xlu0 %7508
        %v7510 = vsel %vm1354, %v7481, 0.0
        %7511 = vadd.xlane.f32.xlu0 %v7510
        %v7512 = vpop.xlane.xlu0 %7511
        %v7513 = vsel %vm1354, %v7483, 0.0
        %7514 = vadd.xlane.f32.xlu0 %v7513
        %v7515 = vpop.xlane.xlu0 %7514
        %v7516 = vsel %vm1361, %v7485, 0.0
        %7517 = vadd.xlane.f32.xlu0 %v7516
        %v7518 = vpop.xlane.xlu0 %7517
        %v7519 = vsel %vm1354, %v7487, 0.0
        %7520 = vadd.xlane.f32.xlu0 %v7519
        %v7521 = vpop.xlane.xlu0 %7520
        %v7522 = vsel %vm1354, %v7489, 0.0
        %7523 = vadd.xlane.f32.xlu0 %v7522
        %v7524 = vpop.xlane.xlu0 %7523
        %v7525 = vsel %vm1361, %v7491, 0.0
        %7526 = vadd.xlane.f32.xlu0 %v7525
        %v7527 = vpop.xlane.xlu0 %7526
        %v7528 = vrcp.pop %v7494
        %v7529 = vmul.f32 %v7494, %v7528
        %v7530 = vsub.f32 1.0, %v7529
        %v7531 = vmul.f32 %v7528, %v7530
        %v7532 = vadd.f32 %v7528, %v7531
        %vm7533 = vweird.f32 %v7494
        %vm7534 = vweird.f32 %v7528
        %vm7535 = vmor %vm7533, %vm7534
        %v7536 = vsel %vm7535, %v7528, %v7532
        %v7537 = vand.u32 2147483647, %v7494
        %vm7538 = vcmp.eq.f32.partialorder %v7537, 8.507059e+37
        %v7539 = vand.u32 %v7494, 2147483648
        %v7540 = vor.u32 1.1754944e-38, %v7539
        %v7541 = vsel %vm7538, %v7540, %v7536
        %v7542 = vmul.f32 %v7469, %v7541
        %v7543 = vrcp.pop %v7497
        %v7544 = vmul.f32 %v7497, %v7543
        %v7545 = vsub.f32 1.0, %v7544
        %v7546 = vmul.f32 %v7543, %v7545
        %v7547 = vadd.f32 %v7543, %v7546
        %vm7548 = vweird.f32 %v7497
        %vm7549 = vweird.f32 %v7543
        %vm7550 = vmor %vm7548, %vm7549
        %v7551 = vsel %vm7550, %v7543, %v7547
        %v7552 = vand.u32 2147483647, %v7497
        %vm7553 = vcmp.eq.f32.partialorder %v7552, 8.507059e+37
        %v7554 = vand.u32 %v7497, 2147483648
        %v7555 = vor.u32 1.1754944e-38, %v7554
        %v7556 = vsel %vm7553, %v7555, %v7551
        %v7557 = vmul.f32 %v7471, %v7556
        %v7558 = vrcp.pop %v7500
        %v7559 = vmul.f32 %v7500, %v7558
        %v7560 = vsub.f32 1.0, %v7559
        %v7561 = vmul.f32 %v7558, %v7560
        %v7562 = vadd.f32 %v7558, %v7561
        %vm7563 = vweird.f32 %v7500
        %vm7564 = vweird.f32 %v7558
        %vm7565 = vmor %vm7563, %vm7564
        %v7566 = vsel %vm7565, %v7558, %v7562
        %v7567 = vand.u32 2147483647, %v7500
        %vm7568 = vcmp.eq.f32.partialorder %v7567, 8.507059e+37
        %v7569 = vand.u32 %v7500, 2147483648
        %v7570 = vor.u32 1.1754944e-38, %v7569
        %v7571 = vsel %vm7568, %v7570, %v7566
        %v7572 = vmul.f32 %v7473, %v7571
        %v7573 = vrcp.pop %v7503
        %v7574 = vmul.f32 %v7503, %v7573
        %v7575 = vsub.f32 1.0, %v7574
        %v7576 = vmul.f32 %v7573, %v7575
        %v7577 = vadd.f32 %v7573, %v7576
        %vm7578 = vweird.f32 %v7503
        %vm7579 = vweird.f32 %v7573
        %vm7580 = vmor %vm7578, %vm7579
        %v7581 = vsel %vm7580, %v7573, %v7577
        %v7582 = vand.u32 2147483647, %v7503
        %vm7583 = vcmp.eq.f32.partialorder %v7582, 8.507059e+37
        %v7584 = vand.u32 %v7503, 2147483648
        %v7585 = vor.u32 1.1754944e-38, %v7584
        %v7586 = vsel %vm7583, %v7585, %v7581
        %v7587 = vmul.f32 %v7475, %v7586
        %v7588 = vrcp.pop %v7506
        %v7589 = vmul.f32 %v7506, %v7588
        %v7590 = vsub.f32 1.0, %v7589
        %v7591 = vmul.f32 %v7588, %v7590
        %v7592 = vadd.f32 %v7588, %v7591
        %vm7593 = vweird.f32 %v7506
        %vm7594 = vweird.f32 %v7588
        %vm7595 = vmor %vm7593, %vm7594
        %v7596 = vsel %vm7595, %v7588, %v7592
        %v7597 = vand.u32 2147483647, %v7506
        %vm7598 = vcmp.eq.f32.partialorder %v7597, 8.507059e+37
        %v7599 = vand.u32 %v7506, 2147483648
        %v7600 = vor.u32 1.1754944e-38, %v7599
        %v7601 = vsel %vm7598, %v7600, %v7596
        %v7602 = vmul.f32 %v7477, %v7601
        %v7603 = vrcp.pop %v7509
        %v7604 = vmul.f32 %v7509, %v7603
        %v7605 = vsub.f32 1.0, %v7604
        %v7606 = vmul.f32 %v7603, %v7605
        %v7607 = vadd.f32 %v7603, %v7606
        %vm7608 = vweird.f32 %v7509
        %vm7609 = vweird.f32 %v7603
        %vm7610 = vmor %vm7608, %vm7609
        %v7611 = vsel %vm7610, %v7603, %v7607
        %v7612 = vand.u32 2147483647, %v7509
        %vm7613 = vcmp.eq.f32.partialorder %v7612, 8.507059e+37
        %v7614 = vand.u32 %v7509, 2147483648
        %v7615 = vor.u32 1.1754944e-38, %v7614
        %v7616 = vsel %vm7613, %v7615, %v7611
        %v7617 = vmul.f32 %v7479, %v7616
        %v7618 = vrcp.pop %v7512
        %v7619 = vmul.f32 %v7512, %v7618
        %v7620 = vsub.f32 1.0, %v7619
        %v7621 = vmul.f32 %v7618, %v7620
        %v7622 = vadd.f32 %v7618, %v7621
        %vm7623 = vweird.f32 %v7512
        %vm7624 = vweird.f32 %v7618
        %vm7625 = vmor %vm7623, %vm7624
        %v7626 = vsel %vm7625, %v7618, %v7622
        %v7627 = vand.u32 2147483647, %v7512
        %vm7628 = vcmp.eq.f32.partialorder %v7627, 8.507059e+37
        %v7629 = vand.u32 %v7512, 2147483648
        %v7630 = vor.u32 1.1754944e-38, %v7629
        %v7631 = vsel %vm7628, %v7630, %v7626
        %v7632 = vmul.f32 %v7481, %v7631
        %v7633 = vrcp.pop %v7515
        %v7634 = vmul.f32 %v7515, %v7633
        %v7635 = vsub.f32 1.0, %v7634
        %v7636 = vmul.f32 %v7633, %v7635
        %v7637 = vadd.f32 %v7633, %v7636
        %vm7638 = vweird.f32 %v7515
        %vm7639 = vweird.f32 %v7633
        %vm7640 = vmor %vm7638, %vm7639
        %v7641 = vsel %vm7640, %v7633, %v7637
        %v7642 = vand.u32 2147483647, %v7515
        %vm7643 = vcmp.eq.f32.partialorder %v7642, 8.507059e+37
        %v7644 = vand.u32 %v7515, 2147483648
        %v7645 = vor.u32 1.1754944e-38, %v7644
        %v7646 = vsel %vm7643, %v7645, %v7641
        %v7647 = vmul.f32 %v7483, %v7646
        %v7648 = vrcp.pop %v7518
        %v7649 = vmul.f32 %v7518, %v7648
        %v7650 = vsub.f32 1.0, %v7649
        %v7651 = vmul.f32 %v7648, %v7650
        %v7652 = vadd.f32 %v7648, %v7651
        %vm7653 = vweird.f32 %v7518
        %vm7654 = vweird.f32 %v7648
        %vm7655 = vmor %vm7653, %vm7654
        %v7656 = vsel %vm7655, %v7648, %v7652
        %v7657 = vand.u32 2147483647, %v7518
        %vm7658 = vcmp.eq.f32.partialorder %v7657, 8.507059e+37
        %v7659 = vand.u32 %v7518, 2147483648
        %v7660 = vor.u32 1.1754944e-38, %v7659
        %v7661 = vsel %vm7658, %v7660, %v7656
        %v7662 = vmul.f32 %v7485, %v7661
        %v7663 = vrcp.pop %v7521
        %v7664 = vmul.f32 %v7521, %v7663
        %v7665 = vsub.f32 1.0, %v7664
        %v7666 = vmul.f32 %v7663, %v7665
        %v7667 = vadd.f32 %v7663, %v7666
        %vm7668 = vweird.f32 %v7521
        %vm7669 = vweird.f32 %v7663
        %vm7670 = vmor %vm7668, %vm7669
        %v7671 = vsel %vm7670, %v7663, %v7667
        %v7672 = vand.u32 2147483647, %v7521
        %vm7673 = vcmp.eq.f32.partialorder %v7672, 8.507059e+37
        %v7674 = vand.u32 %v7521, 2147483648
        %v7675 = vor.u32 1.1754944e-38, %v7674
        %v7676 = vsel %vm7673, %v7675, %v7671
        %v7677 = vmul.f32 %v7487, %v7676
        %v7678 = vrcp.pop %v7524
        %v7679 = vmul.f32 %v7524, %v7678
        %v7680 = vsub.f32 1.0, %v7679
        %v7681 = vmul.f32 %v7678, %v7680
        %v7682 = vadd.f32 %v7678, %v7681
        %vm7683 = vweird.f32 %v7524
        %vm7684 = vweird.f32 %v7678
        %vm7685 = vmor %vm7683, %vm7684
        %v7686 = vsel %vm7685, %v7678, %v7682
        %v7687 = vand.u32 2147483647, %v7524
        %vm7688 = vcmp.eq.f32.partialorder %v7687, 8.507059e+37
        %v7689 = vand.u32 %v7524, 2147483648
        %v7690 = vor.u32 1.1754944e-38, %v7689
        %v7691 = vsel %vm7688, %v7690, %v7686
        %v7692 = vmul.f32 %v7489, %v7691
        %v7693 = vrcp.pop %v7527
        %v7694 = vmul.f32 %v7527, %v7693
        %v7695 = vsub.f32 1.0, %v7694
        %v7696 = vmul.f32 %v7693, %v7695
        %v7697 = vadd.f32 %v7693, %v7696
        %vm7698 = vweird.f32 %v7527
        %vm7699 = vweird.f32 %v7693
        %vm7700 = vmor %vm7698, %vm7699
        %v7701 = vsel %vm7700, %v7693, %v7697
        %v7702 = vand.u32 2147483647, %v7527
        %vm7703 = vcmp.eq.f32.partialorder %v7702, 8.507059e+37
        %v7704 = vand.u32 %v7527, 2147483648
        %v7705 = vor.u32 1.1754944e-38, %v7704
        %v7706 = vsel %vm7703, %v7705, %v7701
        %v7707 = vmul.f32 %v7491, %v7706
        %v7708 = vpack.c.bf16 %v7542, %v7542
        %v7709 = vpack.c.bf16 %v7557, %v7557
        %v7710 = vpack.c.bf16 %v7572, %v7572
        %v7711 = vpack.c.bf16 %v7587, %v7587
        %v7712 = vpack.c.bf16 %v7602, %v7602
        %v7713 = vpack.c.bf16 %v7617, %v7617
        %v7714 = vpack.c.bf16 %v7632, %v7632
        %v7715 = vpack.c.bf16 %v7647, %v7647
        %v7716 = vpack.c.bf16 %v7662, %v7662
        %v7717 = vpack.c.bf16 %v7677, %v7677
        %v7718 = vpack.c.bf16 %v7692, %v7692
        %v7719 = vpack.c.bf16 %v7707, %v7707
        %v7723 = vunpack.c.l.b16 %v7708
        %v7724 = vunpack.c.l.b16 %v7709
        %v7725 = vunpack.c.l.b16 %v7710
        %v7726 = vpack.c.b16 %v7724, %v7723
        %v7727 = vpack.c.b16 %v7725, %v7725
        %7728 = vrot.lane.b32.xlu0 %v7214, 64
        %v7729 = vpop.permute.xlu0 %7728
        %7730 = vrot.lane.b32.xlu0 %v7209, 64
        %v7731 = vpop.permute.xlu0 %7730
        %v7734 = vsel %vm1354, %v7726, 0
        %v7737 = vsel %vm1354, %v7727, 0
        %v7740 = vand.u32 %v7731, %v1677
        %7742 = vmatpush.bf16.msra.mxu0 0
        %7743 = vmatpush.bf16.msra.mxu0 0
        %7744 = vmatpush.bf16.msra.mxu0 0
        %7745 = vmatpush.bf16.msra.mxu0 0
        %7746 = vmatpush.bf16.msra.mxu0 0
        %7747 = vmatpush.bf16.msra.mxu0 0
        %7748 = vmatpush.bf16.msra.mxu0 %v7740
        %7749 = vmatpush.bf16.msra.mxu0 %v7729
        %7750 = vmatmul.bf16.gmra.mxu0 %v7734
        %v7751 = vpop.f32.mrf.mxu0
        %v7752 = vadd.f32 0.0, %v7751
        %v7753 = vpop.f32.mrf.mxu0
        %v7754 = vadd.f32 0.0, %v7753
        %7755 = vmatmul.bf16.gmra.mxu0 %v7737
        %v7756 = vpop.f32.mrf.mxu0
        %v7757 = vadd.f32 0.0, %v7756
        %v7758 = vpop.f32.mrf.mxu0
        %7759 = vdwg.mxu0
        %v7763 = vunpack.c.l.b16 %v7711
        %v7764 = vunpack.c.l.b16 %v7712
        %v7765 = vunpack.c.l.b16 %v7713
        %v7766 = vpack.c.b16 %v7764, %v7763
        %v7767 = vpack.c.b16 %v7765, %v7765
        %7768 = vrot.lane.b32.xlu0 %v7271, 64
        %v7769 = vpop.permute.xlu0 %7768
        %7770 = vrot.lane.b32.xlu0 %v7266, 64
        %v7771 = vpop.permute.xlu0 %7770
        %v7774 = vsel %vm1354, %v7766, 0
        %v7777 = vsel %vm1354, %v7767, 0
        %v7780 = vand.u32 %v7771, %v1677
        %7782 = vmatpush.bf16.msra.mxu0 0
        %7783 = vmatpush.bf16.msra.mxu0 0
        %7784 = vmatpush.bf16.msra.mxu0 0
        %7785 = vmatpush.bf16.msra.mxu0 0
        %7786 = vmatpush.bf16.msra.mxu0 0
        %7787 = vmatpush.bf16.msra.mxu0 0
        %7788 = vmatpush.bf16.msra.mxu0 %v7780
        %7789 = vmatpush.bf16.msra.mxu0 %v7769
        %7790 = vmatmul.bf16.gmra.mxu0 %v7774
        %v7791 = vpop.f32.mrf.mxu0
        %v7792 = vadd.f32 0.0, %v7791
        %v7793 = vpop.f32.mrf.mxu0
        %v7794 = vadd.f32 0.0, %v7793
        %7795 = vmatmul.bf16.gmra.mxu0 %v7777
        %v7796 = vpop.f32.mrf.mxu0
        %v7797 = vadd.f32 0.0, %v7796
        %v7798 = vpop.f32.mrf.mxu0
        %7799 = vdwg.mxu0
        %v7803 = vunpack.c.l.b16 %v7714
        %v7804 = vunpack.c.l.b16 %v7715
        %v7805 = vunpack.c.l.b16 %v7716
        %v7806 = vpack.c.b16 %v7804, %v7803
        %v7807 = vpack.c.b16 %v7805, %v7805
        %7808 = vrot.lane.b32.xlu0 %v7328, 64
        %v7809 = vpop.permute.xlu0 %7808
        %7810 = vrot.lane.b32.xlu0 %v7323, 64
        %v7811 = vpop.permute.xlu0 %7810
        %v7814 = vsel %vm1354, %v7806, 0
        %v7817 = vsel %vm1354, %v7807, 0
        %v7820 = vand.u32 %v7811, %v1677
        %7822 = vmatpush.bf16.msra.mxu0 0
        %7823 = vmatpush.bf16.msra.mxu0 0
        %7824 = vmatpush.bf16.msra.mxu0 0
        %7825 = vmatpush.bf16.msra.mxu0 0
        %7826 = vmatpush.bf16.msra.mxu0 0
        %7827 = vmatpush.bf16.msra.mxu0 0
        %7828 = vmatpush.bf16.msra.mxu0 %v7820
        %7829 = vmatpush.bf16.msra.mxu0 %v7809
        %7830 = vmatmul.bf16.gmra.mxu0 %v7814
        %v7831 = vpop.f32.mrf.mxu0
        %v7832 = vadd.f32 0.0, %v7831
        %v7833 = vpop.f32.mrf.mxu0
        %v7834 = vadd.f32 0.0, %v7833
        %7835 = vmatmul.bf16.gmra.mxu0 %v7817
        %v7836 = vpop.f32.mrf.mxu0
        %v7837 = vadd.f32 0.0, %v7836
        %v7838 = vpop.f32.mrf.mxu0
        %7839 = vdwg.mxu0
        %v7843 = vunpack.c.l.b16 %v7717
        %v7844 = vunpack.c.l.b16 %v7718
        %v7845 = vunpack.c.l.b16 %v7719
        %v7846 = vpack.c.b16 %v7844, %v7843
        %v7847 = vpack.c.b16 %v7845, %v7845
        %7848 = vrot.lane.b32.xlu0 %v7385, 64
        %v7849 = vpop.permute.xlu0 %7848
        %7850 = vrot.lane.b32.xlu0 %v7380, 64
        %v7851 = vpop.permute.xlu0 %7850
        %v7854 = vsel %vm1354, %v7846, 0
        %v7857 = vsel %vm1354, %v7847, 0
        %v7860 = vand.u32 %v7851, %v1677
        %7862 = vmatpush.bf16.msra.mxu0 0
        %7863 = vmatpush.bf16.msra.mxu0 0
        %7864 = vmatpush.bf16.msra.mxu0 0
        %7865 = vmatpush.bf16.msra.mxu0 0
        %7866 = vmatpush.bf16.msra.mxu0 0
        %7867 = vmatpush.bf16.msra.mxu0 0
        %7868 = vmatpush.bf16.msra.mxu0 %v7860
        %7869 = vmatpush.bf16.msra.mxu0 %v7849
        %7870 = vmatmul.bf16.gmra.mxu0 %v7854
        %v7871 = vpop.f32.mrf.mxu0
        %v7872 = vadd.f32 0.0, %v7871
        %v7873 = vpop.f32.mrf.mxu0
        %v7874 = vadd.f32 0.0, %v7873
        %7875 = vmatmul.bf16.gmra.mxu0 %v7857
        %v7876 = vpop.f32.mrf.mxu0
        %v7877 = vadd.f32 0.0, %v7876
        %v7878 = vpop.f32.mrf.mxu0
        %7879 = vdwg.mxu0
        %7880 = vst.msk [vmem:[#allocation2 + $0x33] sm:$0xff] %vm1197, %v7752
        %7881 = vst.msk [vmem:[#allocation2 + $0x3b] sm:$0xff] %vm1197, %v7754
        %7882 = vst.msk [vmem:[#allocation2 + $0x43] sm:$0x1] %vm1821, %v7757
        %7886 = vrot.lane.b32.xlu0 %v7792, 8
        %v7887 = vpop.permute.xlu0 %7886
        %7888 = vrot.lane.b32.xlu0 %v7794, 8
        %v7889 = vpop.permute.xlu0 %7888
        %7890 = vrot.lane.b32.xlu0 %v7797, 8
        %v7891 = vpop.permute.xlu0 %7890
        %7895 = vst.msk [vmem:[#allocation2 + $0x33] sm:$0xff] %vm1835, %v7887
        %7896 = vst.msk [vmem:[#allocation2 + $0x3b] sm:$0xff] %vm1835, %v7889
        %7897 = vst.msk [vmem:[#allocation2 + $0x43] sm:$0x1] %vm1838, %v7891
        %7901 = vrot.lane.b32.xlu0 %v7832, 16
        %v7902 = vpop.permute.xlu0 %7901
        %7903 = vrot.lane.b32.xlu0 %v7834, 16
        %v7904 = vpop.permute.xlu0 %7903
        %7905 = vrot.lane.b32.xlu0 %v7837, 16
        %v7906 = vpop.permute.xlu0 %7905
        %7910 = vst.msk [vmem:[#allocation2 + $0x33] sm:$0xff] %vm1852, %v7902
        %7911 = vst.msk [vmem:[#allocation2 + $0x3b] sm:$0xff] %vm1852, %v7904
        %7912 = vst.msk [vmem:[#allocation2 + $0x43] sm:$0x1] %vm1855, %v7906
        %7916 = vrot.lane.b32.xlu0 %v7872, 24
        %v7917 = vpop.permute.xlu0 %7916
        %7918 = vrot.lane.b32.xlu0 %v7874, 24
        %v7919 = vpop.permute.xlu0 %7918
        %7920 = vrot.lane.b32.xlu0 %v7877, 24
        %v7921 = vpop.permute.xlu0 %7920
        %7925 = vst.msk [vmem:[#allocation2 + $0x33] sm:$0xff] %vm1869, %v7917
        %7926 = vst.msk [vmem:[#allocation2 + $0x3b] sm:$0xff] %vm1869, %v7919
        %7927 = vst.msk [vmem:[#allocation2 + $0x43] sm:$0x1] %vm1872, %v7921
        %v7928 = vld [vmem:[#allocation2] sm:$0xff]
        %v7929 = vld [vmem:[#allocation2 + $0x8] sm:$0xff]
        %v7930 = vld [vmem:[#allocation2 + $0x10] sm:$0xff]
        %v7931 = vld [vmem:[#allocation2 + $0x18] sm:$0xff]
        %v7932 = vld [vmem:[#allocation2 + $0x20] sm:$0xff]
        %v7933 = vld [vmem:[#allocation2 + $0x28] sm:$0xff]
        %v7934 = vld [vmem:[#allocation2 + $0x30] sm:$0xff]
        %v7935 = vld [vmem:[#allocation2 + $0x38] sm:$0xff]
        %v7936 = vld [vmem:[#allocation2 + $0x40] sm:$0xf]
        %v7937 = vpack.c.bf16 %v7929, %v7928
        %v7938 = vpack.c.bf16 %v7931, %v7930
        %v7939 = vpack.c.bf16 %v7933, %v7932
        %v7940 = vpack.c.bf16 %v7935, %v7934
        %v7941 = vpack.c.bf16 %v7936, %v7936
        %s7942 = scalar_lea.vmem %s9, 16
        %v7943 = vld [vmem:[%s7942] sm:$0xf]
        %v7944 = vld [vmem:[%s7942 + $0x4] sm:$0xf]
        %v7945 = vld [vmem:[%s7942 + $0x8] sm:$0xf]
        %v7946 = vld [vmem:[%s7942 + $0xc] sm:$0xf]
        %s7947 = scalar_lea.vmem %s10, 1
        %v7948 = vld [vmem:[%s7947] sm:$0x1]
        %v7950 = vperm.slane %v7948, 0
        %v7956 = vunpack.c.l.b16 %v7943
        %v7957 = vunpack.c.l.b16 %v7944
        %v7958 = vunpack.c.l.b16 %v7945
        %v7959 = vunpack.c.l.b16 %v7946
        %v7960 = vpack.c.b16 %v7957, %v7956
        %v7961 = vpack.c.b16 %v7959, %v7958
        %v7965 = vsel %vm839, %v7937, 0
        %v7968 = vsel %vm839, %v7938, 0
        %v7971 = vsel %vm839, %v7939, 0
        %v7974 = vsel %vm839, %v7940, 0
        %v7977 = vsel %vm839, %v7941, 0
        %7979 = vmatpush.bf16.msra.mxu0 0
        %7980 = vmatpush.bf16.msra.mxu0 0
        %7981 = vmatpush.bf16.msra.mxu0 0
        %7982 = vmatpush.bf16.msra.mxu0 0
        %7983 = vmatpush.bf16.msra.mxu0 0
        %7984 = vmatpush.bf16.msra.mxu0 0
        %7985 = vmatpush.bf16.msra.mxu0 %v7961
        %7986 = vmatpush.bf16.msra.mxu0 %v7960
        %7987 = vmatmul.bf16.gmra.mxu0 %v7965
        %v7988 = vpop.f32.mrf.mxu0
        %v7989 = vadd.f32 %v7950, %v7988
        %v7990 = vpop.f32.mrf.mxu0
        %v7991 = vadd.f32 %v7950, %v7990
        %7992 = vmatmul.bf16.gmra.mxu0 %v7968
        %v7993 = vpop.f32.mrf.mxu0
        %v7994 = vadd.f32 %v7950, %v7993
        %v7995 = vpop.f32.mrf.mxu0
        %v7996 = vadd.f32 %v7950, %v7995
        %7997 = vmatmul.bf16.gmra.mxu0 %v7971
        %v7998 = vpop.f32.mrf.mxu0
        %v7999 = vadd.f32 %v7950, %v7998
        %v8000 = vpop.f32.mrf.mxu0
        %v8001 = vadd.f32 %v7950, %v8000
        %8002 = vmatmul.bf16.gmra.mxu0 %v7974
        %v8003 = vpop.f32.mrf.mxu0
        %v8004 = vadd.f32 %v7950, %v8003
        %v8005 = vpop.f32.mrf.mxu0
        %v8006 = vadd.f32 %v7950, %v8005
        %8007 = vmatmul.bf16.gmra.mxu0 %v7977
        %v8008 = vpop.f32.mrf.mxu0
        %v8009 = vadd.f32 %v7950, %v8008
        %v8010 = vpop.f32.mrf.mxu0
        %8011 = vdwg.mxu0
        %v8012 = vadd.f32 %v4676, %v7989
        %v8013 = vadd.f32 %v4677, %v7991
        %v8014 = vadd.f32 %v4678, %v7994
        %v8015 = vadd.f32 %v4679, %v7996
        %v8016 = vadd.f32 %v4680, %v7999
        %v8017 = vadd.f32 %v4681, %v8001
        %v8018 = vadd.f32 %v4682, %v8004
        %v8019 = vadd.f32 %v4683, %v8006
        %v8020 = vadd.f32 %v4684, %v8009
        %s8021 = scalar_lea.vmem %s11, 1
        %v8022 = vld [vmem:[%s8021] sm:$0x1]
        %s8023 = scalar_lea.vmem %s12, 1
        %v8024 = vld [vmem:[%s8023] sm:$0x1]
        %v8025 = vsel %vm839, %v8012, 0.0
        %8026 = vadd.xlane.f32.xlu0 %v8025
        %v8027 = vpop.xlane.xlu0 %8026
        %v8028 = vsel %vm839, %v8013, 0.0
        %8029 = vadd.xlane.f32.xlu0 %v8028
        %v8030 = vpop.xlane.xlu0 %8029
        %v8031 = vsel %vm839, %v8014, 0.0
        %8032 = vadd.xlane.f32.xlu0 %v8031
        %v8033 = vpop.xlane.xlu0 %8032
        %v8034 = vsel %vm839, %v8015, 0.0
        %8035 = vadd.xlane.f32.xlu0 %v8034
        %v8036 = vpop.xlane.xlu0 %8035
        %v8037 = vsel %vm839, %v8016, 0.0
        %8038 = vadd.xlane.f32.xlu0 %v8037
        %v8039 = vpop.xlane.xlu0 %8038
        %v8040 = vsel %vm839, %v8017, 0.0
        %8041 = vadd.xlane.f32.xlu0 %v8040
        %v8042 = vpop.xlane.xlu0 %8041
        %v8043 = vsel %vm839, %v8018, 0.0
        %8044 = vadd.xlane.f32.xlu0 %v8043
        %v8045 = vpop.xlane.xlu0 %8044
        %v8046 = vsel %vm839, %v8019, 0.0
        %8047 = vadd.xlane.f32.xlu0 %v8046
        %v8048 = vpop.xlane.xlu0 %8047
        %v8049 = vsel %vm864, %v8020, 0.0
        %8050 = vadd.xlane.f32.xlu0 %v8049
        %v8051 = vpop.xlane.xlu0 %8050
        %v8052 = vmul.f32 %v8027, %v874
        %v8053 = vmul.f32 %v8030, %v874
        %v8054 = vmul.f32 %v8033, %v874
        %v8055 = vmul.f32 %v8036, %v874
        %v8056 = vmul.f32 %v8039, %v874
        %v8057 = vmul.f32 %v8042, %v874
        %v8058 = vmul.f32 %v8045, %v874
        %v8059 = vmul.f32 %v8048, %v874
        %v8060 = vmul.f32 %v8051, %v874
        %v8061 = vsub.f32 %v8012, %v8052
        %v8062 = vsub.f32 %v8013, %v8053
        %v8063 = vsub.f32 %v8014, %v8054
        %v8064 = vsub.f32 %v8015, %v8055
        %v8065 = vsub.f32 %v8016, %v8056
        %v8066 = vsub.f32 %v8017, %v8057
        %v8067 = vsub.f32 %v8018, %v8058
        %v8068 = vsub.f32 %v8019, %v8059
        %v8069 = vsub.f32 %v8020, %v8060
        %v8070 = vmul.f32 %v8061, %v8061
        %v8071 = vmul.f32 %v8062, %v8062
        %v8072 = vmul.f32 %v8063, %v8063
        %v8073 = vmul.f32 %v8064, %v8064
        %v8074 = vmul.f32 %v8065, %v8065
        %v8075 = vmul.f32 %v8066, %v8066
        %v8076 = vmul.f32 %v8067, %v8067
        %v8077 = vmul.f32 %v8068, %v8068
        %v8078 = vmul.f32 %v8069, %v8069
        %v8079 = vsel %vm839, %v8070, 0.0
        %8080 = vadd.xlane.f32.xlu0 %v8079
        %v8081 = vpop.xlane.xlu0 %8080
        %v8082 = vsel %vm839, %v8071, 0.0
        %8083 = vadd.xlane.f32.xlu0 %v8082
        %v8084 = vpop.xlane.xlu0 %8083
        %v8085 = vsel %vm839, %v8072, 0.0
        %8086 = vadd.xlane.f32.xlu0 %v8085
        %v8087 = vpop.xlane.xlu0 %8086
        %v8088 = vsel %vm839, %v8073, 0.0
        %8089 = vadd.xlane.f32.xlu0 %v8088
        %v8090 = vpop.xlane.xlu0 %8089
        %v8091 = vsel %vm839, %v8074, 0.0
        %8092 = vadd.xlane.f32.xlu0 %v8091
        %v8093 = vpop.xlane.xlu0 %8092
        %v8094 = vsel %vm839, %v8075, 0.0
        %8095 = vadd.xlane.f32.xlu0 %v8094
        %v8096 = vpop.xlane.xlu0 %8095
        %v8097 = vsel %vm839, %v8076, 0.0
        %8098 = vadd.xlane.f32.xlu0 %v8097
        %v8099 = vpop.xlane.xlu0 %8098
        %v8100 = vsel %vm839, %v8077, 0.0
        %8101 = vadd.xlane.f32.xlu0 %v8100
        %v8102 = vpop.xlane.xlu0 %8101
        %v8103 = vsel %vm864, %v8078, 0.0
        %8104 = vadd.xlane.f32.xlu0 %v8103
        %v8105 = vpop.xlane.xlu0 %8104
        %v8106 = vmul.f32 %v8081, %v874
        %v8107 = vmul.f32 %v8084, %v874
        %v8108 = vmul.f32 %v8087, %v874
        %v8109 = vmul.f32 %v8090, %v874
        %v8110 = vmul.f32 %v8093, %v874
        %v8111 = vmul.f32 %v8096, %v874
        %v8112 = vmul.f32 %v8099, %v874
        %v8113 = vmul.f32 %v8102, %v874
        %v8114 = vmul.f32 %v8105, %v874
        %v8115 = vadd.f32 %v8106, 1e-05
        %v8116 = vadd.f32 %v8107, 1e-05
        %v8117 = vadd.f32 %v8108, 1e-05
        %v8118 = vadd.f32 %v8109, 1e-05
        %v8119 = vadd.f32 %v8110, 1e-05
        %v8120 = vadd.f32 %v8111, 1e-05
        %v8121 = vadd.f32 %v8112, 1e-05
        %v8122 = vadd.f32 %v8113, 1e-05
        %v8123 = vadd.f32 %v8114, 1e-05
        %v8124 = vrsqrt.pop %v8115
        %v8125 = vmul.f32 %v8124, %v8115
        %v8126 = vmul.f32 %v8125, %v8124
        %v8127 = vmul.f32 0.5, %v8126
        %v8128 = vsub.f32 1.5, %v8127
        %v8129 = vmul.f32 %v8124, %v8128
        %vm8130 = vweird.f32 %v8115
        %vm8131 = vweird.f32 %v8124
        %vm8132 = vmor %vm8130, %vm8131
        %v8133 = vsel %vm8132, %v8124, %v8129
        %v8134 = vrsqrt.pop %v8116
        %v8135 = vmul.f32 %v8134, %v8116
        %v8136 = vmul.f32 %v8135, %v8134
        %v8137 = vmul.f32 0.5, %v8136
        %v8138 = vsub.f32 1.5, %v8137
        %v8139 = vmul.f32 %v8134, %v8138
        %vm8140 = vweird.f32 %v8116
        %vm8141 = vweird.f32 %v8134
        %vm8142 = vmor %vm8140, %vm8141
        %v8143 = vsel %vm8142, %v8134, %v8139
        %v8144 = vrsqrt.pop %v8117
        %v8145 = vmul.f32 %v8144, %v8117
        %v8146 = vmul.f32 %v8145, %v8144
        %v8147 = vmul.f32 0.5, %v8146
        %v8148 = vsub.f32 1.5, %v8147
        %v8149 = vmul.f32 %v8144, %v8148
        %vm8150 = vweird.f32 %v8117
        %vm8151 = vweird.f32 %v8144
        %vm8152 = vmor %vm8150, %vm8151
        %v8153 = vsel %vm8152, %v8144, %v8149
        %v8154 = vrsqrt.pop %v8118
        %v8155 = vmul.f32 %v8154, %v8118
        %v8156 = vmul.f32 %v8155, %v8154
        %v8157 = vmul.f32 0.5, %v8156
        %v8158 = vsub.f32 1.5, %v8157
        %v8159 = vmul.f32 %v8154, %v8158
        %vm8160 = vweird.f32 %v8118
        %vm8161 = vweird.f32 %v8154
        %vm8162 = vmor %vm8160, %vm8161
        %v8163 = vsel %vm8162, %v8154, %v8159
        %v8164 = vrsqrt.pop %v8119
        %v8165 = vmul.f32 %v8164, %v8119
        %v8166 = vmul.f32 %v8165, %v8164
        %v8167 = vmul.f32 0.5, %v8166
        %v8168 = vsub.f32 1.5, %v8167
        %v8169 = vmul.f32 %v8164, %v8168
        %vm8170 = vweird.f32 %v8119
        %vm8171 = vweird.f32 %v8164
        %vm8172 = vmor %vm8170, %vm8171
        %v8173 = vsel %vm8172, %v8164, %v8169
        %v8174 = vrsqrt.pop %v8120
        %v8175 = vmul.f32 %v8174, %v8120
        %v8176 = vmul.f32 %v8175, %v8174
        %v8177 = vmul.f32 0.5, %v8176
        %v8178 = vsub.f32 1.5, %v8177
        %v8179 = vmul.f32 %v8174, %v8178
        %vm8180 = vweird.f32 %v8120
        %vm8181 = vweird.f32 %v8174
        %vm8182 = vmor %vm8180, %vm8181
        %v8183 = vsel %vm8182, %v8174, %v8179
        %v8184 = vrsqrt.pop %v8121
        %v8185 = vmul.f32 %v8184, %v8121
        %v8186 = vmul.f32 %v8185, %v8184
        %v8187 = vmul.f32 0.5, %v8186
        %v8188 = vsub.f32 1.5, %v8187
        %v8189 = vmul.f32 %v8184, %v8188
        %vm8190 = vweird.f32 %v8121
        %vm8191 = vweird.f32 %v8184
        %vm8192 = vmor %vm8190, %vm8191
        %v8193 = vsel %vm8192, %v8184, %v8189
        %v8194 = vrsqrt.pop %v8122
        %v8195 = vmul.f32 %v8194, %v8122
        %v8196 = vmul.f32 %v8195, %v8194
        %v8197 = vmul.f32 0.5, %v8196
        %v8198 = vsub.f32 1.5, %v8197
        %v8199 = vmul.f32 %v8194, %v8198
        %vm8200 = vweird.f32 %v8122
        %vm8201 = vweird.f32 %v8194
        %vm8202 = vmor %vm8200, %vm8201
        %v8203 = vsel %vm8202, %v8194, %v8199
        %v8204 = vrsqrt.pop %v8123
        %v8205 = vmul.f32 %v8204, %v8123
        %v8206 = vmul.f32 %v8205, %v8204
        %v8207 = vmul.f32 0.5, %v8206
        %v8208 = vsub.f32 1.5, %v8207
        %v8209 = vmul.f32 %v8204, %v8208
        %vm8210 = vweird.f32 %v8123
        %vm8211 = vweird.f32 %v8204
        %vm8212 = vmor %vm8210, %vm8211
        %v8213 = vsel %vm8212, %v8204, %v8209
        %v8214 = vmul.f32 %v8061, %v8133
        %v8215 = vmul.f32 %v8062, %v8143
        %v8216 = vmul.f32 %v8063, %v8153
        %v8217 = vmul.f32 %v8064, %v8163
        %v8218 = vmul.f32 %v8065, %v8173
        %v8219 = vmul.f32 %v8066, %v8183
        %v8220 = vmul.f32 %v8067, %v8193
        %v8221 = vmul.f32 %v8068, %v8203
        %v8222 = vmul.f32 %v8069, %v8213
        %v8224 = vperm.slane %v8022, 0
        %v8226 = vmul.f32 %v8214, %v8224
        %v8227 = vmul.f32 %v8215, %v8224
        %v8228 = vmul.f32 %v8216, %v8224
        %v8229 = vmul.f32 %v8217, %v8224
        %v8230 = vmul.f32 %v8218, %v8224
        %v8231 = vmul.f32 %v8219, %v8224
        %v8232 = vmul.f32 %v8220, %v8224
        %v8233 = vmul.f32 %v8221, %v8224
        %v8234 = vmul.f32 %v8222, %v8224
        %v8236 = vperm.slane %v8024, 0
        %v8238 = vadd.f32 %v8226, %v8236
        %v8239 = vadd.f32 %v8227, %v8236
        %v8240 = vadd.f32 %v8228, %v8236
        %v8241 = vadd.f32 %v8229, %v8236
        %v8242 = vadd.f32 %v8230, %v8236
        %v8243 = vadd.f32 %v8231, %v8236
        %v8244 = vadd.f32 %v8232, %v8236
        %v8245 = vadd.f32 %v8233, %v8236
        %v8246 = vadd.f32 %v8234, %v8236
        %v8247 = vpack.c.bf16 %v8239, %v8238
        %v8248 = vpack.c.bf16 %v8241, %v8240
        %v8249 = vpack.c.bf16 %v8243, %v8242
        %v8250 = vpack.c.bf16 %v8245, %v8244
        %v8251 = vpack.c.bf16 %v8246, %v8246
        %s8252 = scalar_lea.vmem %s13, 16
        %v8253 = vld [vmem:[%s8252] sm:$0xf]
        %v8254 = vld [vmem:[%s8252 + $0x4] sm:$0xf]
        %v8255 = vld [vmem:[%s8252 + $0x8] sm:$0xf]
        %v8256 = vld [vmem:[%s8252 + $0xc] sm:$0xf]
        %s8257 = scalar_lea.vmem %s14, 1
        %v8258 = vld [vmem:[%s8257] sm:$0x1]
        %v8260 = vperm.slane %v8258, 0
        %v8266 = vunpack.c.l.b16 %v8253
        %v8267 = vunpack.c.l.b16 %v8254
        %v8268 = vunpack.c.l.b16 %v8255
        %v8269 = vunpack.c.l.b16 %v8256
        %v8270 = vpack.c.b16 %v8267, %v8266
        %v8271 = vpack.c.b16 %v8269, %v8268
        %v8275 = vsel %vm839, %v8247, 0
        %v8278 = vsel %vm839, %v8248, 0
        %v8281 = vsel %vm839, %v8249, 0
        %v8284 = vsel %vm839, %v8250, 0
        %v8287 = vsel %vm839, %v8251, 0
        %8289 = vmatpush.bf16.msra.mxu0 0
        %8290 = vmatpush.bf16.msra.mxu0 0
        %8291 = vmatpush.bf16.msra.mxu0 0
        %8292 = vmatpush.bf16.msra.mxu0 0
        %8293 = vmatpush.bf16.msra.mxu0 0
        %8294 = vmatpush.bf16.msra.mxu0 0
        %8295 = vmatpush.bf16.msra.mxu0 %v8271
        %8296 = vmatpush.bf16.msra.mxu0 %v8270
        %8297 = vmatmul.bf16.gmra.mxu0 %v8275
        %v8298 = vpop.f32.mrf.mxu0
        %v8299 = vadd.f32 %v8260, %v8298
        %v8300 = vpop.f32.mrf.mxu0
        %v8301 = vadd.f32 %v8260, %v8300
        %8302 = vmatmul.bf16.gmra.mxu0 %v8278
        %v8303 = vpop.f32.mrf.mxu0
        %v8304 = vadd.f32 %v8260, %v8303
        %v8305 = vpop.f32.mrf.mxu0
        %v8306 = vadd.f32 %v8260, %v8305
        %8307 = vmatmul.bf16.gmra.mxu0 %v8281
        %v8308 = vpop.f32.mrf.mxu0
        %v8309 = vadd.f32 %v8260, %v8308
        %v8310 = vpop.f32.mrf.mxu0
        %v8311 = vadd.f32 %v8260, %v8310
        %8312 = vmatmul.bf16.gmra.mxu0 %v8284
        %v8313 = vpop.f32.mrf.mxu0
        %v8314 = vadd.f32 %v8260, %v8313
        %v8315 = vpop.f32.mrf.mxu0
        %v8316 = vadd.f32 %v8260, %v8315
        %8317 = vmatmul.bf16.gmra.mxu0 %v8287
        %v8318 = vpop.f32.mrf.mxu0
        %v8319 = vadd.f32 %v8260, %v8318
        %v8320 = vpop.f32.mrf.mxu0
        %8321 = vdwg.mxu0
        %v8322 = vmul.f32 %v8299, %v8299
        %v8323 = vmul.f32 %v8301, %v8301
        %v8324 = vmul.f32 %v8304, %v8304
        %v8325 = vmul.f32 %v8306, %v8306
        %v8326 = vmul.f32 %v8309, %v8309
        %v8327 = vmul.f32 %v8311, %v8311
        %v8328 = vmul.f32 %v8314, %v8314
        %v8329 = vmul.f32 %v8316, %v8316
        %v8330 = vmul.f32 %v8319, %v8319
        %v8331 = vmul.f32 %v8299, %v8322
        %v8332 = vmul.f32 %v8301, %v8323
        %v8333 = vmul.f32 %v8304, %v8324
        %v8334 = vmul.f32 %v8306, %v8325
        %v8335 = vmul.f32 %v8309, %v8326
        %v8336 = vmul.f32 %v8311, %v8327
        %v8337 = vmul.f32 %v8314, %v8328
        %v8338 = vmul.f32 %v8316, %v8329
        %v8339 = vmul.f32 %v8319, %v8330
        %v8340 = vmul.f32 %v8331, 0.044715
        %v8341 = vmul.f32 %v8332, 0.044715
        %v8342 = vmul.f32 %v8333, 0.044715
        %v8343 = vmul.f32 %v8334, 0.044715
        %v8344 = vmul.f32 %v8335, 0.044715
        %v8345 = vmul.f32 %v8336, 0.044715
        %v8346 = vmul.f32 %v8337, 0.044715
        %v8347 = vmul.f32 %v8338, 0.044715
        %v8348 = vmul.f32 %v8339, 0.044715
        %v8349 = vadd.f32 %v8299, %v8340
        %v8350 = vadd.f32 %v8301, %v8341
        %v8351 = vadd.f32 %v8304, %v8342
        %v8352 = vadd.f32 %v8306, %v8343
        %v8353 = vadd.f32 %v8309, %v8344
        %v8354 = vadd.f32 %v8311, %v8345
        %v8355 = vadd.f32 %v8314, %v8346
        %v8356 = vadd.f32 %v8316, %v8347
        %v8357 = vadd.f32 %v8319, %v8348
        %v8358 = vmul.f32 %v8349, 0.7978846
        %v8359 = vmul.f32 %v8350, 0.7978846
        %v8360 = vmul.f32 %v8351, 0.7978846
        %v8361 = vmul.f32 %v8352, 0.7978846
        %v8362 = vmul.f32 %v8353, 0.7978846
        %v8363 = vmul.f32 %v8354, 0.7978846
        %v8364 = vmul.f32 %v8355, 0.7978846
        %v8365 = vmul.f32 %v8356, 0.7978846
        %v8366 = vmul.f32 %v8357, 0.7978846
        %v8367 = vtanh.pop %v8358
        %v8368 = vtanh.pop %v8359
        %v8369 = vtanh.pop %v8360
        %v8370 = vtanh.pop %v8361
        %v8371 = vtanh.pop %v8362
        %v8372 = vtanh.pop %v8363
        %v8373 = vtanh.pop %v8364
        %v8374 = vtanh.pop %v8365
        %v8375 = vtanh.pop %v8366
        %v8376 = vadd.f32 %v8367, 1.0
        %v8377 = vadd.f32 %v8368, 1.0
        %v8378 = vadd.f32 %v8369, 1.0
        %v8379 = vadd.f32 %v8370, 1.0
        %v8380 = vadd.f32 %v8371, 1.0
        %v8381 = vadd.f32 %v8372, 1.0
        %v8382 = vadd.f32 %v8373, 1.0
        %v8383 = vadd.f32 %v8374, 1.0
        %v8384 = vadd.f32 %v8375, 1.0
        %v8385 = vmul.f32 %v8376, 0.5
        %v8386 = vmul.f32 %v8377, 0.5
        %v8387 = vmul.f32 %v8378, 0.5
        %v8388 = vmul.f32 %v8379, 0.5
        %v8389 = vmul.f32 %v8380, 0.5
        %v8390 = vmul.f32 %v8381, 0.5
        %v8391 = vmul.f32 %v8382, 0.5
        %v8392 = vmul.f32 %v8383, 0.5
        %v8393 = vmul.f32 %v8384, 0.5
        %v8394 = vmul.f32 %v8299, %v8385
        %v8395 = vmul.f32 %v8301, %v8386
        %v8396 = vmul.f32 %v8304, %v8387
        %v8397 = vmul.f32 %v8306, %v8388
        %v8398 = vmul.f32 %v8309, %v8389
        %v8399 = vmul.f32 %v8311, %v8390
        %v8400 = vmul.f32 %v8314, %v8391
        %v8401 = vmul.f32 %v8316, %v8392
        %v8402 = vmul.f32 %v8319, %v8393
        %v8403 = vpack.c.bf16 %v8395, %v8394
        %v8404 = vpack.c.bf16 %v8397, %v8396
        %v8405 = vpack.c.bf16 %v8399, %v8398
        %v8406 = vpack.c.bf16 %v8401, %v8400
        %v8407 = vpack.c.bf16 %v8402, %v8402
        %s8408 = scalar_lea.vmem %s15, 64
        %v8409 = vld [vmem:[%s8408] sm:$0xf]
        %v8410 = vld [vmem:[%s8408 + $0x4] sm:$0xf]
        %v8411 = vld [vmem:[%s8408 + $0x8] sm:$0xf]
        %v8412 = vld [vmem:[%s8408 + $0xc] sm:$0xf]
        %v8413 = vld [vmem:[%s8408 + $0x10] sm:$0xf]
        %v8414 = vld [vmem:[%s8408 + $0x14] sm:$0xf]
        %v8415 = vld [vmem:[%s8408 + $0x18] sm:$0xf]
        %v8416 = vld [vmem:[%s8408 + $0x1c] sm:$0xf]
        %v8417 = vld [vmem:[%s8408 + $0x20] sm:$0xf]
        %v8418 = vld [vmem:[%s8408 + $0x24] sm:$0xf]
        %v8419 = vld [vmem:[%s8408 + $0x28] sm:$0xf]
        %v8420 = vld [vmem:[%s8408 + $0x2c] sm:$0xf]
        %v8421 = vld [vmem:[%s8408 + $0x30] sm:$0xf]
        %v8422 = vld [vmem:[%s8408 + $0x34] sm:$0xf]
        %v8423 = vld [vmem:[%s8408 + $0x38] sm:$0xf]
        %v8424 = vld [vmem:[%s8408 + $0x3c] sm:$0xf]
        %s8425 = scalar_lea.vmem %s16, 1
        %v8426 = vld [vmem:[%s8425] sm:$0x1]
        %v8428 = vperm.slane %v8426, 0
        %v8446 = vunpack.c.l.b16 %v8409
        %v8447 = vunpack.c.l.b16 %v8410
        %v8448 = vunpack.c.l.b16 %v8411
        %v8449 = vunpack.c.l.b16 %v8412
        %v8450 = vunpack.c.l.b16 %v8413
        %v8451 = vunpack.c.l.b16 %v8414
        %v8452 = vunpack.c.l.b16 %v8415
        %v8453 = vunpack.c.l.b16 %v8416
        %v8454 = vunpack.c.l.b16 %v8417
        %v8455 = vunpack.c.l.b16 %v8418
        %v8456 = vunpack.c.l.b16 %v8419
        %v8457 = vunpack.c.l.b16 %v8420
        %v8458 = vunpack.c.l.b16 %v8421
        %v8459 = vunpack.c.l.b16 %v8422
        %v8460 = vunpack.c.l.b16 %v8423
        %v8461 = vunpack.c.l.b16 %v8424
        %v8462 = vpack.c.b16 %v8447, %v8446
        %v8463 = vpack.c.b16 %v8449, %v8448
        %v8464 = vpack.c.b16 %v8451, %v8450
        %v8465 = vpack.c.b16 %v8453, %v8452
        %v8466 = vpack.c.b16 %v8455, %v8454
        %v8467 = vpack.c.b16 %v8457, %v8456
        %v8468 = vpack.c.b16 %v8459, %v8458
        %v8469 = vpack.c.b16 %v8461, %v8460
        %8478 = vmatpush.bf16.msra.mxu0 %v8469
        %8479 = vmatpush.bf16.msra.mxu0 %v8468
        %8480 = vmatpush.bf16.msra.mxu0 %v8467
        %8481 = vmatpush.bf16.msra.mxu0 %v8466
        %8482 = vmatpush.bf16.msra.mxu0 %v8465
        %8483 = vmatpush.bf16.msra.mxu0 %v8464
        %8484 = vmatpush.bf16.msra.mxu0 %v8463
        %8485 = vmatpush.bf16.msra.mxu0 %v8462
        %8486 = vmatmul.bf16.gmra.mxu0 %v8403
        %v8487 = vpop.f32.mrf.mxu0
        %v8488 = vadd.f32 %v8428, %v8487
        %v8489 = vpop.f32.mrf.mxu0
        %v8490 = vadd.f32 %v8428, %v8489
        %8491 = vmatmul.bf16.gmra.mxu0 %v8404
        %v8492 = vpop.f32.mrf.mxu0
        %v8493 = vadd.f32 %v8428, %v8492
        %v8494 = vpop.f32.mrf.mxu0
        %v8495 = vadd.f32 %v8428, %v8494
        %8496 = vmatmul.bf16.gmra.mxu0 %v8405
        %v8497 = vpop.f32.mrf.mxu0
        %v8498 = vadd.f32 %v8428, %v8497
        %v8499 = vpop.f32.mrf.mxu0
        %v8500 = vadd.f32 %v8428, %v8499
        %8501 = vmatmul.bf16.gmra.mxu0 %v8406
        %v8502 = vpop.f32.mrf.mxu0
        %v8503 = vadd.f32 %v8428, %v8502
        %v8504 = vpop.f32.mrf.mxu0
        %v8505 = vadd.f32 %v8428, %v8504
        %8506 = vmatmul.bf16.gmra.mxu0 %v8407
        %v8507 = vpop.f32.mrf.mxu0
        %v8508 = vadd.f32 %v8428, %v8507
        %v8509 = vpop.f32.mrf.mxu0
        %8510 = vdwg.mxu0
        %v8511 = vadd.f32 %v8012, %v8488
        %v8512 = vadd.f32 %v8013, %v8490
        %v8513 = vadd.f32 %v8014, %v8493
        %v8514 = vadd.f32 %v8015, %v8495
        %v8515 = vadd.f32 %v8016, %v8498
        %v8516 = vadd.f32 %v8017, %v8500
        %v8517 = vadd.f32 %v8018, %v8503
        %v8518 = vadd.f32 %v8019, %v8505
        %v8519 = vadd.f32 %v8020, %v8508
        %v8520 = vld [vmem:[%s17] sm:$0x1]
        %v8521 = vld [vmem:[%s18] sm:$0x1]
        %v8522 = vsel %vm839, %v8511, 0.0
        %8523 = vadd.xlane.f32.xlu0 %v8522
        %v8524 = vpop.xlane.xlu0 %8523
        %v8525 = vsel %vm839, %v8512, 0.0
        %8526 = vadd.xlane.f32.xlu0 %v8525
        %v8527 = vpop.xlane.xlu0 %8526
        %v8528 = vsel %vm839, %v8513, 0.0
        %8529 = vadd.xlane.f32.xlu0 %v8528
        %v8530 = vpop.xlane.xlu0 %8529
        %v8531 = vsel %vm839, %v8514, 0.0
        %8532 = vadd.xlane.f32.xlu0 %v8531
        %v8533 = vpop.xlane.xlu0 %8532
        %v8534 = vsel %vm839, %v8515, 0.0
        %8535 = vadd.xlane.f32.xlu0 %v8534
        %v8536 = vpop.xlane.xlu0 %8535
        %v8537 = vsel %vm839, %v8516, 0.0
        %8538 = vadd.xlane.f32.xlu0 %v8537
        %v8539 = vpop.xlane.xlu0 %8538
        %v8540 = vsel %vm839, %v8517, 0.0
        %8541 = vadd.xlane.f32.xlu0 %v8540
        %v8542 = vpop.xlane.xlu0 %8541
        %v8543 = vsel %vm839, %v8518, 0.0
        %8544 = vadd.xlane.f32.xlu0 %v8543
        %v8545 = vpop.xlane.xlu0 %8544
        %v8546 = vsel %vm864, %v8519, 0.0
        %8547 = vadd.xlane.f32.xlu0 %v8546
        %v8548 = vpop.xlane.xlu0 %8547
        %v8549 = vmul.f32 %v8524, %v874
        %v8550 = vmul.f32 %v8527, %v874
        %v8551 = vmul.f32 %v8530, %v874
        %v8552 = vmul.f32 %v8533, %v874
        %v8553 = vmul.f32 %v8536, %v874
        %v8554 = vmul.f32 %v8539, %v874
        %v8555 = vmul.f32 %v8542, %v874
        %v8556 = vmul.f32 %v8545, %v874
        %v8557 = vmul.f32 %v8548, %v874
        %v8558 = vsub.f32 %v8511, %v8549
        %v8559 = vsub.f32 %v8512, %v8550
        %v8560 = vsub.f32 %v8513, %v8551
        %v8561 = vsub.f32 %v8514, %v8552
        %v8562 = vsub.f32 %v8515, %v8553
        %v8563 = vsub.f32 %v8516, %v8554
        %v8564 = vsub.f32 %v8517, %v8555
        %v8565 = vsub.f32 %v8518, %v8556
        %v8566 = vsub.f32 %v8519, %v8557
        %v8567 = vmul.f32 %v8558, %v8558
        %v8568 = vmul.f32 %v8559, %v8559
        %v8569 = vmul.f32 %v8560, %v8560
        %v8570 = vmul.f32 %v8561, %v8561
        %v8571 = vmul.f32 %v8562, %v8562
        %v8572 = vmul.f32 %v8563, %v8563
        %v8573 = vmul.f32 %v8564, %v8564
        %v8574 = vmul.f32 %v8565, %v8565
        %v8575 = vmul.f32 %v8566, %v8566
        %v8576 = vsel %vm839, %v8567, 0.0
        %8577 = vadd.xlane.f32.xlu0 %v8576
        %v8578 = vpop.xlane.xlu0 %8577
        %v8579 = vsel %vm839, %v8568, 0.0
        %8580 = vadd.xlane.f32.xlu0 %v8579
        %v8581 = vpop.xlane.xlu0 %8580
        %v8582 = vsel %vm839, %v8569, 0.0
        %8583 = vadd.xlane.f32.xlu0 %v8582
        %v8584 = vpop.xlane.xlu0 %8583
        %v8585 = vsel %vm839, %v8570, 0.0
        %8586 = vadd.xlane.f32.xlu0 %v8585
        %v8587 = vpop.xlane.xlu0 %8586
        %v8588 = vsel %vm839, %v8571, 0.0
        %8589 = vadd.xlane.f32.xlu0 %v8588
        %v8590 = vpop.xlane.xlu0 %8589
        %v8591 = vsel %vm839, %v8572, 0.0
        %8592 = vadd.xlane.f32.xlu0 %v8591
        %v8593 = vpop.xlane.xlu0 %8592
        %v8594 = vsel %vm839, %v8573, 0.0
        %8595 = vadd.xlane.f32.xlu0 %v8594
        %v8596 = vpop.xlane.xlu0 %8595
        %v8597 = vsel %vm839, %v8574, 0.0
        %8598 = vadd.xlane.f32.xlu0 %v8597
        %v8599 = vpop.xlane.xlu0 %8598
        %v8600 = vsel %vm864, %v8575, 0.0
        %8601 = vadd.xlane.f32.xlu0 %v8600
        %v8602 = vpop.xlane.xlu0 %8601
        %v8603 = vmul.f32 %v8578, %v874
        %v8604 = vmul.f32 %v8581, %v874
        %v8605 = vmul.f32 %v8584, %v874
        %v8606 = vmul.f32 %v8587, %v874
        %v8607 = vmul.f32 %v8590, %v874
        %v8608 = vmul.f32 %v8593, %v874
        %v8609 = vmul.f32 %v8596, %v874
        %v8610 = vmul.f32 %v8599, %v874
        %v8611 = vmul.f32 %v8602, %v874
        %v8612 = vadd.f32 %v8603, 1e-05
        %v8613 = vadd.f32 %v8604, 1e-05
        %v8614 = vadd.f32 %v8605, 1e-05
        %v8615 = vadd.f32 %v8606, 1e-05
        %v8616 = vadd.f32 %v8607, 1e-05
        %v8617 = vadd.f32 %v8608, 1e-05
        %v8618 = vadd.f32 %v8609, 1e-05
        %v8619 = vadd.f32 %v8610, 1e-05
        %v8620 = vadd.f32 %v8611, 1e-05
        %v8621 = vrsqrt.pop %v8612
        %v8622 = vmul.f32 %v8621, %v8612
        %v8623 = vmul.f32 %v8622, %v8621
        %v8624 = vmul.f32 0.5, %v8623
        %v8625 = vsub.f32 1.5, %v8624
        %v8626 = vmul.f32 %v8621, %v8625
        %vm8627 = vweird.f32 %v8612
        %vm8628 = vweird.f32 %v8621
        %vm8629 = vmor %vm8627, %vm8628
        %v8630 = vsel %vm8629, %v8621, %v8626
        %v8631 = vrsqrt.pop %v8613
        %v8632 = vmul.f32 %v8631, %v8613
        %v8633 = vmul.f32 %v8632, %v8631
        %v8634 = vmul.f32 0.5, %v8633
        %v8635 = vsub.f32 1.5, %v8634
        %v8636 = vmul.f32 %v8631, %v8635
        %vm8637 = vweird.f32 %v8613
        %vm8638 = vweird.f32 %v8631
        %vm8639 = vmor %vm8637, %vm8638
        %v8640 = vsel %vm8639, %v8631, %v8636
        %v8641 = vrsqrt.pop %v8614
        %v8642 = vmul.f32 %v8641, %v8614
        %v8643 = vmul.f32 %v8642, %v8641
        %v8644 = vmul.f32 0.5, %v8643
        %v8645 = vsub.f32 1.5, %v8644
        %v8646 = vmul.f32 %v8641, %v8645
        %vm8647 = vweird.f32 %v8614
        %vm8648 = vweird.f32 %v8641
        %vm8649 = vmor %vm8647, %vm8648
        %v8650 = vsel %vm8649, %v8641, %v8646
        %v8651 = vrsqrt.pop %v8615
        %v8652 = vmul.f32 %v8651, %v8615
        %v8653 = vmul.f32 %v8652, %v8651
        %v8654 = vmul.f32 0.5, %v8653
        %v8655 = vsub.f32 1.5, %v8654
        %v8656 = vmul.f32 %v8651, %v8655
        %vm8657 = vweird.f32 %v8615
        %vm8658 = vweird.f32 %v8651
        %vm8659 = vmor %vm8657, %vm8658
        %v8660 = vsel %vm8659, %v8651, %v8656
        %v8661 = vrsqrt.pop %v8616
        %v8662 = vmul.f32 %v8661, %v8616
        %v8663 = vmul.f32 %v8662, %v8661
        %v8664 = vmul.f32 0.5, %v8663
        %v8665 = vsub.f32 1.5, %v8664
        %v8666 = vmul.f32 %v8661, %v8665
        %vm8667 = vweird.f32 %v8616
        %vm8668 = vweird.f32 %v8661
        %vm8669 = vmor %vm8667, %vm8668
        %v8670 = vsel %vm8669, %v8661, %v8666
        %v8671 = vrsqrt.pop %v8617
        %v8672 = vmul.f32 %v8671, %v8617
        %v8673 = vmul.f32 %v8672, %v8671
        %v8674 = vmul.f32 0.5, %v8673
        %v8675 = vsub.f32 1.5, %v8674
        %v8676 = vmul.f32 %v8671, %v8675
        %vm8677 = vweird.f32 %v8617
        %vm8678 = vweird.f32 %v8671
        %vm8679 = vmor %vm8677, %vm8678
        %v8680 = vsel %vm8679, %v8671, %v8676
        %v8681 = vrsqrt.pop %v8618
        %v8682 = vmul.f32 %v8681, %v8618
        %v8683 = vmul.f32 %v8682, %v8681
        %v8684 = vmul.f32 0.5, %v8683
        %v8685 = vsub.f32 1.5, %v8684
        %v8686 = vmul.f32 %v8681, %v8685
        %vm8687 = vweird.f32 %v8618
        %vm8688 = vweird.f32 %v8681
        %vm8689 = vmor %vm8687, %vm8688
        %v8690 = vsel %vm8689, %v8681, %v8686
        %v8691 = vrsqrt.pop %v8619
        %v8692 = vmul.f32 %v8691, %v8619
        %v8693 = vmul.f32 %v8692, %v8691
        %v8694 = vmul.f32 0.5, %v8693
        %v8695 = vsub.f32 1.5, %v8694
        %v8696 = vmul.f32 %v8691, %v8695
        %vm8697 = vweird.f32 %v8619
        %vm8698 = vweird.f32 %v8691
        %vm8699 = vmor %vm8697, %vm8698
        %v8700 = vsel %vm8699, %v8691, %v8696
        %v8701 = vrsqrt.pop %v8620
        %v8702 = vmul.f32 %v8701, %v8620
        %v8703 = vmul.f32 %v8702, %v8701
        %v8704 = vmul.f32 0.5, %v8703
        %v8705 = vsub.f32 1.5, %v8704
        %v8706 = vmul.f32 %v8701, %v8705
        %vm8707 = vweird.f32 %v8620
        %vm8708 = vweird.f32 %v8701
        %vm8709 = vmor %vm8707, %vm8708
        %v8710 = vsel %vm8709, %v8701, %v8706
        %v8711 = vmul.f32 %v8558, %v8630
        %v8712 = vmul.f32 %v8559, %v8640
        %v8713 = vmul.f32 %v8560, %v8650
        %v8714 = vmul.f32 %v8561, %v8660
        %v8715 = vmul.f32 %v8562, %v8670
        %v8716 = vmul.f32 %v8563, %v8680
        %v8717 = vmul.f32 %v8564, %v8690
        %v8718 = vmul.f32 %v8565, %v8700
        %v8719 = vmul.f32 %v8566, %v8710
        %v8721 = vperm.slane %v8520, 0
        %v8723 = vmul.f32 %v8711, %v8721
        %v8724 = vmul.f32 %v8712, %v8721
        %v8725 = vmul.f32 %v8713, %v8721
        %v8726 = vmul.f32 %v8714, %v8721
        %v8727 = vmul.f32 %v8715, %v8721
        %v8728 = vmul.f32 %v8716, %v8721
        %v8729 = vmul.f32 %v8717, %v8721
        %v8730 = vmul.f32 %v8718, %v8721
        %v8731 = vmul.f32 %v8719, %v8721
        %v8733 = vperm.slane %v8521, 0
        %v8735 = vadd.f32 %v8723, %v8733
        %v8736 = vadd.f32 %v8724, %v8733
        %v8737 = vadd.f32 %v8725, %v8733
        %v8738 = vadd.f32 %v8726, %v8733
        %v8739 = vadd.f32 %v8727, %v8733
        %v8740 = vadd.f32 %v8728, %v8733
        %v8741 = vadd.f32 %v8729, %v8733
        %v8742 = vadd.f32 %v8730, %v8733
        %v8743 = vadd.f32 %v8731, %v8733
        %v8744 = vld [vmem:[%s2] sm:$0xf]
        %vm8745 = vcmask 556032
        %v8747 = vsel %vm8745, %v8744, 0
        %vm8749 = vcmask 1043456
        %v8751 = vsel %vm8749, %v8743, 0
        %8753 = vmatpush.msra.mxu0 0.0
        %8754 = vmatpush.msra.mxu0 0.0
        %8755 = vmatpush.msra.mxu0 0.0
        %8756 = vmatpush.msra.mxu0 0.0
        %8757 = vmatpush.msra.mxu0 0.0
        %8758 = vmatpush.msra.mxu0 0.0
        %8759 = vmatpush.msra.mxu0 0.0
        %8760 = vmatpush.msra.mxu0 %v8751
        %8761 = vmatpush.msra.mxu0 %v8742
        %8762 = vmatpush.msra.mxu0 %v8741
        %8763 = vmatpush.msra.mxu0 %v8740
        %8764 = vmatpush.msra.mxu0 %v8739
        %8765 = vmatpush.msra.mxu0 %v8738
        %8766 = vmatpush.msra.mxu0 %v8737
        %8767 = vmatpush.msra.mxu0 %v8736
        %8768 = vmatpush.msra.mxu0 %v8735
        %8769 = vmatmul.f32.gmra.mxu0 %v8747
        %v8770 = vpop.f32.mrf.mxu0
        %v8771 = vadd.f32 0.0, %v8770
        %8772 = vdwg.mxu0
        %v8773 = vld [vmem:[%s19] sm:$0x1]
        %v8774 = vld [vmem:[%s20] sm:$0x1]
        %v8775 = vsel %vm864, %v8771, 0.0
        %8776 = vadd.xlane.f32.xlu0 %v8775
        %v8777 = vpop.xlane.xlu0 %8776
        %v8778 = vmul.f32 %v8777, %v874
        %v8779 = vsub.f32 %v8771, %v8778
        %v8780 = vmul.f32 %v8779, %v8779
        %v8781 = vsel %vm864, %v8780, 0.0
        %8782 = vadd.xlane.f32.xlu0 %v8781
        %v8783 = vpop.xlane.xlu0 %8782
        %v8784 = vmul.f32 %v8783, %v874
        %v8785 = vadd.f32 %v8784, 1e-05
        %v8786 = vrsqrt.pop %v8785
        %v8787 = vmul.f32 %v8786, %v8785
        %v8788 = vmul.f32 %v8787, %v8786
        %v8789 = vmul.f32 0.5, %v8788
        %v8790 = vsub.f32 1.5, %v8789
        %v8791 = vmul.f32 %v8786, %v8790
        %vm8792 = vweird.f32 %v8785
        %vm8793 = vweird.f32 %v8786
        %vm8794 = vmor %vm8792, %vm8793
        %v8795 = vsel %vm8794, %v8786, %v8791
        %v8796 = vmul.f32 %v8779, %v8795
        %v8798 = vperm.slane %v8773, 0
        %v8800 = vmul.f32 %v8796, %v8798
        %v8802 = vperm.slane %v8774, 0
        %v8804 = vadd.f32 %v8800, %v8802
        %v8805 = vpack.c.bf16 %v8804, %v8804
        %v8806 = vld [vmem:[%s21] sm:$0xf]
        %v8807 = vld [vmem:[%s21 + $0x4] sm:$0xf]
        %v8808 = vld [vmem:[%s21 + $0x8] sm:$0xf]
        %v8809 = vld [vmem:[%s21 + $0xc] sm:$0xf]
        %v8810 = vld [vmem:[%s22] sm:$0x1]
        %v8812 = vperm.slane %v8810, 0
        %v8818 = vunpack.c.l.b16 %v8806
        %v8819 = vunpack.c.l.b16 %v8807
        %v8820 = vunpack.c.l.b16 %v8808
        %v8821 = vunpack.c.l.b16 %v8809
        %v8822 = vpack.c.b16 %v8819, %v8818
        %v8823 = vpack.c.b16 %v8821, %v8820
        %v8827 = vsel %vm839, %v8805, 0
        %8829 = vmatpush.bf16.msra.mxu0 0
        %8830 = vmatpush.bf16.msra.mxu0 0
        %8831 = vmatpush.bf16.msra.mxu0 0
        %8832 = vmatpush.bf16.msra.mxu0 0
        %8833 = vmatpush.bf16.msra.mxu0 0
        %8834 = vmatpush.bf16.msra.mxu0 0
        %8835 = vmatpush.bf16.msra.mxu0 %v8823
        %8836 = vmatpush.bf16.msra.mxu0 %v8822
        %8837 = vmatmul.bf16.gmra.mxu0 %v8827
        %v8838 = vpop.f32.mrf.mxu0
        %v8839 = vadd.f32 %v8812, %v8838
        %v8840 = vpop.f32.mrf.mxu0
        %8841 = vdwg.mxu0
        %8842 = vst [vmem:[%s703] sm:$0xf] %v8839
        %s8843 = sand.u32 %s533, 1
        %s8844 = scalar_lea.sflag [#allocation4], %s8843
        %s8845 = sand.u32 %s533, 1
        %s8846 = smul.addr %s8845, 4
        %s8847 = scalar_lea.vmem [#allocation3], %s8846
        // Predicated region
        $region113: #{chess_piece_predictor_forward.1} parent=111 // pred_check
          %p8848 = pneg %p543
        $region114: #{chess_piece_predictor_forward.1} parent=111 // pred_check_branch
          %8850 = sbr.rel (%p8848) target = $region116
        $region115: #{chess_piece_predictor_forward.1} parent=111 // pred_region
          %8852 = vsyncadd %s8844, 0
          %s8853 = smul.addr %s37, 4
          %s8854 = scalar_lea.hbm %s23, %s8853
          %s8856 = sshll.u32 %s8847, 4
          %s8857 = int_to_ptr.vmem [resolvable:$true] %s8856
          %s8858 = sshll.u32 %s8854, 4
          %s8859 = int_to_ptr.hbm [resolvable:$true] %s8858
          %8861 = dma.vmem_to_hbm [thread:$0]  %s8857, 64, %s8859, %s8844
        $region116: #{chess_piece_predictor_forward.1} parent=111 // pred_fallthru
          _
      $region112: #{chess_piece_predictor_forward.1} parent=5 // pred_fallthru
        _
      %p8862 = scmp.le.s32.totalorder 2, %s32
      // Predicated region
      $region117: #{chess_piece_predictor_forward.1} parent=5 // pred_check
        %p8863 = pneg %p8862
      $region118: #{chess_piece_predictor_forward.1} parent=5 // pred_check_branch
        %8865 = sbr.rel (%p8863) target = $region120
      $region119: #{chess_piece_predictor_forward.1} parent=5 // pred_region
        %s8866 = ssub.s32 %s32, 2
        // Predicated region
        $region121: #{chess_piece_predictor_forward.1} parent=119 // pred_check
          %p8867 = pneg %p549
        $region122: #{chess_piece_predictor_forward.1} parent=119 // pred_check_branch
          %8869 = sbr.rel (%p8867) target = $region124
        $region123: #{chess_piece_predictor_forward.1} parent=119 // pred_region
          %s8870 = sand.u32 %s534, 1
          %s8871 = scalar_lea.sflag [#allocation4], %s8870
          %s8872 = sand.u32 %s534, 1
          %s8873 = smul.addr %s8872, 4
          %s8874 = scalar_lea.vmem [#allocation3], %s8873
          %8876 = dma.done %s8871, 64
        $region124: #{chess_piece_predictor_forward.1} parent=119 // pred_fallthru
          _
      $region120: #{chess_piece_predictor_forward.1} parent=5 // pred_fallthru
        _
    $region6: #{chess_piece_predictor_forward.1} parent=1 // loop_footer
      %s36 = sadd.s32 1, %s32
    $region7: #{chess_piece_predictor_forward.1} parent=1 // loop_footer_branch
      %31 = sbr.rel target = $region3
    $region8: #{chess_piece_predictor_forward.1} parent=1 // loop_exit
      _
    %8877 = vsyncpa [#allocation4], 1
    %s8878 = scalar_lea.sflag [#allocation4], 1
    %8879 = vsyncpa %s8878, 1

</llo_original>
